<compile_context>
chip_gen: v5e
topology: v5e:2x2
jax: 0.10.0
libtpu: 0.0.40
codegen_flags: <defaults>
</compile_context>

<pallas_src>
import math

import jax
import jax.numpy as jnp
from jax.experimental import pallas as pl
from jax.experimental.pallas import tpu as pltpu

embed_size = 100
noise_dim = 100

_VMEM_LIMIT = 64 * 1024 * 1024  # raise v5e's 16 MiB default; fits v6e/v7x headroom

# 1-D sub-pixel phase taps for ConvTranspose2d(k=4, s=2, p=1):
#   out[2i]   = w[3]*x[i-1] + w[1]*x[i]
#   out[2i+1] = w[2]*x[i]   + w[0]*x[i+1]
_TAPS_1D = {0: ((-1, 3), (0, 1)), 1: ((0, 2), (1, 0))}

# rows of the (5, M) boundary-mask array
_ROW_VALID, _ROW_H_NEG, _ROW_H_POS, _ROW_W_NEG, _ROW_W_POS = range(5)


# ---------------------------------------------------------------------------
# Pallas kernels
# ---------------------------------------------------------------------------
def _gemm_kernel(a_ref, w_ref, o_ref):
    # (N, K) @ (K, tile) -> (N, tile); bf16 operands, f32 MXU accumulation.
    o_ref[...] = jnp.dot(a_ref[...], w_ref[...],
                         preferred_element_type=jnp.float32).astype(o_ref.dtype)


def _make_convT_kernel(tap_cfg, apply_act, final):
    """ConvTranspose2d(k=4, s=2, p=1) over one lane tile of whole images.

    Optionally applies the previous block's BN affine + ReLU to the resident
    (Cin, Mt) tile, gathers the 2x2 taps of all 4 output phases in-register
    (jnp.roll + boundary masks; no im2col), then runs 4 bf16 MXU GEMMs with f32
    accumulation.  Non-final variant also emits per-tile partial BN sums.
    """

    def kernel(*refs):
        it = iter(refs)
        x_ref = next(it)
        msk_ref = next(it)
        wm_ref = next(it)
        scale_ref = shift_ref = bias_ref = None
        if apply_act:
            scale_ref = next(it)
            shift_ref = next(it)
        if final:
            bias_ref = next(it)
            y_ref = next(it)
            s_ref = q_ref = None
        else:
            y_ref = next(it)
            s_ref = next(it)
            q_ref = next(it)

        msk = msk_ref[...]                                  # (5, Mt) bf16 {0,1}
        x = x_ref[...]                                      # (Cin, Mt) bf16
        if apply_act:
            # Fused BN (previous block's batch stats) + ReLU, f32 math.
            xf = x.astype(jnp.float32) * scale_ref[...] + shift_ref[...]
            x = jnp.maximum(xf, 0.0).astype(jnp.bfloat16)
        xa = x * msk[_ROW_VALID:_ROW_VALID + 1, :]          # zero batch-padding lanes

        tot_s = tot_q = None
        for q, taps in enumerate(tap_cfg):
            acc = None
            for t, (off, rows) in enumerate(taps):
                # tap value at lane m is xa[m + off]; wrap-around lanes are
                # exactly the ones zeroed by the image-boundary masks below.
                tap = xa if off == 0 else jnp.roll(xa, -off, axis=-1)
                for r in rows:
                    tap = tap * msk[r:r + 1, :]
                contrib = jnp.dot(wm_ref[q, t], tap,
                                  preferred_element_type=jnp.float32)
                acc = contrib if acc is None else acc + contrib
            if final:
                y_ref[q] = jnp.tanh(acc + bias_ref[...]).astype(y_ref.dtype)
            else:
                y_ref[q] = acc.astype(y_ref.dtype)          # bf16 intermediate
                ps = jnp.sum(acc, axis=1, keepdims=True)    # f32 partial BN sums
                pq = jnp.sum(acc * acc, axis=1, keepdims=True)
                tot_s = ps if tot_s is None else tot_s + ps
                tot_q = pq if tot_q is None else tot_q + pq
        if not final:
            s_ref[...] = tot_s
            q_ref[...] = tot_q

    return kernel


# ---------------------------------------------------------------------------
# Tiling / mask helpers
# ---------------------------------------------------------------------------
def _pick_mt(cin, cout, hw, m_real, budget_bytes=8 * 1024 * 1024, cap_lanes=4096):
    # Streaming VMEM bytes per lane: double-buffered bf16 x (2*2*cin) +
    # double-buffered bf16 4-phase y (2*2*4*cout) + masks.  Keeps the lane tile
    # large on small-K late layers (v5e/v6e) without blowing v7x's 64 MiB VMEM.
    per_lane = 4 * cin + 16 * cout + 24
    cap = max(256, min(cap_lanes, budget_bytes // per_lane))
    if m_real <= cap:
        return m_real, m_real, 1          # single full-width tile (no 128 constraint)
    g = hw * 128 // math.gcd(hw, 128)     # whole images per tile AND lane-aligned
    mt = max(g, (cap // g) * g)
    m_pad = -(-m_real // mt) * mt         # pad with whole zero images
    return mt, m_pad, m_pad // mt


def _build_tap_cfg(w_in):
    # tap_cfg[phase] = ((lane offset, mask rows), ...) x 4, ordering matches phase_weights.
    cfg = []
    for py in (0, 1):
        for px in (0, 1):
            taps = []
            for dy, _ in _TAPS_1D[py]:
                for dx, _ in _TAPS_1D[px]:
                    rows = []
                    if dy == -1:
                        rows.append(_ROW_H_NEG)
                    elif dy == 1:
                        rows.append(_ROW_H_POS)
                    if dx == -1:
                        rows.append(_ROW_W_NEG)
                    elif dx == 1:
                        rows.append(_ROW_W_POS)
                    taps.append((dy * w_in + dx, tuple(rows)))
            cfg.append(tuple(taps))
    return tuple(cfg)


def _build_masks(h, w, n_img, m_pad):
    # (5, M_pad) {0,1}: [real image, h>=1, h<=H-2, w>=1, w<=W-2] per lane.
    hw = h * w
    m = jnp.arange(m_pad, dtype=jnp.int32)
    img = m // hw
    p = m - img * hw
    hi = p // w
    wi = p - hi * w
    rows = jnp.stack([img < n_img, hi >= 1, hi <= h - 2, wi >= 1, wi <= w - 2],
                     axis=0)
    return rows.astype(jnp.bfloat16)


# ---------------------------------------------------------------------------
# pallas_call wrappers
# ---------------------------------------------------------------------------
def pallas_gemm(a, w, tn_cap=512):
    # Layer-1 GEMM (1x1 ConvTranspose): (N, K) @ (K, Cout*16), lane-tiled, bf16.
    m, k = a.shape
    p = w.shape[1]
    tn = min(tn_cap, p)
    while tn > 128 and p % tn:
        tn -= 128
    if p % tn:
        tn = p
    return pl.pallas_call(
        _gemm_kernel,
        out_shape=jax.ShapeDtypeStruct((m, p), jnp.bfloat16),
        grid=(p // tn,),
        in_specs=[pl.BlockSpec((m, k), lambda i: (0, 0)),
                  pl.BlockSpec((k, tn), lambda i: (0, i))],
        out_specs=pl.BlockSpec((m, tn), lambda i: (0, i)),
        compiler_params=pltpu.CompilerParams(
            dimension_semantics=("parallel",),
            vmem_limit_bytes=_VMEM_LIMIT),
    )(a.astype(jnp.bfloat16), w.astype(jnp.bfloat16))


def pallas_convT_s2(x, wm, hw_in, n_img, scale_shift=None, bias=None):
    """Phase-decomposed ConvTranspose2d(k=4, s=2, p=1) with fused pre-BN+ReLU.

    x:  (Cin, N*H*W) channel-major bf16.
    wm: (4 phases, 4 taps, Cout, Cin) bf16 (see phase_weights).
    Returns (y, sum, sqsum) with y (4, Cout, M_pad) bf16, or y (4, Cout, M_pad)
    f32 when `bias` is given (final layer: + bias, tanh, no BN stats).
    """
    h_in, w_in = hw_in
    hw = h_in * w_in
    cin, m_real = x.shape
    cout = wm.shape[2]
    mt, m_pad, n_tiles = _pick_mt(cin, cout, hw, m_real)
    if m_pad != m_real:
        x = jnp.pad(x, ((0, 0), (0, m_pad - m_real)))
    x = x.astype(jnp.bfloat16)
    wm = wm.astype(jnp.bfloat16)
    masks = _build_masks(h_in, w_in, n_img, m_pad)

    apply_act = scale_shift is not None
    final = bias is not None
    kernel = _make_convT_kernel(_build_tap_cfg(w_in), apply_act, final)

    in_specs = [pl.BlockSpec((cin, mt), lambda i: (0, i)),
                pl.BlockSpec((5, mt), lambda i: (0, i)),
                pl.BlockSpec((4, 4, cout, cin), lambda i: (0, 0, 0, 0))]
    operands = [x, masks, wm]
    if apply_act:
        scale, shift = scale_shift
        in_specs += [pl.BlockSpec((cin, 1), lambda i: (0, 0)),
                     pl.BlockSpec((cin, 1), lambda i: (0, 0))]
        operands += [scale.astype(jnp.float32), shift.astype(jnp.float32)]
    if final:
        in_specs.append(pl.BlockSpec((cout, 1), lambda i: (0, 0)))
        operands.append(bias.reshape(cout, 1).astype(jnp.float32))
        out_shape = jax.ShapeDtypeStruct((4, cout, m_pad), jnp.float32)
        out_specs = pl.BlockSpec((4, cout, mt), lambda i: (0, 0, i))
    else:
        out_shape = (jax.ShapeDtypeStruct((4, cout, m_pad), jnp.bfloat16),
                     jax.ShapeDtypeStruct((n_tiles, cout, 1), jnp.float32),
                     jax.ShapeDtypeStruct((n_tiles, cout, 1), jnp.float32))
        out_specs = (pl.BlockSpec((4, cout, mt), lambda i: (0, 0, i)),
                     pl.BlockSpec((None, cout, 1), lambda i: (i, 0, 0)),
                     pl.BlockSpec((None, cout, 1), lambda i: (i, 0, 0)))

    return pl.pallas_call(
        kernel,
        out_shape=out_shape,
        grid=(n_tiles,),
        in_specs=in_specs,
        out_specs=out_specs,
        compiler_params=pltpu.CompilerParams(
            dimension_semantics=("parallel",),  # per-tile outputs + partial stats
            vmem_limit_bytes=_VMEM_LIMIT),
    )(*operands)


# ---------------------------------------------------------------------------
# XLA glue (tiny): weight conversion, BN affine from fused sums, interleave
# ---------------------------------------------------------------------------
def phase_weights(w):
    # torch ConvTranspose2d weight (Cin, Cout, 4, 4) -> (4 phases, 4 taps, Cout, Cin)
    mats = []
    for py in (0, 1):
        for px in (0, 1):
            taps = [w[:, :, ky, kx].T
                    for _, ky in _TAPS_1D[py] for _, kx in _TAPS_1D[px]]
            mats.append(jnp.stack(taps, axis=0))
    return jnp.stack(mats, axis=0)


def _bn_affine(s, q, gamma, beta, count, eps=1e-5):
    s = jnp.sum(s, axis=0)                                  # reduce per-tile partials
    q = jnp.sum(q, axis=0)
    mean = s / count
    var = jnp.maximum(q / count - mean * mean, 0.0)         # single-pass batch variance
    scale = gamma[:, None] * jax.lax.rsqrt(var + eps)
    shift = beta[:, None] - mean * scale
    return scale, shift                                     # (C, 1) f32 each


def _interleave(y, n, h, w):
    # y: (4, C, M_pad), phase q = 2*py+px -> channel-major (C, N, 2H, 2W).
    # TODO(synk): fuse this stride-2 interleave into the next layer's in-kernel
    # gather (phase-separated layout) to drop this XLA transpose round trip.
    c = y.shape[1]
    y = y[:, :, : n * h * w].reshape(2, 2, c, n, h, w)
    y = y.transpose(2, 3, 4, 0, 5, 1)                        # (C, N, H, py, W, px)
    return y.reshape(c, n, 2 * h, 2 * w)


def _interleave_flat(y, n, h, w):
    c = y.shape[1]
    return _interleave(y, n, h, w).reshape(c, n * 4 * h * w)


# ---------------------------------------------------------------------------
# Generator forward
# ---------------------------------------------------------------------------
def generator_forward(params, x, labels):
    # x: (N, noise_dim, 1, 1) f32, labels: (N,) int32 -> (N, channels_img, 64, 64) f32
    n = x.shape[0]
    emb = params["embed"][labels]                            # embedding gather (XLA glue)
    h0 = jnp.concatenate([x.reshape(n, -1), emb], axis=1).astype(jnp.bfloat16)

    # ConvTranspose2d(noise+embed, fg*16, 4, 1, 0, bias=False) on 1x1 == GEMM  -> 4x4
    c1 = params["w1"].shape[1] // 16
    y1 = pallas_gemm(h0, params["w1"])                       # (N, c1*16) bf16
    x2 = y1.reshape(n, c1, 16).transpose(1, 0, 2).reshape(c1, n * 16)

    # Gnet blocks: ConvT(4,2,1,bias=False) + BN + ReLU; BN+ReLU of block k is
    # fused as the pre-activation of block k+1's kernel.
    y2, s2, q2 = pallas_convT_s2(x2, params["w2"], (4, 4), n)
    sc2, sh2 = _bn_affine(s2, q2, params["g2"], params["b2"], 4.0 * n * 16)
    x3 = _interleave_flat(y2, n, 4, 4)                       # 8x8

    y3, s3, q3 = pallas_convT_s2(x3, params["w3"], (8, 8), n, scale_shift=(sc2, sh2))
    sc3, sh3 = _bn_affine(s3, q3, params["g3"], params["b3"], 4.0 * n * 64)
    x4 = _interleave_flat(y3, n, 8, 8)                       # 16x16

    y4, s4, q4 = pallas_convT_s2(x4, params["w4"], (16, 16), n, scale_shift=(sc3, sh3))
    sc4, sh4 = _bn_affine(s4, q4, params["g4"], params["b4"], 4.0 * n * 256)
    x5 = _interleave_flat(y4, n, 16, 16)                     # 32x32

    # Final ConvT(fg*2, channels_img, 4, 2, 1) (+bias) + Tanh, with block-4's
    # BN+ReLU fused as pre-activation.                       -> 64x64
    y5 = pallas_convT_s2(x5, params["w5"], (32, 32), n,
                         scale_shift=(sc4, sh4), bias=params["bias5"])
    out = _interleave(y5, n, 32, 32)                         # (C_img, N, 64, 64) f32
    return out.transpose(1, 0, 2, 3)                         # NCHW once at the end


def init_params(key, num_classes, channels_img, features_g):
    fg = features_g
    ks = jax.random.split(key, 6)

    def nrm(k, shape):
        return 0.02 * jax.random.normal(k, shape, jnp.float32)

    cin0 = noise_dim + embed_size
    w1 = nrm(ks[1], (cin0, fg * 16, 4, 4))
    w2 = nrm(ks[2], (fg * 16, fg * 8, 4, 4))
    w3 = nrm(ks[3], (fg * 8, fg * 4, 4, 4))
    w4 = nrm(ks[4], (fg * 4, fg * 2, 4, 4))
    w5 = nrm(ks[5], (fg * 2, channels_img, 4, 4))
    return {
        "embed": nrm(ks[0], (num_classes, embed_size)),
        # Weights pre-converted to kernel layout and bf16 ONCE (not per forward);
        # a torch checkpoint would be converted identically at load time.
        "w1": w1.reshape(cin0, fg * 16 * 16).astype(jnp.bfloat16),
        "w2": phase_weights(w2).astype(jnp.bfloat16),
        "g2": jnp.ones((fg * 8,), jnp.float32),
        "b2": jnp.zeros((fg * 8,), jnp.float32),
        "w3": phase_weights(w3).astype(jnp.bfloat16),
        "g3": jnp.ones((fg * 4,), jnp.float32),
        "b3": jnp.zeros((fg * 4,), jnp.float32),
        "w4": phase_weights(w4).astype(jnp.bfloat16),
        "g4": jnp.ones((fg * 2,), jnp.float32),
        "b4": jnp.zeros((fg * 2,), jnp.float32),
        "w5": phase_weights(w5).astype(jnp.bfloat16),
        "bias5": jnp.zeros((channels_img,), jnp.float32),
    }


if __name__ == "__main__":
    key = jax.random.PRNGKey(0)
    kp, kx, kl = jax.random.split(key, 3)

    num_classes, channels_img, features_g = 10, 3, 4
    batch = 2
    img_size = 64  # implied by the architecture (1 -> 4 -> 8 -> 16 -> 32 -> 64)

    params = init_params(kp, num_classes, channels_img, features_g)
    x = jax.random.normal(kx, (batch, noise_dim, 1, 1), jnp.float32)
    labels = jax.random.randint(kl, (batch,), 0, num_classes)

    out = jax.jit(generator_forward)(params, x, labels)
    out = jax.block_until_ready(out)
    assert out.shape == (batch, channels_img, img_size, img_size)
    assert out.dtype == jnp.float32
    assert bool(jnp.all(jnp.isfinite(out)))
    print("KERNEL_OK")
</pallas_src>

<mosaic_0001>
module attributes {stable_mosaic.version = 11 : i64} {
  func.func @_gemm_kernel(%arg0: i32, %arg1: memref<2x200xbf16, #tpu.memory_space<vmem>>, %arg2: memref<200x512xbf16, #tpu.memory_space<vmem>>, %arg3: memref<2x512xbf16, #tpu.memory_space<vmem>>) attributes {dimension_semantics = [#tpu.dimension_semantics<parallel>], iteration_bounds = array<i64: 2>, scalar_prefetch = 0 : i64, scratch_operands = 0 : i64, tpu.core_type = #tpu.core_type<tc>, window_params = [{pipeline_mode = #tpu.pipeline_mode<synchronous>, transform_indices = @transform_0, window_bounds = array<i64: 2, 200>}, {transform_indices = @transform_1, window_bounds = array<i64: 200, 512>}, {transform_indices = @transform_2, window_bounds = array<i64: 2, 512>}]} {
    %c0 = arith.constant 0 : index
    %c0_0 = arith.constant 0 : index
    %0 = vector.load %arg1[%c0, %c0_0] : memref<2x200xbf16, #tpu.memory_space<vmem>>, vector<2x200xbf16>
    %c0_1 = arith.constant 0 : index
    %c0_2 = arith.constant 0 : index
    %1 = vector.load %arg2[%c0_1, %c0_2] : memref<200x512xbf16, #tpu.memory_space<vmem>>, vector<200x512xbf16>
    %cst = arith.constant dense<0.000000e+00> : vector<2x512xf32>
    %2 = tpu.matmul %0, %1, %cst {dimension_numbers = #tpu.dot_dimension_numbers<[1], [0], [0], [1], [0, 0, 1, 1], [], []>} : vector<2x200xbf16>, vector<200x512xbf16>, vector<2x512xf32> -> vector<2x512xf32>
    %3 = arith.truncf %2 : vector<2x512xf32> to vector<2x512xbf16>
    %c0_3 = arith.constant 0 : index
    %c0_4 = arith.constant 0 : index
    %4 = vector.load %arg3[%c0_3, %c0_4] : memref<2x512xbf16, #tpu.memory_space<vmem>>, vector<2x512xbf16>
    tpu.vector_store %arg3[%c0_3, %c0_4], %3 {strides = array<i32>} : memref<2x512xbf16, #tpu.memory_space<vmem>>, vector<2x512xbf16>,
    return
  }
  func.func @transform_0(%arg0: i32) -> (i32, i32) {
    %c0_i32 = arith.constant 0 : i32
    %c0_i32_0 = arith.constant 0 : i32
    %c0_i32_1 = arith.constant 0 : i32
    return %c0_i32, %c0_i32_0 : i32, i32
  }
  func.func @transform_1(%arg0: i32) -> (i32, i32) {
    %c0_i32 = arith.constant 0 : i32
    %c0_i32_0 = arith.constant 0 : i32
    return %c0_i32, %arg0 : i32, i32
  }
  func.func @transform_2(%arg0: i32) -> (i32, i32) {
    %c0_i32 = arith.constant 0 : i32
    %c0_i32_0 = arith.constant 0 : i32
    return %c0_i32, %arg0 : i32, i32
  }
}

module attributes {stable_mosaic.version = 11 : i64} {
  func.func @kernel(%arg0: i32, %arg1: memref<64x32xbf16, #tpu.memory_space<vmem>>, %arg2: memref<5x32xbf16, #tpu.memory_space<vmem>>, %arg3: memref<4x4x32x64xbf16, #tpu.memory_space<vmem>>, %arg4: memref<4x32x32xbf16, #tpu.memory_space<vmem>>, %arg5: memref<1x32x1xf32, #tpu.memory_space<vmem>>, %arg6: memref<1x32x1xf32, #tpu.memory_space<vmem>>) attributes {dimension_semantics = [#tpu.dimension_semantics<parallel>], iteration_bounds = array<i64: 1>, scalar_prefetch = 0 : i64, scratch_operands = 0 : i64, tpu.core_type = #tpu.core_type<tc>, window_params = [{transform_indices = @transform_0, window_bounds = array<i64: 64, 32>}, {transform_indices = @transform_1, window_bounds = array<i64: 5, 32>}, {pipeline_mode = #tpu.pipeline_mode<synchronous>, transform_indices = @transform_2, window_bounds = array<i64: 4, 4, 32, 64>}, {transform_indices = @transform_3, window_bounds = array<i64: 4, 32, 32>}, {transform_indices = @transform_4, window_bounds = array<i64: 1, 32, 1>}, {transform_indices = @transform_5, window_bounds = array<i64: 1, 32, 1>}]} {
    %c0 = arith.constant 0 : index
    %c0_0 = arith.constant 0 : index
    %0 = vector.load %arg2[%c0, %c0_0] : memref<5x32xbf16, #tpu.memory_space<vmem>>, vector<5x32xbf16>
    %c0_1 = arith.constant 0 : index
    %c0_2 = arith.constant 0 : index
    %1 = vector.load %arg1[%c0_1, %c0_2] : memref<64x32xbf16, #tpu.memory_space<vmem>>, vector<64x32xbf16>
    %2 = vector.extract_strided_slice %0 {offsets = [0, 0], sizes = [1, 32], strides = [1, 1]} : vector<5x32xbf16> to vector<1x32xbf16>
    %3 = vector.broadcast %2 : vector<1x32xbf16> to vector<64x32xbf16>
    %4 = arith.mulf %1, %3 : vector<64x32xbf16>
    %5 = vector.extract_strided_slice %4 {offsets = [0, 27], sizes = [64, 5], strides = [1, 1]} : vector<64x32xbf16> to vector<64x5xbf16>
    %6 = vector.extract_strided_slice %4 {offsets = [0, 0], sizes = [64, 27], strides = [1, 1]} : vector<64x32xbf16> to vector<64x27xbf16>
    %7 = tpu.concatenate %5, %6 in 1 : vector<64x5xbf16>, vector<64x27xbf16> -> vector<64x32xbf16>
    %8 = vector.extract_strided_slice %0 {offsets = [1, 0], sizes = [1, 32], strides = [1, 1]} : vector<5x32xbf16> to vector<1x32xbf16>
    %9 = vector.broadcast %8 : vector<1x32xbf16> to vector<64x32xbf16>
    %10 = arith.mulf %7, %9 : vector<64x32xbf16>
    %11 = vector.extract_strided_slice %0 {offsets = [3, 0], sizes = [1, 32], strides = [1, 1]} : vector<5x32xbf16> to vector<1x32xbf16>
    %12 = vector.broadcast %11 : vector<1x32xbf16> to vector<64x32xbf16>
    %13 = arith.mulf %10, %12 : vector<64x32xbf16>
    %c0_3 = arith.constant 0 : index
    %c0_4 = arith.constant 0 : index
    %c0_5 = arith.constant 0 : index
    %c0_6 = arith.constant 0 : index
    %14 = vector.load %arg3[%c0_3, %c0_4, %c0_5, %c0_6] : memref<4x4x32x64xbf16, #tpu.memory_space<vmem>>, vector<1x1x32x64xbf16>
    %15 = vector.shape_cast %14 : vector<1x1x32x64xbf16> to vector<32x64xbf16>
    %cst = arith.constant dense<0.000000e+00> : vector<32x32xf32>
    %16 = tpu.matmul %15, %13, %cst {dimension_numbers = #tpu.dot_dimension_numbers<[1], [0], [0], [1], [0, 0, 1, 1], [], []>} : vector<32x64xbf16>, vector<64x32xbf16>, vector<32x32xf32> -> vector<32x32xf32>
    %17 = vector.extract_strided_slice %4 {offsets = [0, 28], sizes = [64, 4], strides = [1, 1]} : vector<64x32xbf16> to vector<64x4xbf16>
    %18 = vector.extract_strided_slice %4 {offsets = [0, 0], sizes = [64, 28], strides = [1, 1]} : vector<64x32xbf16> to vector<64x28xbf16>
    %19 = tpu.concatenate %17, %18 in 1 : vector<64x4xbf16>, vector<64x28xbf16> -> vector<64x32xbf16>
    %20 = vector.extract_strided_slice %0 {offsets = [1, 0], sizes = [1, 32], strides = [1, 1]} : vector<5x32xbf16> to vector<1x32xbf16>
    %21 = vector.broadcast %20 : vector<1x32xbf16> to vector<64x32xbf16>
    %22 = arith.mulf %19, %21 : vector<64x32xbf16>
    %c0_7 = arith.constant 0 : index
    %c1 = arith.constant 1 : index
    %c0_8 = arith.constant 0 : index
    %c0_9 = arith.constant 0 : index
    %23 = vector.load %arg3[%c0_7, %c1, %c0_8, %c0_9] : memref<4x4x32x64xbf16, #tpu.memory_space<vmem>>, vector<1x1x32x64xbf16>
    %24 = vector.shape_cast %23 : vector<1x1x32x64xbf16> to vector<32x64xbf16>
    %cst_10 = arith.constant dense<0.000000e+00> : vector<32x32xf32>
    %25 = tpu.matmul %24, %22, %cst_10 {dimension_numbers = #tpu.dot_dimension_numbers<[1], [0], [0], [1], [0, 0, 1, 1], [], []>} : vector<32x64xbf16>, vector<64x32xbf16>, vector<32x32xf32> -> vector<32x32xf32>
    %26 = arith.addf %16, %25 : vector<32x32xf32>
    %27 = vector.extract_strided_slice %4 {offsets = [0, 31], sizes = [64, 1], strides = [1, 1]} : vector<64x32xbf16> to vector<64x1xbf16>
    %28 = vector.extract_strided_slice %4 {offsets = [0, 0], sizes = [64, 31], strides = [1, 1]} : vector<64x32xbf16> to vector<64x31xbf16>
    %29 = tpu.concatenate %27, %28 in 1 : vector<64x1xbf16>, vector<64x31xbf16> -> vector<64x32xbf16>
    %30 = vector.extract_strided_slice %0 {offsets = [3, 0], sizes = [1, 32], strides = [1, 1]} : vector<5x32xbf16> to vector<1x32xbf16>
    %31 = vector.broadcast %30 : vector<1x32xbf16> to vector<64x32xbf16>
    %32 = arith.mulf %29, %31 : vector<64x32xbf16>
    %c0_11 = arith.constant 0 : index
    %c2 = arith.constant 2 : index
    %c0_12 = arith.constant 0 : index
    %c0_13 = arith.constant 0 : index
    %33 = vector.load %arg3[%c0_11, %c2, %c0_12, %c0_13] : memref<4x4x32x64xbf16, #tpu.memory_space<vmem>>, vector<1x1x32x64xbf16>
    %34 = vector.shape_cast %33 : vector<1x1x32x64xbf16> to vector<32x64xbf16>
    %cst_14 = arith.constant dense<0.000000e+00> : vector<32x32xf32>
    %35 = tpu.matmul %34, %32, %cst_14 {dimension_numbers = #tpu.dot_dimension_numbers<[1], [0], [0], [1], [0, 0, 1, 1], [], []>} : vector<32x64xbf16>, vector<64x32xbf16>, vector<32x32xf32> -> vector<32x32xf32>
    %36 = arith.addf %26, %35 : vector<32x32xf32>
    %c0_15 = arith.constant 0 : index
    %c3 = arith.constant 3 : index
    %c0_16 = arith.constant 0 : index
    %c0_17 = arith.constant 0 : index
    %37 = vector.load %arg3[%c0_15, %c3, %c0_16, %c0_17] : memref<4x4x32x64xbf16, #tpu.memory_space<vmem>>, vector<1x1x32x64xbf16>
    %38 = vector.shape_cast %37 : vector<1x1x32x64xbf16> to vector<32x64xbf16>
    %cst_18 = arith.constant dense<0.000000e+00> : vector<32x32xf32>
    %39 = tpu.matmul %38, %4, %cst_18 {dimension_numbers = #tpu.dot_dimension_numbers<[1], [0], [0], [1], [0, 0, 1, 1], [], []>} : vector<32x64xbf16>, vector<64x32xbf16>, vector<32x32xf32> -> vector<32x32xf32>
    %40 = arith.addf %36, %39 : vector<32x32xf32>
    %41 = arith.truncf %40 : vector<32x32xf32> to vector<32x32xbf16>
    %c0_19 = arith.constant 0 : index
    %c0_20 = arith.constant 0 : index
    %c0_21 = arith.constant 0 : index
    %42 = vector.load %arg4[%c0_19, %c0_20, %c0_21] : memref<4x32x32xbf16, #tpu.memory_space<vmem>>, vector<1x32x32xbf16>
    %43 = vector.shape_cast %42 : vector<1x32x32xbf16> to vector<32x32xbf16>
    %44 = vector.shape_cast %41 : vector<32x32xbf16> to vector<1x32x32xbf16>
    tpu.vector_store %arg4[%c0_19, %c0_20, %c0_21], %44 {strides = array<i32>} : memref<4x32x32xbf16, #tpu.memory_space<vmem>>, vector<1x32x32xbf16>,
    %cst_22 = arith.constant dense<0.000000e+00> : vector<32xf32>
    %45 = vector.multi_reduction <add>, %40, %cst_22 [1] : vector<32x32xf32> to vector<32xf32>
    %46 = vector.shape_cast %45 : vector<32xf32> to vector<32x1xf32>
    %47 = arith.mulf %40, %40 : vector<32x32xf32>
    %cst_23 = arith.constant dense<0.000000e+00> : vector<32xf32>
    %48 = vector.multi_reduction <add>, %47, %cst_23 [1] : vector<32x32xf32> to vector<32xf32>
    %49 = vector.shape_cast %48 : vector<32xf32> to vector<32x1xf32>
    %50 = vector.extract_strided_slice %4 {offsets = [0, 28], sizes = [64, 4], strides = [1, 1]} : vector<64x32xbf16> to vector<64x4xbf16>
    %51 = vector.extract_strided_slice %4 {offsets = [0, 0], sizes = [64, 28], strides = [1, 1]} : vector<64x32xbf16> to vector<64x28xbf16>
    %52 = tpu.concatenate %50, %51 in 1 : vector<64x4xbf16>, vector<64x28xbf16> -> vector<64x32xbf16>
    %53 = vector.extract_strided_slice %0 {offsets = [1, 0], sizes = [1, 32], strides = [1, 1]} : vector<5x32xbf16> to vector<1x32xbf16>
    %54 = vector.broadcast %53 : vector<1x32xbf16> to vector<64x32xbf16>
    %55 = arith.mulf %52, %54 : vector<64x32xbf16>
    %c1_24 = arith.constant 1 : index
    %c0_25 = arith.constant 0 : index
    %c0_26 = arith.constant 0 : index
    %c0_27 = arith.constant 0 : index
    %56 = vector.load %arg3[%c1_24, %c0_25, %c0_26, %c0_27] : memref<4x4x32x64xbf16, #tpu.memory_space<vmem>>, vector<1x1x32x64xbf16>
    %57 = vector.shape_cast %56 : vector<1x1x32x64xbf16> to vector<32x64xbf16>
    %cst_28 = arith.constant dense<0.000000e+00> : vector<32x32xf32>
    %58 = tpu.matmul %57, %55, %cst_28 {dimension_numbers = #tpu.dot_dimension_numbers<[1], [0], [0], [1], [0, 0, 1, 1], [], []>} : vector<32x64xbf16>, vector<64x32xbf16>, vector<32x32xf32> -> vector<32x32xf32>
    %59 = vector.extract_strided_slice %4 {offsets = [0, 29], sizes = [64, 3], strides = [1, 1]} : vector<64x32xbf16> to vector<64x3xbf16>
    %60 = vector.extract_strided_slice %4 {offsets = [0, 0], sizes = [64, 29], strides = [1, 1]} : vector<64x32xbf16> to vector<64x29xbf16>
    %61 = tpu.concatenate %59, %60 in 1 : vector<64x3xbf16>, vector<64x29xbf16> -> vector<64x32xbf16>
    %62 = vector.extract_strided_slice %0 {offsets = [1, 0], sizes = [1, 32], strides = [1, 1]} : vector<5x32xbf16> to vector<1x32xbf16>
    %63 = vector.broadcast %62 : vector<1x32xbf16> to vector<64x32xbf16>
    %64 = arith.mulf %61, %63 : vector<64x32xbf16>
    %65 = vector.extract_strided_slice %0 {offsets = [4, 0], sizes = [1, 32], strides = [1, 1]} : vector<5x32xbf16> to vector<1x32xbf16>
    %66 = vector.broadcast %65 : vector<1x32xbf16> to vector<64x32xbf16>
    %67 = arith.mulf %64, %66 : vector<64x32xbf16>
    %c1_29 = arith.constant 1 : index
    %c1_30 = arith.constant 1 : index
    %c0_31 = arith.constant 0 : index
    %c0_32 = arith.constant 0 : index
    %68 = vector.load %arg3[%c1_29, %c1_30, %c0_31, %c0_32] : memref<4x4x32x64xbf16, #tpu.memory_space<vmem>>, vector<1x1x32x64xbf16>
    %69 = vector.shape_cast %68 : vector<1x1x32x64xbf16> to vector<32x64xbf16>
    %cst_33 = arith.constant dense<0.000000e+00> : vector<32x32xf32>
    %70 = tpu.matmul %69, %67, %cst_33 {dimension_numbers = #tpu.dot_dimension_numbers<[1], [0], [0], [1], [0, 0, 1, 1], [], []>} : vector<32x64xbf16>, vector<64x32xbf16>, vector<32x32xf32> -> vector<32x32xf32>
    %71 = arith.addf %58, %70 : vector<32x32xf32>
    %c1_34 = arith.constant 1 : index
    %c2_35 = arith.constant 2 : index
    %c0_36 = arith.constant 0 : index
    %c0_37 = arith.constant 0 : index
    %72 = vector.load %arg3[%c1_34, %c2_35, %c0_36, %c0_37] : memref<4x4x32x64xbf16, #tpu.memory_space<vmem>>, vector<1x1x32x64xbf16>
    %73 = vector.shape_cast %72 : vector<1x1x32x64xbf16> to vector<32x64xbf16>
    %cst_38 = arith.constant dense<0.000000e+00> : vector<32x32xf32>
    %74 = tpu.matmul %73, %4, %cst_38 {dimension_numbers = #tpu.dot_dimension_numbers<[1], [0], [0], [1], [0, 0, 1, 1], [], []>} : vector<32x64xbf16>, vector<64x32xbf16>, vector<32x32xf32> -> vector<32x32xf32>
    %75 = arith.addf %71, %74 : vector<32x32xf32>
    %76 = vector.extract_strided_slice %4 {offsets = [0, 1], sizes = [64, 31], strides = [1, 1]} : vector<64x32xbf16> to vector<64x31xbf16>
    %77 = vector.extract_strided_slice %4 {offsets = [0, 0], sizes = [64, 1], strides = [1, 1]} : vector<64x32xbf16> to vector<64x1xbf16>
    %78 = tpu.concatenate %76, %77 in 1 : vector<64x31xbf16>, vector<64x1xbf16> -> vector<64x32xbf16>
    %79 = vector.extract_strided_slice %0 {offsets = [4, 0], sizes = [1, 32], strides = [1, 1]} : vector<5x32xbf16> to vector<1x32xbf16>
    %80 = vector.broadcast %79 : vector<1x32xbf16> to vector<64x32xbf16>
    %81 = arith.mulf %78, %80 : vector<64x32xbf16>
    %c1_39 = arith.constant 1 : index
    %c3_40 = arith.constant 3 : index
    %c0_41 = arith.constant 0 : index
    %c0_42 = arith.constant 0 : index
    %82 = vector.load %arg3[%c1_39, %c3_40, %c0_41, %c0_42] : memref<4x4x32x64xbf16, #tpu.memory_space<vmem>>, vector<1x1x32x64xbf16>
    %83 = vector.shape_cast %82 : vector<1x1x32x64xbf16> to vector<32x64xbf16>
    %cst_43 = arith.constant dense<0.000000e+00> : vector<32x32xf32>
    %84 = tpu.matmul %83, %81, %cst_43 {dimension_numbers = #tpu.dot_dimension_numbers<[1], [0], [0], [1], [0, 0, 1, 1], [], []>} : vector<32x64xbf16>, vector<64x32xbf16>, vector<32x32xf32> -> vector<32x32xf32>
    %85 = arith.addf %75, %84 : vector<32x32xf32>
    %86 = arith.truncf %85 : vector<32x32xf32> to vector<32x32xbf16>
    %c1_44 = arith.constant 1 : index
    %c0_45 = arith.constant 0 : index
    %c0_46 = arith.constant 0 : index
    %87 = vector.load %arg4[%c1_44, %c0_45, %c0_46] : memref<4x32x32xbf16, #tpu.memory_space<vmem>>, vector<1x32x32xbf16>
    %88 = vector.shape_cast %87 : vector<1x32x32xbf16> to vector<32x32xbf16>
    %89 = vector.shape_cast %86 : vector<32x32xbf16> to vector<1x32x32xbf16>
    tpu.vector_store %arg4[%c1_44, %c0_45, %c0_46], %89 {strides = array<i32>} : memref<4x32x32xbf16, #tpu.memory_space<vmem>>, vector<1x32x32xbf16>,
    %cst_47 = arith.constant dense<0.000000e+00> : vector<32xf32>
    %90 = vector.multi_reduction <add>, %85, %cst_47 [1] : vector<32x32xf32> to vector<32xf32>
    %91 = vector.shape_cast %90 : vector<32xf32> to vector<32x1xf32>
    %92 = arith.mulf %85, %85 : vector<32x32xf32>
    %cst_48 = arith.constant dense<0.000000e+00> : vector<32xf32>
    %93 = vector.multi_reduction <add>, %92, %cst_48 [1] : vector<32x32xf32> to vector<32xf32>
    %94 = vector.shape_cast %93 : vector<32xf32> to vector<32x1xf32>
    %95 = arith.addf %46, %91 : vector<32x1xf32>
    %96 = arith.addf %49, %94 : vector<32x1xf32>
    %97 = vector.extract_strided_slice %4 {offsets = [0, 31], sizes = [64, 1], strides = [1, 1]} : vector<64x32xbf16> to vector<64x1xbf16>
    %98 = vector.extract_strided_slice %4 {offsets = [0, 0], sizes = [64, 31], strides = [1, 1]} : vector<64x32xbf16> to vector<64x31xbf16>
    %99 = tpu.concatenate %97, %98 in 1 : vector<64x1xbf16>, vector<64x31xbf16> -> vector<64x32xbf16>
    %100 = vector.extract_strided_slice %0 {offsets = [3, 0], sizes = [1, 32], strides = [1, 1]} : vector<5x32xbf16> to vector<1x32xbf16>
    %101 = vector.broadcast %100 : vector<1x32xbf16> to vector<64x32xbf16>
    %102 = arith.mulf %99, %101 : vector<64x32xbf16>
    %c2_49 = arith.constant 2 : index
    %c0_50 = arith.constant 0 : index
    %c0_51 = arith.constant 0 : index
    %c0_52 = arith.constant 0 : index
    %103 = vector.load %arg3[%c2_49, %c0_50, %c0_51, %c0_52] : memref<4x4x32x64xbf16, #tpu.memory_space<vmem>>, vector<1x1x32x64xbf16>
    %104 = vector.shape_cast %103 : vector<1x1x32x64xbf16> to vector<32x64xbf16>
    %cst_53 = arith.constant dense<0.000000e+00> : vector<32x32xf32>
    %105 = tpu.matmul %104, %102, %cst_53 {dimension_numbers = #tpu.dot_dimension_numbers<[1], [0], [0], [1], [0, 0, 1, 1], [], []>} : vector<32x64xbf16>, vector<64x32xbf16>, vector<32x32xf32> -> vector<32x32xf32>
    %c2_54 = arith.constant 2 : index
    %c1_55 = arith.constant 1 : index
    %c0_56 = arith.constant 0 : index
    %c0_57 = arith.constant 0 : index
    %106 = vector.load %arg3[%c2_54, %c1_55, %c0_56, %c0_57] : memref<4x4x32x64xbf16, #tpu.memory_space<vmem>>, vector<1x1x32x64xbf16>
    %107 = vector.shape_cast %106 : vector<1x1x32x64xbf16> to vector<32x64xbf16>
    %cst_58 = arith.constant dense<0.000000e+00> : vector<32x32xf32>
    %108 = tpu.matmul %107, %4, %cst_58 {dimension_numbers = #tpu.dot_dimension_numbers<[1], [0], [0], [1], [0, 0, 1, 1], [], []>} : vector<32x64xbf16>, vector<64x32xbf16>, vector<32x32xf32> -> vector<32x32xf32>
    %109 = arith.addf %105, %108 : vector<32x32xf32>
    %110 = vector.extract_strided_slice %4 {offsets = [0, 3], sizes = [64, 29], strides = [1, 1]} : vector<64x32xbf16> to vector<64x29xbf16>
    %111 = vector.extract_strided_slice %4 {offsets = [0, 0], sizes = [64, 3], strides = [1, 1]} : vector<64x32xbf16> to vector<64x3xbf16>
    %112 = tpu.concatenate %110, %111 in 1 : vector<64x29xbf16>, vector<64x3xbf16> -> vector<64x32xbf16>
    %113 = vector.extract_strided_slice %0 {offsets = [2, 0], sizes = [1, 32], strides = [1, 1]} : vector<5x32xbf16> to vector<1x32xbf16>
    %114 = vector.broadcast %113 : vector<1x32xbf16> to vector<64x32xbf16>
    %115 = arith.mulf %112, %114 : vector<64x32xbf16>
    %116 = vector.extract_strided_slice %0 {offsets = [3, 0], sizes = [1, 32], strides = [1, 1]} : vector<5x32xbf16> to vector<1x32xbf16>
    %117 = vector.broadcast %116 : vector<1x32xbf16> to vector<64x32xbf16>
    %118 = arith.mulf %115, %117 : vector<64x32xbf16>
    %c2_59 = arith.constant 2 : index
    %c2_60 = arith.constant 2 : index
    %c0_61 = arith.constant 0 : index
    %c0_62 = arith.constant 0 : index
    %119 = vector.load %arg3[%c2_59, %c2_60, %c0_61, %c0_62] : memref<4x4x32x64xbf16, #tpu.memory_space<vmem>>, vector<1x1x32x64xbf16>
    %120 = vector.shape_cast %119 : vector<1x1x32x64xbf16> to vector<32x64xbf16>
    %cst_63 = arith.constant dense<0.000000e+00> : vector<32x32xf32>
    %121 = tpu.matmul %120, %118, %cst_63 {dimension_numbers = #tpu.dot_dimension_numbers<[1], [0], [0], [1], [0, 0, 1, 1], [], []>} : vector<32x64xbf16>, vector<64x32xbf16>, vector<32x32xf32> -> vector<32x32xf32>
    %122 = arith.addf %109, %121 : vector<32x32xf32>
    %123 = vector.extract_strided_slice %4 {offsets = [0, 4], sizes = [64, 28], strides = [1, 1]} : vector<64x32xbf16> to vector<64x28xbf16>
    %124 = vector.extract_strided_slice %4 {offsets = [0, 0], sizes = [64, 4], strides = [1, 1]} : vector<64x32xbf16> to vector<64x4xbf16>
    %125 = tpu.concatenate %123, %124 in 1 : vector<64x28xbf16>, vector<64x4xbf16> -> vector<64x32xbf16>
    %126 = vector.extract_strided_slice %0 {offsets = [2, 0], sizes = [1, 32], strides = [1, 1]} : vector<5x32xbf16> to vector<1x32xbf16>
    %127 = vector.broadcast %126 : vector<1x32xbf16> to vector<64x32xbf16>
    %128 = arith.mulf %125, %127 : vector<64x32xbf16>
    %c2_64 = arith.constant 2 : index
    %c3_65 = arith.constant 3 : index
    %c0_66 = arith.constant 0 : index
    %c0_67 = arith.constant 0 : index
    %129 = vector.load %arg3[%c2_64, %c3_65, %c0_66, %c0_67] : memref<4x4x32x64xbf16, #tpu.memory_space<vmem>>, vector<1x1x32x64xbf16>
    %130 = vector.shape_cast %129 : vector<1x1x32x64xbf16> to vector<32x64xbf16>
    %cst_68 = arith.constant dense<0.000000e+00> : vector<32x32xf32>
    %131 = tpu.matmul %130, %128, %cst_68 {dimension_numbers = #tpu.dot_dimension_numbers<[1], [0], [0], [1], [0, 0, 1, 1], [], []>} : vector<32x64xbf16>, vector<64x32xbf16>, vector<32x32xf32> -> vector<32x32xf32>
    %132 = arith.addf %122, %131 : vector<32x32xf32>
    %133 = arith.truncf %132 : vector<32x32xf32> to vector<32x32xbf16>
    %c2_69 = arith.constant 2 : index
    %c0_70 = arith.constant 0 : index
    %c0_71 = arith.constant 0 : index
    %134 = vector.load %arg4[%c2_69, %c0_70, %c0_71] : memref<4x32x32xbf16, #tpu.memory_space<vmem>>, vector<1x32x32xbf16>
    %135 = vector.shape_cast %134 : vector<1x32x32xbf16> to vector<32x32xbf16>
    %136 = vector.shape_cast %133 : vector<32x32xbf16> to vector<1x32x32xbf16>
    tpu.vector_store %arg4[%c2_69, %c0_70, %c0_71], %136 {strides = array<i32>} : memref<4x32x32xbf16, #tpu.memory_space<vmem>>, vector<1x32x32xbf16>,
    %cst_72 = arith.constant dense<0.000000e+00> : vector<32xf32>
    %137 = vector.multi_reduction <add>, %132, %cst_72 [1] : vector<32x32xf32> to vector<32xf32>
    %138 = vector.shape_cast %137 : vector<32xf32> to vector<32x1xf32>
    %139 = arith.mulf %132, %132 : vector<32x32xf32>
    %cst_73 = arith.constant dense<0.000000e+00> : vector<32xf32>
    %140 = vector.multi_reduction <add>, %139, %cst_73 [1] : vector<32x32xf32> to vector<32xf32>
    %141 = vector.shape_cast %140 : vector<32xf32> to vector<32x1xf32>
    %142 = arith.addf %95, %138 : vector<32x1xf32>
    %143 = arith.addf %96, %141 : vector<32x1xf32>
    %c3_74 = arith.constant 3 : index
    %c0_75 = arith.constant 0 : index
    %c0_76 = arith.constant 0 : index
    %c0_77 = arith.constant 0 : index
    %144 = vector.load %arg3[%c3_74, %c0_75, %c0_76, %c0_77] : memref<4x4x32x64xbf16, #tpu.memory_space<vmem>>, vector<1x1x32x64xbf16>
    %145 = vector.shape_cast %144 : vector<1x1x32x64xbf16> to vector<32x64xbf16>
    %cst_78 = arith.constant dense<0.000000e+00> : vector<32x32xf32>
    %146 = tpu.matmul %145, %4, %cst_78 {dimension_numbers = #tpu.dot_dimension_numbers<[1], [0], [0], [1], [0, 0, 1, 1], [], []>} : vector<32x64xbf16>, vector<64x32xbf16>, vector<32x32xf32> -> vector<32x32xf32>
    %147 = vector.extract_strided_slice %4 {offsets = [0, 1], sizes = [64, 31], strides = [1, 1]} : vector<64x32xbf16> to vector<64x31xbf16>
    %148 = vector.extract_strided_slice %4 {offsets = [0, 0], sizes = [64, 1], strides = [1, 1]} : vector<64x32xbf16> to vector<64x1xbf16>
    %149 = tpu.concatenate %147, %148 in 1 : vector<64x31xbf16>, vector<64x1xbf16> -> vector<64x32xbf16>
    %150 = vector.extract_strided_slice %0 {offsets = [4, 0], sizes = [1, 32], strides = [1, 1]} : vector<5x32xbf16> to vector<1x32xbf16>
    %151 = vector.broadcast %150 : vector<1x32xbf16> to vector<64x32xbf16>
    %152 = arith.mulf %149, %151 : vector<64x32xbf16>
    %c3_79 = arith.constant 3 : index
    %c1_80 = arith.constant 1 : index
    %c0_81 = arith.constant 0 : index
    %c0_82 = arith.constant 0 : index
    %153 = vector.load %arg3[%c3_79, %c1_80, %c0_81, %c0_82] : memref<4x4x32x64xbf16, #tpu.memory_space<vmem>>, vector<1x1x32x64xbf16>
    %154 = vector.shape_cast %153 : vector<1x1x32x64xbf16> to vector<32x64xbf16>
    %cst_83 = arith.constant dense<0.000000e+00> : vector<32x32xf32>
    %155 = tpu.matmul %154, %152, %cst_83 {dimension_numbers = #tpu.dot_dimension_numbers<[1], [0], [0], [1], [0, 0, 1, 1], [], []>} : vector<32x64xbf16>, vector<64x32xbf16>, vector<32x32xf32> -> vector<32x32xf32>
    %156 = arith.addf %146, %155 : vector<32x32xf32>
    %157 = vector.extract_strided_slice %4 {offsets = [0, 4], sizes = [64, 28], strides = [1, 1]} : vector<64x32xbf16> to vector<64x28xbf16>
    %158 = vector.extract_strided_slice %4 {offsets = [0, 0], sizes = [64, 4], strides = [1, 1]} : vector<64x32xbf16> to vector<64x4xbf16>
    %159 = tpu.concatenate %157, %158 in 1 : vector<64x28xbf16>, vector<64x4xbf16> -> vector<64x32xbf16>
    %160 = vector.extract_strided_slice %0 {offsets = [2, 0], sizes = [1, 32], strides = [1, 1]} : vector<5x32xbf16> to vector<1x32xbf16>
    %161 = vector.broadcast %160 : vector<1x32xbf16> to vector<64x32xbf16>
    %162 = arith.mulf %159, %161 : vector<64x32xbf16>
    %c3_84 = arith.constant 3 : index
    %c2_85 = arith.constant 2 : index
    %c0_86 = arith.constant 0 : index
    %c0_87 = arith.constant 0 : index
    %163 = vector.load %arg3[%c3_84, %c2_85, %c0_86, %c0_87] : memref<4x4x32x64xbf16, #tpu.memory_space<vmem>>, vector<1x1x32x64xbf16>
    %164 = vector.shape_cast %163 : vector<1x1x32x64xbf16> to vector<32x64xbf16>
    %cst_88 = arith.constant dense<0.000000e+00> : vector<32x32xf32>
    %165 = tpu.matmul %164, %162, %cst_88 {dimension_numbers = #tpu.dot_dimension_numbers<[1], [0], [0], [1], [0, 0, 1, 1], [], []>} : vector<32x64xbf16>, vector<64x32xbf16>, vector<32x32xf32> -> vector<32x32xf32>
    %166 = arith.addf %156, %165 : vector<32x32xf32>
    %167 = vector.extract_strided_slice %4 {offsets = [0, 5], sizes = [64, 27], strides = [1, 1]} : vector<64x32xbf16> to vector<64x27xbf16>
    %168 = vector.extract_strided_slice %4 {offsets = [0, 0], sizes = [64, 5], strides = [1, 1]} : vector<64x32xbf16> to vector<64x5xbf16>
    %169 = tpu.concatenate %167, %168 in 1 : vector<64x27xbf16>, vector<64x5xbf16> -> vector<64x32xbf16>
    %170 = vector.extract_strided_slice %0 {offsets = [2, 0], sizes = [1, 32], strides = [1, 1]} : vector<5x32xbf16> to vector<1x32xbf16>
    %171 = vector.broadcast %170 : vector<1x32xbf16> to vector<64x32xbf16>
    %172 = arith.mulf %169, %171 : vector<64x32xbf16>
    %173 = vector.extract_strided_slice %0 {offsets = [4, 0], sizes = [1, 32], strides = [1, 1]} : vector<5x32xbf16> to vector<1x32xbf16>
    %174 = vector.broadcast %173 : vector<1x32xbf16> to vector<64x32xbf16>
    %175 = arith.mulf %172, %174 : vector<64x32xbf16>
    %c3_89 = arith.constant 3 : index
    %c3_90 = arith.constant 3 : index
    %c0_91 = arith.constant 0 : index
    %c0_92 = arith.constant 0 : index
    %176 = vector.load %arg3[%c3_89, %c3_90, %c0_91, %c0_92] : memref<4x4x32x64xbf16, #tpu.memory_space<vmem>>, vector<1x1x32x64xbf16>
    %177 = vector.shape_cast %176 : vector<1x1x32x64xbf16> to vector<32x64xbf16>
    %cst_93 = arith.constant dense<0.000000e+00> : vector<32x32xf32>
    %178 = tpu.matmul %177, %175, %cst_93 {dimension_numbers = #tpu.dot_dimension_numbers<[1], [0], [0], [1], [0, 0, 1, 1], [], []>} : vector<32x64xbf16>, vector<64x32xbf16>, vector<32x32xf32> -> vector<32x32xf32>
    %179 = arith.addf %166, %178 : vector<32x32xf32>
    %180 = arith.truncf %179 : vector<32x32xf32> to vector<32x32xbf16>
    %c3_94 = arith.constant 3 : index
    %c0_95 = arith.constant 0 : index
    %c0_96 = arith.constant 0 : index
    %181 = vector.load %arg4[%c3_94, %c0_95, %c0_96] : memref<4x32x32xbf16, #tpu.memory_space<vmem>>, vector<1x32x32xbf16>
    %182 = vector.shape_cast %181 : vector<1x32x32xbf16> to vector<32x32xbf16>
    %183 = vector.shape_cast %180 : vector<32x32xbf16> to vector<1x32x32xbf16>
    tpu.vector_store %arg4[%c3_94, %c0_95, %c0_96], %183 {strides = array<i32>} : memref<4x32x32xbf16, #tpu.memory_space<vmem>>, vector<1x32x32xbf16>,
    %cst_97 = arith.constant dense<0.000000e+00> : vector<32xf32>
    %184 = vector.multi_reduction <add>, %179, %cst_97 [1] : vector<32x32xf32> to vector<32xf32>
    %185 = vector.shape_cast %184 : vector<32xf32> to vector<32x1xf32>
    %186 = arith.mulf %179, %179 : vector<32x32xf32>
    %cst_98 = arith.constant dense<0.000000e+00> : vector<32xf32>
    %187 = vector.multi_reduction <add>, %186, %cst_98 [1] : vector<32x32xf32> to vector<32xf32>
    %188 = vector.shape_cast %187 : vector<32xf32> to vector<32x1xf32>
    %189 = arith.addf %142, %185 : vector<32x1xf32>
    %190 = arith.addf %143, %188 : vector<32x1xf32>
    %c0_99 = arith.constant 0 : index
    %c0_100 = arith.constant 0 : index
    %c0_101 = arith.constant 0 : index
    %191 = vector.load %arg5[%c0_99, %c0_100, %c0_101] : memref<1x32x1xf32, #tpu.memory_space<vmem>>, vector<1x32x1xf32>
    %192 = vector.shape_cast %191 : vector<1x32x1xf32> to vector<32x1xf32>
    %193 = vector.shape_cast %189 : vector<32x1xf32> to vector<1x32x1xf32>
    tpu.vector_store %arg5[%c0_99, %c0_100, %c0_101], %193 {strides = array<i32>} : memref<1x32x1xf32, #tpu.memory_space<vmem>>, vector<1x32x1xf32>,
    %c0_102 = arith.constant 0 : index
    %c0_103 = arith.constant 0 : index
    %c0_104 = arith.constant 0 : index
    %194 = vector.load %arg6[%c0_102, %c0_103, %c0_104] : memref<1x32x1xf32, #tpu.memory_space<vmem>>, vector<1x32x1xf32>
    %195 = vector.shape_cast %194 : vector<1x32x1xf32> to vector<32x1xf32>
    %196 = vector.shape_cast %190 : vector<32x1xf32> to vector<1x32x1xf32>
    tpu.vector_store %arg6[%c0_102, %c0_103, %c0_104], %196 {strides = array<i32>} : memref<1x32x1xf32, #tpu.memory_space<vmem>>, vector<1x32x1xf32>,
    return
  }
  func.func @transform_0(%arg0: i32) -> (i32, i32) {
    %c0_i32 = arith.constant 0 : i32
    %c0_i32_0 = arith.constant 0 : i32
    return %c0_i32, %arg0 : i32, i32
  }
  func.func @transform_1(%arg0: i32) -> (i32, i32) {
    %c0_i32 = arith.constant 0 : i32
    %c0_i32_0 = arith.constant 0 : i32
    return %c0_i32, %arg0 : i32, i32
  }
  func.func @transform_2(%arg0: i32) -> (i32, i32, i32, i32) {
    %c0_i32 = arith.constant 0 : i32
    %c0_i32_0 = arith.constant 0 : i32
    %c0_i32_1 = arith.constant 0 : i32
    %c0_i32_2 = arith.constant 0 : i32
    %c0_i32_3 = arith.constant 0 : i32
    return %c0_i32, %c0_i32_0, %c0_i32_1, %c0_i32_2 : i32, i32, i32, i32
  }
  func.func @transform_3(%arg0: i32) -> (i32, i32, i32) {
    %c0_i32 = arith.constant 0 : i32
    %c0_i32_0 = arith.constant 0 : i32
    %c0_i32_1 = arith.constant 0 : i32
    return %c0_i32, %c0_i32_0, %arg0 : i32, i32, i32
  }
  func.func @transform_4(%arg0: i32) -> (i32, i32, i32) {
    %c0_i32 = arith.constant 0 : i32
    %c0_i32_0 = arith.constant 0 : i32
    %c0_i32_1 = arith.constant 0 : i32
    return %arg0, %c0_i32, %c0_i32_0 : i32, i32, i32
  }
  func.func @transform_5(%arg0: i32) -> (i32, i32, i32) {
    %c0_i32 = arith.constant 0 : i32
    %c0_i32_0 = arith.constant 0 : i32
    %c0_i32_1 = arith.constant 0 : i32
    return %arg0, %c0_i32, %c0_i32_0 : i32, i32, i32
  }
}

module attributes {stable_mosaic.version = 11 : i64} {
  func.func @kernel(%arg0: i32, %arg1: memref<32x128xbf16, #tpu.memory_space<vmem>>, %arg2: memref<5x128xbf16, #tpu.memory_space<vmem>>, %arg3: memref<4x4x16x32xbf16, #tpu.memory_space<vmem>>, %arg4: memref<32x1xf32, #tpu.memory_space<vmem>>, %arg5: memref<32x1xf32, #tpu.memory_space<vmem>>, %arg6: memref<4x16x128xbf16, #tpu.memory_space<vmem>>, %arg7: memref<1x16x1xf32, #tpu.memory_space<vmem>>, %arg8: memref<1x16x1xf32, #tpu.memory_space<vmem>>) attributes {dimension_semantics = [#tpu.dimension_semantics<parallel>], iteration_bounds = array<i64: 1>, scalar_prefetch = 0 : i64, scratch_operands = 0 : i64, tpu.core_type = #tpu.core_type<tc>, window_params = [{transform_indices = @transform_0, window_bounds = array<i64: 32, 128>}, {transform_indices = @transform_1, window_bounds = array<i64: 5, 128>}, {pipeline_mode = #tpu.pipeline_mode<synchronous>, transform_indices = @transform_2, window_bounds = array<i64: 4, 4, 16, 32>}, {pipeline_mode = #tpu.pipeline_mode<synchronous>, transform_indices = @transform_3, window_bounds = array<i64: 32, 1>}, {pipeline_mode = #tpu.pipeline_mode<synchronous>, transform_indices = @transform_4, window_bounds = array<i64: 32, 1>}, {transform_indices = @transform_5, window_bounds = array<i64: 4, 16, 128>}, {transform_indices = @transform_6, window_bounds = array<i64: 1, 16, 1>}, {transform_indices = @transform_7, window_bounds = array<i64: 1, 16, 1>}]} {
    %c0 = arith.constant 0 : index
    %c0_0 = arith.constant 0 : index
    %0 = vector.load %arg2[%c0, %c0_0] : memref<5x128xbf16, #tpu.memory_space<vmem>>, vector<5x128xbf16>
    %c0_1 = arith.constant 0 : index
    %c0_2 = arith.constant 0 : index
    %1 = vector.load %arg1[%c0_1, %c0_2] : memref<32x128xbf16, #tpu.memory_space<vmem>>, vector<32x128xbf16>
    %2 = arith.extf %1 : vector<32x128xbf16> to vector<32x128xf32>
    %c0_3 = arith.constant 0 : index
    %c0_4 = arith.constant 0 : index
    %3 = vector.load %arg4[%c0_3, %c0_4] : memref<32x1xf32, #tpu.memory_space<vmem>>, vector<32x1xf32>
    %4 = vector.broadcast %3 : vector<32x1xf32> to vector<32x128xf32>
    %5 = arith.mulf %2, %4 : vector<32x128xf32>
    %c0_5 = arith.constant 0 : index
    %c0_6 = arith.constant 0 : index
    %6 = vector.load %arg5[%c0_5, %c0_6] : memref<32x1xf32, #tpu.memory_space<vmem>>, vector<32x1xf32>
    %7 = vector.broadcast %6 : vector<32x1xf32> to vector<32x128xf32>
    %8 = arith.addf %5, %7 : vector<32x128xf32>
    %cst = arith.constant 0.000000e+00 : f32
    %9 = vector.broadcast %cst : f32 to vector<32x128xf32>
    %10 = arith.maximumf %8, %9 : vector<32x128xf32>
    %11 = arith.truncf %10 : vector<32x128xf32> to vector<32x128xbf16>
    %12 = vector.extract_strided_slice %0 {offsets = [0, 0], sizes = [1, 128], strides = [1, 1]} : vector<5x128xbf16> to vector<1x128xbf16>
    %13 = vector.broadcast %12 : vector<1x128xbf16> to vector<32x128xbf16>
    %14 = arith.mulf %11, %13 : vector<32x128xbf16>
    %15 = vector.extract_strided_slice %14 {offsets = [0, 119], sizes = [32, 9], strides = [1, 1]} : vector<32x128xbf16> to vector<32x9xbf16>
    %16 = vector.extract_strided_slice %14 {offsets = [0, 0], sizes = [32, 119], strides = [1, 1]} : vector<32x128xbf16> to vector<32x119xbf16>
    %17 = tpu.concatenate %15, %16 in 1 : vector<32x9xbf16>, vector<32x119xbf16> -> vector<32x128xbf16>
    %18 = vector.extract_strided_slice %0 {offsets = [1, 0], sizes = [1, 128], strides = [1, 1]} : vector<5x128xbf16> to vector<1x128xbf16>
    %19 = vector.broadcast %18 : vector<1x128xbf16> to vector<32x128xbf16>
    %20 = arith.mulf %17, %19 : vector<32x128xbf16>
    %21 = vector.extract_strided_slice %0 {offsets = [3, 0], sizes = [1, 128], strides = [1, 1]} : vector<5x128xbf16> to vector<1x128xbf16>
    %22 = vector.broadcast %21 : vector<1x128xbf16> to vector<32x128xbf16>
    %23 = arith.mulf %20, %22 : vector<32x128xbf16>
    %c0_7 = arith.constant 0 : index
    %c0_8 = arith.constant 0 : index
    %c0_9 = arith.constant 0 : index
    %c0_10 = arith.constant 0 : index
    %24 = vector.load %arg3[%c0_7, %c0_8, %c0_9, %c0_10] : memref<4x4x16x32xbf16, #tpu.memory_space<vmem>>, vector<1x1x16x32xbf16>
    %25 = vector.shape_cast %24 : vector<1x1x16x32xbf16> to vector<16x32xbf16>
    %cst_11 = arith.constant dense<0.000000e+00> : vector<16x128xf32>
    %26 = tpu.matmul %25, %23, %cst_11 {dimension_numbers = #tpu.dot_dimension_numbers<[1], [0], [0], [1], [0, 0, 1, 1], [], []>} : vector<16x32xbf16>, vector<32x128xbf16>, vector<16x128xf32> -> vector<16x128xf32>
    %27 = vector.extract_strided_slice %14 {offsets = [0, 120], sizes = [32, 8], strides = [1, 1]} : vector<32x128xbf16> to vector<32x8xbf16>
    %28 = vector.extract_strided_slice %14 {offsets = [0, 0], sizes = [32, 120], strides = [1, 1]} : vector<32x128xbf16> to vector<32x120xbf16>
    %29 = tpu.concatenate %27, %28 in 1 : vector<32x8xbf16>, vector<32x120xbf16> -> vector<32x128xbf16>
    %30 = vector.extract_strided_slice %0 {offsets = [1, 0], sizes = [1, 128], strides = [1, 1]} : vector<5x128xbf16> to vector<1x128xbf16>
    %31 = vector.broadcast %30 : vector<1x128xbf16> to vector<32x128xbf16>
    %32 = arith.mulf %29, %31 : vector<32x128xbf16>
    %c0_12 = arith.constant 0 : index
    %c1 = arith.constant 1 : index
    %c0_13 = arith.constant 0 : index
    %c0_14 = arith.constant 0 : index
    %33 = vector.load %arg3[%c0_12, %c1, %c0_13, %c0_14] : memref<4x4x16x32xbf16, #tpu.memory_space<vmem>>, vector<1x1x16x32xbf16>
    %34 = vector.shape_cast %33 : vector<1x1x16x32xbf16> to vector<16x32xbf16>
    %cst_15 = arith.constant dense<0.000000e+00> : vector<16x128xf32>
    %35 = tpu.matmul %34, %32, %cst_15 {dimension_numbers = #tpu.dot_dimension_numbers<[1], [0], [0], [1], [0, 0, 1, 1], [], []>} : vector<16x32xbf16>, vector<32x128xbf16>, vector<16x128xf32> -> vector<16x128xf32>
    %36 = arith.addf %26, %35 : vector<16x128xf32>
    %37 = vector.extract_strided_slice %14 {offsets = [0, 127], sizes = [32, 1], strides = [1, 1]} : vector<32x128xbf16> to vector<32x1xbf16>
    %38 = vector.extract_strided_slice %14 {offsets = [0, 0], sizes = [32, 127], strides = [1, 1]} : vector<32x128xbf16> to vector<32x127xbf16>
    %39 = tpu.concatenate %37, %38 in 1 : vector<32x1xbf16>, vector<32x127xbf16> -> vector<32x128xbf16>
    %40 = vector.extract_strided_slice %0 {offsets = [3, 0], sizes = [1, 128], strides = [1, 1]} : vector<5x128xbf16> to vector<1x128xbf16>
    %41 = vector.broadcast %40 : vector<1x128xbf16> to vector<32x128xbf16>
    %42 = arith.mulf %39, %41 : vector<32x128xbf16>
    %c0_16 = arith.constant 0 : index
    %c2 = arith.constant 2 : index
    %c0_17 = arith.constant 0 : index
    %c0_18 = arith.constant 0 : index
    %43 = vector.load %arg3[%c0_16, %c2, %c0_17, %c0_18] : memref<4x4x16x32xbf16, #tpu.memory_space<vmem>>, vector<1x1x16x32xbf16>
    %44 = vector.shape_cast %43 : vector<1x1x16x32xbf16> to vector<16x32xbf16>
    %cst_19 = arith.constant dense<0.000000e+00> : vector<16x128xf32>
    %45 = tpu.matmul %44, %42, %cst_19 {dimension_numbers = #tpu.dot_dimension_numbers<[1], [0], [0], [1], [0, 0, 1, 1], [], []>} : vector<16x32xbf16>, vector<32x128xbf16>, vector<16x128xf32> -> vector<16x128xf32>
    %46 = arith.addf %36, %45 : vector<16x128xf32>
    %c0_20 = arith.constant 0 : index
    %c3 = arith.constant 3 : index
    %c0_21 = arith.constant 0 : index
    %c0_22 = arith.constant 0 : index
    %47 = vector.load %arg3[%c0_20, %c3, %c0_21, %c0_22] : memref<4x4x16x32xbf16, #tpu.memory_space<vmem>>, vector<1x1x16x32xbf16>
    %48 = vector.shape_cast %47 : vector<1x1x16x32xbf16> to vector<16x32xbf16>
    %cst_23 = arith.constant dense<0.000000e+00> : vector<16x128xf32>
    %49 = tpu.matmul %48, %14, %cst_23 {dimension_numbers = #tpu.dot_dimension_numbers<[1], [0], [0], [1], [0, 0, 1, 1], [], []>} : vector<16x32xbf16>, vector<32x128xbf16>, vector<16x128xf32> -> vector<16x128xf32>
    %50 = arith.addf %46, %49 : vector<16x128xf32>
    %51 = arith.truncf %50 : vector<16x128xf32> to vector<16x128xbf16>
    %c0_24 = arith.constant 0 : index
    %c0_25 = arith.constant 0 : index
    %c0_26 = arith.constant 0 : index
    %52 = vector.load %arg6[%c0_24, %c0_25, %c0_26] : memref<4x16x128xbf16, #tpu.memory_space<vmem>>, vector<1x16x128xbf16>
    %53 = vector.shape_cast %52 : vector<1x16x128xbf16> to vector<16x128xbf16>
    %54 = vector.shape_cast %51 : vector<16x128xbf16> to vector<1x16x128xbf16>
    tpu.vector_store %arg6[%c0_24, %c0_25, %c0_26], %54 {strides = array<i32>} : memref<4x16x128xbf16, #tpu.memory_space<vmem>>, vector<1x16x128xbf16>,
    %cst_27 = arith.constant dense<0.000000e+00> : vector<16xf32>
    %55 = vector.multi_reduction <add>, %50, %cst_27 [1] : vector<16x128xf32> to vector<16xf32>
    %56 = vector.shape_cast %55 : vector<16xf32> to vector<16x1xf32>
    %57 = arith.mulf %50, %50 : vector<16x128xf32>
    %cst_28 = arith.constant dense<0.000000e+00> : vector<16xf32>
    %58 = vector.multi_reduction <add>, %57, %cst_28 [1] : vector<16x128xf32> to vector<16xf32>
    %59 = vector.shape_cast %58 : vector<16xf32> to vector<16x1xf32>
    %60 = vector.extract_strided_slice %14 {offsets = [0, 120], sizes = [32, 8], strides = [1, 1]} : vector<32x128xbf16> to vector<32x8xbf16>
    %61 = vector.extract_strided_slice %14 {offsets = [0, 0], sizes = [32, 120], strides = [1, 1]} : vector<32x128xbf16> to vector<32x120xbf16>
    %62 = tpu.concatenate %60, %61 in 1 : vector<32x8xbf16>, vector<32x120xbf16> -> vector<32x128xbf16>
    %63 = vector.extract_strided_slice %0 {offsets = [1, 0], sizes = [1, 128], strides = [1, 1]} : vector<5x128xbf16> to vector<1x128xbf16>
    %64 = vector.broadcast %63 : vector<1x128xbf16> to vector<32x128xbf16>
    %65 = arith.mulf %62, %64 : vector<32x128xbf16>
    %c1_29 = arith.constant 1 : index
    %c0_30 = arith.constant 0 : index
    %c0_31 = arith.constant 0 : index
    %c0_32 = arith.constant 0 : index
    %66 = vector.load %arg3[%c1_29, %c0_30, %c0_31, %c0_32] : memref<4x4x16x32xbf16, #tpu.memory_space<vmem>>, vector<1x1x16x32xbf16>
    %67 = vector.shape_cast %66 : vector<1x1x16x32xbf16> to vector<16x32xbf16>
    %cst_33 = arith.constant dense<0.000000e+00> : vector<16x128xf32>
    %68 = tpu.matmul %67, %65, %cst_33 {dimension_numbers = #tpu.dot_dimension_numbers<[1], [0], [0], [1], [0, 0, 1, 1], [], []>} : vector<16x32xbf16>, vector<32x128xbf16>, vector<16x128xf32> -> vector<16x128xf32>
    %69 = vector.extract_strided_slice %14 {offsets = [0, 121], sizes = [32, 7], strides = [1, 1]} : vector<32x128xbf16> to vector<32x7xbf16>
    %70 = vector.extract_strided_slice %14 {offsets = [0, 0], sizes = [32, 121], strides = [1, 1]} : vector<32x128xbf16> to vector<32x121xbf16>
    %71 = tpu.concatenate %69, %70 in 1 : vector<32x7xbf16>, vector<32x121xbf16> -> vector<32x128xbf16>
    %72 = vector.extract_strided_slice %0 {offsets = [1, 0], sizes = [1, 128], strides = [1, 1]} : vector<5x128xbf16> to vector<1x128xbf16>
    %73 = vector.broadcast %72 : vector<1x128xbf16> to vector<32x128xbf16>
    %74 = arith.mulf %71, %73 : vector<32x128xbf16>
    %75 = vector.extract_strided_slice %0 {offsets = [4, 0], sizes = [1, 128], strides = [1, 1]} : vector<5x128xbf16> to vector<1x128xbf16>
    %76 = vector.broadcast %75 : vector<1x128xbf16> to vector<32x128xbf16>
    %77 = arith.mulf %74, %76 : vector<32x128xbf16>
    %c1_34 = arith.constant 1 : index
    %c1_35 = arith.constant 1 : index
    %c0_36 = arith.constant 0 : index
    %c0_37 = arith.constant 0 : index
    %78 = vector.load %arg3[%c1_34, %c1_35, %c0_36, %c0_37] : memref<4x4x16x32xbf16, #tpu.memory_space<vmem>>, vector<1x1x16x32xbf16>
    %79 = vector.shape_cast %78 : vector<1x1x16x32xbf16> to vector<16x32xbf16>
    %cst_38 = arith.constant dense<0.000000e+00> : vector<16x128xf32>
    %80 = tpu.matmul %79, %77, %cst_38 {dimension_numbers = #tpu.dot_dimension_numbers<[1], [0], [0], [1], [0, 0, 1, 1], [], []>} : vector<16x32xbf16>, vector<32x128xbf16>, vector<16x128xf32> -> vector<16x128xf32>
    %81 = arith.addf %68, %80 : vector<16x128xf32>
    %c1_39 = arith.constant 1 : index
    %c2_40 = arith.constant 2 : index
    %c0_41 = arith.constant 0 : index
    %c0_42 = arith.constant 0 : index
    %82 = vector.load %arg3[%c1_39, %c2_40, %c0_41, %c0_42] : memref<4x4x16x32xbf16, #tpu.memory_space<vmem>>, vector<1x1x16x32xbf16>
    %83 = vector.shape_cast %82 : vector<1x1x16x32xbf16> to vector<16x32xbf16>
    %cst_43 = arith.constant dense<0.000000e+00> : vector<16x128xf32>
    %84 = tpu.matmul %83, %14, %cst_43 {dimension_numbers = #tpu.dot_dimension_numbers<[1], [0], [0], [1], [0, 0, 1, 1], [], []>} : vector<16x32xbf16>, vector<32x128xbf16>, vector<16x128xf32> -> vector<16x128xf32>
    %85 = arith.addf %81, %84 : vector<16x128xf32>
    %86 = vector.extract_strided_slice %14 {offsets = [0, 1], sizes = [32, 127], strides = [1, 1]} : vector<32x128xbf16> to vector<32x127xbf16>
    %87 = vector.extract_strided_slice %14 {offsets = [0, 0], sizes = [32, 1], strides = [1, 1]} : vector<32x128xbf16> to vector<32x1xbf16>
    %88 = tpu.concatenate %86, %87 in 1 : vector<32x127xbf16>, vector<32x1xbf16> -> vector<32x128xbf16>
    %89 = vector.extract_strided_slice %0 {offsets = [4, 0], sizes = [1, 128], strides = [1, 1]} : vector<5x128xbf16> to vector<1x128xbf16>
    %90 = vector.broadcast %89 : vector<1x128xbf16> to vector<32x128xbf16>
    %91 = arith.mulf %88, %90 : vector<32x128xbf16>
    %c1_44 = arith.constant 1 : index
    %c3_45 = arith.constant 3 : index
    %c0_46 = arith.constant 0 : index
    %c0_47 = arith.constant 0 : index
    %92 = vector.load %arg3[%c1_44, %c3_45, %c0_46, %c0_47] : memref<4x4x16x32xbf16, #tpu.memory_space<vmem>>, vector<1x1x16x32xbf16>
    %93 = vector.shape_cast %92 : vector<1x1x16x32xbf16> to vector<16x32xbf16>
    %cst_48 = arith.constant dense<0.000000e+00> : vector<16x128xf32>
    %94 = tpu.matmul %93, %91, %cst_48 {dimension_numbers = #tpu.dot_dimension_numbers<[1], [0], [0], [1], [0, 0, 1, 1], [], []>} : vector<16x32xbf16>, vector<32x128xbf16>, vector<16x128xf32> -> vector<16x128xf32>
    %95 = arith.addf %85, %94 : vector<16x128xf32>
    %96 = arith.truncf %95 : vector<16x128xf32> to vector<16x128xbf16>
    %c1_49 = arith.constant 1 : index
    %c0_50 = arith.constant 0 : index
    %c0_51 = arith.constant 0 : index
    %97 = vector.load %arg6[%c1_49, %c0_50, %c0_51] : memref<4x16x128xbf16, #tpu.memory_space<vmem>>, vector<1x16x128xbf16>
    %98 = vector.shape_cast %97 : vector<1x16x128xbf16> to vector<16x128xbf16>
    %99 = vector.shape_cast %96 : vector<16x128xbf16> to vector<1x16x128xbf16>
    tpu.vector_store %arg6[%c1_49, %c0_50, %c0_51], %99 {strides = array<i32>} : memref<4x16x128xbf16, #tpu.memory_space<vmem>>, vector<1x16x128xbf16>,
    %cst_52 = arith.constant dense<0.000000e+00> : vector<16xf32>
    %100 = vector.multi_reduction <add>, %95, %cst_52 [1] : vector<16x128xf32> to vector<16xf32>
    %101 = vector.shape_cast %100 : vector<16xf32> to vector<16x1xf32>
    %102 = arith.mulf %95, %95 : vector<16x128xf32>
    %cst_53 = arith.constant dense<0.000000e+00> : vector<16xf32>
    %103 = vector.multi_reduction <add>, %102, %cst_53 [1] : vector<16x128xf32> to vector<16xf32>
    %104 = vector.shape_cast %103 : vector<16xf32> to vector<16x1xf32>
    %105 = arith.addf %56, %101 : vector<16x1xf32>
    %106 = arith.addf %59, %104 : vector<16x1xf32>
    %107 = vector.extract_strided_slice %14 {offsets = [0, 127], sizes = [32, 1], strides = [1, 1]} : vector<32x128xbf16> to vector<32x1xbf16>
    %108 = vector.extract_strided_slice %14 {offsets = [0, 0], sizes = [32, 127], strides = [1, 1]} : vector<32x128xbf16> to vector<32x127xbf16>
    %109 = tpu.concatenate %107, %108 in 1 : vector<32x1xbf16>, vector<32x127xbf16> -> vector<32x128xbf16>
    %110 = vector.extract_strided_slice %0 {offsets = [3, 0], sizes = [1, 128], strides = [1, 1]} : vector<5x128xbf16> to vector<1x128xbf16>
    %111 = vector.broadcast %110 : vector<1x128xbf16> to vector<32x128xbf16>
    %112 = arith.mulf %109, %111 : vector<32x128xbf16>
    %c2_54 = arith.constant 2 : index
    %c0_55 = arith.constant 0 : index
    %c0_56 = arith.constant 0 : index
    %c0_57 = arith.constant 0 : index
    %113 = vector.load %arg3[%c2_54, %c0_55, %c0_56, %c0_57] : memref<4x4x16x32xbf16, #tpu.memory_space<vmem>>, vector<1x1x16x32xbf16>
    %114 = vector.shape_cast %113 : vector<1x1x16x32xbf16> to vector<16x32xbf16>
    %cst_58 = arith.constant dense<0.000000e+00> : vector<16x128xf32>
    %115 = tpu.matmul %114, %112, %cst_58 {dimension_numbers = #tpu.dot_dimension_numbers<[1], [0], [0], [1], [0, 0, 1, 1], [], []>} : vector<16x32xbf16>, vector<32x128xbf16>, vector<16x128xf32> -> vector<16x128xf32>
    %c2_59 = arith.constant 2 : index
    %c1_60 = arith.constant 1 : index
    %c0_61 = arith.constant 0 : index
    %c0_62 = arith.constant 0 : index
    %116 = vector.load %arg3[%c2_59, %c1_60, %c0_61, %c0_62] : memref<4x4x16x32xbf16, #tpu.memory_space<vmem>>, vector<1x1x16x32xbf16>
    %117 = vector.shape_cast %116 : vector<1x1x16x32xbf16> to vector<16x32xbf16>
    %cst_63 = arith.constant dense<0.000000e+00> : vector<16x128xf32>
    %118 = tpu.matmul %117, %14, %cst_63 {dimension_numbers = #tpu.dot_dimension_numbers<[1], [0], [0], [1], [0, 0, 1, 1], [], []>} : vector<16x32xbf16>, vector<32x128xbf16>, vector<16x128xf32> -> vector<16x128xf32>
    %119 = arith.addf %115, %118 : vector<16x128xf32>
    %120 = vector.extract_strided_slice %14 {offsets = [0, 7], sizes = [32, 121], strides = [1, 1]} : vector<32x128xbf16> to vector<32x121xbf16>
    %121 = vector.extract_strided_slice %14 {offsets = [0, 0], sizes = [32, 7], strides = [1, 1]} : vector<32x128xbf16> to vector<32x7xbf16>
    %122 = tpu.concatenate %120, %121 in 1 : vector<32x121xbf16>, vector<32x7xbf16> -> vector<32x128xbf16>
    %123 = vector.extract_strided_slice %0 {offsets = [2, 0], sizes = [1, 128], strides = [1, 1]} : vector<5x128xbf16> to vector<1x128xbf16>
    %124 = vector.broadcast %123 : vector<1x128xbf16> to vector<32x128xbf16>
    %125 = arith.mulf %122, %124 : vector<32x128xbf16>
    %126 = vector.extract_strided_slice %0 {offsets = [3, 0], sizes = [1, 128], strides = [1, 1]} : vector<5x128xbf16> to vector<1x128xbf16>
    %127 = vector.broadcast %126 : vector<1x128xbf16> to vector<32x128xbf16>
    %128 = arith.mulf %125, %127 : vector<32x128xbf16>
    %c2_64 = arith.constant 2 : index
    %c2_65 = arith.constant 2 : index
    %c0_66 = arith.constant 0 : index
    %c0_67 = arith.constant 0 : index
    %129 = vector.load %arg3[%c2_64, %c2_65, %c0_66, %c0_67] : memref<4x4x16x32xbf16, #tpu.memory_space<vmem>>, vector<1x1x16x32xbf16>
    %130 = vector.shape_cast %129 : vector<1x1x16x32xbf16> to vector<16x32xbf16>
    %cst_68 = arith.constant dense<0.000000e+00> : vector<16x128xf32>
    %131 = tpu.matmul %130, %128, %cst_68 {dimension_numbers = #tpu.dot_dimension_numbers<[1], [0], [0], [1], [0, 0, 1, 1], [], []>} : vector<16x32xbf16>, vector<32x128xbf16>, vector<16x128xf32> -> vector<16x128xf32>
    %132 = arith.addf %119, %131 : vector<16x128xf32>
    %133 = vector.extract_strided_slice %14 {offsets = [0, 8], sizes = [32, 120], strides = [1, 1]} : vector<32x128xbf16> to vector<32x120xbf16>
    %134 = vector.extract_strided_slice %14 {offsets = [0, 0], sizes = [32, 8], strides = [1, 1]} : vector<32x128xbf16> to vector<32x8xbf16>
    %135 = tpu.concatenate %133, %134 in 1 : vector<32x120xbf16>, vector<32x8xbf16> -> vector<32x128xbf16>
    %136 = vector.extract_strided_slice %0 {offsets = [2, 0], sizes = [1, 128], strides = [1, 1]} : vector<5x128xbf16> to vector<1x128xbf16>
    %137 = vector.broadcast %136 : vector<1x128xbf16> to vector<32x128xbf16>
    %138 = arith.mulf %135, %137 : vector<32x128xbf16>
    %c2_69 = arith.constant 2 : index
    %c3_70 = arith.constant 3 : index
    %c0_71 = arith.constant 0 : index
    %c0_72 = arith.constant 0 : index
    %139 = vector.load %arg3[%c2_69, %c3_70, %c0_71, %c0_72] : memref<4x4x16x32xbf16, #tpu.memory_space<vmem>>, vector<1x1x16x32xbf16>
    %140 = vector.shape_cast %139 : vector<1x1x16x32xbf16> to vector<16x32xbf16>
    %cst_73 = arith.constant dense<0.000000e+00> : vector<16x128xf32>
    %141 = tpu.matmul %140, %138, %cst_73 {dimension_numbers = #tpu.dot_dimension_numbers<[1], [0], [0], [1], [0, 0, 1, 1], [], []>} : vector<16x32xbf16>, vector<32x128xbf16>, vector<16x128xf32> -> vector<16x128xf32>
    %142 = arith.addf %132, %141 : vector<16x128xf32>
    %143 = arith.truncf %142 : vector<16x128xf32> to vector<16x128xbf16>
    %c2_74 = arith.constant 2 : index
    %c0_75 = arith.constant 0 : index
    %c0_76 = arith.constant 0 : index
    %144 = vector.load %arg6[%c2_74, %c0_75, %c0_76] : memref<4x16x128xbf16, #tpu.memory_space<vmem>>, vector<1x16x128xbf16>
    %145 = vector.shape_cast %144 : vector<1x16x128xbf16> to vector<16x128xbf16>
    %146 = vector.shape_cast %143 : vector<16x128xbf16> to vector<1x16x128xbf16>
    tpu.vector_store %arg6[%c2_74, %c0_75, %c0_76], %146 {strides = array<i32>} : memref<4x16x128xbf16, #tpu.memory_space<vmem>>, vector<1x16x128xbf16>,
    %cst_77 = arith.constant dense<0.000000e+00> : vector<16xf32>
    %147 = vector.multi_reduction <add>, %142, %cst_77 [1] : vector<16x128xf32> to vector<16xf32>
    %148 = vector.shape_cast %147 : vector<16xf32> to vector<16x1xf32>
    %149 = arith.mulf %142, %142 : vector<16x128xf32>
    %cst_78 = arith.constant dense<0.000000e+00> : vector<16xf32>
    %150 = vector.multi_reduction <add>, %149, %cst_78 [1] : vector<16x128xf32> to vector<16xf32>
    %151 = vector.shape_cast %150 : vector<16xf32> to vector<16x1xf32>
    %152 = arith.addf %105, %148 : vector<16x1xf32>
    %153 = arith.addf %106, %151 : vector<16x1xf32>
    %c3_79 = arith.constant 3 : index
    %c0_80 = arith.constant 0 : index
    %c0_81 = arith.constant 0 : index
    %c0_82 = arith.constant 0 : index
    %154 = vector.load %arg3[%c3_79, %c0_80, %c0_81, %c0_82] : memref<4x4x16x32xbf16, #tpu.memory_space<vmem>>, vector<1x1x16x32xbf16>
    %155 = vector.shape_cast %154 : vector<1x1x16x32xbf16> to vector<16x32xbf16>
    %cst_83 = arith.constant dense<0.000000e+00> : vector<16x128xf32>
    %156 = tpu.matmul %155, %14, %cst_83 {dimension_numbers = #tpu.dot_dimension_numbers<[1], [0], [0], [1], [0, 0, 1, 1], [], []>} : vector<16x32xbf16>, vector<32x128xbf16>, vector<16x128xf32> -> vector<16x128xf32>
    %157 = vector.extract_strided_slice %14 {offsets = [0, 1], sizes = [32, 127], strides = [1, 1]} : vector<32x128xbf16> to vector<32x127xbf16>
    %158 = vector.extract_strided_slice %14 {offsets = [0, 0], sizes = [32, 1], strides = [1, 1]} : vector<32x128xbf16> to vector<32x1xbf16>
    %159 = tpu.concatenate %157, %158 in 1 : vector<32x127xbf16>, vector<32x1xbf16> -> vector<32x128xbf16>
    %160 = vector.extract_strided_slice %0 {offsets = [4, 0], sizes = [1, 128], strides = [1, 1]} : vector<5x128xbf16> to vector<1x128xbf16>
    %161 = vector.broadcast %160 : vector<1x128xbf16> to vector<32x128xbf16>
    %162 = arith.mulf %159, %161 : vector<32x128xbf16>
    %c3_84 = arith.constant 3 : index
    %c1_85 = arith.constant 1 : index
    %c0_86 = arith.constant 0 : index
    %c0_87 = arith.constant 0 : index
    %163 = vector.load %arg3[%c3_84, %c1_85, %c0_86, %c0_87] : memref<4x4x16x32xbf16, #tpu.memory_space<vmem>>, vector<1x1x16x32xbf16>
    %164 = vector.shape_cast %163 : vector<1x1x16x32xbf16> to vector<16x32xbf16>
    %cst_88 = arith.constant dense<0.000000e+00> : vector<16x128xf32>
    %165 = tpu.matmul %164, %162, %cst_88 {dimension_numbers = #tpu.dot_dimension_numbers<[1], [0], [0], [1], [0, 0, 1, 1], [], []>} : vector<16x32xbf16>, vector<32x128xbf16>, vector<16x128xf32> -> vector<16x128xf32>
    %166 = arith.addf %156, %165 : vector<16x128xf32>
    %167 = vector.extract_strided_slice %14 {offsets = [0, 8], sizes = [32, 120], strides = [1, 1]} : vector<32x128xbf16> to vector<32x120xbf16>
    %168 = vector.extract_strided_slice %14 {offsets = [0, 0], sizes = [32, 8], strides = [1, 1]} : vector<32x128xbf16> to vector<32x8xbf16>
    %169 = tpu.concatenate %167, %168 in 1 : vector<32x120xbf16>, vector<32x8xbf16> -> vector<32x128xbf16>
    %170 = vector.extract_strided_slice %0 {offsets = [2, 0], sizes = [1, 128], strides = [1, 1]} : vector<5x128xbf16> to vector<1x128xbf16>
    %171 = vector.broadcast %170 : vector<1x128xbf16> to vector<32x128xbf16>
    %172 = arith.mulf %169, %171 : vector<32x128xbf16>
    %c3_89 = arith.constant 3 : index
    %c2_90 = arith.constant 2 : index
    %c0_91 = arith.constant 0 : index
    %c0_92 = arith.constant 0 : index
    %173 = vector.load %arg3[%c3_89, %c2_90, %c0_91, %c0_92] : memref<4x4x16x32xbf16, #tpu.memory_space<vmem>>, vector<1x1x16x32xbf16>
    %174 = vector.shape_cast %173 : vector<1x1x16x32xbf16> to vector<16x32xbf16>
    %cst_93 = arith.constant dense<0.000000e+00> : vector<16x128xf32>
    %175 = tpu.matmul %174, %172, %cst_93 {dimension_numbers = #tpu.dot_dimension_numbers<[1], [0], [0], [1], [0, 0, 1, 1], [], []>} : vector<16x32xbf16>, vector<32x128xbf16>, vector<16x128xf32> -> vector<16x128xf32>
    %176 = arith.addf %166, %175 : vector<16x128xf32>
    %177 = vector.extract_strided_slice %14 {offsets = [0, 9], sizes = [32, 119], strides = [1, 1]} : vector<32x128xbf16> to vector<32x119xbf16>
    %178 = vector.extract_strided_slice %14 {offsets = [0, 0], sizes = [32, 9], strides = [1, 1]} : vector<32x128xbf16> to vector<32x9xbf16>
    %179 = tpu.concatenate %177, %178 in 1 : vector<32x119xbf16>, vector<32x9xbf16> -> vector<32x128xbf16>
    %180 = vector.extract_strided_slice %0 {offsets = [2, 0], sizes = [1, 128], strides = [1, 1]} : vector<5x128xbf16> to vector<1x128xbf16>
    %181 = vector.broadcast %180 : vector<1x128xbf16> to vector<32x128xbf16>
    %182 = arith.mulf %179, %181 : vector<32x128xbf16>
    %183 = vector.extract_strided_slice %0 {offsets = [4, 0], sizes = [1, 128], strides = [1, 1]} : vector<5x128xbf16> to vector<1x128xbf16>
    %184 = vector.broadcast %183 : vector<1x128xbf16> to vector<32x128xbf16>
    %185 = arith.mulf %182, %184 : vector<32x128xbf16>
    %c3_94 = arith.constant 3 : index
    %c3_95 = arith.constant 3 : index
    %c0_96 = arith.constant 0 : index
    %c0_97 = arith.constant 0 : index
    %186 = vector.load %arg3[%c3_94, %c3_95, %c0_96, %c0_97] : memref<4x4x16x32xbf16, #tpu.memory_space<vmem>>, vector<1x1x16x32xbf16>
    %187 = vector.shape_cast %186 : vector<1x1x16x32xbf16> to vector<16x32xbf16>
    %cst_98 = arith.constant dense<0.000000e+00> : vector<16x128xf32>
    %188 = tpu.matmul %187, %185, %cst_98 {dimension_numbers = #tpu.dot_dimension_numbers<[1], [0], [0], [1], [0, 0, 1, 1], [], []>} : vector<16x32xbf16>, vector<32x128xbf16>, vector<16x128xf32> -> vector<16x128xf32>
    %189 = arith.addf %176, %188 : vector<16x128xf32>
    %190 = arith.truncf %189 : vector<16x128xf32> to vector<16x128xbf16>
    %c3_99 = arith.constant 3 : index
    %c0_100 = arith.constant 0 : index
    %c0_101 = arith.constant 0 : index
    %191 = vector.load %arg6[%c3_99, %c0_100, %c0_101] : memref<4x16x128xbf16, #tpu.memory_space<vmem>>, vector<1x16x128xbf16>
    %192 = vector.shape_cast %191 : vector<1x16x128xbf16> to vector<16x128xbf16>
    %193 = vector.shape_cast %190 : vector<16x128xbf16> to vector<1x16x128xbf16>
    tpu.vector_store %arg6[%c3_99, %c0_100, %c0_101], %193 {strides = array<i32>} : memref<4x16x128xbf16, #tpu.memory_space<vmem>>, vector<1x16x128xbf16>,
    %cst_102 = arith.constant dense<0.000000e+00> : vector<16xf32>
    %194 = vector.multi_reduction <add>, %189, %cst_102 [1] : vector<16x128xf32> to vector<16xf32>
    %195 = vector.shape_cast %194 : vector<16xf32> to vector<16x1xf32>
    %196 = arith.mulf %189, %189 : vector<16x128xf32>
    %cst_103 = arith.constant dense<0.000000e+00> : vector<16xf32>
    %197 = vector.multi_reduction <add>, %196, %cst_103 [1] : vector<16x128xf32> to vector<16xf32>
    %198 = vector.shape_cast %197 : vector<16xf32> to vector<16x1xf32>
    %199 = arith.addf %152, %195 : vector<16x1xf32>
    %200 = arith.addf %153, %198 : vector<16x1xf32>
    %c0_104 = arith.constant 0 : index
    %c0_105 = arith.constant 0 : index
    %c0_106 = arith.constant 0 : index
    %201 = vector.load %arg7[%c0_104, %c0_105, %c0_106] : memref<1x16x1xf32, #tpu.memory_space<vmem>>, vector<1x16x1xf32>
    %202 = vector.shape_cast %201 : vector<1x16x1xf32> to vector<16x1xf32>
    %203 = vector.shape_cast %199 : vector<16x1xf32> to vector<1x16x1xf32>
    tpu.vector_store %arg7[%c0_104, %c0_105, %c0_106], %203 {strides = array<i32>} : memref<1x16x1xf32, #tpu.memory_space<vmem>>, vector<1x16x1xf32>,
    %c0_107 = arith.constant 0 : index
    %c0_108 = arith.constant 0 : index
    %c0_109 = arith.constant 0 : index
    %204 = vector.load %arg8[%c0_107, %c0_108, %c0_109] : memref<1x16x1xf32, #tpu.memory_space<vmem>>, vector<1x16x1xf32>
    %205 = vector.shape_cast %204 : vector<1x16x1xf32> to vector<16x1xf32>
    %206 = vector.shape_cast %200 : vector<16x1xf32> to vector<1x16x1xf32>
    tpu.vector_store %arg8[%c0_107, %c0_108, %c0_109], %206 {strides = array<i32>} : memref<1x16x1xf32, #tpu.memory_space<vmem>>, vector<1x16x1xf32>,
    return
  }
  func.func @transform_0(%arg0: i32) -> (i32, i32) {
    %c0_i32 = arith.constant 0 : i32
    %c0_i32_0 = arith.constant 0 : i32
    return %c0_i32, %arg0 : i32, i32
  }
  func.func @transform_1(%arg0: i32) -> (i32, i32) {
    %c0_i32 = arith.constant 0 : i32
    %c0_i32_0 = arith.constant 0 : i32
    return %c0_i32, %arg0 : i32, i32
  }
  func.func @transform_2(%arg0: i32) -> (i32, i32, i32, i32) {
    %c0_i32 = arith.constant 0 : i32
    %c0_i32_0 = arith.constant 0 : i32
    %c0_i32_1 = arith.constant 0 : i32
    %c0_i32_2 = arith.constant 0 : i32
    %c0_i32_3 = arith.constant 0 : i32
    return %c0_i32, %c0_i32_0, %c0_i32_1, %c0_i32_2 : i32, i32, i32, i32
  }
  func.func @transform_3(%arg0: i32) -> (i32, i32) {
    %c0_i32 = arith.constant 0 : i32
    %c0_i32_0 = arith.constant 0 : i32
    %c0_i32_1 = arith.constant 0 : i32
    return %c0_i32, %c0_i32_0 : i32, i32
  }
  func.func @transform_4(%arg0: i32) -> (i32, i32) {
    %c0_i32 = arith.constant 0 : i32
    %c0_i32_0 = arith.constant 0 : i32
    %c0_i32_1 = arith.constant 0 : i32
    return %c0_i32, %c0_i32_0 : i32, i32
  }
  func.func @transform_5(%arg0: i32) -> (i32, i32, i32) {
    %c0_i32 = arith.constant 0 : i32
    %c0_i32_0 = arith.constant 0 : i32
    %c0_i32_1 = arith.constant 0 : i32
    return %c0_i32, %c0_i32_0, %arg0 : i32, i32, i32
  }
  func.func @transform_6(%arg0: i32) -> (i32, i32, i32) {
    %c0_i32 = arith.constant 0 : i32
    %c0_i32_0 = arith.constant 0 : i32
    %c0_i32_1 = arith.constant 0 : i32
    return %arg0, %c0_i32, %c0_i32_0 : i32, i32, i32
  }
  func.func @transform_7(%arg0: i32) -> (i32, i32, i32) {
    %c0_i32 = arith.constant 0 : i32
    %c0_i32_0 = arith.constant 0 : i32
    %c0_i32_1 = arith.constant 0 : i32
    return %arg0, %c0_i32, %c0_i32_0 : i32, i32, i32
  }
}

module attributes {stable_mosaic.version = 11 : i64} {
  func.func @kernel(%arg0: i32, %arg1: memref<16x512xbf16, #tpu.memory_space<vmem>>, %arg2: memref<5x512xbf16, #tpu.memory_space<vmem>>, %arg3: memref<4x4x8x16xbf16, #tpu.memory_space<vmem>>, %arg4: memref<16x1xf32, #tpu.memory_space<vmem>>, %arg5: memref<16x1xf32, #tpu.memory_space<vmem>>, %arg6: memref<4x8x512xbf16, #tpu.memory_space<vmem>>, %arg7: memref<1x8x1xf32, #tpu.memory_space<vmem>>, %arg8: memref<1x8x1xf32, #tpu.memory_space<vmem>>) attributes {dimension_semantics = [#tpu.dimension_semantics<parallel>], iteration_bounds = array<i64: 1>, scalar_prefetch = 0 : i64, scratch_operands = 0 : i64, tpu.core_type = #tpu.core_type<tc>, window_params = [{transform_indices = @transform_0, window_bounds = array<i64: 16, 512>}, {transform_indices = @transform_1, window_bounds = array<i64: 5, 512>}, {pipeline_mode = #tpu.pipeline_mode<synchronous>, transform_indices = @transform_2, window_bounds = array<i64: 4, 4, 8, 16>}, {pipeline_mode = #tpu.pipeline_mode<synchronous>, transform_indices = @transform_3, window_bounds = array<i64: 16, 1>}, {pipeline_mode = #tpu.pipeline_mode<synchronous>, transform_indices = @transform_4, window_bounds = array<i64: 16, 1>}, {transform_indices = @transform_5, window_bounds = array<i64: 4, 8, 512>}, {transform_indices = @transform_6, window_bounds = array<i64: 1, 8, 1>}, {transform_indices = @transform_7, window_bounds = array<i64: 1, 8, 1>}]} {
    %c0 = arith.constant 0 : index
    %c0_0 = arith.constant 0 : index
    %0 = vector.load %arg2[%c0, %c0_0] : memref<5x512xbf16, #tpu.memory_space<vmem>>, vector<5x512xbf16>
    %c0_1 = arith.constant 0 : index
    %c0_2 = arith.constant 0 : index
    %1 = vector.load %arg1[%c0_1, %c0_2] : memref<16x512xbf16, #tpu.memory_space<vmem>>, vector<16x512xbf16>
    %2 = arith.extf %1 : vector<16x512xbf16> to vector<16x512xf32>
    %c0_3 = arith.constant 0 : index
    %c0_4 = arith.constant 0 : index
    %3 = vector.load %arg4[%c0_3, %c0_4] : memref<16x1xf32, #tpu.memory_space<vmem>>, vector<16x1xf32>
    %4 = vector.broadcast %3 : vector<16x1xf32> to vector<16x512xf32>
    %5 = arith.mulf %2, %4 : vector<16x512xf32>
    %c0_5 = arith.constant 0 : index
    %c0_6 = arith.constant 0 : index
    %6 = vector.load %arg5[%c0_5, %c0_6] : memref<16x1xf32, #tpu.memory_space<vmem>>, vector<16x1xf32>
    %7 = vector.broadcast %6 : vector<16x1xf32> to vector<16x512xf32>
    %8 = arith.addf %5, %7 : vector<16x512xf32>
    %cst = arith.constant 0.000000e+00 : f32
    %9 = vector.broadcast %cst : f32 to vector<16x512xf32>
    %10 = arith.maximumf %8, %9 : vector<16x512xf32>
    %11 = arith.truncf %10 : vector<16x512xf32> to vector<16x512xbf16>
    %12 = vector.extract_strided_slice %0 {offsets = [0, 0], sizes = [1, 512], strides = [1, 1]} : vector<5x512xbf16> to vector<1x512xbf16>
    %13 = vector.broadcast %12 : vector<1x512xbf16> to vector<16x512xbf16>
    %14 = arith.mulf %11, %13 : vector<16x512xbf16>
    %15 = vector.extract_strided_slice %14 {offsets = [0, 495], sizes = [16, 17], strides = [1, 1]} : vector<16x512xbf16> to vector<16x17xbf16>
    %16 = vector.extract_strided_slice %14 {offsets = [0, 0], sizes = [16, 495], strides = [1, 1]} : vector<16x512xbf16> to vector<16x495xbf16>
    %17 = tpu.concatenate %15, %16 in 1 : vector<16x17xbf16>, vector<16x495xbf16> -> vector<16x512xbf16>
    %18 = vector.extract_strided_slice %0 {offsets = [1, 0], sizes = [1, 512], strides = [1, 1]} : vector<5x512xbf16> to vector<1x512xbf16>
    %19 = vector.broadcast %18 : vector<1x512xbf16> to vector<16x512xbf16>
    %20 = arith.mulf %17, %19 : vector<16x512xbf16>
    %21 = vector.extract_strided_slice %0 {offsets = [3, 0], sizes = [1, 512], strides = [1, 1]} : vector<5x512xbf16> to vector<1x512xbf16>
    %22 = vector.broadcast %21 : vector<1x512xbf16> to vector<16x512xbf16>
    %23 = arith.mulf %20, %22 : vector<16x512xbf16>
    %c0_7 = arith.constant 0 : index
    %c0_8 = arith.constant 0 : index
    %c0_9 = arith.constant 0 : index
    %c0_10 = arith.constant 0 : index
    %24 = vector.load %arg3[%c0_7, %c0_8, %c0_9, %c0_10] : memref<4x4x8x16xbf16, #tpu.memory_space<vmem>>, vector<1x1x8x16xbf16>
    %25 = vector.shape_cast %24 : vector<1x1x8x16xbf16> to vector<8x16xbf16>
    %cst_11 = arith.constant dense<0.000000e+00> : vector<8x512xf32>
    %26 = tpu.matmul %25, %23, %cst_11 {dimension_numbers = #tpu.dot_dimension_numbers<[1], [0], [0], [1], [0, 0, 1, 1], [], []>} : vector<8x16xbf16>, vector<16x512xbf16>, vector<8x512xf32> -> vector<8x512xf32>
    %27 = vector.extract_strided_slice %14 {offsets = [0, 496], sizes = [16, 16], strides = [1, 1]} : vector<16x512xbf16> to vector<16x16xbf16>
    %28 = vector.extract_strided_slice %14 {offsets = [0, 0], sizes = [16, 496], strides = [1, 1]} : vector<16x512xbf16> to vector<16x496xbf16>
    %29 = tpu.concatenate %27, %28 in 1 : vector<16x16xbf16>, vector<16x496xbf16> -> vector<16x512xbf16>
    %30 = vector.extract_strided_slice %0 {offsets = [1, 0], sizes = [1, 512], strides = [1, 1]} : vector<5x512xbf16> to vector<1x512xbf16>
    %31 = vector.broadcast %30 : vector<1x512xbf16> to vector<16x512xbf16>
    %32 = arith.mulf %29, %31 : vector<16x512xbf16>
    %c0_12 = arith.constant 0 : index
    %c1 = arith.constant 1 : index
    %c0_13 = arith.constant 0 : index
    %c0_14 = arith.constant 0 : index
    %33 = vector.load %arg3[%c0_12, %c1, %c0_13, %c0_14] : memref<4x4x8x16xbf16, #tpu.memory_space<vmem>>, vector<1x1x8x16xbf16>
    %34 = vector.shape_cast %33 : vector<1x1x8x16xbf16> to vector<8x16xbf16>
    %cst_15 = arith.constant dense<0.000000e+00> : vector<8x512xf32>
    %35 = tpu.matmul %34, %32, %cst_15 {dimension_numbers = #tpu.dot_dimension_numbers<[1], [0], [0], [1], [0, 0, 1, 1], [], []>} : vector<8x16xbf16>, vector<16x512xbf16>, vector<8x512xf32> -> vector<8x512xf32>
    %36 = arith.addf %26, %35 : vector<8x512xf32>
    %37 = vector.extract_strided_slice %14 {offsets = [0, 511], sizes = [16, 1], strides = [1, 1]} : vector<16x512xbf16> to vector<16x1xbf16>
    %38 = vector.extract_strided_slice %14 {offsets = [0, 0], sizes = [16, 511], strides = [1, 1]} : vector<16x512xbf16> to vector<16x511xbf16>
    %39 = tpu.concatenate %37, %38 in 1 : vector<16x1xbf16>, vector<16x511xbf16> -> vector<16x512xbf16>
    %40 = vector.extract_strided_slice %0 {offsets = [3, 0], sizes = [1, 512], strides = [1, 1]} : vector<5x512xbf16> to vector<1x512xbf16>
    %41 = vector.broadcast %40 : vector<1x512xbf16> to vector<16x512xbf16>
    %42 = arith.mulf %39, %41 : vector<16x512xbf16>
    %c0_16 = arith.constant 0 : index
    %c2 = arith.constant 2 : index
    %c0_17 = arith.constant 0 : index
    %c0_18 = arith.constant 0 : index
    %43 = vector.load %arg3[%c0_16, %c2, %c0_17, %c0_18] : memref<4x4x8x16xbf16, #tpu.memory_space<vmem>>, vector<1x1x8x16xbf16>
    %44 = vector.shape_cast %43 : vector<1x1x8x16xbf16> to vector<8x16xbf16>
    %cst_19 = arith.constant dense<0.000000e+00> : vector<8x512xf32>
    %45 = tpu.matmul %44, %42, %cst_19 {dimension_numbers = #tpu.dot_dimension_numbers<[1], [0], [0], [1], [0, 0, 1, 1], [], []>} : vector<8x16xbf16>, vector<16x512xbf16>, vector<8x512xf32> -> vector<8x512xf32>
    %46 = arith.addf %36, %45 : vector<8x512xf32>
    %c0_20 = arith.constant 0 : index
    %c3 = arith.constant 3 : index
    %c0_21 = arith.constant 0 : index
    %c0_22 = arith.constant 0 : index
    %47 = vector.load %arg3[%c0_20, %c3, %c0_21, %c0_22] : memref<4x4x8x16xbf16, #tpu.memory_space<vmem>>, vector<1x1x8x16xbf16>
    %48 = vector.shape_cast %47 : vector<1x1x8x16xbf16> to vector<8x16xbf16>
    %cst_23 = arith.constant dense<0.000000e+00> : vector<8x512xf32>
    %49 = tpu.matmul %48, %14, %cst_23 {dimension_numbers = #tpu.dot_dimension_numbers<[1], [0], [0], [1], [0, 0, 1, 1], [], []>} : vector<8x16xbf16>, vector<16x512xbf16>, vector<8x512xf32> -> vector<8x512xf32>
    %50 = arith.addf %46, %49 : vector<8x512xf32>
    %51 = arith.truncf %50 : vector<8x512xf32> to vector<8x512xbf16>
    %c0_24 = arith.constant 0 : index
    %c0_25 = arith.constant 0 : index
    %c0_26 = arith.constant 0 : index
    %52 = vector.load %arg6[%c0_24, %c0_25, %c0_26] : memref<4x8x512xbf16, #tpu.memory_space<vmem>>, vector<1x8x512xbf16>
    %53 = vector.shape_cast %52 : vector<1x8x512xbf16> to vector<8x512xbf16>
    %54 = vector.shape_cast %51 : vector<8x512xbf16> to vector<1x8x512xbf16>
    tpu.vector_store %arg6[%c0_24, %c0_25, %c0_26], %54 {strides = array<i32>} : memref<4x8x512xbf16, #tpu.memory_space<vmem>>, vector<1x8x512xbf16>,
    %cst_27 = arith.constant dense<0.000000e+00> : vector<8xf32>
    %55 = vector.multi_reduction <add>, %50, %cst_27 [1] : vector<8x512xf32> to vector<8xf32>
    %56 = vector.shape_cast %55 : vector<8xf32> to vector<8x1xf32>
    %57 = arith.mulf %50, %50 : vector<8x512xf32>
    %cst_28 = arith.constant dense<0.000000e+00> : vector<8xf32>
    %58 = vector.multi_reduction <add>, %57, %cst_28 [1] : vector<8x512xf32> to vector<8xf32>
    %59 = vector.shape_cast %58 : vector<8xf32> to vector<8x1xf32>
    %60 = vector.extract_strided_slice %14 {offsets = [0, 496], sizes = [16, 16], strides = [1, 1]} : vector<16x512xbf16> to vector<16x16xbf16>
    %61 = vector.extract_strided_slice %14 {offsets = [0, 0], sizes = [16, 496], strides = [1, 1]} : vector<16x512xbf16> to vector<16x496xbf16>
    %62 = tpu.concatenate %60, %61 in 1 : vector<16x16xbf16>, vector<16x496xbf16> -> vector<16x512xbf16>
    %63 = vector.extract_strided_slice %0 {offsets = [1, 0], sizes = [1, 512], strides = [1, 1]} : vector<5x512xbf16> to vector<1x512xbf16>
    %64 = vector.broadcast %63 : vector<1x512xbf16> to vector<16x512xbf16>
    %65 = arith.mulf %62, %64 : vector<16x512xbf16>
    %c1_29 = arith.constant 1 : index
    %c0_30 = arith.constant 0 : index
    %c0_31 = arith.constant 0 : index
    %c0_32 = arith.constant 0 : index
    %66 = vector.load %arg3[%c1_29, %c0_30, %c0_31, %c0_32] : memref<4x4x8x16xbf16, #tpu.memory_space<vmem>>, vector<1x1x8x16xbf16>
    %67 = vector.shape_cast %66 : vector<1x1x8x16xbf16> to vector<8x16xbf16>
    %cst_33 = arith.constant dense<0.000000e+00> : vector<8x512xf32>
    %68 = tpu.matmul %67, %65, %cst_33 {dimension_numbers = #tpu.dot_dimension_numbers<[1], [0], [0], [1], [0, 0, 1, 1], [], []>} : vector<8x16xbf16>, vector<16x512xbf16>, vector<8x512xf32> -> vector<8x512xf32>
    %69 = vector.extract_strided_slice %14 {offsets = [0, 497], sizes = [16, 15], strides = [1, 1]} : vector<16x512xbf16> to vector<16x15xbf16>
    %70 = vector.extract_strided_slice %14 {offsets = [0, 0], sizes = [16, 497], strides = [1, 1]} : vector<16x512xbf16> to vector<16x497xbf16>
    %71 = tpu.concatenate %69, %70 in 1 : vector<16x15xbf16>, vector<16x497xbf16> -> vector<16x512xbf16>
    %72 = vector.extract_strided_slice %0 {offsets = [1, 0], sizes = [1, 512], strides = [1, 1]} : vector<5x512xbf16> to vector<1x512xbf16>
    %73 = vector.broadcast %72 : vector<1x512xbf16> to vector<16x512xbf16>
    %74 = arith.mulf %71, %73 : vector<16x512xbf16>
    %75 = vector.extract_strided_slice %0 {offsets = [4, 0], sizes = [1, 512], strides = [1, 1]} : vector<5x512xbf16> to vector<1x512xbf16>
    %76 = vector.broadcast %75 : vector<1x512xbf16> to vector<16x512xbf16>
    %77 = arith.mulf %74, %76 : vector<16x512xbf16>
    %c1_34 = arith.constant 1 : index
    %c1_35 = arith.constant 1 : index
    %c0_36 = arith.constant 0 : index
    %c0_37 = arith.constant 0 : index
    %78 = vector.load %arg3[%c1_34, %c1_35, %c0_36, %c0_37] : memref<4x4x8x16xbf16, #tpu.memory_space<vmem>>, vector<1x1x8x16xbf16>
    %79 = vector.shape_cast %78 : vector<1x1x8x16xbf16> to vector<8x16xbf16>
    %cst_38 = arith.constant dense<0.000000e+00> : vector<8x512xf32>
    %80 = tpu.matmul %79, %77, %cst_38 {dimension_numbers = #tpu.dot_dimension_numbers<[1], [0], [0], [1], [0, 0, 1, 1], [], []>} : vector<8x16xbf16>, vector<16x512xbf16>, vector<8x512xf32> -> vector<8x512xf32>
    %81 = arith.addf %68, %80 : vector<8x512xf32>
    %c1_39 = arith.constant 1 : index
    %c2_40 = arith.constant 2 : index
    %c0_41 = arith.constant 0 : index
    %c0_42 = arith.constant 0 : index
    %82 = vector.load %arg3[%c1_39, %c2_40, %c0_41, %c0_42] : memref<4x4x8x16xbf16, #tpu.memory_space<vmem>>, vector<1x1x8x16xbf16>
    %83 = vector.shape_cast %82 : vector<1x1x8x16xbf16> to vector<8x16xbf16>
    %cst_43 = arith.constant dense<0.000000e+00> : vector<8x512xf32>
    %84 = tpu.matmul %83, %14, %cst_43 {dimension_numbers = #tpu.dot_dimension_numbers<[1], [0], [0], [1], [0, 0, 1, 1], [], []>} : vector<8x16xbf16>, vector<16x512xbf16>, vector<8x512xf32> -> vector<8x512xf32>
    %85 = arith.addf %81, %84 : vector<8x512xf32>
    %86 = vector.extract_strided_slice %14 {offsets = [0, 1], sizes = [16, 511], strides = [1, 1]} : vector<16x512xbf16> to vector<16x511xbf16>
    %87 = vector.extract_strided_slice %14 {offsets = [0, 0], sizes = [16, 1], strides = [1, 1]} : vector<16x512xbf16> to vector<16x1xbf16>
    %88 = tpu.concatenate %86, %87 in 1 : vector<16x511xbf16>, vector<16x1xbf16> -> vector<16x512xbf16>
    %89 = vector.extract_strided_slice %0 {offsets = [4, 0], sizes = [1, 512], strides = [1, 1]} : vector<5x512xbf16> to vector<1x512xbf16>
    %90 = vector.broadcast %89 : vector<1x512xbf16> to vector<16x512xbf16>
    %91 = arith.mulf %88, %90 : vector<16x512xbf16>
    %c1_44 = arith.constant 1 : index
    %c3_45 = arith.constant 3 : index
    %c0_46 = arith.constant 0 : index
    %c0_47 = arith.constant 0 : index
    %92 = vector.load %arg3[%c1_44, %c3_45, %c0_46, %c0_47] : memref<4x4x8x16xbf16, #tpu.memory_space<vmem>>, vector<1x1x8x16xbf16>
    %93 = vector.shape_cast %92 : vector<1x1x8x16xbf16> to vector<8x16xbf16>
    %cst_48 = arith.constant dense<0.000000e+00> : vector<8x512xf32>
    %94 = tpu.matmul %93, %91, %cst_48 {dimension_numbers = #tpu.dot_dimension_numbers<[1], [0], [0], [1], [0, 0, 1, 1], [], []>} : vector<8x16xbf16>, vector<16x512xbf16>, vector<8x512xf32> -> vector<8x512xf32>
    %95 = arith.addf %85, %94 : vector<8x512xf32>
    %96 = arith.truncf %95 : vector<8x512xf32> to vector<8x512xbf16>
    %c1_49 = arith.constant 1 : index
    %c0_50 = arith.constant 0 : index
    %c0_51 = arith.constant 0 : index
    %97 = vector.load %arg6[%c1_49, %c0_50, %c0_51] : memref<4x8x512xbf16, #tpu.memory_space<vmem>>, vector<1x8x512xbf16>
    %98 = vector.shape_cast %97 : vector<1x8x512xbf16> to vector<8x512xbf16>
    %99 = vector.shape_cast %96 : vector<8x512xbf16> to vector<1x8x512xbf16>
    tpu.vector_store %arg6[%c1_49, %c0_50, %c0_51], %99 {strides = array<i32>} : memref<4x8x512xbf16, #tpu.memory_space<vmem>>, vector<1x8x512xbf16>,
    %cst_52 = arith.constant dense<0.000000e+00> : vector<8xf32>
    %100 = vector.multi_reduction <add>, %95, %cst_52 [1] : vector<8x512xf32> to vector<8xf32>
    %101 = vector.shape_cast %100 : vector<8xf32> to vector<8x1xf32>
    %102 = arith.mulf %95, %95 : vector<8x512xf32>
    %cst_53 = arith.constant dense<0.000000e+00> : vector<8xf32>
    %103 = vector.multi_reduction <add>, %102, %cst_53 [1] : vector<8x512xf32> to vector<8xf32>
    %104 = vector.shape_cast %103 : vector<8xf32> to vector<8x1xf32>
    %105 = arith.addf %56, %101 : vector<8x1xf32>
    %106 = arith.addf %59, %104 : vector<8x1xf32>
    %107 = vector.extract_strided_slice %14 {offsets = [0, 511], sizes = [16, 1], strides = [1, 1]} : vector<16x512xbf16> to vector<16x1xbf16>
    %108 = vector.extract_strided_slice %14 {offsets = [0, 0], sizes = [16, 511], strides = [1, 1]} : vector<16x512xbf16> to vector<16x511xbf16>
    %109 = tpu.concatenate %107, %108 in 1 : vector<16x1xbf16>, vector<16x511xbf16> -> vector<16x512xbf16>
    %110 = vector.extract_strided_slice %0 {offsets = [3, 0], sizes = [1, 512], strides = [1, 1]} : vector<5x512xbf16> to vector<1x512xbf16>
    %111 = vector.broadcast %110 : vector<1x512xbf16> to vector<16x512xbf16>
    %112 = arith.mulf %109, %111 : vector<16x512xbf16>
    %c2_54 = arith.constant 2 : index
    %c0_55 = arith.constant 0 : index
    %c0_56 = arith.constant 0 : index
    %c0_57 = arith.constant 0 : index
    %113 = vector.load %arg3[%c2_54, %c0_55, %c0_56, %c0_57] : memref<4x4x8x16xbf16, #tpu.memory_space<vmem>>, vector<1x1x8x16xbf16>
    %114 = vector.shape_cast %113 : vector<1x1x8x16xbf16> to vector<8x16xbf16>
    %cst_58 = arith.constant dense<0.000000e+00> : vector<8x512xf32>
    %115 = tpu.matmul %114, %112, %cst_58 {dimension_numbers = #tpu.dot_dimension_numbers<[1], [0], [0], [1], [0, 0, 1, 1], [], []>} : vector<8x16xbf16>, vector<16x512xbf16>, vector<8x512xf32> -> vector<8x512xf32>
    %c2_59 = arith.constant 2 : index
    %c1_60 = arith.constant 1 : index
    %c0_61 = arith.constant 0 : index
    %c0_62 = arith.constant 0 : index
    %116 = vector.load %arg3[%c2_59, %c1_60, %c0_61, %c0_62] : memref<4x4x8x16xbf16, #tpu.memory_space<vmem>>, vector<1x1x8x16xbf16>
    %117 = vector.shape_cast %116 : vector<1x1x8x16xbf16> to vector<8x16xbf16>
    %cst_63 = arith.constant dense<0.000000e+00> : vector<8x512xf32>
    %118 = tpu.matmul %117, %14, %cst_63 {dimension_numbers = #tpu.dot_dimension_numbers<[1], [0], [0], [1], [0, 0, 1, 1], [], []>} : vector<8x16xbf16>, vector<16x512xbf16>, vector<8x512xf32> -> vector<8x512xf32>
    %119 = arith.addf %115, %118 : vector<8x512xf32>
    %120 = vector.extract_strided_slice %14 {offsets = [0, 15], sizes = [16, 497], strides = [1, 1]} : vector<16x512xbf16> to vector<16x497xbf16>
    %121 = vector.extract_strided_slice %14 {offsets = [0, 0], sizes = [16, 15], strides = [1, 1]} : vector<16x512xbf16> to vector<16x15xbf16>
    %122 = tpu.concatenate %120, %121 in 1 : vector<16x497xbf16>, vector<16x15xbf16> -> vector<16x512xbf16>
    %123 = vector.extract_strided_slice %0 {offsets = [2, 0], sizes = [1, 512], strides = [1, 1]} : vector<5x512xbf16> to vector<1x512xbf16>
    %124 = vector.broadcast %123 : vector<1x512xbf16> to vector<16x512xbf16>
    %125 = arith.mulf %122, %124 : vector<16x512xbf16>
    %126 = vector.extract_strided_slice %0 {offsets = [3, 0], sizes = [1, 512], strides = [1, 1]} : vector<5x512xbf16> to vector<1x512xbf16>
    %127 = vector.broadcast %126 : vector<1x512xbf16> to vector<16x512xbf16>
    %128 = arith.mulf %125, %127 : vector<16x512xbf16>
    %c2_64 = arith.constant 2 : index
    %c2_65 = arith.constant 2 : index
    %c0_66 = arith.constant 0 : index
    %c0_67 = arith.constant 0 : index
    %129 = vector.load %arg3[%c2_64, %c2_65, %c0_66, %c0_67] : memref<4x4x8x16xbf16, #tpu.memory_space<vmem>>, vector<1x1x8x16xbf16>
    %130 = vector.shape_cast %129 : vector<1x1x8x16xbf16> to vector<8x16xbf16>
    %cst_68 = arith.constant dense<0.000000e+00> : vector<8x512xf32>
    %131 = tpu.matmul %130, %128, %cst_68 {dimension_numbers = #tpu.dot_dimension_numbers<[1], [0], [0], [1], [0, 0, 1, 1], [], []>} : vector<8x16xbf16>, vector<16x512xbf16>, vector<8x512xf32> -> vector<8x512xf32>
    %132 = arith.addf %119, %131 : vector<8x512xf32>
    %133 = vector.extract_strided_slice %14 {offsets = [0, 16], sizes = [16, 496], strides = [1, 1]} : vector<16x512xbf16> to vector<16x496xbf16>
    %134 = vector.extract_strided_slice %14 {offsets = [0, 0], sizes = [16, 16], strides = [1, 1]} : vector<16x512xbf16> to vector<16x16xbf16>
    %135 = tpu.concatenate %133, %134 in 1 : vector<16x496xbf16>, vector<16x16xbf16> -> vector<16x512xbf16>
    %136 = vector.extract_strided_slice %0 {offsets = [2, 0], sizes = [1, 512], strides = [1, 1]} : vector<5x512xbf16> to vector<1x512xbf16>
    %137 = vector.broadcast %136 : vector<1x512xbf16> to vector<16x512xbf16>
    %138 = arith.mulf %135, %137 : vector<16x512xbf16>
    %c2_69 = arith.constant 2 : index
    %c3_70 = arith.constant 3 : index
    %c0_71 = arith.constant 0 : index
    %c0_72 = arith.constant 0 : index
    %139 = vector.load %arg3[%c2_69, %c3_70, %c0_71, %c0_72] : memref<4x4x8x16xbf16, #tpu.memory_space<vmem>>, vector<1x1x8x16xbf16>
    %140 = vector.shape_cast %139 : vector<1x1x8x16xbf16> to vector<8x16xbf16>
    %cst_73 = arith.constant dense<0.000000e+00> : vector<8x512xf32>
    %141 = tpu.matmul %140, %138, %cst_73 {dimension_numbers = #tpu.dot_dimension_numbers<[1], [0], [0], [1], [0, 0, 1, 1], [], []>} : vector<8x16xbf16>, vector<16x512xbf16>, vector<8x512xf32> -> vector<8x512xf32>
    %142 = arith.addf %132, %141 : vector<8x512xf32>
    %143 = arith.truncf %142 : vector<8x512xf32> to vector<8x512xbf16>
    %c2_74 = arith.constant 2 : index
    %c0_75 = arith.constant 0 : index
    %c0_76 = arith.constant 0 : index
    %144 = vector.load %arg6[%c2_74, %c0_75, %c0_76] : memref<4x8x512xbf16, #tpu.memory_space<vmem>>, vector<1x8x512xbf16>
    %145 = vector.shape_cast %144 : vector<1x8x512xbf16> to vector<8x512xbf16>
    %146 = vector.shape_cast %143 : vector<8x512xbf16> to vector<1x8x512xbf16>
    tpu.vector_store %arg6[%c2_74, %c0_75, %c0_76], %146 {strides = array<i32>} : memref<4x8x512xbf16, #tpu.memory_space<vmem>>, vector<1x8x512xbf16>,
    %cst_77 = arith.constant dense<0.000000e+00> : vector<8xf32>
    %147 = vector.multi_reduction <add>, %142, %cst_77 [1] : vector<8x512xf32> to vector<8xf32>
    %148 = vector.shape_cast %147 : vector<8xf32> to vector<8x1xf32>
    %149 = arith.mulf %142, %142 : vector<8x512xf32>
    %cst_78 = arith.constant dense<0.000000e+00> : vector<8xf32>
    %150 = vector.multi_reduction <add>, %149, %cst_78 [1] : vector<8x512xf32> to vector<8xf32>
    %151 = vector.shape_cast %150 : vector<8xf32> to vector<8x1xf32>
    %152 = arith.addf %105, %148 : vector<8x1xf32>
    %153 = arith.addf %106, %151 : vector<8x1xf32>
    %c3_79 = arith.constant 3 : index
    %c0_80 = arith.constant 0 : index
    %c0_81 = arith.constant 0 : index
    %c0_82 = arith.constant 0 : index
    %154 = vector.load %arg3[%c3_79, %c0_80, %c0_81, %c0_82] : memref<4x4x8x16xbf16, #tpu.memory_space<vmem>>, vector<1x1x8x16xbf16>
    %155 = vector.shape_cast %154 : vector<1x1x8x16xbf16> to vector<8x16xbf16>
    %cst_83 = arith.constant dense<0.000000e+00> : vector<8x512xf32>
    %156 = tpu.matmul %155, %14, %cst_83 {dimension_numbers = #tpu.dot_dimension_numbers<[1], [0], [0], [1], [0, 0, 1, 1], [], []>} : vector<8x16xbf16>, vector<16x512xbf16>, vector<8x512xf32> -> vector<8x512xf32>
    %157 = vector.extract_strided_slice %14 {offsets = [0, 1], sizes = [16, 511], strides = [1, 1]} : vector<16x512xbf16> to vector<16x511xbf16>
    %158 = vector.extract_strided_slice %14 {offsets = [0, 0], sizes = [16, 1], strides = [1, 1]} : vector<16x512xbf16> to vector<16x1xbf16>
    %159 = tpu.concatenate %157, %158 in 1 : vector<16x511xbf16>, vector<16x1xbf16> -> vector<16x512xbf16>
    %160 = vector.extract_strided_slice %0 {offsets = [4, 0], sizes = [1, 512], strides = [1, 1]} : vector<5x512xbf16> to vector<1x512xbf16>
    %161 = vector.broadcast %160 : vector<1x512xbf16> to vector<16x512xbf16>
    %162 = arith.mulf %159, %161 : vector<16x512xbf16>
    %c3_84 = arith.constant 3 : index
    %c1_85 = arith.constant 1 : index
    %c0_86 = arith.constant 0 : index
    %c0_87 = arith.constant 0 : index
    %163 = vector.load %arg3[%c3_84, %c1_85, %c0_86, %c0_87] : memref<4x4x8x16xbf16, #tpu.memory_space<vmem>>, vector<1x1x8x16xbf16>
    %164 = vector.shape_cast %163 : vector<1x1x8x16xbf16> to vector<8x16xbf16>
    %cst_88 = arith.constant dense<0.000000e+00> : vector<8x512xf32>
    %165 = tpu.matmul %164, %162, %cst_88 {dimension_numbers = #tpu.dot_dimension_numbers<[1], [0], [0], [1], [0, 0, 1, 1], [], []>} : vector<8x16xbf16>, vector<16x512xbf16>, vector<8x512xf32> -> vector<8x512xf32>
    %166 = arith.addf %156, %165 : vector<8x512xf32>
    %167 = vector.extract_strided_slice %14 {offsets = [0, 16], sizes = [16, 496], strides = [1, 1]} : vector<16x512xbf16> to vector<16x496xbf16>
    %168 = vector.extract_strided_slice %14 {offsets = [0, 0], sizes = [16, 16], strides = [1, 1]} : vector<16x512xbf16> to vector<16x16xbf16>
    %169 = tpu.concatenate %167, %168 in 1 : vector<16x496xbf16>, vector<16x16xbf16> -> vector<16x512xbf16>
    %170 = vector.extract_strided_slice %0 {offsets = [2, 0], sizes = [1, 512], strides = [1, 1]} : vector<5x512xbf16> to vector<1x512xbf16>
    %171 = vector.broadcast %170 : vector<1x512xbf16> to vector<16x512xbf16>
    %172 = arith.mulf %169, %171 : vector<16x512xbf16>
    %c3_89 = arith.constant 3 : index
    %c2_90 = arith.constant 2 : index
    %c0_91 = arith.constant 0 : index
    %c0_92 = arith.constant 0 : index
    %173 = vector.load %arg3[%c3_89, %c2_90, %c0_91, %c0_92] : memref<4x4x8x16xbf16, #tpu.memory_space<vmem>>, vector<1x1x8x16xbf16>
    %174 = vector.shape_cast %173 : vector<1x1x8x16xbf16> to vector<8x16xbf16>
    %cst_93 = arith.constant dense<0.000000e+00> : vector<8x512xf32>
    %175 = tpu.matmul %174, %172, %cst_93 {dimension_numbers = #tpu.dot_dimension_numbers<[1], [0], [0], [1], [0, 0, 1, 1], [], []>} : vector<8x16xbf16>, vector<16x512xbf16>, vector<8x512xf32> -> vector<8x512xf32>
    %176 = arith.addf %166, %175 : vector<8x512xf32>
    %177 = vector.extract_strided_slice %14 {offsets = [0, 17], sizes = [16, 495], strides = [1, 1]} : vector<16x512xbf16> to vector<16x495xbf16>
    %178 = vector.extract_strided_slice %14 {offsets = [0, 0], sizes = [16, 17], strides = [1, 1]} : vector<16x512xbf16> to vector<16x17xbf16>
    %179 = tpu.concatenate %177, %178 in 1 : vector<16x495xbf16>, vector<16x17xbf16> -> vector<16x512xbf16>
    %180 = vector.extract_strided_slice %0 {offsets = [2, 0], sizes = [1, 512], strides = [1, 1]} : vector<5x512xbf16> to vector<1x512xbf16>
    %181 = vector.broadcast %180 : vector<1x512xbf16> to vector<16x512xbf16>
    %182 = arith.mulf %179, %181 : vector<16x512xbf16>
    %183 = vector.extract_strided_slice %0 {offsets = [4, 0], sizes = [1, 512], strides = [1, 1]} : vector<5x512xbf16> to vector<1x512xbf16>
    %184 = vector.broadcast %183 : vector<1x512xbf16> to vector<16x512xbf16>
    %185 = arith.mulf %182, %184 : vector<16x512xbf16>
    %c3_94 = arith.constant 3 : index
    %c3_95 = arith.constant 3 : index
    %c0_96 = arith.constant 0 : index
    %c0_97 = arith.constant 0 : index
    %186 = vector.load %arg3[%c3_94, %c3_95, %c0_96, %c0_97] : memref<4x4x8x16xbf16, #tpu.memory_space<vmem>>, vector<1x1x8x16xbf16>
    %187 = vector.shape_cast %186 : vector<1x1x8x16xbf16> to vector<8x16xbf16>
    %cst_98 = arith.constant dense<0.000000e+00> : vector<8x512xf32>
    %188 = tpu.matmul %187, %185, %cst_98 {dimension_numbers = #tpu.dot_dimension_numbers<[1], [0], [0], [1], [0, 0, 1, 1], [], []>} : vector<8x16xbf16>, vector<16x512xbf16>, vector<8x512xf32> -> vector<8x512xf32>
    %189 = arith.addf %176, %188 : vector<8x512xf32>
    %190 = arith.truncf %189 : vector<8x512xf32> to vector<8x512xbf16>
    %c3_99 = arith.constant 3 : index
    %c0_100 = arith.constant 0 : index
    %c0_101 = arith.constant 0 : index
    %191 = vector.load %arg6[%c3_99, %c0_100, %c0_101] : memref<4x8x512xbf16, #tpu.memory_space<vmem>>, vector<1x8x512xbf16>
    %192 = vector.shape_cast %191 : vector<1x8x512xbf16> to vector<8x512xbf16>
    %193 = vector.shape_cast %190 : vector<8x512xbf16> to vector<1x8x512xbf16>
    tpu.vector_store %arg6[%c3_99, %c0_100, %c0_101], %193 {strides = array<i32>} : memref<4x8x512xbf16, #tpu.memory_space<vmem>>, vector<1x8x512xbf16>,
    %cst_102 = arith.constant dense<0.000000e+00> : vector<8xf32>
    %194 = vector.multi_reduction <add>, %189, %cst_102 [1] : vector<8x512xf32> to vector<8xf32>
    %195 = vector.shape_cast %194 : vector<8xf32> to vector<8x1xf32>
    %196 = arith.mulf %189, %189 : vector<8x512xf32>
    %cst_103 = arith.constant dense<0.000000e+00> : vector<8xf32>
    %197 = vector.multi_reduction <add>, %196, %cst_103 [1] : vector<8x512xf32> to vector<8xf32>
    %198 = vector.shape_cast %197 : vector<8xf32> to vector<8x1xf32>
    %199 = arith.addf %152, %195 : vector<8x1xf32>
    %200 = arith.addf %153, %198 : vector<8x1xf32>
    %c0_104 = arith.constant 0 : index
    %c0_105 = arith.constant 0 : index
    %c0_106 = arith.constant 0 : index
    %201 = vector.load %arg7[%c0_104, %c0_105, %c0_106] : memref<1x8x1xf32, #tpu.memory_space<vmem>>, vector<1x8x1xf32>
    %202 = vector.shape_cast %201 : vector<1x8x1xf32> to vector<8x1xf32>
    %203 = vector.shape_cast %199 : vector<8x1xf32> to vector<1x8x1xf32>
    tpu.vector_store %arg7[%c0_104, %c0_105, %c0_106], %203 {strides = array<i32>} : memref<1x8x1xf32, #tpu.memory_space<vmem>>, vector<1x8x1xf32>,
    %c0_107 = arith.constant 0 : index
    %c0_108 = arith.constant 0 : index
    %c0_109 = arith.constant 0 : index
    %204 = vector.load %arg8[%c0_107, %c0_108, %c0_109] : memref<1x8x1xf32, #tpu.memory_space<vmem>>, vector<1x8x1xf32>
    %205 = vector.shape_cast %204 : vector<1x8x1xf32> to vector<8x1xf32>
    %206 = vector.shape_cast %200 : vector<8x1xf32> to vector<1x8x1xf32>
    tpu.vector_store %arg8[%c0_107, %c0_108, %c0_109], %206 {strides = array<i32>} : memref<1x8x1xf32, #tpu.memory_space<vmem>>, vector<1x8x1xf32>,
    return
  }
  func.func @transform_0(%arg0: i32) -> (i32, i32) {
    %c0_i32 = arith.constant 0 : i32
    %c0_i32_0 = arith.constant 0 : i32
    return %c0_i32, %arg0 : i32, i32
  }
  func.func @transform_1(%arg0: i32) -> (i32, i32) {
    %c0_i32 = arith.constant 0 : i32
    %c0_i32_0 = arith.constant 0 : i32
    return %c0_i32, %arg0 : i32, i32
  }
  func.func @transform_2(%arg0: i32) -> (i32, i32, i32, i32) {
    %c0_i32 = arith.constant 0 : i32
    %c0_i32_0 = arith.constant 0 : i32
    %c0_i32_1 = arith.constant 0 : i32
    %c0_i32_2 = arith.constant 0 : i32
    %c0_i32_3 = arith.constant 0 : i32
    return %c0_i32, %c0_i32_0, %c0_i32_1, %c0_i32_2 : i32, i32, i32, i32
  }
  func.func @transform_3(%arg0: i32) -> (i32, i32) {
    %c0_i32 = arith.constant 0 : i32
    %c0_i32_0 = arith.constant 0 : i32
    %c0_i32_1 = arith.constant 0 : i32
    return %c0_i32, %c0_i32_0 : i32, i32
  }
  func.func @transform_4(%arg0: i32) -> (i32, i32) {
    %c0_i32 = arith.constant 0 : i32
    %c0_i32_0 = arith.constant 0 : i32
    %c0_i32_1 = arith.constant 0 : i32
    return %c0_i32, %c0_i32_0 : i32, i32
  }
  func.func @transform_5(%arg0: i32) -> (i32, i32, i32) {
    %c0_i32 = arith.constant 0 : i32
    %c0_i32_0 = arith.constant 0 : i32
    %c0_i32_1 = arith.constant 0 : i32
    return %c0_i32, %c0_i32_0, %arg0 : i32, i32, i32
  }
  func.func @transform_6(%arg0: i32) -> (i32, i32, i32) {
    %c0_i32 = arith.constant 0 : i32
    %c0_i32_0 = arith.constant 0 : i32
    %c0_i32_1 = arith.constant 0 : i32
    return %arg0, %c0_i32, %c0_i32_0 : i32, i32, i32
  }
  func.func @transform_7(%arg0: i32) -> (i32, i32, i32) {
    %c0_i32 = arith.constant 0 : i32
    %c0_i32_0 = arith.constant 0 : i32
    %c0_i32_1 = arith.constant 0 : i32
    return %arg0, %c0_i32, %c0_i32_0 : i32, i32, i32
  }
}

module attributes {stable_mosaic.version = 11 : i64} {
  func.func @kernel(%arg0: i32, %arg1: memref<8x2048xbf16, #tpu.memory_space<vmem>>, %arg2: memref<5x2048xbf16, #tpu.memory_space<vmem>>, %arg3: memref<4x4x3x8xbf16, #tpu.memory_space<vmem>>, %arg4: memref<8x1xf32, #tpu.memory_space<vmem>>, %arg5: memref<8x1xf32, #tpu.memory_space<vmem>>, %arg6: memref<3x1xf32, #tpu.memory_space<vmem>>, %arg7: memref<4x3x2048xf32, #tpu.memory_space<vmem>>) attributes {dimension_semantics = [#tpu.dimension_semantics<parallel>], iteration_bounds = array<i64: 1>, scalar_prefetch = 0 : i64, scratch_operands = 0 : i64, tpu.core_type = #tpu.core_type<tc>, window_params = [{transform_indices = @transform_0, window_bounds = array<i64: 8, 2048>}, {transform_indices = @transform_1, window_bounds = array<i64: 5, 2048>}, {pipeline_mode = #tpu.pipeline_mode<synchronous>, transform_indices = @transform_2, window_bounds = array<i64: 4, 4, 3, 8>}, {pipeline_mode = #tpu.pipeline_mode<synchronous>, transform_indices = @transform_3, window_bounds = array<i64: 8, 1>}, {pipeline_mode = #tpu.pipeline_mode<synchronous>, transform_indices = @transform_4, window_bounds = array<i64: 8, 1>}, {pipeline_mode = #tpu.pipeline_mode<synchronous>, transform_indices = @transform_5, window_bounds = array<i64: 3, 1>}, {transform_indices = @transform_6, window_bounds = array<i64: 4, 3, 2048>}]} {
    %c0 = arith.constant 0 : index
    %c0_0 = arith.constant 0 : index
    %0 = vector.load %arg2[%c0, %c0_0] : memref<5x2048xbf16, #tpu.memory_space<vmem>>, vector<5x2048xbf16>
    %c0_1 = arith.constant 0 : index
    %c0_2 = arith.constant 0 : index
    %1 = vector.load %arg1[%c0_1, %c0_2] : memref<8x2048xbf16, #tpu.memory_space<vmem>>, vector<8x2048xbf16>
    %2 = arith.extf %1 : vector<8x2048xbf16> to vector<8x2048xf32>
    %c0_3 = arith.constant 0 : index
    %c0_4 = arith.constant 0 : index
    %3 = vector.load %arg4[%c0_3, %c0_4] : memref<8x1xf32, #tpu.memory_space<vmem>>, vector<8x1xf32>
    %4 = vector.broadcast %3 : vector<8x1xf32> to vector<8x2048xf32>
    %5 = arith.mulf %2, %4 : vector<8x2048xf32>
    %c0_5 = arith.constant 0 : index
    %c0_6 = arith.constant 0 : index
    %6 = vector.load %arg5[%c0_5, %c0_6] : memref<8x1xf32, #tpu.memory_space<vmem>>, vector<8x1xf32>
    %7 = vector.broadcast %6 : vector<8x1xf32> to vector<8x2048xf32>
    %8 = arith.addf %5, %7 : vector<8x2048xf32>
    %cst = arith.constant 0.000000e+00 : f32
    %9 = vector.broadcast %cst : f32 to vector<8x2048xf32>
    %10 = arith.maximumf %8, %9 : vector<8x2048xf32>
    %11 = arith.truncf %10 : vector<8x2048xf32> to vector<8x2048xbf16>
    %12 = vector.extract_strided_slice %0 {offsets = [0, 0], sizes = [1, 2048], strides = [1, 1]} : vector<5x2048xbf16> to vector<1x2048xbf16>
    %13 = vector.broadcast %12 : vector<1x2048xbf16> to vector<8x2048xbf16>
    %14 = arith.mulf %11, %13 : vector<8x2048xbf16>
    %15 = vector.extract_strided_slice %14 {offsets = [0, 2015], sizes = [8, 33], strides = [1, 1]} : vector<8x2048xbf16> to vector<8x33xbf16>
    %16 = vector.extract_strided_slice %14 {offsets = [0, 0], sizes = [8, 2015], strides = [1, 1]} : vector<8x2048xbf16> to vector<8x2015xbf16>
    %17 = tpu.concatenate %15, %16 in 1 : vector<8x33xbf16>, vector<8x2015xbf16> -> vector<8x2048xbf16>
    %18 = vector.extract_strided_slice %0 {offsets = [1, 0], sizes = [1, 2048], strides = [1, 1]} : vector<5x2048xbf16> to vector<1x2048xbf16>
    %19 = vector.broadcast %18 : vector<1x2048xbf16> to vector<8x2048xbf16>
    %20 = arith.mulf %17, %19 : vector<8x2048xbf16>
    %21 = vector.extract_strided_slice %0 {offsets = [3, 0], sizes = [1, 2048], strides = [1, 1]} : vector<5x2048xbf16> to vector<1x2048xbf16>
    %22 = vector.broadcast %21 : vector<1x2048xbf16> to vector<8x2048xbf16>
    %23 = arith.mulf %20, %22 : vector<8x2048xbf16>
    %c0_7 = arith.constant 0 : index
    %c0_8 = arith.constant 0 : index
    %c0_9 = arith.constant 0 : index
    %c0_10 = arith.constant 0 : index
    %24 = vector.load %arg3[%c0_7, %c0_8, %c0_9, %c0_10] : memref<4x4x3x8xbf16, #tpu.memory_space<vmem>>, vector<1x1x3x8xbf16>
    %25 = vector.shape_cast %24 : vector<1x1x3x8xbf16> to vector<3x8xbf16>
    %cst_11 = arith.constant dense<0.000000e+00> : vector<3x2048xf32>
    %26 = tpu.matmul %25, %23, %cst_11 {dimension_numbers = #tpu.dot_dimension_numbers<[1], [0], [0], [1], [0, 0, 1, 1], [], []>} : vector<3x8xbf16>, vector<8x2048xbf16>, vector<3x2048xf32> -> vector<3x2048xf32>
    %27 = vector.extract_strided_slice %14 {offsets = [0, 2016], sizes = [8, 32], strides = [1, 1]} : vector<8x2048xbf16> to vector<8x32xbf16>
    %28 = vector.extract_strided_slice %14 {offsets = [0, 0], sizes = [8, 2016], strides = [1, 1]} : vector<8x2048xbf16> to vector<8x2016xbf16>
    %29 = tpu.concatenate %27, %28 in 1 : vector<8x32xbf16>, vector<8x2016xbf16> -> vector<8x2048xbf16>
    %30 = vector.extract_strided_slice %0 {offsets = [1, 0], sizes = [1, 2048], strides = [1, 1]} : vector<5x2048xbf16> to vector<1x2048xbf16>
    %31 = vector.broadcast %30 : vector<1x2048xbf16> to vector<8x2048xbf16>
    %32 = arith.mulf %29, %31 : vector<8x2048xbf16>
    %c0_12 = arith.constant 0 : index
    %c1 = arith.constant 1 : index
    %c0_13 = arith.constant 0 : index
    %c0_14 = arith.constant 0 : index
    %33 = vector.load %arg3[%c0_12, %c1, %c0_13, %c0_14] : memref<4x4x3x8xbf16, #tpu.memory_space<vmem>>, vector<1x1x3x8xbf16>
    %34 = vector.shape_cast %33 : vector<1x1x3x8xbf16> to vector<3x8xbf16>
    %cst_15 = arith.constant dense<0.000000e+00> : vector<3x2048xf32>
    %35 = tpu.matmul %34, %32, %cst_15 {dimension_numbers = #tpu.dot_dimension_numbers<[1], [0], [0], [1], [0, 0, 1, 1], [], []>} : vector<3x8xbf16>, vector<8x2048xbf16>, vector<3x2048xf32> -> vector<3x2048xf32>
    %36 = arith.addf %26, %35 : vector<3x2048xf32>
    %37 = vector.extract_strided_slice %14 {offsets = [0, 2047], sizes = [8, 1], strides = [1, 1]} : vector<8x2048xbf16> to vector<8x1xbf16>
    %38 = vector.extract_strided_slice %14 {offsets = [0, 0], sizes = [8, 2047], strides = [1, 1]} : vector<8x2048xbf16> to vector<8x2047xbf16>
    %39 = tpu.concatenate %37, %38 in 1 : vector<8x1xbf16>, vector<8x2047xbf16> -> vector<8x2048xbf16>
    %40 = vector.extract_strided_slice %0 {offsets = [3, 0], sizes = [1, 2048], strides = [1, 1]} : vector<5x2048xbf16> to vector<1x2048xbf16>
    %41 = vector.broadcast %40 : vector<1x2048xbf16> to vector<8x2048xbf16>
    %42 = arith.mulf %39, %41 : vector<8x2048xbf16>
    %c0_16 = arith.constant 0 : index
    %c2 = arith.constant 2 : index
    %c0_17 = arith.constant 0 : index
    %c0_18 = arith.constant 0 : index
    %43 = vector.load %arg3[%c0_16, %c2, %c0_17, %c0_18] : memref<4x4x3x8xbf16, #tpu.memory_space<vmem>>, vector<1x1x3x8xbf16>
    %44 = vector.shape_cast %43 : vector<1x1x3x8xbf16> to vector<3x8xbf16>
    %cst_19 = arith.constant dense<0.000000e+00> : vector<3x2048xf32>
    %45 = tpu.matmul %44, %42, %cst_19 {dimension_numbers = #tpu.dot_dimension_numbers<[1], [0], [0], [1], [0, 0, 1, 1], [], []>} : vector<3x8xbf16>, vector<8x2048xbf16>, vector<3x2048xf32> -> vector<3x2048xf32>
    %46 = arith.addf %36, %45 : vector<3x2048xf32>
    %c0_20 = arith.constant 0 : index
    %c3 = arith.constant 3 : index
    %c0_21 = arith.constant 0 : index
    %c0_22 = arith.constant 0 : index
    %47 = vector.load %arg3[%c0_20, %c3, %c0_21, %c0_22] : memref<4x4x3x8xbf16, #tpu.memory_space<vmem>>, vector<1x1x3x8xbf16>
    %48 = vector.shape_cast %47 : vector<1x1x3x8xbf16> to vector<3x8xbf16>
    %cst_23 = arith.constant dense<0.000000e+00> : vector<3x2048xf32>
    %49 = tpu.matmul %48, %14, %cst_23 {dimension_numbers = #tpu.dot_dimension_numbers<[1], [0], [0], [1], [0, 0, 1, 1], [], []>} : vector<3x8xbf16>, vector<8x2048xbf16>, vector<3x2048xf32> -> vector<3x2048xf32>
    %50 = arith.addf %46, %49 : vector<3x2048xf32>
    %c0_24 = arith.constant 0 : index
    %c0_25 = arith.constant 0 : index
    %51 = vector.load %arg6[%c0_24, %c0_25] : memref<3x1xf32, #tpu.memory_space<vmem>>, vector<3x1xf32>
    %52 = vector.broadcast %51 : vector<3x1xf32> to vector<3x2048xf32>
    %53 = arith.addf %50, %52 : vector<3x2048xf32>
    %54 = math.tanh %53 : vector<3x2048xf32>
    %c0_26 = arith.constant 0 : index
    %c0_27 = arith.constant 0 : index
    %c0_28 = arith.constant 0 : index
    %55 = vector.load %arg7[%c0_26, %c0_27, %c0_28] : memref<4x3x2048xf32, #tpu.memory_space<vmem>>, vector<1x3x2048xf32>
    %56 = vector.shape_cast %55 : vector<1x3x2048xf32> to vector<3x2048xf32>
    %57 = vector.shape_cast %54 : vector<3x2048xf32> to vector<1x3x2048xf32>
    tpu.vector_store %arg7[%c0_26, %c0_27, %c0_28], %57 {strides = array<i32>} : memref<4x3x2048xf32, #tpu.memory_space<vmem>>, vector<1x3x2048xf32>,
    %58 = vector.extract_strided_slice %14 {offsets = [0, 2016], sizes = [8, 32], strides = [1, 1]} : vector<8x2048xbf16> to vector<8x32xbf16>
    %59 = vector.extract_strided_slice %14 {offsets = [0, 0], sizes = [8, 2016], strides = [1, 1]} : vector<8x2048xbf16> to vector<8x2016xbf16>
    %60 = tpu.concatenate %58, %59 in 1 : vector<8x32xbf16>, vector<8x2016xbf16> -> vector<8x2048xbf16>
    %61 = vector.extract_strided_slice %0 {offsets = [1, 0], sizes = [1, 2048], strides = [1, 1]} : vector<5x2048xbf16> to vector<1x2048xbf16>
    %62 = vector.broadcast %61 : vector<1x2048xbf16> to vector<8x2048xbf16>
    %63 = arith.mulf %60, %62 : vector<8x2048xbf16>
    %c1_29 = arith.constant 1 : index
    %c0_30 = arith.constant 0 : index
    %c0_31 = arith.constant 0 : index
    %c0_32 = arith.constant 0 : index
    %64 = vector.load %arg3[%c1_29, %c0_30, %c0_31, %c0_32] : memref<4x4x3x8xbf16, #tpu.memory_space<vmem>>, vector<1x1x3x8xbf16>
    %65 = vector.shape_cast %64 : vector<1x1x3x8xbf16> to vector<3x8xbf16>
    %cst_33 = arith.constant dense<0.000000e+00> : vector<3x2048xf32>
    %66 = tpu.matmul %65, %63, %cst_33 {dimension_numbers = #tpu.dot_dimension_numbers<[1], [0], [0], [1], [0, 0, 1, 1], [], []>} : vector<3x8xbf16>, vector<8x2048xbf16>, vector<3x2048xf32> -> vector<3x2048xf32>
    %67 = vector.extract_strided_slice %14 {offsets = [0, 2017], sizes = [8, 31], strides = [1, 1]} : vector<8x2048xbf16> to vector<8x31xbf16>
    %68 = vector.extract_strided_slice %14 {offsets = [0, 0], sizes = [8, 2017], strides = [1, 1]} : vector<8x2048xbf16> to vector<8x2017xbf16>
    %69 = tpu.concatenate %67, %68 in 1 : vector<8x31xbf16>, vector<8x2017xbf16> -> vector<8x2048xbf16>
    %70 = vector.extract_strided_slice %0 {offsets = [1, 0], sizes = [1, 2048], strides = [1, 1]} : vector<5x2048xbf16> to vector<1x2048xbf16>
    %71 = vector.broadcast %70 : vector<1x2048xbf16> to vector<8x2048xbf16>
    %72 = arith.mulf %69, %71 : vector<8x2048xbf16>
    %73 = vector.extract_strided_slice %0 {offsets = [4, 0], sizes = [1, 2048], strides = [1, 1]} : vector<5x2048xbf16> to vector<1x2048xbf16>
    %74 = vector.broadcast %73 : vector<1x2048xbf16> to vector<8x2048xbf16>
    %75 = arith.mulf %72, %74 : vector<8x2048xbf16>
    %c1_34 = arith.constant 1 : index
    %c1_35 = arith.constant 1 : index
    %c0_36 = arith.constant 0 : index
    %c0_37 = arith.constant 0 : index
    %76 = vector.load %arg3[%c1_34, %c1_35, %c0_36, %c0_37] : memref<4x4x3x8xbf16, #tpu.memory_space<vmem>>, vector<1x1x3x8xbf16>
    %77 = vector.shape_cast %76 : vector<1x1x3x8xbf16> to vector<3x8xbf16>
    %cst_38 = arith.constant dense<0.000000e+00> : vector<3x2048xf32>
    %78 = tpu.matmul %77, %75, %cst_38 {dimension_numbers = #tpu.dot_dimension_numbers<[1], [0], [0], [1], [0, 0, 1, 1], [], []>} : vector<3x8xbf16>, vector<8x2048xbf16>, vector<3x2048xf32> -> vector<3x2048xf32>
    %79 = arith.addf %66, %78 : vector<3x2048xf32>
    %c1_39 = arith.constant 1 : index
    %c2_40 = arith.constant 2 : index
    %c0_41 = arith.constant 0 : index
    %c0_42 = arith.constant 0 : index
    %80 = vector.load %arg3[%c1_39, %c2_40, %c0_41, %c0_42] : memref<4x4x3x8xbf16, #tpu.memory_space<vmem>>, vector<1x1x3x8xbf16>
    %81 = vector.shape_cast %80 : vector<1x1x3x8xbf16> to vector<3x8xbf16>
    %cst_43 = arith.constant dense<0.000000e+00> : vector<3x2048xf32>
    %82 = tpu.matmul %81, %14, %cst_43 {dimension_numbers = #tpu.dot_dimension_numbers<[1], [0], [0], [1], [0, 0, 1, 1], [], []>} : vector<3x8xbf16>, vector<8x2048xbf16>, vector<3x2048xf32> -> vector<3x2048xf32>
    %83 = arith.addf %79, %82 : vector<3x2048xf32>
    %84 = vector.extract_strided_slice %14 {offsets = [0, 1], sizes = [8, 2047], strides = [1, 1]} : vector<8x2048xbf16> to vector<8x2047xbf16>
    %85 = vector.extract_strided_slice %14 {offsets = [0, 0], sizes = [8, 1], strides = [1, 1]} : vector<8x2048xbf16> to vector<8x1xbf16>
    %86 = tpu.concatenate %84, %85 in 1 : vector<8x2047xbf16>, vector<8x1xbf16> -> vector<8x2048xbf16>
    %87 = vector.extract_strided_slice %0 {offsets = [4, 0], sizes = [1, 2048], strides = [1, 1]} : vector<5x2048xbf16> to vector<1x2048xbf16>
    %88 = vector.broadcast %87 : vector<1x2048xbf16> to vector<8x2048xbf16>
    %89 = arith.mulf %86, %88 : vector<8x2048xbf16>
    %c1_44 = arith.constant 1 : index
    %c3_45 = arith.constant 3 : index
    %c0_46 = arith.constant 0 : index
    %c0_47 = arith.constant 0 : index
    %90 = vector.load %arg3[%c1_44, %c3_45, %c0_46, %c0_47] : memref<4x4x3x8xbf16, #tpu.memory_space<vmem>>, vector<1x1x3x8xbf16>
    %91 = vector.shape_cast %90 : vector<1x1x3x8xbf16> to vector<3x8xbf16>
    %cst_48 = arith.constant dense<0.000000e+00> : vector<3x2048xf32>
    %92 = tpu.matmul %91, %89, %cst_48 {dimension_numbers = #tpu.dot_dimension_numbers<[1], [0], [0], [1], [0, 0, 1, 1], [], []>} : vector<3x8xbf16>, vector<8x2048xbf16>, vector<3x2048xf32> -> vector<3x2048xf32>
    %93 = arith.addf %83, %92 : vector<3x2048xf32>
    %c0_49 = arith.constant 0 : index
    %c0_50 = arith.constant 0 : index
    %94 = vector.load %arg6[%c0_49, %c0_50] : memref<3x1xf32, #tpu.memory_space<vmem>>, vector<3x1xf32>
    %95 = vector.broadcast %94 : vector<3x1xf32> to vector<3x2048xf32>
    %96 = arith.addf %93, %95 : vector<3x2048xf32>
    %97 = math.tanh %96 : vector<3x2048xf32>
    %c1_51 = arith.constant 1 : index
    %c0_52 = arith.constant 0 : index
    %c0_53 = arith.constant 0 : index
    %98 = vector.load %arg7[%c1_51, %c0_52, %c0_53] : memref<4x3x2048xf32, #tpu.memory_space<vmem>>, vector<1x3x2048xf32>
    %99 = vector.shape_cast %98 : vector<1x3x2048xf32> to vector<3x2048xf32>
    %100 = vector.shape_cast %97 : vector<3x2048xf32> to vector<1x3x2048xf32>
    tpu.vector_store %arg7[%c1_51, %c0_52, %c0_53], %100 {strides = array<i32>} : memref<4x3x2048xf32, #tpu.memory_space<vmem>>, vector<1x3x2048xf32>,
    %101 = vector.extract_strided_slice %14 {offsets = [0, 2047], sizes = [8, 1], strides = [1, 1]} : vector<8x2048xbf16> to vector<8x1xbf16>
    %102 = vector.extract_strided_slice %14 {offsets = [0, 0], sizes = [8, 2047], strides = [1, 1]} : vector<8x2048xbf16> to vector<8x2047xbf16>
    %103 = tpu.concatenate %101, %102 in 1 : vector<8x1xbf16>, vector<8x2047xbf16> -> vector<8x2048xbf16>
    %104 = vector.extract_strided_slice %0 {offsets = [3, 0], sizes = [1, 2048], strides = [1, 1]} : vector<5x2048xbf16> to vector<1x2048xbf16>
    %105 = vector.broadcast %104 : vector<1x2048xbf16> to vector<8x2048xbf16>
    %106 = arith.mulf %103, %105 : vector<8x2048xbf16>
    %c2_54 = arith.constant 2 : index
    %c0_55 = arith.constant 0 : index
    %c0_56 = arith.constant 0 : index
    %c0_57 = arith.constant 0 : index
    %107 = vector.load %arg3[%c2_54, %c0_55, %c0_56, %c0_57] : memref<4x4x3x8xbf16, #tpu.memory_space<vmem>>, vector<1x1x3x8xbf16>
    %108 = vector.shape_cast %107 : vector<1x1x3x8xbf16> to vector<3x8xbf16>
    %cst_58 = arith.constant dense<0.000000e+00> : vector<3x2048xf32>
    %109 = tpu.matmul %108, %106, %cst_58 {dimension_numbers = #tpu.dot_dimension_numbers<[1], [0], [0], [1], [0, 0, 1, 1], [], []>} : vector<3x8xbf16>, vector<8x2048xbf16>, vector<3x2048xf32> -> vector<3x2048xf32>
    %c2_59 = arith.constant 2 : index
    %c1_60 = arith.constant 1 : index
    %c0_61 = arith.constant 0 : index
    %c0_62 = arith.constant 0 : index
    %110 = vector.load %arg3[%c2_59, %c1_60, %c0_61, %c0_62] : memref<4x4x3x8xbf16, #tpu.memory_space<vmem>>, vector<1x1x3x8xbf16>
    %111 = vector.shape_cast %110 : vector<1x1x3x8xbf16> to vector<3x8xbf16>
    %cst_63 = arith.constant dense<0.000000e+00> : vector<3x2048xf32>
    %112 = tpu.matmul %111, %14, %cst_63 {dimension_numbers = #tpu.dot_dimension_numbers<[1], [0], [0], [1], [0, 0, 1, 1], [], []>} : vector<3x8xbf16>, vector<8x2048xbf16>, vector<3x2048xf32> -> vector<3x2048xf32>
    %113 = arith.addf %109, %112 : vector<3x2048xf32>
    %114 = vector.extract_strided_slice %14 {offsets = [0, 31], sizes = [8, 2017], strides = [1, 1]} : vector<8x2048xbf16> to vector<8x2017xbf16>
    %115 = vector.extract_strided_slice %14 {offsets = [0, 0], sizes = [8, 31], strides = [1, 1]} : vector<8x2048xbf16> to vector<8x31xbf16>
    %116 = tpu.concatenate %114, %115 in 1 : vector<8x2017xbf16>, vector<8x31xbf16> -> vector<8x2048xbf16>
    %117 = vector.extract_strided_slice %0 {offsets = [2, 0], sizes = [1, 2048], strides = [1, 1]} : vector<5x2048xbf16> to vector<1x2048xbf16>
    %118 = vector.broadcast %117 : vector<1x2048xbf16> to vector<8x2048xbf16>
    %119 = arith.mulf %116, %118 : vector<8x2048xbf16>
    %120 = vector.extract_strided_slice %0 {offsets = [3, 0], sizes = [1, 2048], strides = [1, 1]} : vector<5x2048xbf16> to vector<1x2048xbf16>
    %121 = vector.broadcast %120 : vector<1x2048xbf16> to vector<8x2048xbf16>
    %122 = arith.mulf %119, %121 : vector<8x2048xbf16>
    %c2_64 = arith.constant 2 : index
    %c2_65 = arith.constant 2 : index
    %c0_66 = arith.constant 0 : index
    %c0_67 = arith.constant 0 : index
    %123 = vector.load %arg3[%c2_64, %c2_65, %c0_66, %c0_67] : memref<4x4x3x8xbf16, #tpu.memory_space<vmem>>, vector<1x1x3x8xbf16>
    %124 = vector.shape_cast %123 : vector<1x1x3x8xbf16> to vector<3x8xbf16>
    %cst_68 = arith.constant dense<0.000000e+00> : vector<3x2048xf32>
    %125 = tpu.matmul %124, %122, %cst_68 {dimension_numbers = #tpu.dot_dimension_numbers<[1], [0], [0], [1], [0, 0, 1, 1], [], []>} : vector<3x8xbf16>, vector<8x2048xbf16>, vector<3x2048xf32> -> vector<3x2048xf32>
    %126 = arith.addf %113, %125 : vector<3x2048xf32>
    %127 = vector.extract_strided_slice %14 {offsets = [0, 32], sizes = [8, 2016], strides = [1, 1]} : vector<8x2048xbf16> to vector<8x2016xbf16>
    %128 = vector.extract_strided_slice %14 {offsets = [0, 0], sizes = [8, 32], strides = [1, 1]} : vector<8x2048xbf16> to vector<8x32xbf16>
    %129 = tpu.concatenate %127, %128 in 1 : vector<8x2016xbf16>, vector<8x32xbf16> -> vector<8x2048xbf16>
    %130 = vector.extract_strided_slice %0 {offsets = [2, 0], sizes = [1, 2048], strides = [1, 1]} : vector<5x2048xbf16> to vector<1x2048xbf16>
    %131 = vector.broadcast %130 : vector<1x2048xbf16> to vector<8x2048xbf16>
    %132 = arith.mulf %129, %131 : vector<8x2048xbf16>
    %c2_69 = arith.constant 2 : index
    %c3_70 = arith.constant 3 : index
    %c0_71 = arith.constant 0 : index
    %c0_72 = arith.constant 0 : index
    %133 = vector.load %arg3[%c2_69, %c3_70, %c0_71, %c0_72] : memref<4x4x3x8xbf16, #tpu.memory_space<vmem>>, vector<1x1x3x8xbf16>
    %134 = vector.shape_cast %133 : vector<1x1x3x8xbf16> to vector<3x8xbf16>
    %cst_73 = arith.constant dense<0.000000e+00> : vector<3x2048xf32>
    %135 = tpu.matmul %134, %132, %cst_73 {dimension_numbers = #tpu.dot_dimension_numbers<[1], [0], [0], [1], [0, 0, 1, 1], [], []>} : vector<3x8xbf16>, vector<8x2048xbf16>, vector<3x2048xf32> -> vector<3x2048xf32>
    %136 = arith.addf %126, %135 : vector<3x2048xf32>
    %c0_74 = arith.constant 0 : index
    %c0_75 = arith.constant 0 : index
    %137 = vector.load %arg6[%c0_74, %c0_75] : memref<3x1xf32, #tpu.memory_space<vmem>>, vector<3x1xf32>
    %138 = vector.broadcast %137 : vector<3x1xf32> to vector<3x2048xf32>
    %139 = arith.addf %136, %138 : vector<3x2048xf32>
    %140 = math.tanh %139 : vector<3x2048xf32>
    %c2_76 = arith.constant 2 : index
    %c0_77 = arith.constant 0 : index
    %c0_78 = arith.constant 0 : index
    %141 = vector.load %arg7[%c2_76, %c0_77, %c0_78] : memref<4x3x2048xf32, #tpu.memory_space<vmem>>, vector<1x3x2048xf32>
    %142 = vector.shape_cast %141 : vector<1x3x2048xf32> to vector<3x2048xf32>
    %143 = vector.shape_cast %140 : vector<3x2048xf32> to vector<1x3x2048xf32>
    tpu.vector_store %arg7[%c2_76, %c0_77, %c0_78], %143 {strides = array<i32>} : memref<4x3x2048xf32, #tpu.memory_space<vmem>>, vector<1x3x2048xf32>,
    %c3_79 = arith.constant 3 : index
    %c0_80 = arith.constant 0 : index
    %c0_81 = arith.constant 0 : index
    %c0_82 = arith.constant 0 : index
    %144 = vector.load %arg3[%c3_79, %c0_80, %c0_81, %c0_82] : memref<4x4x3x8xbf16, #tpu.memory_space<vmem>>, vector<1x1x3x8xbf16>
    %145 = vector.shape_cast %144 : vector<1x1x3x8xbf16> to vector<3x8xbf16>
    %cst_83 = arith.constant dense<0.000000e+00> : vector<3x2048xf32>
    %146 = tpu.matmul %145, %14, %cst_83 {dimension_numbers = #tpu.dot_dimension_numbers<[1], [0], [0], [1], [0, 0, 1, 1], [], []>} : vector<3x8xbf16>, vector<8x2048xbf16>, vector<3x2048xf32> -> vector<3x2048xf32>
    %147 = vector.extract_strided_slice %14 {offsets = [0, 1], sizes = [8, 2047], strides = [1, 1]} : vector<8x2048xbf16> to vector<8x2047xbf16>
    %148 = vector.extract_strided_slice %14 {offsets = [0, 0], sizes = [8, 1], strides = [1, 1]} : vector<8x2048xbf16> to vector<8x1xbf16>
    %149 = tpu.concatenate %147, %148 in 1 : vector<8x2047xbf16>, vector<8x1xbf16> -> vector<8x2048xbf16>
    %150 = vector.extract_strided_slice %0 {offsets = [4, 0], sizes = [1, 2048], strides = [1, 1]} : vector<5x2048xbf16> to vector<1x2048xbf16>
    %151 = vector.broadcast %150 : vector<1x2048xbf16> to vector<8x2048xbf16>
    %152 = arith.mulf %149, %151 : vector<8x2048xbf16>
    %c3_84 = arith.constant 3 : index
    %c1_85 = arith.constant 1 : index
    %c0_86 = arith.constant 0 : index
    %c0_87 = arith.constant 0 : index
    %153 = vector.load %arg3[%c3_84, %c1_85, %c0_86, %c0_87] : memref<4x4x3x8xbf16, #tpu.memory_space<vmem>>, vector<1x1x3x8xbf16>
    %154 = vector.shape_cast %153 : vector<1x1x3x8xbf16> to vector<3x8xbf16>
    %cst_88 = arith.constant dense<0.000000e+00> : vector<3x2048xf32>
    %155 = tpu.matmul %154, %152, %cst_88 {dimension_numbers = #tpu.dot_dimension_numbers<[1], [0], [0], [1], [0, 0, 1, 1], [], []>} : vector<3x8xbf16>, vector<8x2048xbf16>, vector<3x2048xf32> -> vector<3x2048xf32>
    %156 = arith.addf %146, %155 : vector<3x2048xf32>
    %157 = vector.extract_strided_slice %14 {offsets = [0, 32], sizes = [8, 2016], strides = [1, 1]} : vector<8x2048xbf16> to vector<8x2016xbf16>
    %158 = vector.extract_strided_slice %14 {offsets = [0, 0], sizes = [8, 32], strides = [1, 1]} : vector<8x2048xbf16> to vector<8x32xbf16>
    %159 = tpu.concatenate %157, %158 in 1 : vector<8x2016xbf16>, vector<8x32xbf16> -> vector<8x2048xbf16>
    %160 = vector.extract_strided_slice %0 {offsets = [2, 0], sizes = [1, 2048], strides = [1, 1]} : vector<5x2048xbf16> to vector<1x2048xbf16>
    %161 = vector.broadcast %160 : vector<1x2048xbf16> to vector<8x2048xbf16>
    %162 = arith.mulf %159, %161 : vector<8x2048xbf16>
    %c3_89 = arith.constant 3 : index
    %c2_90 = arith.constant 2 : index
    %c0_91 = arith.constant 0 : index
    %c0_92 = arith.constant 0 : index
    %163 = vector.load %arg3[%c3_89, %c2_90, %c0_91, %c0_92] : memref<4x4x3x8xbf16, #tpu.memory_space<vmem>>, vector<1x1x3x8xbf16>
    %164 = vector.shape_cast %163 : vector<1x1x3x8xbf16> to vector<3x8xbf16>
    %cst_93 = arith.constant dense<0.000000e+00> : vector<3x2048xf32>
    %165 = tpu.matmul %164, %162, %cst_93 {dimension_numbers = #tpu.dot_dimension_numbers<[1], [0], [0], [1], [0, 0, 1, 1], [], []>} : vector<3x8xbf16>, vector<8x2048xbf16>, vector<3x2048xf32> -> vector<3x2048xf32>
    %166 = arith.addf %156, %165 : vector<3x2048xf32>
    %167 = vector.extract_strided_slice %14 {offsets = [0, 33], sizes = [8, 2015], strides = [1, 1]} : vector<8x2048xbf16> to vector<8x2015xbf16>
    %168 = vector.extract_strided_slice %14 {offsets = [0, 0], sizes = [8, 33], strides = [1, 1]} : vector<8x2048xbf16> to vector<8x33xbf16>
    %169 = tpu.concatenate %167, %168 in 1 : vector<8x2015xbf16>, vector<8x33xbf16> -> vector<8x2048xbf16>
    %170 = vector.extract_strided_slice %0 {offsets = [2, 0], sizes = [1, 2048], strides = [1, 1]} : vector<5x2048xbf16> to vector<1x2048xbf16>
    %171 = vector.broadcast %170 : vector<1x2048xbf16> to vector<8x2048xbf16>
    %172 = arith.mulf %169, %171 : vector<8x2048xbf16>
    %173 = vector.extract_strided_slice %0 {offsets = [4, 0], sizes = [1, 2048], strides = [1, 1]} : vector<5x2048xbf16> to vector<1x2048xbf16>
    %174 = vector.broadcast %173 : vector<1x2048xbf16> to vector<8x2048xbf16>
    %175 = arith.mulf %172, %174 : vector<8x2048xbf16>
    %c3_94 = arith.constant 3 : index
    %c3_95 = arith.constant 3 : index
    %c0_96 = arith.constant 0 : index
    %c0_97 = arith.constant 0 : index
    %176 = vector.load %arg3[%c3_94, %c3_95, %c0_96, %c0_97] : memref<4x4x3x8xbf16, #tpu.memory_space<vmem>>, vector<1x1x3x8xbf16>
    %177 = vector.shape_cast %176 : vector<1x1x3x8xbf16> to vector<3x8xbf16>
    %cst_98 = arith.constant dense<0.000000e+00> : vector<3x2048xf32>
    %178 = tpu.matmul %177, %175, %cst_98 {dimension_numbers = #tpu.dot_dimension_numbers<[1], [0], [0], [1], [0, 0, 1, 1], [], []>} : vector<3x8xbf16>, vector<8x2048xbf16>, vector<3x2048xf32> -> vector<3x2048xf32>
    %179 = arith.addf %166, %178 : vector<3x2048xf32>
    %c0_99 = arith.constant 0 : index
    %c0_100 = arith.constant 0 : index
    %180 = vector.load %arg6[%c0_99, %c0_100] : memref<3x1xf32, #tpu.memory_space<vmem>>, vector<3x1xf32>
    %181 = vector.broadcast %180 : vector<3x1xf32> to vector<3x2048xf32>
    %182 = arith.addf %179, %181 : vector<3x2048xf32>
    %183 = math.tanh %182 : vector<3x2048xf32>
    %c3_101 = arith.constant 3 : index
    %c0_102 = arith.constant 0 : index
    %c0_103 = arith.constant 0 : index
    %184 = vector.load %arg7[%c3_101, %c0_102, %c0_103] : memref<4x3x2048xf32, #tpu.memory_space<vmem>>, vector<1x3x2048xf32>
    %185 = vector.shape_cast %184 : vector<1x3x2048xf32> to vector<3x2048xf32>
    %186 = vector.shape_cast %183 : vector<3x2048xf32> to vector<1x3x2048xf32>
    tpu.vector_store %arg7[%c3_101, %c0_102, %c0_103], %186 {strides = array<i32>} : memref<4x3x2048xf32, #tpu.memory_space<vmem>>, vector<1x3x2048xf32>,
    return
  }
  func.func @transform_0(%arg0: i32) -> (i32, i32) {
    %c0_i32 = arith.constant 0 : i32
    %c0_i32_0 = arith.constant 0 : i32
    return %c0_i32, %arg0 : i32, i32
  }
  func.func @transform_1(%arg0: i32) -> (i32, i32) {
    %c0_i32 = arith.constant 0 : i32
    %c0_i32_0 = arith.constant 0 : i32
    return %c0_i32, %arg0 : i32, i32
  }
  func.func @transform_2(%arg0: i32) -> (i32, i32, i32, i32) {
    %c0_i32 = arith.constant 0 : i32
    %c0_i32_0 = arith.constant 0 : i32
    %c0_i32_1 = arith.constant 0 : i32
    %c0_i32_2 = arith.constant 0 : i32
    %c0_i32_3 = arith.constant 0 : i32
    return %c0_i32, %c0_i32_0, %c0_i32_1, %c0_i32_2 : i32, i32, i32, i32
  }
  func.func @transform_3(%arg0: i32) -> (i32, i32) {
    %c0_i32 = arith.constant 0 : i32
    %c0_i32_0 = arith.constant 0 : i32
    %c0_i32_1 = arith.constant 0 : i32
    return %c0_i32, %c0_i32_0 : i32, i32
  }
  func.func @transform_4(%arg0: i32) -> (i32, i32) {
    %c0_i32 = arith.constant 0 : i32
    %c0_i32_0 = arith.constant 0 : i32
    %c0_i32_1 = arith.constant 0 : i32
    return %c0_i32, %c0_i32_0 : i32, i32
  }
  func.func @transform_5(%arg0: i32) -> (i32, i32) {
    %c0_i32 = arith.constant 0 : i32
    %c0_i32_0 = arith.constant 0 : i32
    %c0_i32_1 = arith.constant 0 : i32
    return %c0_i32, %c0_i32_0 : i32, i32
  }
  func.func @transform_6(%arg0: i32) -> (i32, i32, i32) {
    %c0_i32 = arith.constant 0 : i32
    %c0_i32_0 = arith.constant 0 : i32
    %c0_i32_1 = arith.constant 0 : i32
    return %c0_i32, %c0_i32_0, %arg0 : i32, i32, i32
  }
}

</mosaic_0001>

<llo_original>
// kernel: generator_forward.5
$region0: #{generator_forward.5}
  #allocation0 [shape = 'u32[]', space=smem, size = 0x4, offset = 0x4, fixed_abs, tag = 'smem constant byte address 0x4 - core index']
  #allocation1 [shape = 'u32[72,128]{1,0:T(1,128)}', space=vmem, size = 0x9000, scoped, tag = 'internal scratch']
  %s0 = inlined_call_operand.vmem [shape: bf16[2,200], index: 0, kind: input, shape index: {}]
  %s1 = inlined_call_operand.hbm [shape: bf16[200,1024], index: 1, kind: input, shape index: {}]
  %s2 = inlined_call_operand.vmem [shape: bf16[2,1024], index: 2, kind: output, shape index: {}]
  %s3 = sld [smem:[#allocation0]]
  $region45: #{generator_forward.5} parent=0
    _
  %s5 = ssub.s32 1, %s3
  %s6 = scalar_select 0, %s5, %s3
  $region1: #{generator_forward.5} parent=0
    #allocation2 [shape = 'u8[409600]{0}', space=vmem, size = 0x64000, scoped, tag = 'input window, operand 1']
    #allocation3 [shape = 's32[2]{0}', space=sflag, size = 0x8, scoped, tag = 'scoped memory for generator_forward.5']
    %7 = vsyncpa [#allocation3], 0
    %s8 = scalar_lea.sflag [#allocation3], 1
    %9 = vsyncpa %s8, 0
    loop: start=0, step=1, limit=4
    $region2: #{generator_forward.5} parent=1 // loop_pre_header
      _
    $region3: #{generator_forward.5} parent=1 // loop_header
      %s11 = sphi 0, %s15
      %p12 = scmp.ge.s32.totalorder %s11, 4
      %s19 = sphi 0, %s19
      %s21 = sphi 0, %s19
      %s22 = sphi 0, %s21
      %s36 = sphi 0, %s22
      %s42 = sphi 0, %s44
      %s45 = sphi 0, %s42
      %s46 = sphi 0, %s45
      %s62 = sphi 0, %s46
      %s68 = sphi 0, %s70
      %s71 = sphi 0, %s68
      %s72 = sphi 0, %s71
      %s88 = sphi 0, %s72
    $region4: #{generator_forward.5} parent=1 // loop_header_branch
      %14 = sbr.rel (%p12) target = $region8
    $region5: #{generator_forward.5} parent=1 // loop_body
      %s16 = ssub.s32 %s11, 1
      %s17 = ssub.s32 %s11, 2
      %s18 = sadd.s32 %s11, 1
      %s20 = sadd.s32 %s19, 1
      %p23 = scmp.eq.s32.totalorder %s11, 1
      %p24 = scmp.ne.s32.totalorder %s19, %s21
      %p25 = scmp.eq.s32.totalorder %s11, 0
      %p26 = por %p24, %p25
      %p27 = scmp.ne.s32.totalorder %s19, %s21
      %p28 = scmp.eq.s32.totalorder %s16, 1
      %p29 = por %p27, %p28
      %p30 = scmp.ne.s32.totalorder %s21, %s22
      %p31 = scmp.eq.s32.totalorder %s16, 0
      %p32 = por %p30, %p31
      %p33 = scmp.ne.s32.totalorder %s21, %s22
      %p34 = scmp.eq.s32.totalorder %s17, 1
      %p35 = por %p33, %p34
      %p37 = scmp.ne.s32.totalorder %s22, %s36
      %p38 = scmp.eq.s32.totalorder %s17, 0
      %p39 = por %p37, %p38
      %s40 = ssub.s32 %s11, %s18
      %p41 = scmp.eq.s32.totalorder %s40, 0
      %s43 = sadd.s32 %s42, 1
      %s44 = scalar_select %p41, %s42, %s43
      %p47 = pneg %p41
      %p48 = scmp.eq.s32.totalorder %s11, 1
      %p49 = por %p47, %p48
      %p50 = scmp.ne.s32.totalorder %s42, %s45
      %p51 = scmp.eq.s32.totalorder %s11, 0
      %p52 = por %p50, %p51
      %p53 = scmp.ne.s32.totalorder %s42, %s45
      %p54 = scmp.eq.s32.totalorder %s16, 1
      %p55 = por %p53, %p54
      %p56 = scmp.ne.s32.totalorder %s45, %s46
      %p57 = scmp.eq.s32.totalorder %s16, 0
      %p58 = por %p56, %p57
      %p59 = scmp.ne.s32.totalorder %s45, %s46
      %p60 = scmp.eq.s32.totalorder %s17, 1
      %p61 = por %p59, %p60
      %p63 = scmp.ne.s32.totalorder %s46, %s62
      %p64 = scmp.eq.s32.totalorder %s17, 0
      %p65 = por %p63, %p64
      %s66 = ssub.s32 %s11, %s18
      %p67 = scmp.eq.s32.totalorder %s66, 0
      %s69 = sadd.s32 %s68, 1
      %s70 = scalar_select %p67, %s68, %s69
      %p73 = pneg %p67
      %p74 = scmp.eq.s32.totalorder %s11, 1
      %p75 = por %p73, %p74
      %p76 = scmp.ne.s32.totalorder %s68, %s71
      %p77 = scmp.eq.s32.totalorder %s11, 0
      %p78 = por %p76, %p77
      %p79 = scmp.ne.s32.totalorder %s68, %s71
      %p80 = scmp.eq.s32.totalorder %s16, 1
      %p81 = por %p79, %p80
      %p82 = scmp.ne.s32.totalorder %s71, %s72
      %p83 = scmp.eq.s32.totalorder %s16, 0
      %p84 = por %p82, %p83
      %p85 = scmp.ne.s32.totalorder %s71, %s72
      %p86 = scmp.eq.s32.totalorder %s17, 1
      %p87 = por %p85, %p86
      %p89 = scmp.ne.s32.totalorder %s72, %s88
      %p90 = scmp.eq.s32.totalorder %s17, 0
      %p91 = por %p89, %p90
      %p92 = scmp.le.s32.totalorder 1, %s11
      %p93 = scmp.lt.s32.totalorder %s11, 3
      %p94 = pnand %p92, %p93
      %p95 = pneg %p94
      // Predicated region
      $region9: #{generator_forward.5} parent=5 // pred_check
        _
      $region10: #{generator_forward.5} parent=5 // pred_check_branch
        %97 = sbr.rel (%p94) target = $region12
      $region11: #{generator_forward.5} parent=5 // pred_region
        %s98 = ssub.s32 %s11, 1
        // Predicated region
        $region13: #{generator_forward.5} parent=11 // pred_check
          %p99 = pneg %p32
        $region14: #{generator_forward.5} parent=11 // pred_check_branch
          %101 = sbr.rel (%p99) target = $region16
        $region15: #{generator_forward.5} parent=11 // pred_region
          _
        $region16: #{generator_forward.5} parent=11 // pred_fallthru
          _
      $region12: #{generator_forward.5} parent=5 // pred_fallthru
        _
      %p102 = scmp.lt.s32.totalorder %s11, 2
      // Predicated region
      $region17: #{generator_forward.5} parent=5 // pred_check
        %p103 = pneg %p102
      $region18: #{generator_forward.5} parent=5 // pred_check_branch
        %105 = sbr.rel (%p103) target = $region20
      $region19: #{generator_forward.5} parent=5 // pred_region
        // Predicated region
        $region21: #{generator_forward.5} parent=19 // pred_check
          %p106 = pneg %p52
        $region22: #{generator_forward.5} parent=19 // pred_check_branch
          %108 = sbr.rel (%p106) target = $region24
        $region23: #{generator_forward.5} parent=19 // pred_region
          %s109 = sand.u32 %s42, 1
          %s110 = scalar_lea.sflag [#allocation3], %s109
          %s111 = sand.u32 %s42, 1
          %s112 = smul.addr %s111, 400
          %s113 = scalar_lea.vmem [#allocation2], %s112
          %s114 = smul.u32 4, %s11
          %116 = vsyncadd %s110, 0
          %s117 = smul.addr %s114, 4
          %s118 = scalar_lea.hbm %s1, %s117
          %s119 = sshll.u32 %s118, 4
          %s120 = int_to_ptr.hbm [resolvable:$true] %s119
          %s121 = sshll.u32 %s113, 4
          %s122 = int_to_ptr.vmem [resolvable:$true] %s121
          %127 = dma.hbm_to_vmem [thread:$0]  %s120, 6400, %s122, %s110, 512, 256, 16
        $region24: #{generator_forward.5} parent=19 // pred_fallthru
          _
      $region20: #{generator_forward.5} parent=5 // pred_fallthru
        _
      %p128 = scmp.le.s32.totalorder 1, %s11
      %p129 = scmp.lt.s32.totalorder %s11, 3
      %p130 = pnand %p128, %p129
      %p131 = pneg %p130
      // Predicated region
      $region25: #{generator_forward.5} parent=5 // pred_check
        _
      $region26: #{generator_forward.5} parent=5 // pred_check_branch
        %133 = sbr.rel (%p130) target = $region28
      $region27: #{generator_forward.5} parent=5 // pred_region
        %s134 = ssub.s32 %s11, 1
        %s135 = sand.u32 %s45, 1
        %s136 = scalar_lea.sflag [#allocation3], %s135
        %s137 = sand.u32 %s45, 1
        %s138 = smul.addr %s137, 400
        %s139 = scalar_lea.vmem [#allocation2], %s138
        // Predicated region
        $region29: #{generator_forward.5} parent=27 // pred_check
          %p140 = pneg %p58
        $region30: #{generator_forward.5} parent=27 // pred_check_branch
          %142 = sbr.rel (%p140) target = $region32
        $region31: #{generator_forward.5} parent=27 // pred_region
          %144 = dma.done %s136, 6400
        $region32: #{generator_forward.5} parent=27 // pred_fallthru
          _
        %p145 = pneg %p32
        %p146 = pneg %p29
        %s147 = sand.u32 %s45, 1
        %s148 = scalar_lea.sflag [#allocation3], %s147
        %s149 = sand.u32 %s45, 1
        %s150 = smul.addr %s149, 400
        %s151 = scalar_lea.vmem [#allocation2], %s150
        %p152 = pneg %p58
        %p153 = pneg %p55
        %p154 = pneg %p84
        %p155 = pneg %p81
        %s156 = smul.u32 4, %s16
        %p157 = scmp.lt.s32.totalorder %s156, 7
        %s158 = scalar_select %p157, %s156, 7
        %s159 = scalar_lea.vmem %s2, %s158
        %s160 = smul.u32 4, %s16
        %s161 = smul.u32 4, %s16
        %p162 = scmp.lt.s32.totalorder %s161, 7
        %s163 = scalar_select %p162, %s161, 7
        %s164 = scalar_lea.vmem %s2, %s163
        %s165 = smul.u32 4, %s16
        %v167 = vld [vmem:[%s0] sm:$0x3]
        %v168 = vld [vmem:[%s139] sm:$0xff]
        %v169 = vld [vmem:[%s139 + $0x8] sm:$0xff]
        %v170 = vld [vmem:[%s139 + $0x10] sm:$0xff]
        %v171 = vld [vmem:[%s139 + $0x18] sm:$0xff]
        %v172 = vld [vmem:[%s139 + $0x20] sm:$0xff]
        %v173 = vld [vmem:[%s139 + $0x28] sm:$0xff]
        %v174 = vld [vmem:[%s139 + $0x30] sm:$0xff]
        %v175 = vld [vmem:[%s139 + $0x38] sm:$0xff]
        %v176 = vld [vmem:[%s139 + $0x40] sm:$0xff]
        %v177 = vld [vmem:[%s139 + $0x48] sm:$0xff]
        %v178 = vld [vmem:[%s139 + $0x50] sm:$0xff]
        %v179 = vld [vmem:[%s139 + $0x58] sm:$0xff]
        %v180 = vld [vmem:[%s139 + $0x60] sm:$0xff]
        %v181 = vld [vmem:[%s139 + $0x68] sm:$0xff]
        %v182 = vld [vmem:[%s139 + $0x70] sm:$0xff]
        %v183 = vld [vmem:[%s139 + $0x78] sm:$0xff]
        %v184 = vld [vmem:[%s139 + $0x80] sm:$0xff]
        %v185 = vld [vmem:[%s139 + $0x88] sm:$0xff]
        %v186 = vld [vmem:[%s139 + $0x90] sm:$0xff]
        %v187 = vld [vmem:[%s139 + $0x98] sm:$0xff]
        %v188 = vld [vmem:[%s139 + $0xa0] sm:$0xff]
        %v189 = vld [vmem:[%s139 + $0xa8] sm:$0xff]
        %v190 = vld [vmem:[%s139 + $0xb0] sm:$0xff]
        %v191 = vld [vmem:[%s139 + $0xb8] sm:$0xff]
        %v192 = vld [vmem:[%s139 + $0xc0] sm:$0xff]
        %v193 = vld [vmem:[%s139 + $0xc8] sm:$0xff]
        %v194 = vld [vmem:[%s139 + $0xd0] sm:$0xff]
        %v195 = vld [vmem:[%s139 + $0xd8] sm:$0xff]
        %v196 = vld [vmem:[%s139 + $0xe0] sm:$0xff]
        %v197 = vld [vmem:[%s139 + $0xe8] sm:$0xff]
        %v198 = vld [vmem:[%s139 + $0xf0] sm:$0xff]
        %v199 = vld [vmem:[%s139 + $0xf8] sm:$0xff]
        %v200 = vld [vmem:[%s139 + $0x100] sm:$0xff]
        %v201 = vld [vmem:[%s139 + $0x108] sm:$0xff]
        %v202 = vld [vmem:[%s139 + $0x110] sm:$0xff]
        %v203 = vld [vmem:[%s139 + $0x118] sm:$0xff]
        %v204 = vld [vmem:[%s139 + $0x120] sm:$0xff]
        %v205 = vld [vmem:[%s139 + $0x128] sm:$0xff]
        %v206 = vld [vmem:[%s139 + $0x130] sm:$0xff]
        %v207 = vld [vmem:[%s139 + $0x138] sm:$0xff]
        %v208 = vld [vmem:[%s139 + $0x140] sm:$0xff]
        %v209 = vld [vmem:[%s139 + $0x148] sm:$0xff]
        %v210 = vld [vmem:[%s139 + $0x150] sm:$0xff]
        %v211 = vld [vmem:[%s139 + $0x158] sm:$0xff]
        %v212 = vld [vmem:[%s139 + $0x160] sm:$0xff]
        %v213 = vld [vmem:[%s139 + $0x168] sm:$0xff]
        %v214 = vld [vmem:[%s139 + $0x170] sm:$0xff]
        %v215 = vld [vmem:[%s139 + $0x178] sm:$0xff]
        %v216 = vld [vmem:[%s139 + $0x180] sm:$0xff]
        %v217 = vld [vmem:[%s139 + $0x188] sm:$0xff]
        %219 = vst [vmem:[#allocation1] ss:$9 sm:$0xff] %v167
        %v220 = vld [vmem:[#allocation1] sm:$0xff]
        %v221 = vld [vmem:[#allocation1 + $0x9] sm:$0xff]
        %v273 = vunpack.c.l.b16 %v168
        %v274 = vunpack.c.h.b16 %v168
        %v275 = vunpack.c.l.b16 %v169
        %v276 = vunpack.c.h.b16 %v169
        %v277 = vunpack.c.l.b16 %v170
        %v278 = vunpack.c.h.b16 %v170
        %v279 = vunpack.c.l.b16 %v171
        %v280 = vunpack.c.h.b16 %v171
        %v281 = vunpack.c.l.b16 %v172
        %v282 = vunpack.c.h.b16 %v172
        %v283 = vunpack.c.l.b16 %v173
        %v284 = vunpack.c.h.b16 %v173
        %v285 = vunpack.c.l.b16 %v174
        %v286 = vunpack.c.h.b16 %v174
        %v287 = vunpack.c.l.b16 %v175
        %v288 = vunpack.c.h.b16 %v175
        %v289 = vunpack.c.l.b16 %v176
        %v290 = vunpack.c.h.b16 %v176
        %v291 = vunpack.c.l.b16 %v177
        %v292 = vunpack.c.h.b16 %v177
        %v293 = vunpack.c.l.b16 %v178
        %v294 = vunpack.c.h.b16 %v178
        %v295 = vunpack.c.l.b16 %v179
        %v296 = vunpack.c.h.b16 %v179
        %v297 = vunpack.c.l.b16 %v180
        %v298 = vunpack.c.h.b16 %v180
        %v299 = vunpack.c.l.b16 %v181
        %v300 = vunpack.c.h.b16 %v181
        %v301 = vunpack.c.l.b16 %v182
        %v302 = vunpack.c.h.b16 %v182
        %v303 = vunpack.c.l.b16 %v183
        %v304 = vunpack.c.h.b16 %v183
        %v305 = vunpack.c.l.b16 %v184
        %v306 = vunpack.c.h.b16 %v184
        %v307 = vunpack.c.l.b16 %v185
        %v308 = vunpack.c.h.b16 %v185
        %v309 = vunpack.c.l.b16 %v186
        %v310 = vunpack.c.h.b16 %v186
        %v311 = vunpack.c.l.b16 %v187
        %v312 = vunpack.c.h.b16 %v187
        %v313 = vunpack.c.l.b16 %v188
        %v314 = vunpack.c.h.b16 %v188
        %v315 = vunpack.c.l.b16 %v189
        %v316 = vunpack.c.h.b16 %v189
        %v317 = vunpack.c.l.b16 %v190
        %v318 = vunpack.c.h.b16 %v190
        %v319 = vunpack.c.l.b16 %v191
        %v320 = vunpack.c.h.b16 %v191
        %v321 = vunpack.c.l.b16 %v192
        %v322 = vunpack.c.h.b16 %v192
        %v323 = vunpack.c.l.b16 %v193
        %v324 = vunpack.c.h.b16 %v193
        %v325 = vunpack.c.l.b16 %v194
        %v326 = vunpack.c.h.b16 %v194
        %v327 = vunpack.c.l.b16 %v195
        %v328 = vunpack.c.h.b16 %v195
        %v329 = vunpack.c.l.b16 %v196
        %v330 = vunpack.c.h.b16 %v196
        %v331 = vunpack.c.l.b16 %v197
        %v332 = vunpack.c.h.b16 %v197
        %v333 = vunpack.c.l.b16 %v198
        %v334 = vunpack.c.h.b16 %v198
        %v335 = vunpack.c.l.b16 %v199
        %v336 = vunpack.c.h.b16 %v199
        %v337 = vunpack.c.l.b16 %v200
        %v338 = vunpack.c.h.b16 %v200
        %v339 = vunpack.c.l.b16 %v201
        %v340 = vunpack.c.h.b16 %v201
        %v341 = vunpack.c.l.b16 %v202
        %v342 = vunpack.c.h.b16 %v202
        %v343 = vunpack.c.l.b16 %v203
        %v344 = vunpack.c.h.b16 %v203
        %v345 = vunpack.c.l.b16 %v204
        %v346 = vunpack.c.h.b16 %v204
        %v347 = vunpack.c.l.b16 %v205
        %v348 = vunpack.c.h.b16 %v205
        %v349 = vunpack.c.l.b16 %v206
        %v350 = vunpack.c.h.b16 %v206
        %v351 = vunpack.c.l.b16 %v207
        %v352 = vunpack.c.h.b16 %v207
        %v353 = vunpack.c.l.b16 %v208
        %v354 = vunpack.c.h.b16 %v208
        %v355 = vunpack.c.l.b16 %v209
        %v356 = vunpack.c.h.b16 %v209
        %v357 = vunpack.c.l.b16 %v210
        %v358 = vunpack.c.h.b16 %v210
        %v359 = vunpack.c.l.b16 %v211
        %v360 = vunpack.c.h.b16 %v211
        %v361 = vunpack.c.l.b16 %v212
        %v362 = vunpack.c.h.b16 %v212
        %v363 = vunpack.c.l.b16 %v213
        %v364 = vunpack.c.h.b16 %v213
        %v365 = vunpack.c.l.b16 %v214
        %v366 = vunpack.c.h.b16 %v214
        %v367 = vunpack.c.l.b16 %v215
        %v368 = vunpack.c.h.b16 %v215
        %v369 = vunpack.c.l.b16 %v216
        %v370 = vunpack.c.h.b16 %v216
        %v371 = vunpack.c.l.b16 %v217
        %v372 = vunpack.c.h.b16 %v217
        %v373 = vpack.c.b16 %v277, %v273
        %v374 = vpack.c.b16 %v278, %v274
        %v375 = vpack.c.b16 %v279, %v275
        %v376 = vpack.c.b16 %v280, %v276
        %v377 = vpack.c.b16 %v285, %v281
        %v378 = vpack.c.b16 %v286, %v282
        %v379 = vpack.c.b16 %v287, %v283
        %v380 = vpack.c.b16 %v288, %v284
        %v381 = vpack.c.b16 %v293, %v289
        %v382 = vpack.c.b16 %v294, %v290
        %v383 = vpack.c.b16 %v295, %v291
        %v384 = vpack.c.b16 %v296, %v292
        %v385 = vpack.c.b16 %v301, %v297
        %v386 = vpack.c.b16 %v302, %v298
        %v387 = vpack.c.b16 %v303, %v299
        %v388 = vpack.c.b16 %v304, %v300
        %v389 = vpack.c.b16 %v309, %v305
        %v390 = vpack.c.b16 %v310, %v306
        %v391 = vpack.c.b16 %v311, %v307
        %v392 = vpack.c.b16 %v312, %v308
        %v393 = vpack.c.b16 %v317, %v313
        %v394 = vpack.c.b16 %v318, %v314
        %v395 = vpack.c.b16 %v319, %v315
        %v396 = vpack.c.b16 %v320, %v316
        %v397 = vpack.c.b16 %v325, %v321
        %v398 = vpack.c.b16 %v326, %v322
        %v399 = vpack.c.b16 %v327, %v323
        %v400 = vpack.c.b16 %v328, %v324
        %v401 = vpack.c.b16 %v333, %v329
        %v402 = vpack.c.b16 %v334, %v330
        %v403 = vpack.c.b16 %v335, %v331
        %v404 = vpack.c.b16 %v336, %v332
        %v405 = vpack.c.b16 %v341, %v337
        %v406 = vpack.c.b16 %v342, %v338
        %v407 = vpack.c.b16 %v343, %v339
        %v408 = vpack.c.b16 %v344, %v340
        %v409 = vpack.c.b16 %v349, %v345
        %v410 = vpack.c.b16 %v350, %v346
        %v411 = vpack.c.b16 %v351, %v347
        %v412 = vpack.c.b16 %v352, %v348
        %v413 = vpack.c.b16 %v357, %v353
        %v414 = vpack.c.b16 %v358, %v354
        %v415 = vpack.c.b16 %v359, %v355
        %v416 = vpack.c.b16 %v360, %v356
        %v417 = vpack.c.b16 %v365, %v361
        %v418 = vpack.c.b16 %v366, %v362
        %v419 = vpack.c.b16 %v367, %v363
        %v420 = vpack.c.b16 %v368, %v364
        %v421 = vpack.c.b16 %v369, %v369
        %v422 = vpack.c.b16 %v370, %v370
        %v423 = vpack.c.b16 %v371, %v371
        %v424 = vpack.c.b16 %v372, %v372
        %vm473 = vcmask 588800
        %v474 = vsel %vm473, %v221, 0
        %vm476 = vcmask 1043456
        %v478 = vsel %vm476, %v421, 0
        %v481 = vsel %vm476, %v422, 0
        %v484 = vsel %vm476, %v423, 0
        %v487 = vsel %vm476, %v424, 0
        %489 = vmatpush.bf16.msra.mxu0 %v401
        %490 = vmatpush.bf16.msra.mxu0 %v397
        %491 = vmatpush.bf16.msra.mxu0 %v393
        %492 = vmatpush.bf16.msra.mxu0 %v389
        %493 = vmatpush.bf16.msra.mxu0 %v385
        %494 = vmatpush.bf16.msra.mxu0 %v381
        %495 = vmatpush.bf16.msra.mxu0 %v377
        %496 = vmatpush.bf16.msra.mxu0 %v373
        %497 = vmatmul.bf16.gmra.mxu0 %v220
        %v498 = vpop.f32.mrf.mxu0
        %v499 = vadd.f32 0.0, %v498
        %v500 = vpop.f32.mrf.mxu0
        %501 = vdwg.mxu0
        %502 = vmatpush.bf16.msra.mxu0 0
        %503 = vmatpush.bf16.msra.mxu0 0
        %504 = vmatpush.bf16.msra.mxu0 0
        %505 = vmatpush.bf16.msra.mxu0 %v478
        %506 = vmatpush.bf16.msra.mxu0 %v417
        %507 = vmatpush.bf16.msra.mxu0 %v413
        %508 = vmatpush.bf16.msra.mxu0 %v409
        %509 = vmatpush.bf16.msra.mxu0 %v405
        %510 = vmatmul.bf16.gmra.mxu0 %v474
        %v511 = vpop.f32.mrf.mxu0
        %v512 = vadd.f32 %v499, %v511
        %v513 = vpop.f32.mrf.mxu0
        %514 = vdwg.mxu0
        %515 = vmatpush.bf16.msra.mxu0 %v402
        %516 = vmatpush.bf16.msra.mxu0 %v398
        %517 = vmatpush.bf16.msra.mxu0 %v394
        %518 = vmatpush.bf16.msra.mxu0 %v390
        %519 = vmatpush.bf16.msra.mxu0 %v386
        %520 = vmatpush.bf16.msra.mxu0 %v382
        %521 = vmatpush.bf16.msra.mxu0 %v378
        %522 = vmatpush.bf16.msra.mxu0 %v374
        %523 = vmatmul.bf16.gmra.mxu0 %v220
        %v524 = vpop.f32.mrf.mxu0
        %v525 = vadd.f32 0.0, %v524
        %v526 = vpop.f32.mrf.mxu0
        %527 = vdwg.mxu0
        %528 = vmatpush.bf16.msra.mxu0 0
        %529 = vmatpush.bf16.msra.mxu0 0
        %530 = vmatpush.bf16.msra.mxu0 0
        %531 = vmatpush.bf16.msra.mxu0 %v481
        %532 = vmatpush.bf16.msra.mxu0 %v418
        %533 = vmatpush.bf16.msra.mxu0 %v414
        %534 = vmatpush.bf16.msra.mxu0 %v410
        %535 = vmatpush.bf16.msra.mxu0 %v406
        %536 = vmatmul.bf16.gmra.mxu0 %v474
        %v537 = vpop.f32.mrf.mxu0
        %v538 = vadd.f32 %v525, %v537
        %v539 = vpop.f32.mrf.mxu0
        %540 = vdwg.mxu0
        %541 = vmatpush.bf16.msra.mxu0 %v403
        %542 = vmatpush.bf16.msra.mxu0 %v399
        %543 = vmatpush.bf16.msra.mxu0 %v395
        %544 = vmatpush.bf16.msra.mxu0 %v391
        %545 = vmatpush.bf16.msra.mxu0 %v387
        %546 = vmatpush.bf16.msra.mxu0 %v383
        %547 = vmatpush.bf16.msra.mxu0 %v379
        %548 = vmatpush.bf16.msra.mxu0 %v375
        %549 = vmatmul.bf16.gmra.mxu0 %v220
        %v550 = vpop.f32.mrf.mxu0
        %v551 = vadd.f32 0.0, %v550
        %v552 = vpop.f32.mrf.mxu0
        %553 = vdwg.mxu0
        %554 = vmatpush.bf16.msra.mxu0 0
        %555 = vmatpush.bf16.msra.mxu0 0
        %556 = vmatpush.bf16.msra.mxu0 0
        %557 = vmatpush.bf16.msra.mxu0 %v484
        %558 = vmatpush.bf16.msra.mxu0 %v419
        %559 = vmatpush.bf16.msra.mxu0 %v415
        %560 = vmatpush.bf16.msra.mxu0 %v411
        %561 = vmatpush.bf16.msra.mxu0 %v407
        %562 = vmatmul.bf16.gmra.mxu0 %v474
        %v563 = vpop.f32.mrf.mxu0
        %v564 = vadd.f32 %v551, %v563
        %v565 = vpop.f32.mrf.mxu0
        %566 = vdwg.mxu0
        %567 = vmatpush.bf16.msra.mxu0 %v404
        %568 = vmatpush.bf16.msra.mxu0 %v400
        %569 = vmatpush.bf16.msra.mxu0 %v396
        %570 = vmatpush.bf16.msra.mxu0 %v392
        %571 = vmatpush.bf16.msra.mxu0 %v388
        %572 = vmatpush.bf16.msra.mxu0 %v384
        %573 = vmatpush.bf16.msra.mxu0 %v380
        %574 = vmatpush.bf16.msra.mxu0 %v376
        %575 = vmatmul.bf16.gmra.mxu0 %v220
        %v576 = vpop.f32.mrf.mxu0
        %v577 = vadd.f32 0.0, %v576
        %v578 = vpop.f32.mrf.mxu0
        %579 = vdwg.mxu0
        %580 = vmatpush.bf16.msra.mxu0 0
        %581 = vmatpush.bf16.msra.mxu0 0
        %582 = vmatpush.bf16.msra.mxu0 0
        %583 = vmatpush.bf16.msra.mxu0 %v487
        %584 = vmatpush.bf16.msra.mxu0 %v420
        %585 = vmatpush.bf16.msra.mxu0 %v416
        %586 = vmatpush.bf16.msra.mxu0 %v412
        %587 = vmatpush.bf16.msra.mxu0 %v408
        %588 = vmatmul.bf16.gmra.mxu0 %v474
        %v589 = vpop.f32.mrf.mxu0
        %v590 = vadd.f32 %v577, %v589
        %v591 = vpop.f32.mrf.mxu0
        %592 = vdwg.mxu0
        %v593 = vpack.c.bf16 %v538, %v512
        %v594 = vpack.c.bf16 %v590, %v564
        %v597 = vrot.slane %v593, 3
        %v598 = vrot.slane %v594, 6
        %v599 = vrot.slane %v594, 1
        %vm600 = vcmask 1040384
        %v603 = vsel %vm600, %v593, %v597
        %vm604 = vcmask 1042434
        %v607 = vsel %vm604, %v598, %v599
        %vm608 = vcmask 1041408
        %v609 = vsel %vm608, %v603, %v607
        %611 = vst [vmem:[%s164] sm:$0xf] %v609
        %s612 = smul.u32 4, %s16
        %p613 = scmp.lt.s32.totalorder %s612, 7
        %s614 = scalar_select %p613, %s612, 7
        %s615 = scalar_lea.vmem %s2, %s614
        // Predicated region
        $region33: #{generator_forward.5} parent=27 // pred_check
          %p616 = pneg %p81
        $region34: #{generator_forward.5} parent=27 // pred_check_branch
          %618 = sbr.rel (%p616) target = $region36
        $region35: #{generator_forward.5} parent=27 // pred_region
          %s619 = smul.u32 4, %s16
        $region36: #{generator_forward.5} parent=27 // pred_fallthru
          _
      $region28: #{generator_forward.5} parent=5 // pred_fallthru
        _
      %p620 = scmp.le.s32.totalorder 2, %s11
      // Predicated region
      $region37: #{generator_forward.5} parent=5 // pred_check
        %p621 = pneg %p620
      $region38: #{generator_forward.5} parent=5 // pred_check_branch
        %623 = sbr.rel (%p621) target = $region40
      $region39: #{generator_forward.5} parent=5 // pred_region
        %s624 = ssub.s32 %s11, 2
        // Predicated region
        $region41: #{generator_forward.5} parent=39 // pred_check
          %p625 = pneg %p87
        $region42: #{generator_forward.5} parent=39 // pred_check_branch
          %627 = sbr.rel (%p625) target = $region44
        $region43: #{generator_forward.5} parent=39 // pred_region
          %s628 = smul.u32 4, %s17
          %p629 = scmp.lt.s32.totalorder %s628, 7
          %s630 = scalar_select %p629, %s628, 7
          %s631 = scalar_lea.vmem %s2, %s630
        $region44: #{generator_forward.5} parent=39 // pred_fallthru
          _
      $region40: #{generator_forward.5} parent=5 // pred_fallthru
        _
    $region6: #{generator_forward.5} parent=1 // loop_footer
      %s15 = sadd.s32 1, %s11
    $region7: #{generator_forward.5} parent=1 // loop_footer_branch
      %10 = sbr.rel target = $region3
    $region8: #{generator_forward.5} parent=1 // loop_exit
      _
    %632 = vsyncpa [#allocation3], 1
    %s633 = scalar_lea.sflag [#allocation3], 1
    %634 = vsyncpa %s633, 1

// kernel: generator_forward.6
$region0: #{generator_forward.6}
  #allocation0 [shape = 'u32[]', space=smem, size = 0x4, offset = 0x4, fixed_abs, tag = 'smem constant byte address 0x4 - core index']
  #allocation1 [shape = 'u32[72,128]{1,0:T(1,128)}', space=vmem, size = 0x9000, scoped, tag = 'internal scratch']
  %s0 = inlined_call_operand.vmem [shape: bf16[64,32], index: 0, kind: input, shape index: {}]
  %s1 = inlined_call_operand.vmem [shape: bf16[5,32], index: 1, kind: input, shape index: {}]
  %s2 = inlined_call_operand.hbm [shape: bf16[4,4,32,64], index: 2, kind: input, shape index: {}]
  %s3 = inlined_call_operand.vmem [shape: bf16[4,32,32], index: 3, kind: output, shape index: {0}]
  %s4 = inlined_call_operand.vmem [shape: f32[1,32,1], index: 4, kind: output, shape index: {1}]
  %s5 = inlined_call_operand.vmem [shape: f32[1,32,1], index: 5, kind: output, shape index: {2}]
  %6 = xla_tuple %s3, %s4, %s5
  %s7 = sld [smem:[#allocation0]]
  $region42: #{generator_forward.6} parent=0
    _
  %s9 = ssub.s32 1, %s7
  %s10 = scalar_select 0, %s9, %s7
  $region1: #{generator_forward.6} parent=0
    #allocation2 [shape = 'u8[131072]{0}', space=vmem, size = 0x20000, scoped, tag = 'input window, operand 2, single buffered']
    #allocation3 [shape = 's32[1]{0}', space=sflag, size = 0x4, scoped, tag = 'scoped memory for generator_forward.6']
    %11 = vsyncpa [#allocation3], 0
    // Predicated region
    $region2: #{generator_forward.6} parent=1 // pred_check
      _
    $region3: #{generator_forward.6} parent=1 // pred_check_branch
      %13 = sbr.rel (0) target = $region5
    $region4: #{generator_forward.6} parent=1 // pred_region
      _
    $region5: #{generator_forward.6} parent=1 // pred_fallthru
      _
    // Predicated region
    $region6: #{generator_forward.6} parent=1 // pred_check
      _
    $region7: #{generator_forward.6} parent=1 // pred_check_branch
      %15 = sbr.rel (0) target = $region9
    $region8: #{generator_forward.6} parent=1 // pred_region
      _
    $region9: #{generator_forward.6} parent=1 // pred_fallthru
      _
    // Predicated region
    $region10: #{generator_forward.6} parent=1 // pred_check
      _
    $region11: #{generator_forward.6} parent=1 // pred_check_branch
      %17 = sbr.rel (0) target = $region13
    $region12: #{generator_forward.6} parent=1 // pred_region
      %19 = vsyncadd [#allocation3], 0
      %s20 = sshll.u32 %s2, 4
      %s21 = int_to_ptr.hbm [resolvable:$true] %s20
      %s22 = sshll.u32 [#allocation2], 4
      %s23 = int_to_ptr.vmem [resolvable:$true] %s22
      %28 = dma.hbm_to_vmem [thread:$0]  %s21, 4096, %s23, [#allocation3], 64, 64, 4
    $region13: #{generator_forward.6} parent=1 // pred_fallthru
      _
    // Predicated region
    $region14: #{generator_forward.6} parent=1 // pred_check
      _
    $region15: #{generator_forward.6} parent=1 // pred_check_branch
      %30 = sbr.rel (0) target = $region17
    $region16: #{generator_forward.6} parent=1 // pred_region
      %32 = dma.done [#allocation3], 4096
    $region17: #{generator_forward.6} parent=1 // pred_fallthru
      _
    %v34 = vld [vmem:[%s1] sm:$0x7]
    %v35 = vld [vmem:[%s0] sm:$0xf]
    %v36 = vld [vmem:[%s0 + $0x4] sm:$0xf]
    %v37 = vld [vmem:[%s0 + $0x8] sm:$0xf]
    %v38 = vld [vmem:[%s0 + $0xc] sm:$0xf]
    %v39 = vld [vmem:[%s0 + $0x10] sm:$0xf]
    %v40 = vld [vmem:[%s0 + $0x14] sm:$0xf]
    %v41 = vld [vmem:[%s0 + $0x18] sm:$0xf]
    %v42 = vld [vmem:[%s0 + $0x1c] sm:$0xf]
    %v44 = vpack.i.b16 %v34, %v34
    %v46 = vperm.slane %v44, 0
    %v47 = vunpack.c.l.bf16 %v35
    %v48 = vunpack.c.l.bf16 %v36
    %v49 = vunpack.c.l.bf16 %v37
    %v50 = vunpack.c.l.bf16 %v38
    %v51 = vunpack.c.l.bf16 %v39
    %v52 = vunpack.c.l.bf16 %v40
    %v53 = vunpack.c.l.bf16 %v41
    %v54 = vunpack.c.l.bf16 %v42
    %v55 = vunpack.c.l.bf16 %v46
    %v56 = vmul.f32 %v47, %v55
    %v57 = vmul.f32 %v48, %v55
    %v58 = vmul.f32 %v49, %v55
    %v59 = vmul.f32 %v50, %v55
    %v60 = vmul.f32 %v51, %v55
    %v61 = vmul.f32 %v52, %v55
    %v62 = vmul.f32 %v53, %v55
    %v63 = vmul.f32 %v54, %v55
    %v64 = vpack.c.bf16 %v56, %v56
    %v65 = vpack.c.bf16 %v57, %v57
    %v66 = vpack.c.bf16 %v58, %v58
    %v67 = vpack.c.bf16 %v59, %v59
    %v68 = vpack.c.bf16 %v60, %v60
    %v69 = vpack.c.bf16 %v61, %v61
    %v70 = vpack.c.bf16 %v62, %v62
    %v71 = vpack.c.bf16 %v63, %v63
    %v80 = vunpack.c.l.b16 %v64
    %v81 = vunpack.c.l.b16 %v65
    %v82 = vunpack.c.l.b16 %v66
    %v83 = vunpack.c.l.b16 %v67
    %v84 = vunpack.c.l.b16 %v68
    %v85 = vunpack.c.l.b16 %v69
    %v86 = vunpack.c.l.b16 %v70
    %v87 = vunpack.c.l.b16 %v71
    %v88 = vpack.c.b16 %v81, %v80
    %v89 = vpack.c.b16 %v83, %v82
    %v90 = vpack.c.b16 %v85, %v84
    %v91 = vpack.c.b16 %v87, %v86
    %92 = vrot.lane.b32.xlu0 %v88, 101
    %v93 = vpop.permute.xlu0 %92
    %94 = vrot.lane.b32.xlu0 %v89, 101
    %v95 = vpop.permute.xlu0 %94
    %96 = vrot.lane.b32.xlu0 %v90, 101
    %v97 = vpop.permute.xlu0 %96
    %98 = vrot.lane.b32.xlu0 %v91, 101
    %v99 = vpop.permute.xlu0 %98
    %100 = vrot.lane.b32.xlu0 %v88, 5
    %v101 = vpop.permute.xlu0 %100
    %102 = vrot.lane.b32.xlu0 %v89, 5
    %v103 = vpop.permute.xlu0 %102
    %104 = vrot.lane.b32.xlu0 %v90, 5
    %v105 = vpop.permute.xlu0 %104
    %106 = vrot.lane.b32.xlu0 %v91, 5
    %v107 = vpop.permute.xlu0 %106
    %vm108 = vcmask 39936
    %v111 = vsel %vm108, %v93, %v101
    %v115 = vsel %vm108, %v95, %v103
    %v119 = vsel %vm108, %v97, %v105
    %v123 = vsel %vm108, %v99, %v107
    %v125 = vshrl.u32 %v34, 16
    %v126 = vpack.i.b16 %v125, %v125
    %v128 = vperm.slane %v126, 0
    %v129 = vunpack.c.l.bf16 %v111
    %v130 = vunpack.c.h.bf16 %v111
    %v131 = vunpack.c.l.bf16 %v115
    %v132 = vunpack.c.h.bf16 %v115
    %v133 = vunpack.c.l.bf16 %v119
    %v134 = vunpack.c.h.bf16 %v119
    %v135 = vunpack.c.l.bf16 %v123
    %v136 = vunpack.c.h.bf16 %v123
    %v137 = vunpack.c.l.bf16 %v128
    %v138 = vmul.f32 %v129, %v137
    %v139 = vmul.f32 %v130, %v137
    %v140 = vmul.f32 %v131, %v137
    %v141 = vmul.f32 %v132, %v137
    %v142 = vmul.f32 %v133, %v137
    %v143 = vmul.f32 %v134, %v137
    %v144 = vmul.f32 %v135, %v137
    %v145 = vmul.f32 %v136, %v137
    %v146 = vpack.c.bf16 %v138, %v138
    %v147 = vpack.c.bf16 %v139, %v139
    %v148 = vpack.c.bf16 %v140, %v140
    %v149 = vpack.c.bf16 %v141, %v141
    %v150 = vpack.c.bf16 %v142, %v142
    %v151 = vpack.c.bf16 %v143, %v143
    %v152 = vpack.c.bf16 %v144, %v144
    %v153 = vpack.c.bf16 %v145, %v145
    %v154 = vperm.slane %v126, 1
    %v155 = vunpack.c.l.bf16 %v146
    %v156 = vunpack.c.l.bf16 %v147
    %v157 = vunpack.c.l.bf16 %v148
    %v158 = vunpack.c.l.bf16 %v149
    %v159 = vunpack.c.l.bf16 %v150
    %v160 = vunpack.c.l.bf16 %v151
    %v161 = vunpack.c.l.bf16 %v152
    %v162 = vunpack.c.l.bf16 %v153
    %v163 = vunpack.c.l.bf16 %v154
    %v164 = vmul.f32 %v155, %v163
    %v165 = vmul.f32 %v156, %v163
    %v166 = vmul.f32 %v157, %v163
    %v167 = vmul.f32 %v158, %v163
    %v168 = vmul.f32 %v159, %v163
    %v169 = vmul.f32 %v160, %v163
    %v170 = vmul.f32 %v161, %v163
    %v171 = vmul.f32 %v162, %v163
    %v172 = vpack.c.bf16 %v165, %v164
    %v173 = vpack.c.bf16 %v167, %v166
    %v174 = vpack.c.bf16 %v169, %v168
    %v175 = vpack.c.bf16 %v171, %v170
    %v176 = vld [vmem:[#allocation2] sm:$0xf]
    %v177 = vld [vmem:[#allocation2 + $0x4] sm:$0xf]
    %v178 = vld [vmem:[#allocation2 + $0x8] sm:$0xf]
    %v179 = vld [vmem:[#allocation2 + $0xc] sm:$0xf]
    %180 = vrot.lane.b32.xlu0 %v88, 100
    %v181 = vpop.permute.xlu0 %180
    %182 = vrot.lane.b32.xlu0 %v89, 100
    %v183 = vpop.permute.xlu0 %182
    %184 = vrot.lane.b32.xlu0 %v90, 100
    %v185 = vpop.permute.xlu0 %184
    %186 = vrot.lane.b32.xlu0 %v91, 100
    %v187 = vpop.permute.xlu0 %186
    %188 = vrot.lane.b32.xlu0 %v88, 4
    %v189 = vpop.permute.xlu0 %188
    %190 = vrot.lane.b32.xlu0 %v89, 4
    %v191 = vpop.permute.xlu0 %190
    %192 = vrot.lane.b32.xlu0 %v90, 4
    %v193 = vpop.permute.xlu0 %192
    %194 = vrot.lane.b32.xlu0 %v91, 4
    %v195 = vpop.permute.xlu0 %194
    %vm196 = vcmask 31744
    %v199 = vsel %vm196, %v181, %v189
    %v203 = vsel %vm196, %v183, %v191
    %v207 = vsel %vm196, %v185, %v193
    %v211 = vsel %vm196, %v187, %v195
    %v213 = vunpack.c.l.bf16 %v199
    %v214 = vunpack.c.h.bf16 %v199
    %v215 = vunpack.c.l.bf16 %v203
    %v216 = vunpack.c.h.bf16 %v203
    %v217 = vunpack.c.l.bf16 %v207
    %v218 = vunpack.c.h.bf16 %v207
    %v219 = vunpack.c.l.bf16 %v211
    %v220 = vunpack.c.h.bf16 %v211
    %v221 = vmul.f32 %v213, %v137
    %v222 = vmul.f32 %v214, %v137
    %v223 = vmul.f32 %v215, %v137
    %v224 = vmul.f32 %v216, %v137
    %v225 = vmul.f32 %v217, %v137
    %v226 = vmul.f32 %v218, %v137
    %v227 = vmul.f32 %v219, %v137
    %v228 = vmul.f32 %v220, %v137
    %v229 = vpack.c.bf16 %v222, %v221
    %v230 = vpack.c.bf16 %v224, %v223
    %v231 = vpack.c.bf16 %v226, %v225
    %v232 = vpack.c.bf16 %v228, %v227
    %s233 = scalar_lea.vmem [#allocation2], 16
    %v234 = vld [vmem:[%s233] sm:$0xf]
    %v235 = vld [vmem:[%s233 + $0x4] sm:$0xf]
    %v236 = vld [vmem:[%s233 + $0x8] sm:$0xf]
    %v237 = vld [vmem:[%s233 + $0xc] sm:$0xf]
    %v242 = vunpack.c.l.b16 %v234
    %v243 = vunpack.c.l.b16 %v235
    %v244 = vunpack.c.l.b16 %v236
    %v245 = vunpack.c.l.b16 %v237
    %v246 = vpack.c.b16 %v243, %v242
    %v247 = vpack.c.b16 %v245, %v244
    %vm248 = vcmask 523264
    %v250 = vsel %vm248, %v246, 0
    %v253 = vsel %vm248, %v247, 0
    %255 = vmatpush.bf16.msra.mxu0 0
    %256 = vmatpush.bf16.msra.mxu0 0
    %257 = vmatpush.bf16.msra.mxu0 0
    %258 = vmatpush.bf16.msra.mxu0 0
    %259 = vmatpush.bf16.msra.mxu0 %v232
    %260 = vmatpush.bf16.msra.mxu0 %v231
    %261 = vmatpush.bf16.msra.mxu0 %v230
    %262 = vmatpush.bf16.msra.mxu0 %v229
    %263 = vmatmul.bf16.gmra.mxu0 %v250
    %v264 = vpop.f32.mrf.mxu0
    %v265 = vadd.f32 0.0, %v264
    %v266 = vpop.f32.mrf.mxu0
    %v267 = vadd.f32 0.0, %v266
    %268 = vmatmul.bf16.gmra.mxu0 %v253
    %v269 = vpop.f32.mrf.mxu0
    %v270 = vadd.f32 0.0, %v269
    %v271 = vpop.f32.mrf.mxu0
    %v272 = vadd.f32 0.0, %v271
    %273 = vdwg.mxu0
    %v278 = vunpack.c.l.b16 %v176
    %v279 = vunpack.c.l.b16 %v177
    %v280 = vunpack.c.l.b16 %v178
    %v281 = vunpack.c.l.b16 %v179
    %v282 = vpack.c.b16 %v279, %v278
    %v283 = vpack.c.b16 %v281, %v280
    %v285 = vsel %vm248, %v282, 0
    %v288 = vsel %vm248, %v283, 0
    %290 = vmatpush.bf16.msra.mxu0 0
    %291 = vmatpush.bf16.msra.mxu0 0
    %292 = vmatpush.bf16.msra.mxu0 0
    %293 = vmatpush.bf16.msra.mxu0 0
    %294 = vmatpush.bf16.msra.mxu0 %v175
    %295 = vmatpush.bf16.msra.mxu0 %v174
    %296 = vmatpush.bf16.msra.mxu0 %v173
    %297 = vmatpush.bf16.msra.mxu0 %v172
    %298 = vmatmul.bf16.gmra.mxu0 %v285
    %v299 = vpop.f32.mrf.mxu0
    %v300 = vadd.f32 %v265, %v299
    %v301 = vpop.f32.mrf.mxu0
    %v302 = vadd.f32 %v267, %v301
    %303 = vmatmul.bf16.gmra.mxu0 %v288
    %v304 = vpop.f32.mrf.mxu0
    %v305 = vadd.f32 %v270, %v304
    %v306 = vpop.f32.mrf.mxu0
    %v307 = vadd.f32 %v272, %v306
    %308 = vdwg.mxu0
    %309 = vrot.lane.b32.xlu0 %v88, 97
    %v310 = vpop.permute.xlu0 %309
    %311 = vrot.lane.b32.xlu0 %v89, 97
    %v312 = vpop.permute.xlu0 %311
    %313 = vrot.lane.b32.xlu0 %v90, 97
    %v314 = vpop.permute.xlu0 %313
    %315 = vrot.lane.b32.xlu0 %v91, 97
    %v316 = vpop.permute.xlu0 %315
    %317 = vrot.lane.b32.xlu0 %v88, 1
    %v318 = vpop.permute.xlu0 %317
    %319 = vrot.lane.b32.xlu0 %v89, 1
    %v320 = vpop.permute.xlu0 %319
    %321 = vrot.lane.b32.xlu0 %v90, 1
    %v322 = vpop.permute.xlu0 %321
    %323 = vrot.lane.b32.xlu0 %v91, 1
    %v324 = vpop.permute.xlu0 %323
    %vm325 = vcmask 7168
    %v328 = vsel %vm325, %v310, %v318
    %v332 = vsel %vm325, %v312, %v320
    %v336 = vsel %vm325, %v314, %v322
    %v340 = vsel %vm325, %v316, %v324
    %v342 = vunpack.c.l.bf16 %v328
    %v343 = vunpack.c.h.bf16 %v328
    %v344 = vunpack.c.l.bf16 %v332
    %v345 = vunpack.c.h.bf16 %v332
    %v346 = vunpack.c.l.bf16 %v336
    %v347 = vunpack.c.h.bf16 %v336
    %v348 = vunpack.c.l.bf16 %v340
    %v349 = vunpack.c.h.bf16 %v340
    %v350 = vmul.f32 %v342, %v163
    %v351 = vmul.f32 %v343, %v163
    %v352 = vmul.f32 %v344, %v163
    %v353 = vmul.f32 %v345, %v163
    %v354 = vmul.f32 %v346, %v163
    %v355 = vmul.f32 %v347, %v163
    %v356 = vmul.f32 %v348, %v163
    %v357 = vmul.f32 %v349, %v163
    %v358 = vpack.c.bf16 %v351, %v350
    %v359 = vpack.c.bf16 %v353, %v352
    %v360 = vpack.c.bf16 %v355, %v354
    %v361 = vpack.c.bf16 %v357, %v356
    %s362 = scalar_lea.vmem [#allocation2], 32
    %v363 = vld [vmem:[%s362] sm:$0xf]
    %v364 = vld [vmem:[%s362 + $0x4] sm:$0xf]
    %v365 = vld [vmem:[%s362 + $0x8] sm:$0xf]
    %v366 = vld [vmem:[%s362 + $0xc] sm:$0xf]
    %v371 = vunpack.c.l.b16 %v363
    %v372 = vunpack.c.l.b16 %v364
    %v373 = vunpack.c.l.b16 %v365
    %v374 = vunpack.c.l.b16 %v366
    %v375 = vpack.c.b16 %v372, %v371
    %v376 = vpack.c.b16 %v374, %v373
    %v378 = vsel %vm248, %v375, 0
    %v381 = vsel %vm248, %v376, 0
    %383 = vmatpush.bf16.msra.mxu0 0
    %384 = vmatpush.bf16.msra.mxu0 0
    %385 = vmatpush.bf16.msra.mxu0 0
    %386 = vmatpush.bf16.msra.mxu0 0
    %387 = vmatpush.bf16.msra.mxu0 %v361
    %388 = vmatpush.bf16.msra.mxu0 %v360
    %389 = vmatpush.bf16.msra.mxu0 %v359
    %390 = vmatpush.bf16.msra.mxu0 %v358
    %391 = vmatmul.bf16.gmra.mxu0 %v378
    %v392 = vpop.f32.mrf.mxu0
    %v393 = vadd.f32 0.0, %v392
    %v394 = vpop.f32.mrf.mxu0
    %v395 = vadd.f32 0.0, %v394
    %396 = vmatmul.bf16.gmra.mxu0 %v381
    %v397 = vpop.f32.mrf.mxu0
    %v398 = vadd.f32 0.0, %v397
    %v399 = vpop.f32.mrf.mxu0
    %v400 = vadd.f32 0.0, %v399
    %401 = vdwg.mxu0
    %v402 = vadd.f32 %v300, %v393
    %v403 = vadd.f32 %v302, %v395
    %v404 = vadd.f32 %v305, %v398
    %v405 = vadd.f32 %v307, %v400
    %s406 = scalar_lea.vmem [#allocation2], 48
    %v407 = vld [vmem:[%s406] sm:$0xf]
    %v408 = vld [vmem:[%s406 + $0x4] sm:$0xf]
    %v409 = vld [vmem:[%s406 + $0x8] sm:$0xf]
    %v410 = vld [vmem:[%s406 + $0xc] sm:$0xf]
    %v415 = vunpack.c.l.b16 %v407
    %v416 = vunpack.c.l.b16 %v408
    %v417 = vunpack.c.l.b16 %v409
    %v418 = vunpack.c.l.b16 %v410
    %v419 = vpack.c.b16 %v416, %v415
    %v420 = vpack.c.b16 %v418, %v417
    %v426 = vsel %vm248, %v419, 0
    %v429 = vsel %vm248, %v420, 0
    %431 = vmatpush.bf16.msra.mxu0 0
    %432 = vmatpush.bf16.msra.mxu0 0
    %433 = vmatpush.bf16.msra.mxu0 0
    %434 = vmatpush.bf16.msra.mxu0 0
    %435 = vmatpush.bf16.msra.mxu0 %v91
    %436 = vmatpush.bf16.msra.mxu0 %v90
    %437 = vmatpush.bf16.msra.mxu0 %v89
    %438 = vmatpush.bf16.msra.mxu0 %v88
    %439 = vmatmul.bf16.gmra.mxu0 %v426
    %v440 = vpop.f32.mrf.mxu0
    %v441 = vadd.f32 0.0, %v440
    %v442 = vpop.f32.mrf.mxu0
    %v443 = vadd.f32 0.0, %v442
    %444 = vmatmul.bf16.gmra.mxu0 %v429
    %v445 = vpop.f32.mrf.mxu0
    %v446 = vadd.f32 0.0, %v445
    %v447 = vpop.f32.mrf.mxu0
    %v448 = vadd.f32 0.0, %v447
    %449 = vdwg.mxu0
    %v450 = vadd.f32 %v402, %v441
    %v451 = vadd.f32 %v403, %v443
    %v452 = vadd.f32 %v404, %v446
    %v453 = vadd.f32 %v405, %v448
    %v454 = vpack.c.bf16 %v450, %v450
    %v455 = vpack.c.bf16 %v451, %v451
    %v456 = vpack.c.bf16 %v452, %v452
    %v457 = vpack.c.bf16 %v453, %v453
    %vm458 = vcmask 257024
    %459 = vst.msk [vmem:[%s3] sm:$0xf] %vm458, %v454
    %460 = vst.msk [vmem:[%s3 + $0x4] sm:$0xf] %vm458, %v455
    %461 = vst.msk [vmem:[%s3 + $0x8] sm:$0xf] %vm458, %v456
    %462 = vst.msk [vmem:[%s3 + $0xc] sm:$0xf] %vm458, %v457
    %vm463 = vcmask 261120
    %v464 = vsel %vm463, %v450, 0.0
    %465 = vadd.xlane.f32.xlu0 %v464
    %v466 = vpop.xlane.xlu0 %465
    %v467 = vsel %vm463, %v451, 0.0
    %468 = vadd.xlane.f32.xlu0 %v467
    %v469 = vpop.xlane.xlu0 %468
    %v470 = vsel %vm463, %v452, 0.0
    %471 = vadd.xlane.f32.xlu0 %v470
    %v472 = vpop.xlane.xlu0 %471
    %v473 = vsel %vm463, %v453, 0.0
    %474 = vadd.xlane.f32.xlu0 %v473
    %v475 = vpop.xlane.xlu0 %474
    %v476 = vmul.f32 %v450, %v450
    %v477 = vmul.f32 %v451, %v451
    %v478 = vmul.f32 %v452, %v452
    %v479 = vmul.f32 %v453, %v453
    %v480 = vsel %vm463, %v476, 0.0
    %481 = vadd.xlane.f32.xlu0 %v480
    %v482 = vpop.xlane.xlu0 %481
    %v483 = vsel %vm463, %v477, 0.0
    %484 = vadd.xlane.f32.xlu0 %v483
    %v485 = vpop.xlane.xlu0 %484
    %v486 = vsel %vm463, %v478, 0.0
    %487 = vadd.xlane.f32.xlu0 %v486
    %v488 = vpop.xlane.xlu0 %487
    %v489 = vsel %vm463, %v479, 0.0
    %490 = vadd.xlane.f32.xlu0 %v489
    %v491 = vpop.xlane.xlu0 %490
    %s492 = scalar_lea.vmem [#allocation2], 64
    %v493 = vld [vmem:[%s492] sm:$0xf]
    %v494 = vld [vmem:[%s492 + $0x4] sm:$0xf]
    %v495 = vld [vmem:[%s492 + $0x8] sm:$0xf]
    %v496 = vld [vmem:[%s492 + $0xc] sm:$0xf]
    %497 = vrot.lane.b32.xlu0 %v88, 99
    %v498 = vpop.permute.xlu0 %497
    %499 = vrot.lane.b32.xlu0 %v89, 99
    %v500 = vpop.permute.xlu0 %499
    %501 = vrot.lane.b32.xlu0 %v90, 99
    %v502 = vpop.permute.xlu0 %501
    %503 = vrot.lane.b32.xlu0 %v91, 99
    %v504 = vpop.permute.xlu0 %503
    %505 = vrot.lane.b32.xlu0 %v88, 3
    %v506 = vpop.permute.xlu0 %505
    %507 = vrot.lane.b32.xlu0 %v89, 3
    %v508 = vpop.permute.xlu0 %507
    %509 = vrot.lane.b32.xlu0 %v90, 3
    %v510 = vpop.permute.xlu0 %509
    %511 = vrot.lane.b32.xlu0 %v91, 3
    %v512 = vpop.permute.xlu0 %511
    %vm513 = vcmask 23552
    %v516 = vsel %vm513, %v498, %v506
    %v520 = vsel %vm513, %v500, %v508
    %v524 = vsel %vm513, %v502, %v510
    %v528 = vsel %vm513, %v504, %v512
    %v530 = vunpack.c.l.bf16 %v516
    %v531 = vunpack.c.h.bf16 %v516
    %v532 = vunpack.c.l.bf16 %v520
    %v533 = vunpack.c.h.bf16 %v520
    %v534 = vunpack.c.l.bf16 %v524
    %v535 = vunpack.c.h.bf16 %v524
    %v536 = vunpack.c.l.bf16 %v528
    %v537 = vunpack.c.h.bf16 %v528
    %v538 = vmul.f32 %v530, %v137
    %v539 = vmul.f32 %v531, %v137
    %v540 = vmul.f32 %v532, %v137
    %v541 = vmul.f32 %v533, %v137
    %v542 = vmul.f32 %v534, %v137
    %v543 = vmul.f32 %v535, %v137
    %v544 = vmul.f32 %v536, %v137
    %v545 = vmul.f32 %v537, %v137
    %v546 = vpack.c.bf16 %v538, %v538
    %v547 = vpack.c.bf16 %v539, %v539
    %v548 = vpack.c.bf16 %v540, %v540
    %v549 = vpack.c.bf16 %v541, %v541
    %v550 = vpack.c.bf16 %v542, %v542
    %v551 = vpack.c.bf16 %v543, %v543
    %v552 = vpack.c.bf16 %v544, %v544
    %v553 = vpack.c.bf16 %v545, %v545
    %v554 = vperm.slane %v44, 2
    %v555 = vunpack.c.l.bf16 %v546
    %v556 = vunpack.c.l.bf16 %v547
    %v557 = vunpack.c.l.bf16 %v548
    %v558 = vunpack.c.l.bf16 %v549
    %v559 = vunpack.c.l.bf16 %v550
    %v560 = vunpack.c.l.bf16 %v551
    %v561 = vunpack.c.l.bf16 %v552
    %v562 = vunpack.c.l.bf16 %v553
    %v563 = vunpack.c.l.bf16 %v554
    %v564 = vmul.f32 %v555, %v563
    %v565 = vmul.f32 %v556, %v563
    %v566 = vmul.f32 %v557, %v563
    %v567 = vmul.f32 %v558, %v563
    %v568 = vmul.f32 %v559, %v563
    %v569 = vmul.f32 %v560, %v563
    %v570 = vmul.f32 %v561, %v563
    %v571 = vmul.f32 %v562, %v563
    %v572 = vpack.c.bf16 %v565, %v564
    %v573 = vpack.c.bf16 %v567, %v566
    %v574 = vpack.c.bf16 %v569, %v568
    %v575 = vpack.c.bf16 %v571, %v570
    %s576 = scalar_lea.vmem [#allocation2], 80
    %v577 = vld [vmem:[%s576] sm:$0xf]
    %v578 = vld [vmem:[%s576 + $0x4] sm:$0xf]
    %v579 = vld [vmem:[%s576 + $0x8] sm:$0xf]
    %v580 = vld [vmem:[%s576 + $0xc] sm:$0xf]
    %v585 = vunpack.c.l.b16 %v577
    %v586 = vunpack.c.l.b16 %v578
    %v587 = vunpack.c.l.b16 %v579
    %v588 = vunpack.c.l.b16 %v580
    %v589 = vpack.c.b16 %v586, %v585
    %v590 = vpack.c.b16 %v588, %v587
    %v592 = vsel %vm248, %v589, 0
    %v595 = vsel %vm248, %v590, 0
    %597 = vmatpush.bf16.msra.mxu0 0
    %598 = vmatpush.bf16.msra.mxu0 0
    %599 = vmatpush.bf16.msra.mxu0 0
    %600 = vmatpush.bf16.msra.mxu0 0
    %601 = vmatpush.bf16.msra.mxu0 %v575
    %602 = vmatpush.bf16.msra.mxu0 %v574
    %603 = vmatpush.bf16.msra.mxu0 %v573
    %604 = vmatpush.bf16.msra.mxu0 %v572
    %605 = vmatmul.bf16.gmra.mxu0 %v592
    %v606 = vpop.f32.mrf.mxu0
    %v607 = vadd.f32 0.0, %v606
    %v608 = vpop.f32.mrf.mxu0
    %v609 = vadd.f32 0.0, %v608
    %610 = vmatmul.bf16.gmra.mxu0 %v595
    %v611 = vpop.f32.mrf.mxu0
    %v612 = vadd.f32 0.0, %v611
    %v613 = vpop.f32.mrf.mxu0
    %v614 = vadd.f32 0.0, %v613
    %615 = vdwg.mxu0
    %v620 = vunpack.c.l.b16 %v493
    %v621 = vunpack.c.l.b16 %v494
    %v622 = vunpack.c.l.b16 %v495
    %v623 = vunpack.c.l.b16 %v496
    %v624 = vpack.c.b16 %v621, %v620
    %v625 = vpack.c.b16 %v623, %v622
    %v627 = vsel %vm248, %v624, 0
    %v630 = vsel %vm248, %v625, 0
    %632 = vmatpush.bf16.msra.mxu0 0
    %633 = vmatpush.bf16.msra.mxu0 0
    %634 = vmatpush.bf16.msra.mxu0 0
    %635 = vmatpush.bf16.msra.mxu0 0
    %636 = vmatpush.bf16.msra.mxu0 %v232
    %637 = vmatpush.bf16.msra.mxu0 %v231
    %638 = vmatpush.bf16.msra.mxu0 %v230
    %639 = vmatpush.bf16.msra.mxu0 %v229
    %640 = vmatmul.bf16.gmra.mxu0 %v627
    %v641 = vpop.f32.mrf.mxu0
    %v642 = vadd.f32 %v607, %v641
    %v643 = vpop.f32.mrf.mxu0
    %v644 = vadd.f32 %v609, %v643
    %645 = vmatmul.bf16.gmra.mxu0 %v630
    %v646 = vpop.f32.mrf.mxu0
    %v647 = vadd.f32 %v612, %v646
    %v648 = vpop.f32.mrf.mxu0
    %v649 = vadd.f32 %v614, %v648
    %650 = vdwg.mxu0
    %s651 = scalar_lea.vmem [#allocation2], 96
    %v652 = vld [vmem:[%s651] sm:$0xf]
    %v653 = vld [vmem:[%s651 + $0x4] sm:$0xf]
    %v654 = vld [vmem:[%s651 + $0x8] sm:$0xf]
    %v655 = vld [vmem:[%s651 + $0xc] sm:$0xf]
    %v660 = vunpack.c.l.b16 %v652
    %v661 = vunpack.c.l.b16 %v653
    %v662 = vunpack.c.l.b16 %v654
    %v663 = vunpack.c.l.b16 %v655
    %v664 = vpack.c.b16 %v661, %v660
    %v665 = vpack.c.b16 %v663, %v662
    %v667 = vsel %vm248, %v664, 0
    %v670 = vsel %vm248, %v665, 0
    %672 = vmatpush.bf16.msra.mxu0 0
    %673 = vmatpush.bf16.msra.mxu0 0
    %674 = vmatpush.bf16.msra.mxu0 0
    %675 = vmatpush.bf16.msra.mxu0 0
    %676 = vmatpush.bf16.msra.mxu0 %v91
    %677 = vmatpush.bf16.msra.mxu0 %v90
    %678 = vmatpush.bf16.msra.mxu0 %v89
    %679 = vmatpush.bf16.msra.mxu0 %v88
    %680 = vmatmul.bf16.gmra.mxu0 %v667
    %v681 = vpop.f32.mrf.mxu0
    %v682 = vadd.f32 0.0, %v681
    %v683 = vpop.f32.mrf.mxu0
    %v684 = vadd.f32 0.0, %v683
    %685 = vmatmul.bf16.gmra.mxu0 %v670
    %v686 = vpop.f32.mrf.mxu0
    %v687 = vadd.f32 0.0, %v686
    %v688 = vpop.f32.mrf.mxu0
    %v689 = vadd.f32 0.0, %v688
    %690 = vdwg.mxu0
    %v691 = vadd.f32 %v642, %v682
    %v692 = vadd.f32 %v644, %v684
    %v693 = vadd.f32 %v647, %v687
    %v694 = vadd.f32 %v649, %v689
    %695 = vrot.lane.b32.xlu0 %v88, 127
    %v696 = vpop.permute.xlu0 %695
    %697 = vrot.lane.b32.xlu0 %v89, 127
    %v698 = vpop.permute.xlu0 %697
    %699 = vrot.lane.b32.xlu0 %v90, 127
    %v700 = vpop.permute.xlu0 %699
    %701 = vrot.lane.b32.xlu0 %v91, 127
    %v702 = vpop.permute.xlu0 %701
    %703 = vrot.lane.b32.xlu0 %v88, 31
    %v704 = vpop.permute.xlu0 %703
    %705 = vrot.lane.b32.xlu0 %v89, 31
    %v706 = vpop.permute.xlu0 %705
    %707 = vrot.lane.b32.xlu0 %v90, 31
    %v708 = vpop.permute.xlu0 %707
    %709 = vrot.lane.b32.xlu0 %v91, 31
    %v710 = vpop.permute.xlu0 %709
    %vm711 = vcmask 252928
    %v714 = vsel %vm711, %v696, %v704
    %v718 = vsel %vm711, %v698, %v706
    %v722 = vsel %vm711, %v700, %v708
    %v726 = vsel %vm711, %v702, %v710
    %v728 = vunpack.c.l.bf16 %v714
    %v729 = vunpack.c.h.bf16 %v714
    %v730 = vunpack.c.l.bf16 %v718
    %v731 = vunpack.c.h.bf16 %v718
    %v732 = vunpack.c.l.bf16 %v722
    %v733 = vunpack.c.h.bf16 %v722
    %v734 = vunpack.c.l.bf16 %v726
    %v735 = vunpack.c.h.bf16 %v726
    %v736 = vmul.f32 %v728, %v563
    %v737 = vmul.f32 %v729, %v563
    %v738 = vmul.f32 %v730, %v563
    %v739 = vmul.f32 %v731, %v563
    %v740 = vmul.f32 %v732, %v563
    %v741 = vmul.f32 %v733, %v563
    %v742 = vmul.f32 %v734, %v563
    %v743 = vmul.f32 %v735, %v563
    %v744 = vpack.c.bf16 %v737, %v736
    %v745 = vpack.c.bf16 %v739, %v738
    %v746 = vpack.c.bf16 %v741, %v740
    %v747 = vpack.c.bf16 %v743, %v742
    %s748 = scalar_lea.vmem [#allocation2], 112
    %v749 = vld [vmem:[%s748] sm:$0xf]
    %v750 = vld [vmem:[%s748 + $0x4] sm:$0xf]
    %v751 = vld [vmem:[%s748 + $0x8] sm:$0xf]
    %v752 = vld [vmem:[%s748 + $0xc] sm:$0xf]
    %v757 = vunpack.c.l.b16 %v749
    %v758 = vunpack.c.l.b16 %v750
    %v759 = vunpack.c.l.b16 %v751
    %v760 = vunpack.c.l.b16 %v752
    %v761 = vpack.c.b16 %v758, %v757
    %v762 = vpack.c.b16 %v760, %v759
    %v764 = vsel %vm248, %v761, 0
    %v767 = vsel %vm248, %v762, 0
    %769 = vmatpush.bf16.msra.mxu0 0
    %770 = vmatpush.bf16.msra.mxu0 0
    %771 = vmatpush.bf16.msra.mxu0 0
    %772 = vmatpush.bf16.msra.mxu0 0
    %773 = vmatpush.bf16.msra.mxu0 %v747
    %774 = vmatpush.bf16.msra.mxu0 %v746
    %775 = vmatpush.bf16.msra.mxu0 %v745
    %776 = vmatpush.bf16.msra.mxu0 %v744
    %777 = vmatmul.bf16.gmra.mxu0 %v764
    %v778 = vpop.f32.mrf.mxu0
    %v779 = vadd.f32 0.0, %v778
    %v780 = vpop.f32.mrf.mxu0
    %v781 = vadd.f32 0.0, %v780
    %782 = vmatmul.bf16.gmra.mxu0 %v767
    %v783 = vpop.f32.mrf.mxu0
    %v784 = vadd.f32 0.0, %v783
    %v785 = vpop.f32.mrf.mxu0
    %v786 = vadd.f32 0.0, %v785
    %787 = vdwg.mxu0
    %v788 = vadd.f32 %v691, %v779
    %v789 = vadd.f32 %v692, %v781
    %v790 = vadd.f32 %v693, %v784
    %v791 = vadd.f32 %v694, %v786
    %v792 = vpack.c.bf16 %v788, %v788
    %v793 = vpack.c.bf16 %v789, %v789
    %v794 = vpack.c.bf16 %v790, %v790
    %v795 = vpack.c.bf16 %v791, %v791
    %s796 = scalar_lea.vmem %s3, 16
    %797 = vst.msk [vmem:[%s796] sm:$0xf] %vm458, %v792
    %798 = vst.msk [vmem:[%s796 + $0x4] sm:$0xf] %vm458, %v793
    %799 = vst.msk [vmem:[%s796 + $0x8] sm:$0xf] %vm458, %v794
    %800 = vst.msk [vmem:[%s796 + $0xc] sm:$0xf] %vm458, %v795
    %v801 = vsel %vm463, %v788, 0.0
    %802 = vadd.xlane.f32.xlu0 %v801
    %v803 = vpop.xlane.xlu0 %802
    %v804 = vsel %vm463, %v789, 0.0
    %805 = vadd.xlane.f32.xlu0 %v804
    %v806 = vpop.xlane.xlu0 %805
    %v807 = vsel %vm463, %v790, 0.0
    %808 = vadd.xlane.f32.xlu0 %v807
    %v809 = vpop.xlane.xlu0 %808
    %v810 = vsel %vm463, %v791, 0.0
    %811 = vadd.xlane.f32.xlu0 %v810
    %v812 = vpop.xlane.xlu0 %811
    %v813 = vmul.f32 %v788, %v788
    %v814 = vmul.f32 %v789, %v789
    %v815 = vmul.f32 %v790, %v790
    %v816 = vmul.f32 %v791, %v791
    %v817 = vsel %vm463, %v813, 0.0
    %818 = vadd.xlane.f32.xlu0 %v817
    %v819 = vpop.xlane.xlu0 %818
    %v820 = vsel %vm463, %v814, 0.0
    %821 = vadd.xlane.f32.xlu0 %v820
    %v822 = vpop.xlane.xlu0 %821
    %v823 = vsel %vm463, %v815, 0.0
    %824 = vadd.xlane.f32.xlu0 %v823
    %v825 = vpop.xlane.xlu0 %824
    %v826 = vsel %vm463, %v816, 0.0
    %827 = vadd.xlane.f32.xlu0 %v826
    %v828 = vpop.xlane.xlu0 %827
    %v829 = vadd.f32 %v466, %v803
    %v830 = vadd.f32 %v469, %v806
    %v831 = vadd.f32 %v472, %v809
    %v832 = vadd.f32 %v475, %v812
    %v833 = vadd.f32 %v482, %v819
    %v834 = vadd.f32 %v485, %v822
    %v835 = vadd.f32 %v488, %v825
    %v836 = vadd.f32 %v491, %v828
    %s837 = scalar_lea.vmem [#allocation2], 128
    %v838 = vld [vmem:[%s837] sm:$0xf]
    %v839 = vld [vmem:[%s837 + $0x4] sm:$0xf]
    %v840 = vld [vmem:[%s837 + $0x8] sm:$0xf]
    %v841 = vld [vmem:[%s837 + $0xc] sm:$0xf]
    %s842 = scalar_lea.vmem [#allocation2], 144
    %v843 = vld [vmem:[%s842] sm:$0xf]
    %v844 = vld [vmem:[%s842 + $0x4] sm:$0xf]
    %v845 = vld [vmem:[%s842 + $0x8] sm:$0xf]
    %v846 = vld [vmem:[%s842 + $0xc] sm:$0xf]
    %v851 = vunpack.c.l.b16 %v843
    %v852 = vunpack.c.l.b16 %v844
    %v853 = vunpack.c.l.b16 %v845
    %v854 = vunpack.c.l.b16 %v846
    %v855 = vpack.c.b16 %v852, %v851
    %v856 = vpack.c.b16 %v854, %v853
    %v858 = vsel %vm248, %v855, 0
    %v861 = vsel %vm248, %v856, 0
    %863 = vmatpush.bf16.msra.mxu0 0
    %864 = vmatpush.bf16.msra.mxu0 0
    %865 = vmatpush.bf16.msra.mxu0 0
    %866 = vmatpush.bf16.msra.mxu0 0
    %867 = vmatpush.bf16.msra.mxu0 %v91
    %868 = vmatpush.bf16.msra.mxu0 %v90
    %869 = vmatpush.bf16.msra.mxu0 %v89
    %870 = vmatpush.bf16.msra.mxu0 %v88
    %871 = vmatmul.bf16.gmra.mxu0 %v858
    %v872 = vpop.f32.mrf.mxu0
    %v873 = vadd.f32 0.0, %v872
    %v874 = vpop.f32.mrf.mxu0
    %v875 = vadd.f32 0.0, %v874
    %876 = vmatmul.bf16.gmra.mxu0 %v861
    %v877 = vpop.f32.mrf.mxu0
    %v878 = vadd.f32 0.0, %v877
    %v879 = vpop.f32.mrf.mxu0
    %v880 = vadd.f32 0.0, %v879
    %881 = vdwg.mxu0
    %v886 = vunpack.c.l.b16 %v838
    %v887 = vunpack.c.l.b16 %v839
    %v888 = vunpack.c.l.b16 %v840
    %v889 = vunpack.c.l.b16 %v841
    %v890 = vpack.c.b16 %v887, %v886
    %v891 = vpack.c.b16 %v889, %v888
    %v893 = vsel %vm248, %v890, 0
    %v896 = vsel %vm248, %v891, 0
    %898 = vmatpush.bf16.msra.mxu0 0
    %899 = vmatpush.bf16.msra.mxu0 0
    %900 = vmatpush.bf16.msra.mxu0 0
    %901 = vmatpush.bf16.msra.mxu0 0
    %902 = vmatpush.bf16.msra.mxu0 %v361
    %903 = vmatpush.bf16.msra.mxu0 %v360
    %904 = vmatpush.bf16.msra.mxu0 %v359
    %905 = vmatpush.bf16.msra.mxu0 %v358
    %906 = vmatmul.bf16.gmra.mxu0 %v893
    %v907 = vpop.f32.mrf.mxu0
    %v908 = vadd.f32 %v873, %v907
    %v909 = vpop.f32.mrf.mxu0
    %v910 = vadd.f32 %v875, %v909
    %911 = vmatmul.bf16.gmra.mxu0 %v896
    %v912 = vpop.f32.mrf.mxu0
    %v913 = vadd.f32 %v878, %v912
    %v914 = vpop.f32.mrf.mxu0
    %v915 = vadd.f32 %v880, %v914
    %916 = vdwg.mxu0
    %917 = vrot.lane.b32.xlu0 %v88, 125
    %v918 = vpop.permute.xlu0 %917
    %919 = vrot.lane.b32.xlu0 %v89, 125
    %v920 = vpop.permute.xlu0 %919
    %921 = vrot.lane.b32.xlu0 %v90, 125
    %v922 = vpop.permute.xlu0 %921
    %923 = vrot.lane.b32.xlu0 %v91, 125
    %v924 = vpop.permute.xlu0 %923
    %925 = vrot.lane.b32.xlu0 %v88, 29
    %v926 = vpop.permute.xlu0 %925
    %927 = vrot.lane.b32.xlu0 %v89, 29
    %v928 = vpop.permute.xlu0 %927
    %929 = vrot.lane.b32.xlu0 %v90, 29
    %v930 = vpop.permute.xlu0 %929
    %931 = vrot.lane.b32.xlu0 %v91, 29
    %v932 = vpop.permute.xlu0 %931
    %vm933 = vcmask 236544
    %v936 = vsel %vm933, %v918, %v926
    %v940 = vsel %vm933, %v920, %v928
    %v944 = vsel %vm933, %v922, %v930
    %v948 = vsel %vm933, %v924, %v932
    %v950 = vperm.slane %v44, 1
    %v951 = vunpack.c.l.bf16 %v936
    %v952 = vunpack.c.h.bf16 %v936
    %v953 = vunpack.c.l.bf16 %v940
    %v954 = vunpack.c.h.bf16 %v940
    %v955 = vunpack.c.l.bf16 %v944
    %v956 = vunpack.c.h.bf16 %v944
    %v957 = vunpack.c.l.bf16 %v948
    %v958 = vunpack.c.h.bf16 %v948
    %v959 = vunpack.c.l.bf16 %v950
    %v960 = vmul.f32 %v951, %v959
    %v961 = vmul.f32 %v952, %v959
    %v962 = vmul.f32 %v953, %v959
    %v963 = vmul.f32 %v954, %v959
    %v964 = vmul.f32 %v955, %v959
    %v965 = vmul.f32 %v956, %v959
    %v966 = vmul.f32 %v957, %v959
    %v967 = vmul.f32 %v958, %v959
    %v968 = vpack.c.bf16 %v960, %v960
    %v969 = vpack.c.bf16 %v961, %v961
    %v970 = vpack.c.bf16 %v962, %v962
    %v971 = vpack.c.bf16 %v963, %v963
    %v972 = vpack.c.bf16 %v964, %v964
    %v973 = vpack.c.bf16 %v965, %v965
    %v974 = vpack.c.bf16 %v966, %v966
    %v975 = vpack.c.bf16 %v967, %v967
    %v976 = vunpack.c.l.bf16 %v968
    %v977 = vunpack.c.l.bf16 %v969
    %v978 = vunpack.c.l.bf16 %v970
    %v979 = vunpack.c.l.bf16 %v971
    %v980 = vunpack.c.l.bf16 %v972
    %v981 = vunpack.c.l.bf16 %v973
    %v982 = vunpack.c.l.bf16 %v974
    %v983 = vunpack.c.l.bf16 %v975
    %v984 = vmul.f32 %v976, %v163
    %v985 = vmul.f32 %v977, %v163
    %v986 = vmul.f32 %v978, %v163
    %v987 = vmul.f32 %v979, %v163
    %v988 = vmul.f32 %v980, %v163
    %v989 = vmul.f32 %v981, %v163
    %v990 = vmul.f32 %v982, %v163
    %v991 = vmul.f32 %v983, %v163
    %v992 = vpack.c.bf16 %v985, %v984
    %v993 = vpack.c.bf16 %v987, %v986
    %v994 = vpack.c.bf16 %v989, %v988
    %v995 = vpack.c.bf16 %v991, %v990
    %s996 = scalar_lea.vmem [#allocation2], 160
    %v997 = vld [vmem:[%s996] sm:$0xf]
    %v998 = vld [vmem:[%s996 + $0x4] sm:$0xf]
    %v999 = vld [vmem:[%s996 + $0x8] sm:$0xf]
    %v1000 = vld [vmem:[%s996 + $0xc] sm:$0xf]
    %v1005 = vunpack.c.l.b16 %v997
    %v1006 = vunpack.c.l.b16 %v998
    %v1007 = vunpack.c.l.b16 %v999
    %v1008 = vunpack.c.l.b16 %v1000
    %v1009 = vpack.c.b16 %v1006, %v1005
    %v1010 = vpack.c.b16 %v1008, %v1007
    %v1012 = vsel %vm248, %v1009, 0
    %v1015 = vsel %vm248, %v1010, 0
    %1017 = vmatpush.bf16.msra.mxu0 0
    %1018 = vmatpush.bf16.msra.mxu0 0
    %1019 = vmatpush.bf16.msra.mxu0 0
    %1020 = vmatpush.bf16.msra.mxu0 0
    %1021 = vmatpush.bf16.msra.mxu0 %v995
    %1022 = vmatpush.bf16.msra.mxu0 %v994
    %1023 = vmatpush.bf16.msra.mxu0 %v993
    %1024 = vmatpush.bf16.msra.mxu0 %v992
    %1025 = vmatmul.bf16.gmra.mxu0 %v1012
    %v1026 = vpop.f32.mrf.mxu0
    %v1027 = vadd.f32 0.0, %v1026
    %v1028 = vpop.f32.mrf.mxu0
    %v1029 = vadd.f32 0.0, %v1028
    %1030 = vmatmul.bf16.gmra.mxu0 %v1015
    %v1031 = vpop.f32.mrf.mxu0
    %v1032 = vadd.f32 0.0, %v1031
    %v1033 = vpop.f32.mrf.mxu0
    %v1034 = vadd.f32 0.0, %v1033
    %1035 = vdwg.mxu0
    %v1036 = vadd.f32 %v908, %v1027
    %v1037 = vadd.f32 %v910, %v1029
    %v1038 = vadd.f32 %v913, %v1032
    %v1039 = vadd.f32 %v915, %v1034
    %1040 = vrot.lane.b32.xlu0 %v88, 124
    %v1041 = vpop.permute.xlu0 %1040
    %1042 = vrot.lane.b32.xlu0 %v89, 124
    %v1043 = vpop.permute.xlu0 %1042
    %1044 = vrot.lane.b32.xlu0 %v90, 124
    %v1045 = vpop.permute.xlu0 %1044
    %1046 = vrot.lane.b32.xlu0 %v91, 124
    %v1047 = vpop.permute.xlu0 %1046
    %1048 = vrot.lane.b32.xlu0 %v88, 28
    %v1049 = vpop.permute.xlu0 %1048
    %1050 = vrot.lane.b32.xlu0 %v89, 28
    %v1051 = vpop.permute.xlu0 %1050
    %1052 = vrot.lane.b32.xlu0 %v90, 28
    %v1053 = vpop.permute.xlu0 %1052
    %1054 = vrot.lane.b32.xlu0 %v91, 28
    %v1055 = vpop.permute.xlu0 %1054
    %vm1056 = vcmask 228352
    %v1059 = vsel %vm1056, %v1041, %v1049
    %v1063 = vsel %vm1056, %v1043, %v1051
    %v1067 = vsel %vm1056, %v1045, %v1053
    %v1071 = vsel %vm1056, %v1047, %v1055
    %v1073 = vunpack.c.l.bf16 %v1059
    %v1074 = vunpack.c.h.bf16 %v1059
    %v1075 = vunpack.c.l.bf16 %v1063
    %v1076 = vunpack.c.h.bf16 %v1063
    %v1077 = vunpack.c.l.bf16 %v1067
    %v1078 = vunpack.c.h.bf16 %v1067
    %v1079 = vunpack.c.l.bf16 %v1071
    %v1080 = vunpack.c.h.bf16 %v1071
    %v1081 = vmul.f32 %v1073, %v959
    %v1082 = vmul.f32 %v1074, %v959
    %v1083 = vmul.f32 %v1075, %v959
    %v1084 = vmul.f32 %v1076, %v959
    %v1085 = vmul.f32 %v1077, %v959
    %v1086 = vmul.f32 %v1078, %v959
    %v1087 = vmul.f32 %v1079, %v959
    %v1088 = vmul.f32 %v1080, %v959
    %v1089 = vpack.c.bf16 %v1082, %v1081
    %v1090 = vpack.c.bf16 %v1084, %v1083
    %v1091 = vpack.c.bf16 %v1086, %v1085
    %v1092 = vpack.c.bf16 %v1088, %v1087
    %s1093 = scalar_lea.vmem [#allocation2], 176
    %v1094 = vld [vmem:[%s1093] sm:$0xf]
    %v1095 = vld [vmem:[%s1093 + $0x4] sm:$0xf]
    %v1096 = vld [vmem:[%s1093 + $0x8] sm:$0xf]
    %v1097 = vld [vmem:[%s1093 + $0xc] sm:$0xf]
    %v1102 = vunpack.c.l.b16 %v1094
    %v1103 = vunpack.c.l.b16 %v1095
    %v1104 = vunpack.c.l.b16 %v1096
    %v1105 = vunpack.c.l.b16 %v1097
    %v1106 = vpack.c.b16 %v1103, %v1102
    %v1107 = vpack.c.b16 %v1105, %v1104
    %v1109 = vsel %vm248, %v1106, 0
    %v1112 = vsel %vm248, %v1107, 0
    %1114 = vmatpush.bf16.msra.mxu0 0
    %1115 = vmatpush.bf16.msra.mxu0 0
    %1116 = vmatpush.bf16.msra.mxu0 0
    %1117 = vmatpush.bf16.msra.mxu0 0
    %1118 = vmatpush.bf16.msra.mxu0 %v1092
    %1119 = vmatpush.bf16.msra.mxu0 %v1091
    %1120 = vmatpush.bf16.msra.mxu0 %v1090
    %1121 = vmatpush.bf16.msra.mxu0 %v1089
    %1122 = vmatmul.bf16.gmra.mxu0 %v1109
    %v1123 = vpop.f32.mrf.mxu0
    %v1124 = vadd.f32 0.0, %v1123
    %v1125 = vpop.f32.mrf.mxu0
    %v1126 = vadd.f32 0.0, %v1125
    %1127 = vmatmul.bf16.gmra.mxu0 %v1112
    %v1128 = vpop.f32.mrf.mxu0
    %v1129 = vadd.f32 0.0, %v1128
    %v1130 = vpop.f32.mrf.mxu0
    %v1131 = vadd.f32 0.0, %v1130
    %1132 = vdwg.mxu0
    %v1133 = vadd.f32 %v1036, %v1124
    %v1134 = vadd.f32 %v1037, %v1126
    %v1135 = vadd.f32 %v1038, %v1129
    %v1136 = vadd.f32 %v1039, %v1131
    %v1137 = vpack.c.bf16 %v1133, %v1133
    %v1138 = vpack.c.bf16 %v1134, %v1134
    %v1139 = vpack.c.bf16 %v1135, %v1135
    %v1140 = vpack.c.bf16 %v1136, %v1136
    %s1141 = scalar_lea.vmem %s3, 32
    %1142 = vst.msk [vmem:[%s1141] sm:$0xf] %vm458, %v1137
    %1143 = vst.msk [vmem:[%s1141 + $0x4] sm:$0xf] %vm458, %v1138
    %1144 = vst.msk [vmem:[%s1141 + $0x8] sm:$0xf] %vm458, %v1139
    %1145 = vst.msk [vmem:[%s1141 + $0xc] sm:$0xf] %vm458, %v1140
    %v1146 = vsel %vm463, %v1133, 0.0
    %1147 = vadd.xlane.f32.xlu0 %v1146
    %v1148 = vpop.xlane.xlu0 %1147
    %v1149 = vsel %vm463, %v1134, 0.0
    %1150 = vadd.xlane.f32.xlu0 %v1149
    %v1151 = vpop.xlane.xlu0 %1150
    %v1152 = vsel %vm463, %v1135, 0.0
    %1153 = vadd.xlane.f32.xlu0 %v1152
    %v1154 = vpop.xlane.xlu0 %1153
    %v1155 = vsel %vm463, %v1136, 0.0
    %1156 = vadd.xlane.f32.xlu0 %v1155
    %v1157 = vpop.xlane.xlu0 %1156
    %v1158 = vmul.f32 %v1133, %v1133
    %v1159 = vmul.f32 %v1134, %v1134
    %v1160 = vmul.f32 %v1135, %v1135
    %v1161 = vmul.f32 %v1136, %v1136
    %v1162 = vsel %vm463, %v1158, 0.0
    %1163 = vadd.xlane.f32.xlu0 %v1162
    %v1164 = vpop.xlane.xlu0 %1163
    %v1165 = vsel %vm463, %v1159, 0.0
    %1166 = vadd.xlane.f32.xlu0 %v1165
    %v1167 = vpop.xlane.xlu0 %1166
    %v1168 = vsel %vm463, %v1160, 0.0
    %1169 = vadd.xlane.f32.xlu0 %v1168
    %v1170 = vpop.xlane.xlu0 %1169
    %v1171 = vsel %vm463, %v1161, 0.0
    %1172 = vadd.xlane.f32.xlu0 %v1171
    %v1173 = vpop.xlane.xlu0 %1172
    %v1174 = vadd.f32 %v829, %v1148
    %v1175 = vadd.f32 %v830, %v1151
    %v1176 = vadd.f32 %v831, %v1154
    %v1177 = vadd.f32 %v832, %v1157
    %v1178 = vadd.f32 %v833, %v1164
    %v1179 = vadd.f32 %v834, %v1167
    %v1180 = vadd.f32 %v835, %v1170
    %v1181 = vadd.f32 %v836, %v1173
    %s1182 = scalar_lea.vmem [#allocation2], 192
    %v1183 = vld [vmem:[%s1182] sm:$0xf]
    %v1184 = vld [vmem:[%s1182 + $0x4] sm:$0xf]
    %v1185 = vld [vmem:[%s1182 + $0x8] sm:$0xf]
    %v1186 = vld [vmem:[%s1182 + $0xc] sm:$0xf]
    %s1187 = scalar_lea.vmem [#allocation2], 208
    %v1188 = vld [vmem:[%s1187] sm:$0xf]
    %v1189 = vld [vmem:[%s1187 + $0x4] sm:$0xf]
    %v1190 = vld [vmem:[%s1187 + $0x8] sm:$0xf]
    %v1191 = vld [vmem:[%s1187 + $0xc] sm:$0xf]
    %v1196 = vunpack.c.l.b16 %v1188
    %v1197 = vunpack.c.l.b16 %v1189
    %v1198 = vunpack.c.l.b16 %v1190
    %v1199 = vunpack.c.l.b16 %v1191
    %v1200 = vpack.c.b16 %v1197, %v1196
    %v1201 = vpack.c.b16 %v1199, %v1198
    %v1203 = vsel %vm248, %v1200, 0
    %v1206 = vsel %vm248, %v1201, 0
    %1208 = vmatpush.bf16.msra.mxu0 0
    %1209 = vmatpush.bf16.msra.mxu0 0
    %1210 = vmatpush.bf16.msra.mxu0 0
    %1211 = vmatpush.bf16.msra.mxu0 0
    %1212 = vmatpush.bf16.msra.mxu0 %v747
    %1213 = vmatpush.bf16.msra.mxu0 %v746
    %1214 = vmatpush.bf16.msra.mxu0 %v745
    %1215 = vmatpush.bf16.msra.mxu0 %v744
    %1216 = vmatmul.bf16.gmra.mxu0 %v1203
    %v1217 = vpop.f32.mrf.mxu0
    %v1218 = vadd.f32 0.0, %v1217
    %v1219 = vpop.f32.mrf.mxu0
    %v1220 = vadd.f32 0.0, %v1219
    %1221 = vmatmul.bf16.gmra.mxu0 %v1206
    %v1222 = vpop.f32.mrf.mxu0
    %v1223 = vadd.f32 0.0, %v1222
    %v1224 = vpop.f32.mrf.mxu0
    %v1225 = vadd.f32 0.0, %v1224
    %1226 = vdwg.mxu0
    %v1231 = vunpack.c.l.b16 %v1183
    %v1232 = vunpack.c.l.b16 %v1184
    %v1233 = vunpack.c.l.b16 %v1185
    %v1234 = vunpack.c.l.b16 %v1186
    %v1235 = vpack.c.b16 %v1232, %v1231
    %v1236 = vpack.c.b16 %v1234, %v1233
    %v1238 = vsel %vm248, %v1235, 0
    %v1241 = vsel %vm248, %v1236, 0
    %1243 = vmatpush.bf16.msra.mxu0 0
    %1244 = vmatpush.bf16.msra.mxu0 0
    %1245 = vmatpush.bf16.msra.mxu0 0
    %1246 = vmatpush.bf16.msra.mxu0 0
    %1247 = vmatpush.bf16.msra.mxu0 %v91
    %1248 = vmatpush.bf16.msra.mxu0 %v90
    %1249 = vmatpush.bf16.msra.mxu0 %v89
    %1250 = vmatpush.bf16.msra.mxu0 %v88
    %1251 = vmatmul.bf16.gmra.mxu0 %v1238
    %v1252 = vpop.f32.mrf.mxu0
    %v1253 = vadd.f32 %v1218, %v1252
    %v1254 = vpop.f32.mrf.mxu0
    %v1255 = vadd.f32 %v1220, %v1254
    %1256 = vmatmul.bf16.gmra.mxu0 %v1241
    %v1257 = vpop.f32.mrf.mxu0
    %v1258 = vadd.f32 %v1223, %v1257
    %v1259 = vpop.f32.mrf.mxu0
    %v1260 = vadd.f32 %v1225, %v1259
    %1261 = vdwg.mxu0
    %s1262 = scalar_lea.vmem [#allocation2], 224
    %v1263 = vld [vmem:[%s1262] sm:$0xf]
    %v1264 = vld [vmem:[%s1262 + $0x4] sm:$0xf]
    %v1265 = vld [vmem:[%s1262 + $0x8] sm:$0xf]
    %v1266 = vld [vmem:[%s1262 + $0xc] sm:$0xf]
    %v1271 = vunpack.c.l.b16 %v1263
    %v1272 = vunpack.c.l.b16 %v1264
    %v1273 = vunpack.c.l.b16 %v1265
    %v1274 = vunpack.c.l.b16 %v1266
    %v1275 = vpack.c.b16 %v1272, %v1271
    %v1276 = vpack.c.b16 %v1274, %v1273
    %v1278 = vsel %vm248, %v1275, 0
    %v1281 = vsel %vm248, %v1276, 0
    %1283 = vmatpush.bf16.msra.mxu0 0
    %1284 = vmatpush.bf16.msra.mxu0 0
    %1285 = vmatpush.bf16.msra.mxu0 0
    %1286 = vmatpush.bf16.msra.mxu0 0
    %1287 = vmatpush.bf16.msra.mxu0 %v1092
    %1288 = vmatpush.bf16.msra.mxu0 %v1091
    %1289 = vmatpush.bf16.msra.mxu0 %v1090
    %1290 = vmatpush.bf16.msra.mxu0 %v1089
    %1291 = vmatmul.bf16.gmra.mxu0 %v1278
    %v1292 = vpop.f32.mrf.mxu0
    %v1293 = vadd.f32 0.0, %v1292
    %v1294 = vpop.f32.mrf.mxu0
    %v1295 = vadd.f32 0.0, %v1294
    %1296 = vmatmul.bf16.gmra.mxu0 %v1281
    %v1297 = vpop.f32.mrf.mxu0
    %v1298 = vadd.f32 0.0, %v1297
    %v1299 = vpop.f32.mrf.mxu0
    %v1300 = vadd.f32 0.0, %v1299
    %1301 = vdwg.mxu0
    %v1302 = vadd.f32 %v1253, %v1293
    %v1303 = vadd.f32 %v1255, %v1295
    %v1304 = vadd.f32 %v1258, %v1298
    %v1305 = vadd.f32 %v1260, %v1300
    %1306 = vrot.lane.b32.xlu0 %v88, 123
    %v1307 = vpop.permute.xlu0 %1306
    %1308 = vrot.lane.b32.xlu0 %v89, 123
    %v1309 = vpop.permute.xlu0 %1308
    %1310 = vrot.lane.b32.xlu0 %v90, 123
    %v1311 = vpop.permute.xlu0 %1310
    %1312 = vrot.lane.b32.xlu0 %v91, 123
    %v1313 = vpop.permute.xlu0 %1312
    %1314 = vrot.lane.b32.xlu0 %v88, 27
    %v1315 = vpop.permute.xlu0 %1314
    %1316 = vrot.lane.b32.xlu0 %v89, 27
    %v1317 = vpop.permute.xlu0 %1316
    %1318 = vrot.lane.b32.xlu0 %v90, 27
    %v1319 = vpop.permute.xlu0 %1318
    %1320 = vrot.lane.b32.xlu0 %v91, 27
    %v1321 = vpop.permute.xlu0 %1320
    %vm1322 = vcmask 220160
    %v1325 = vsel %vm1322, %v1307, %v1315
    %v1329 = vsel %vm1322, %v1309, %v1317
    %v1333 = vsel %vm1322, %v1311, %v1319
    %v1337 = vsel %vm1322, %v1313, %v1321
    %v1339 = vunpack.c.l.bf16 %v1325
    %v1340 = vunpack.c.h.bf16 %v1325
    %v1341 = vunpack.c.l.bf16 %v1329
    %v1342 = vunpack.c.h.bf16 %v1329
    %v1343 = vunpack.c.l.bf16 %v1333
    %v1344 = vunpack.c.h.bf16 %v1333
    %v1345 = vunpack.c.l.bf16 %v1337
    %v1346 = vunpack.c.h.bf16 %v1337
    %v1347 = vmul.f32 %v1339, %v959
    %v1348 = vmul.f32 %v1340, %v959
    %v1349 = vmul.f32 %v1341, %v959
    %v1350 = vmul.f32 %v1342, %v959
    %v1351 = vmul.f32 %v1343, %v959
    %v1352 = vmul.f32 %v1344, %v959
    %v1353 = vmul.f32 %v1345, %v959
    %v1354 = vmul.f32 %v1346, %v959
    %v1355 = vpack.c.bf16 %v1347, %v1347
    %v1356 = vpack.c.bf16 %v1348, %v1348
    %v1357 = vpack.c.bf16 %v1349, %v1349
    %v1358 = vpack.c.bf16 %v1350, %v1350
    %v1359 = vpack.c.bf16 %v1351, %v1351
    %v1360 = vpack.c.bf16 %v1352, %v1352
    %v1361 = vpack.c.bf16 %v1353, %v1353
    %v1362 = vpack.c.bf16 %v1354, %v1354
    %v1363 = vunpack.c.l.bf16 %v1355
    %v1364 = vunpack.c.l.bf16 %v1356
    %v1365 = vunpack.c.l.bf16 %v1357
    %v1366 = vunpack.c.l.bf16 %v1358
    %v1367 = vunpack.c.l.bf16 %v1359
    %v1368 = vunpack.c.l.bf16 %v1360
    %v1369 = vunpack.c.l.bf16 %v1361
    %v1370 = vunpack.c.l.bf16 %v1362
    %v1371 = vmul.f32 %v1363, %v563
    %v1372 = vmul.f32 %v1364, %v563
    %v1373 = vmul.f32 %v1365, %v563
    %v1374 = vmul.f32 %v1366, %v563
    %v1375 = vmul.f32 %v1367, %v563
    %v1376 = vmul.f32 %v1368, %v563
    %v1377 = vmul.f32 %v1369, %v563
    %v1378 = vmul.f32 %v1370, %v563
    %v1379 = vpack.c.bf16 %v1372, %v1371
    %v1380 = vpack.c.bf16 %v1374, %v1373
    %v1381 = vpack.c.bf16 %v1376, %v1375
    %v1382 = vpack.c.bf16 %v1378, %v1377
    %s1383 = scalar_lea.vmem [#allocation2], 240
    %v1384 = vld [vmem:[%s1383] sm:$0xf]
    %v1385 = vld [vmem:[%s1383 + $0x4] sm:$0xf]
    %v1386 = vld [vmem:[%s1383 + $0x8] sm:$0xf]
    %v1387 = vld [vmem:[%s1383 + $0xc] sm:$0xf]
    %v1392 = vunpack.c.l.b16 %v1384
    %v1393 = vunpack.c.l.b16 %v1385
    %v1394 = vunpack.c.l.b16 %v1386
    %v1395 = vunpack.c.l.b16 %v1387
    %v1396 = vpack.c.b16 %v1393, %v1392
    %v1397 = vpack.c.b16 %v1395, %v1394
    %v1399 = vsel %vm248, %v1396, 0
    %v1402 = vsel %vm248, %v1397, 0
    %1404 = vmatpush.bf16.msra.mxu0 0
    %1405 = vmatpush.bf16.msra.mxu0 0
    %1406 = vmatpush.bf16.msra.mxu0 0
    %1407 = vmatpush.bf16.msra.mxu0 0
    %1408 = vmatpush.bf16.msra.mxu0 %v1382
    %1409 = vmatpush.bf16.msra.mxu0 %v1381
    %1410 = vmatpush.bf16.msra.mxu0 %v1380
    %1411 = vmatpush.bf16.msra.mxu0 %v1379
    %1412 = vmatmul.bf16.gmra.mxu0 %v1399
    %v1413 = vpop.f32.mrf.mxu0
    %v1414 = vadd.f32 0.0, %v1413
    %v1415 = vpop.f32.mrf.mxu0
    %v1416 = vadd.f32 0.0, %v1415
    %1417 = vmatmul.bf16.gmra.mxu0 %v1402
    %v1418 = vpop.f32.mrf.mxu0
    %v1419 = vadd.f32 0.0, %v1418
    %v1420 = vpop.f32.mrf.mxu0
    %v1421 = vadd.f32 0.0, %v1420
    %1422 = vdwg.mxu0
    %v1423 = vadd.f32 %v1302, %v1414
    %v1424 = vadd.f32 %v1303, %v1416
    %v1425 = vadd.f32 %v1304, %v1419
    %v1426 = vadd.f32 %v1305, %v1421
    %v1427 = vpack.c.bf16 %v1423, %v1423
    %v1428 = vpack.c.bf16 %v1424, %v1424
    %v1429 = vpack.c.bf16 %v1425, %v1425
    %v1430 = vpack.c.bf16 %v1426, %v1426
    %s1431 = scalar_lea.vmem %s3, 48
    %1432 = vst.msk [vmem:[%s1431] sm:$0xf] %vm458, %v1427
    %1433 = vst.msk [vmem:[%s1431 + $0x4] sm:$0xf] %vm458, %v1428
    %1434 = vst.msk [vmem:[%s1431 + $0x8] sm:$0xf] %vm458, %v1429
    %1435 = vst.msk [vmem:[%s1431 + $0xc] sm:$0xf] %vm458, %v1430
    %v1436 = vsel %vm463, %v1423, 0.0
    %1437 = vadd.xlane.f32.xlu0 %v1436
    %v1438 = vpop.xlane.xlu0 %1437
    %v1439 = vsel %vm463, %v1424, 0.0
    %1440 = vadd.xlane.f32.xlu0 %v1439
    %v1441 = vpop.xlane.xlu0 %1440
    %v1442 = vsel %vm463, %v1425, 0.0
    %1443 = vadd.xlane.f32.xlu0 %v1442
    %v1444 = vpop.xlane.xlu0 %1443
    %v1445 = vsel %vm463, %v1426, 0.0
    %1446 = vadd.xlane.f32.xlu0 %v1445
    %v1447 = vpop.xlane.xlu0 %1446
    %v1448 = vmul.f32 %v1423, %v1423
    %v1449 = vmul.f32 %v1424, %v1424
    %v1450 = vmul.f32 %v1425, %v1425
    %v1451 = vmul.f32 %v1426, %v1426
    %v1452 = vsel %vm463, %v1448, 0.0
    %1453 = vadd.xlane.f32.xlu0 %v1452
    %v1454 = vpop.xlane.xlu0 %1453
    %v1455 = vsel %vm463, %v1449, 0.0
    %1456 = vadd.xlane.f32.xlu0 %v1455
    %v1457 = vpop.xlane.xlu0 %1456
    %v1458 = vsel %vm463, %v1450, 0.0
    %1459 = vadd.xlane.f32.xlu0 %v1458
    %v1460 = vpop.xlane.xlu0 %1459
    %v1461 = vsel %vm463, %v1451, 0.0
    %1462 = vadd.xlane.f32.xlu0 %v1461
    %v1463 = vpop.xlane.xlu0 %1462
    %v1464 = vadd.f32 %v1174, %v1438
    %v1465 = vadd.f32 %v1175, %v1441
    %v1466 = vadd.f32 %v1176, %v1444
    %v1467 = vadd.f32 %v1177, %v1447
    %v1468 = vadd.f32 %v1178, %v1454
    %v1469 = vadd.f32 %v1179, %v1457
    %v1470 = vadd.f32 %v1180, %v1460
    %v1471 = vadd.f32 %v1181, %v1463
    %1472 = vst.msk [vmem:[%s4] sm:$0xff] %vm325, %v1464
    %1473 = vst.msk [vmem:[%s4 + $0x8] sm:$0xff] %vm325, %v1465
    %1474 = vst.msk [vmem:[%s4 + $0x10] sm:$0xff] %vm325, %v1466
    %1475 = vst.msk [vmem:[%s4 + $0x18] sm:$0xff] %vm325, %v1467
    %1476 = vst.msk [vmem:[%s5] sm:$0xff] %vm325, %v1468
    %1477 = vst.msk [vmem:[%s5 + $0x8] sm:$0xff] %vm325, %v1469
    %1478 = vst.msk [vmem:[%s5 + $0x10] sm:$0xff] %vm325, %v1470
    %1479 = vst.msk [vmem:[%s5 + $0x18] sm:$0xff] %vm325, %v1471
    // Predicated region
    $region18: #{generator_forward.6} parent=1 // pred_check
      _
    $region19: #{generator_forward.6} parent=1 // pred_check_branch
      %1481 = sbr.rel (0) target = $region21
    $region20: #{generator_forward.6} parent=1 // pred_region
      _
    $region21: #{generator_forward.6} parent=1 // pred_fallthru
      _
    // Predicated region
    $region22: #{generator_forward.6} parent=1 // pred_check
      _
    $region23: #{generator_forward.6} parent=1 // pred_check_branch
      %1483 = sbr.rel (0) target = $region25
    $region24: #{generator_forward.6} parent=1 // pred_region
      _
    $region25: #{generator_forward.6} parent=1 // pred_fallthru
      _
    // Predicated region
    $region26: #{generator_forward.6} parent=1 // pred_check
      _
    $region27: #{generator_forward.6} parent=1 // pred_check_branch
      %1485 = sbr.rel (0) target = $region29
    $region28: #{generator_forward.6} parent=1 // pred_region
      _
    $region29: #{generator_forward.6} parent=1 // pred_fallthru
      _
    // Predicated region
    $region30: #{generator_forward.6} parent=1 // pred_check
      _
    $region31: #{generator_forward.6} parent=1 // pred_check_branch
      %1487 = sbr.rel (0) target = $region33
    $region32: #{generator_forward.6} parent=1 // pred_region
      _
    $region33: #{generator_forward.6} parent=1 // pred_fallthru
      _
    // Predicated region
    $region34: #{generator_forward.6} parent=1 // pred_check
      _
    $region35: #{generator_forward.6} parent=1 // pred_check_branch
      %1489 = sbr.rel (0) target = $region37
    $region36: #{generator_forward.6} parent=1 // pred_region
      _
    $region37: #{generator_forward.6} parent=1 // pred_fallthru
      _
    // Predicated region
    $region38: #{generator_forward.6} parent=1 // pred_check
      _
    $region39: #{generator_forward.6} parent=1 // pred_check_branch
      %1491 = sbr.rel (0) target = $region41
    $region40: #{generator_forward.6} parent=1 // pred_region
      _
    $region41: #{generator_forward.6} parent=1 // pred_fallthru
      _
    %1492 = vsyncpa [#allocation3], 1

// kernel: generator_forward.7
$region0: #{generator_forward.7}
  #allocation0 [shape = 'u32[]', space=smem, size = 0x4, offset = 0x4, fixed_abs, tag = 'smem constant byte address 0x4 - core index']
  #allocation1 [shape = 'u32[72,128]{1,0:T(1,128)}', space=vmem, size = 0x9000, scoped, tag = 'internal scratch']
  %s0 = inlined_call_operand.vmem [shape: bf16[32,128], index: 0, kind: input, shape index: {}]
  %s1 = inlined_call_operand.vmem [shape: bf16[5,128], index: 1, kind: input, shape index: {}]
  %s2 = inlined_call_operand.hbm [shape: bf16[4,4,16,32], index: 2, kind: input, shape index: {}]
  %s3 = inlined_call_operand.vmem [shape: f32[32,1], index: 3, kind: input, shape index: {}]
  %s4 = inlined_call_operand.vmem [shape: f32[32,1], index: 4, kind: input, shape index: {}]
  %s5 = inlined_call_operand.vmem [shape: bf16[4,16,128], index: 5, kind: output, shape index: {0}]
  %s6 = inlined_call_operand.vmem [shape: f32[1,16,1], index: 6, kind: output, shape index: {1}]
  %s7 = inlined_call_operand.vmem [shape: f32[1,16,1], index: 7, kind: output, shape index: {2}]
  %8 = xla_tuple %s5, %s6, %s7
  %s9 = sld [smem:[#allocation0]]
  $region50: #{generator_forward.7} parent=0
    _
  %s11 = ssub.s32 1, %s9
  %s12 = scalar_select 0, %s11, %s9
  $region1: #{generator_forward.7} parent=0
    #allocation2 [shape = 'u8[65536]{0}', space=vmem, size = 0x10000, scoped, tag = 'input window, operand 2, single buffered']
    #allocation3 [shape = 's32[1]{0}', space=sflag, size = 0x4, scoped, tag = 'scoped memory for generator_forward.7']
    %13 = vsyncpa [#allocation3], 0
    // Predicated region
    $region2: #{generator_forward.7} parent=1 // pred_check
      _
    $region3: #{generator_forward.7} parent=1 // pred_check_branch
      %15 = sbr.rel (0) target = $region5
    $region4: #{generator_forward.7} parent=1 // pred_region
      _
    $region5: #{generator_forward.7} parent=1 // pred_fallthru
      _
    // Predicated region
    $region6: #{generator_forward.7} parent=1 // pred_check
      _
    $region7: #{generator_forward.7} parent=1 // pred_check_branch
      %17 = sbr.rel (0) target = $region9
    $region8: #{generator_forward.7} parent=1 // pred_region
      _
    $region9: #{generator_forward.7} parent=1 // pred_fallthru
      _
    // Predicated region
    $region10: #{generator_forward.7} parent=1 // pred_check
      _
    $region11: #{generator_forward.7} parent=1 // pred_check_branch
      %19 = sbr.rel (0) target = $region13
    $region12: #{generator_forward.7} parent=1 // pred_region
      %21 = vsyncadd [#allocation3], 0
      %s22 = sshll.u32 %s2, 4
      %s23 = int_to_ptr.hbm [resolvable:$true] %s22
      %s24 = sshll.u32 [#allocation2], 4
      %s25 = int_to_ptr.vmem [resolvable:$true] %s24
      %30 = dma.hbm_to_vmem [thread:$0]  %s23, 2048, %s25, [#allocation3], 64, 64, 4
    $region13: #{generator_forward.7} parent=1 // pred_fallthru
      _
    // Predicated region
    $region14: #{generator_forward.7} parent=1 // pred_check
      _
    $region15: #{generator_forward.7} parent=1 // pred_check_branch
      %32 = sbr.rel (0) target = $region17
    $region16: #{generator_forward.7} parent=1 // pred_region
      _
    $region17: #{generator_forward.7} parent=1 // pred_fallthru
      _
    // Predicated region
    $region18: #{generator_forward.7} parent=1 // pred_check
      _
    $region19: #{generator_forward.7} parent=1 // pred_check_branch
      %34 = sbr.rel (0) target = $region21
    $region20: #{generator_forward.7} parent=1 // pred_region
      _
    $region21: #{generator_forward.7} parent=1 // pred_fallthru
      _
    // Predicated region
    $region22: #{generator_forward.7} parent=1 // pred_check
      _
    $region23: #{generator_forward.7} parent=1 // pred_check_branch
      %36 = sbr.rel (0) target = $region25
    $region24: #{generator_forward.7} parent=1 // pred_region
      %38 = dma.done [#allocation3], 2048
    $region25: #{generator_forward.7} parent=1 // pred_fallthru
      _
    %v40 = vld [vmem:[%s1] sm:$0x7]
    %v41 = vld [vmem:[%s0] sm:$0xf]
    %v42 = vld [vmem:[%s0 + $0x4] sm:$0xf]
    %v43 = vld [vmem:[%s0 + $0x8] sm:$0xf]
    %v44 = vld [vmem:[%s0 + $0xc] sm:$0xf]
    %v45 = vunpack.c.l.bf16 %v41
    %v46 = vunpack.c.l.bf16 %v42
    %v47 = vunpack.c.l.bf16 %v43
    %v48 = vunpack.c.l.bf16 %v44
    %v49 = vld [vmem:[%s3] sm:$0xff]
    %v50 = vld [vmem:[%s3 + $0x8] sm:$0xff]
    %v51 = vld [vmem:[%s3 + $0x10] sm:$0xff]
    %v52 = vld [vmem:[%s3 + $0x18] sm:$0xff]
    %54 = vset.pattern.permute.xlu0 0
    %55 = vperm.xlu0 %54, %v49
    %v56 = vpop.permute.xlu0 %55
    %59 = vset.pattern.permute.xlu0 0
    %60 = vperm.xlu0 %59, %v50
    %v61 = vpop.permute.xlu0 %60
    %64 = vset.pattern.permute.xlu0 0
    %65 = vperm.xlu0 %64, %v51
    %v66 = vpop.permute.xlu0 %65
    %69 = vset.pattern.permute.xlu0 0
    %70 = vperm.xlu0 %69, %v52
    %v71 = vpop.permute.xlu0 %70
    %v73 = vmul.f32 %v45, %v56
    %v74 = vmul.f32 %v46, %v61
    %v75 = vmul.f32 %v47, %v66
    %v76 = vmul.f32 %v48, %v71
    %v77 = vld [vmem:[%s4] sm:$0xff]
    %v78 = vld [vmem:[%s4 + $0x8] sm:$0xff]
    %v79 = vld [vmem:[%s4 + $0x10] sm:$0xff]
    %v80 = vld [vmem:[%s4 + $0x18] sm:$0xff]
    %82 = vset.pattern.permute.xlu0 0
    %83 = vperm.xlu0 %82, %v77
    %v84 = vpop.permute.xlu0 %83
    %87 = vset.pattern.permute.xlu0 0
    %88 = vperm.xlu0 %87, %v78
    %v89 = vpop.permute.xlu0 %88
    %92 = vset.pattern.permute.xlu0 0
    %93 = vperm.xlu0 %92, %v79
    %v94 = vpop.permute.xlu0 %93
    %97 = vset.pattern.permute.xlu0 0
    %98 = vperm.xlu0 %97, %v80
    %v99 = vpop.permute.xlu0 %98
    %v101 = vadd.f32 %v73, %v84
    %v102 = vadd.f32 %v74, %v89
    %v103 = vadd.f32 %v75, %v94
    %v104 = vadd.f32 %v76, %v99
    %v105 = vmax.f32 %v101, 0.0
    %v106 = vmax.f32 %v102, 0.0
    %v107 = vmax.f32 %v103, 0.0
    %v108 = vmax.f32 %v104, 0.0
    %v109 = vpack.c.bf16 %v105, %v105
    %v110 = vpack.c.bf16 %v106, %v106
    %v111 = vpack.c.bf16 %v107, %v107
    %v112 = vpack.c.bf16 %v108, %v108
    %v114 = vpack.i.b16 %v40, %v40
    %v116 = vperm.slane %v114, 0
    %v117 = vunpack.c.l.bf16 %v109
    %v118 = vunpack.c.l.bf16 %v110
    %v119 = vunpack.c.l.bf16 %v111
    %v120 = vunpack.c.l.bf16 %v112
    %v121 = vunpack.c.l.bf16 %v116
    %v122 = vmul.f32 %v117, %v121
    %v123 = vmul.f32 %v118, %v121
    %v124 = vmul.f32 %v119, %v121
    %v125 = vmul.f32 %v120, %v121
    %v126 = vpack.c.bf16 %v122, %v122
    %v127 = vpack.c.bf16 %v123, %v123
    %v128 = vpack.c.bf16 %v124, %v124
    %v129 = vpack.c.bf16 %v125, %v125
    %v134 = vunpack.c.l.b16 %v126
    %v135 = vunpack.c.l.b16 %v127
    %v136 = vunpack.c.l.b16 %v128
    %v137 = vunpack.c.l.b16 %v129
    %v138 = vpack.c.b16 %v135, %v134
    %v139 = vpack.c.b16 %v137, %v136
    %140 = vrot.lane.b32.xlu0 %v138, 9
    %v141 = vpop.permute.xlu0 %140
    %142 = vrot.lane.b32.xlu0 %v139, 9
    %v143 = vpop.permute.xlu0 %142
    %v148 = vshrl.u32 %v40, 16
    %v149 = vpack.i.b16 %v148, %v148
    %v151 = vperm.slane %v149, 0
    %v152 = vunpack.c.l.bf16 %v141
    %v153 = vunpack.c.h.bf16 %v141
    %v154 = vunpack.c.l.bf16 %v143
    %v155 = vunpack.c.h.bf16 %v143
    %v156 = vunpack.c.l.bf16 %v151
    %v157 = vmul.f32 %v152, %v156
    %v158 = vmul.f32 %v153, %v156
    %v159 = vmul.f32 %v154, %v156
    %v160 = vmul.f32 %v155, %v156
    %v161 = vpack.c.bf16 %v157, %v157
    %v162 = vpack.c.bf16 %v158, %v158
    %v163 = vpack.c.bf16 %v159, %v159
    %v164 = vpack.c.bf16 %v160, %v160
    %v165 = vperm.slane %v149, 1
    %v166 = vunpack.c.l.bf16 %v161
    %v167 = vunpack.c.l.bf16 %v162
    %v168 = vunpack.c.l.bf16 %v163
    %v169 = vunpack.c.l.bf16 %v164
    %v170 = vunpack.c.l.bf16 %v165
    %v171 = vmul.f32 %v166, %v170
    %v172 = vmul.f32 %v167, %v170
    %v173 = vmul.f32 %v168, %v170
    %v174 = vmul.f32 %v169, %v170
    %v175 = vpack.c.bf16 %v172, %v171
    %v176 = vpack.c.bf16 %v174, %v173
    %v177 = vld [vmem:[#allocation2] sm:$0xf]
    %v178 = vld [vmem:[#allocation2 + $0x4] sm:$0xf]
    %179 = vrot.lane.b32.xlu0 %v138, 8
    %v180 = vpop.permute.xlu0 %179
    %181 = vrot.lane.b32.xlu0 %v139, 8
    %v182 = vpop.permute.xlu0 %181
    %v187 = vunpack.c.l.bf16 %v180
    %v188 = vunpack.c.h.bf16 %v180
    %v189 = vunpack.c.l.bf16 %v182
    %v190 = vunpack.c.h.bf16 %v182
    %v191 = vmul.f32 %v187, %v156
    %v192 = vmul.f32 %v188, %v156
    %v193 = vmul.f32 %v189, %v156
    %v194 = vmul.f32 %v190, %v156
    %v195 = vpack.c.bf16 %v192, %v191
    %v196 = vpack.c.bf16 %v194, %v193
    %s197 = scalar_lea.vmem [#allocation2], 8
    %v198 = vld [vmem:[%s197] sm:$0xf]
    %v199 = vld [vmem:[%s197 + $0x4] sm:$0xf]
    %v202 = vunpack.c.l.b16 %v198
    %v203 = vunpack.c.l.b16 %v199
    %v204 = vpack.c.b16 %v203, %v202
    %vm205 = vcmask 261120
    %v207 = vsel %vm205, %v204, 0
    %209 = vmatpush.bf16.msra.mxu0 0
    %210 = vmatpush.bf16.msra.mxu0 0
    %211 = vmatpush.bf16.msra.mxu0 0
    %212 = vmatpush.bf16.msra.mxu0 0
    %213 = vmatpush.bf16.msra.mxu0 0
    %214 = vmatpush.bf16.msra.mxu0 0
    %215 = vmatpush.bf16.msra.mxu0 %v196
    %216 = vmatpush.bf16.msra.mxu0 %v195
    %217 = vmatmul.bf16.gmra.mxu0 %v207
    %v218 = vpop.f32.mrf.mxu0
    %v219 = vadd.f32 0.0, %v218
    %v220 = vpop.f32.mrf.mxu0
    %v221 = vadd.f32 0.0, %v220
    %222 = vdwg.mxu0
    %v225 = vunpack.c.l.b16 %v177
    %v226 = vunpack.c.l.b16 %v178
    %v227 = vpack.c.b16 %v226, %v225
    %v229 = vsel %vm205, %v227, 0
    %231 = vmatpush.bf16.msra.mxu0 0
    %232 = vmatpush.bf16.msra.mxu0 0
    %233 = vmatpush.bf16.msra.mxu0 0
    %234 = vmatpush.bf16.msra.mxu0 0
    %235 = vmatpush.bf16.msra.mxu0 0
    %236 = vmatpush.bf16.msra.mxu0 0
    %237 = vmatpush.bf16.msra.mxu0 %v176
    %238 = vmatpush.bf16.msra.mxu0 %v175
    %239 = vmatmul.bf16.gmra.mxu0 %v229
    %v240 = vpop.f32.mrf.mxu0
    %v241 = vadd.f32 %v219, %v240
    %v242 = vpop.f32.mrf.mxu0
    %v243 = vadd.f32 %v221, %v242
    %244 = vdwg.mxu0
    %245 = vrot.lane.b32.xlu0 %v138, 1
    %v246 = vpop.permute.xlu0 %245
    %247 = vrot.lane.b32.xlu0 %v139, 1
    %v248 = vpop.permute.xlu0 %247
    %vm249 = vcmask 7168
    %v254 = vunpack.c.l.bf16 %v246
    %v255 = vunpack.c.h.bf16 %v246
    %v256 = vunpack.c.l.bf16 %v248
    %v257 = vunpack.c.h.bf16 %v248
    %v258 = vmul.f32 %v254, %v170
    %v259 = vmul.f32 %v255, %v170
    %v260 = vmul.f32 %v256, %v170
    %v261 = vmul.f32 %v257, %v170
    %v262 = vpack.c.bf16 %v259, %v258
    %v263 = vpack.c.bf16 %v261, %v260
    %s264 = scalar_lea.vmem [#allocation2], 16
    %v265 = vld [vmem:[%s264] sm:$0xf]
    %v266 = vld [vmem:[%s264 + $0x4] sm:$0xf]
    %v269 = vunpack.c.l.b16 %v265
    %v270 = vunpack.c.l.b16 %v266
    %v271 = vpack.c.b16 %v270, %v269
    %v273 = vsel %vm205, %v271, 0
    %275 = vmatpush.bf16.msra.mxu0 0
    %276 = vmatpush.bf16.msra.mxu0 0
    %277 = vmatpush.bf16.msra.mxu0 0
    %278 = vmatpush.bf16.msra.mxu0 0
    %279 = vmatpush.bf16.msra.mxu0 0
    %280 = vmatpush.bf16.msra.mxu0 0
    %281 = vmatpush.bf16.msra.mxu0 %v263
    %282 = vmatpush.bf16.msra.mxu0 %v262
    %283 = vmatmul.bf16.gmra.mxu0 %v273
    %v284 = vpop.f32.mrf.mxu0
    %v285 = vadd.f32 0.0, %v284
    %v286 = vpop.f32.mrf.mxu0
    %v287 = vadd.f32 0.0, %v286
    %288 = vdwg.mxu0
    %v289 = vadd.f32 %v241, %v285
    %v290 = vadd.f32 %v243, %v287
    %s291 = scalar_lea.vmem [#allocation2], 24
    %v292 = vld [vmem:[%s291] sm:$0xf]
    %v293 = vld [vmem:[%s291 + $0x4] sm:$0xf]
    %v296 = vunpack.c.l.b16 %v292
    %v297 = vunpack.c.l.b16 %v293
    %v298 = vpack.c.b16 %v297, %v296
    %v302 = vsel %vm205, %v298, 0
    %304 = vmatpush.bf16.msra.mxu0 0
    %305 = vmatpush.bf16.msra.mxu0 0
    %306 = vmatpush.bf16.msra.mxu0 0
    %307 = vmatpush.bf16.msra.mxu0 0
    %308 = vmatpush.bf16.msra.mxu0 0
    %309 = vmatpush.bf16.msra.mxu0 0
    %310 = vmatpush.bf16.msra.mxu0 %v139
    %311 = vmatpush.bf16.msra.mxu0 %v138
    %312 = vmatmul.bf16.gmra.mxu0 %v302
    %v313 = vpop.f32.mrf.mxu0
    %v314 = vadd.f32 0.0, %v313
    %v315 = vpop.f32.mrf.mxu0
    %v316 = vadd.f32 0.0, %v315
    %317 = vdwg.mxu0
    %v318 = vadd.f32 %v289, %v314
    %v319 = vadd.f32 %v290, %v316
    %v320 = vpack.c.bf16 %v318, %v318
    %v321 = vpack.c.bf16 %v319, %v319
    %322 = vst [vmem:[%s5] sm:$0xf] %v320
    %323 = vst [vmem:[%s5 + $0x4] sm:$0xf] %v321
    %324 = vadd.xlane.f32.xlu0 %v318
    %v325 = vpop.xlane.xlu0 %324
    %326 = vadd.xlane.f32.xlu0 %v319
    %v327 = vpop.xlane.xlu0 %326
    %v328 = vmul.f32 %v318, %v318
    %v329 = vmul.f32 %v319, %v319
    %330 = vadd.xlane.f32.xlu0 %v328
    %v331 = vpop.xlane.xlu0 %330
    %332 = vadd.xlane.f32.xlu0 %v329
    %v333 = vpop.xlane.xlu0 %332
    %s334 = scalar_lea.vmem [#allocation2], 32
    %v335 = vld [vmem:[%s334] sm:$0xf]
    %v336 = vld [vmem:[%s334 + $0x4] sm:$0xf]
    %337 = vrot.lane.b32.xlu0 %v138, 7
    %v338 = vpop.permute.xlu0 %337
    %339 = vrot.lane.b32.xlu0 %v139, 7
    %v340 = vpop.permute.xlu0 %339
    %v345 = vunpack.c.l.bf16 %v338
    %v346 = vunpack.c.h.bf16 %v338
    %v347 = vunpack.c.l.bf16 %v340
    %v348 = vunpack.c.h.bf16 %v340
    %v349 = vmul.f32 %v345, %v156
    %v350 = vmul.f32 %v346, %v156
    %v351 = vmul.f32 %v347, %v156
    %v352 = vmul.f32 %v348, %v156
    %v353 = vpack.c.bf16 %v349, %v349
    %v354 = vpack.c.bf16 %v350, %v350
    %v355 = vpack.c.bf16 %v351, %v351
    %v356 = vpack.c.bf16 %v352, %v352
    %v357 = vperm.slane %v114, 2
    %v358 = vunpack.c.l.bf16 %v353
    %v359 = vunpack.c.l.bf16 %v354
    %v360 = vunpack.c.l.bf16 %v355
    %v361 = vunpack.c.l.bf16 %v356
    %v362 = vunpack.c.l.bf16 %v357
    %v363 = vmul.f32 %v358, %v362
    %v364 = vmul.f32 %v359, %v362
    %v365 = vmul.f32 %v360, %v362
    %v366 = vmul.f32 %v361, %v362
    %v367 = vpack.c.bf16 %v364, %v363
    %v368 = vpack.c.bf16 %v366, %v365
    %s369 = scalar_lea.vmem [#allocation2], 40
    %v370 = vld [vmem:[%s369] sm:$0xf]
    %v371 = vld [vmem:[%s369 + $0x4] sm:$0xf]
    %v374 = vunpack.c.l.b16 %v370
    %v375 = vunpack.c.l.b16 %v371
    %v376 = vpack.c.b16 %v375, %v374
    %v378 = vsel %vm205, %v376, 0
    %380 = vmatpush.bf16.msra.mxu0 0
    %381 = vmatpush.bf16.msra.mxu0 0
    %382 = vmatpush.bf16.msra.mxu0 0
    %383 = vmatpush.bf16.msra.mxu0 0
    %384 = vmatpush.bf16.msra.mxu0 0
    %385 = vmatpush.bf16.msra.mxu0 0
    %386 = vmatpush.bf16.msra.mxu0 %v368
    %387 = vmatpush.bf16.msra.mxu0 %v367
    %388 = vmatmul.bf16.gmra.mxu0 %v378
    %v389 = vpop.f32.mrf.mxu0
    %v390 = vadd.f32 0.0, %v389
    %v391 = vpop.f32.mrf.mxu0
    %v392 = vadd.f32 0.0, %v391
    %393 = vdwg.mxu0
    %v396 = vunpack.c.l.b16 %v335
    %v397 = vunpack.c.l.b16 %v336
    %v398 = vpack.c.b16 %v397, %v396
    %v400 = vsel %vm205, %v398, 0
    %402 = vmatpush.bf16.msra.mxu0 0
    %403 = vmatpush.bf16.msra.mxu0 0
    %404 = vmatpush.bf16.msra.mxu0 0
    %405 = vmatpush.bf16.msra.mxu0 0
    %406 = vmatpush.bf16.msra.mxu0 0
    %407 = vmatpush.bf16.msra.mxu0 0
    %408 = vmatpush.bf16.msra.mxu0 %v196
    %409 = vmatpush.bf16.msra.mxu0 %v195
    %410 = vmatmul.bf16.gmra.mxu0 %v400
    %v411 = vpop.f32.mrf.mxu0
    %v412 = vadd.f32 %v390, %v411
    %v413 = vpop.f32.mrf.mxu0
    %v414 = vadd.f32 %v392, %v413
    %415 = vdwg.mxu0
    %s416 = scalar_lea.vmem [#allocation2], 48
    %v417 = vld [vmem:[%s416] sm:$0xf]
    %v418 = vld [vmem:[%s416 + $0x4] sm:$0xf]
    %v421 = vunpack.c.l.b16 %v417
    %v422 = vunpack.c.l.b16 %v418
    %v423 = vpack.c.b16 %v422, %v421
    %v425 = vsel %vm205, %v423, 0
    %427 = vmatpush.bf16.msra.mxu0 0
    %428 = vmatpush.bf16.msra.mxu0 0
    %429 = vmatpush.bf16.msra.mxu0 0
    %430 = vmatpush.bf16.msra.mxu0 0
    %431 = vmatpush.bf16.msra.mxu0 0
    %432 = vmatpush.bf16.msra.mxu0 0
    %433 = vmatpush.bf16.msra.mxu0 %v139
    %434 = vmatpush.bf16.msra.mxu0 %v138
    %435 = vmatmul.bf16.gmra.mxu0 %v425
    %v436 = vpop.f32.mrf.mxu0
    %v437 = vadd.f32 0.0, %v436
    %v438 = vpop.f32.mrf.mxu0
    %v439 = vadd.f32 0.0, %v438
    %440 = vdwg.mxu0
    %v441 = vadd.f32 %v412, %v437
    %v442 = vadd.f32 %v414, %v439
    %443 = vrot.lane.b32.xlu0 %v138, 127
    %v444 = vpop.permute.xlu0 %443
    %445 = vrot.lane.b32.xlu0 %v139, 127
    %v446 = vpop.permute.xlu0 %445
    %v451 = vunpack.c.l.bf16 %v444
    %v452 = vunpack.c.h.bf16 %v444
    %v453 = vunpack.c.l.bf16 %v446
    %v454 = vunpack.c.h.bf16 %v446
    %v455 = vmul.f32 %v451, %v362
    %v456 = vmul.f32 %v452, %v362
    %v457 = vmul.f32 %v453, %v362
    %v458 = vmul.f32 %v454, %v362
    %v459 = vpack.c.bf16 %v456, %v455
    %v460 = vpack.c.bf16 %v458, %v457
    %s461 = scalar_lea.vmem [#allocation2], 56
    %v462 = vld [vmem:[%s461] sm:$0xf]
    %v463 = vld [vmem:[%s461 + $0x4] sm:$0xf]
    %v466 = vunpack.c.l.b16 %v462
    %v467 = vunpack.c.l.b16 %v463
    %v468 = vpack.c.b16 %v467, %v466
    %v470 = vsel %vm205, %v468, 0
    %472 = vmatpush.bf16.msra.mxu0 0
    %473 = vmatpush.bf16.msra.mxu0 0
    %474 = vmatpush.bf16.msra.mxu0 0
    %475 = vmatpush.bf16.msra.mxu0 0
    %476 = vmatpush.bf16.msra.mxu0 0
    %477 = vmatpush.bf16.msra.mxu0 0
    %478 = vmatpush.bf16.msra.mxu0 %v460
    %479 = vmatpush.bf16.msra.mxu0 %v459
    %480 = vmatmul.bf16.gmra.mxu0 %v470
    %v481 = vpop.f32.mrf.mxu0
    %v482 = vadd.f32 0.0, %v481
    %v483 = vpop.f32.mrf.mxu0
    %v484 = vadd.f32 0.0, %v483
    %485 = vdwg.mxu0
    %v486 = vadd.f32 %v441, %v482
    %v487 = vadd.f32 %v442, %v484
    %v488 = vpack.c.bf16 %v486, %v486
    %v489 = vpack.c.bf16 %v487, %v487
    %s490 = scalar_lea.vmem %s5, 8
    %491 = vst [vmem:[%s490] sm:$0xf] %v488
    %492 = vst [vmem:[%s490 + $0x4] sm:$0xf] %v489
    %493 = vadd.xlane.f32.xlu0 %v486
    %v494 = vpop.xlane.xlu0 %493
    %495 = vadd.xlane.f32.xlu0 %v487
    %v496 = vpop.xlane.xlu0 %495
    %v497 = vmul.f32 %v486, %v486
    %v498 = vmul.f32 %v487, %v487
    %499 = vadd.xlane.f32.xlu0 %v497
    %v500 = vpop.xlane.xlu0 %499
    %501 = vadd.xlane.f32.xlu0 %v498
    %v502 = vpop.xlane.xlu0 %501
    %v503 = vadd.f32 %v325, %v494
    %v504 = vadd.f32 %v327, %v496
    %v505 = vadd.f32 %v331, %v500
    %v506 = vadd.f32 %v333, %v502
    %s507 = scalar_lea.vmem [#allocation2], 64
    %v508 = vld [vmem:[%s507] sm:$0xf]
    %v509 = vld [vmem:[%s507 + $0x4] sm:$0xf]
    %s510 = scalar_lea.vmem [#allocation2], 72
    %v511 = vld [vmem:[%s510] sm:$0xf]
    %v512 = vld [vmem:[%s510 + $0x4] sm:$0xf]
    %v515 = vunpack.c.l.b16 %v511
    %v516 = vunpack.c.l.b16 %v512
    %v517 = vpack.c.b16 %v516, %v515
    %v519 = vsel %vm205, %v517, 0
    %521 = vmatpush.bf16.msra.mxu0 0
    %522 = vmatpush.bf16.msra.mxu0 0
    %523 = vmatpush.bf16.msra.mxu0 0
    %524 = vmatpush.bf16.msra.mxu0 0
    %525 = vmatpush.bf16.msra.mxu0 0
    %526 = vmatpush.bf16.msra.mxu0 0
    %527 = vmatpush.bf16.msra.mxu0 %v139
    %528 = vmatpush.bf16.msra.mxu0 %v138
    %529 = vmatmul.bf16.gmra.mxu0 %v519
    %v530 = vpop.f32.mrf.mxu0
    %v531 = vadd.f32 0.0, %v530
    %v532 = vpop.f32.mrf.mxu0
    %v533 = vadd.f32 0.0, %v532
    %534 = vdwg.mxu0
    %v537 = vunpack.c.l.b16 %v508
    %v538 = vunpack.c.l.b16 %v509
    %v539 = vpack.c.b16 %v538, %v537
    %v541 = vsel %vm205, %v539, 0
    %543 = vmatpush.bf16.msra.mxu0 0
    %544 = vmatpush.bf16.msra.mxu0 0
    %545 = vmatpush.bf16.msra.mxu0 0
    %546 = vmatpush.bf16.msra.mxu0 0
    %547 = vmatpush.bf16.msra.mxu0 0
    %548 = vmatpush.bf16.msra.mxu0 0
    %549 = vmatpush.bf16.msra.mxu0 %v263
    %550 = vmatpush.bf16.msra.mxu0 %v262
    %551 = vmatmul.bf16.gmra.mxu0 %v541
    %v552 = vpop.f32.mrf.mxu0
    %v553 = vadd.f32 %v531, %v552
    %v554 = vpop.f32.mrf.mxu0
    %v555 = vadd.f32 %v533, %v554
    %556 = vdwg.mxu0
    %557 = vrot.lane.b32.xlu0 %v138, 121
    %v558 = vpop.permute.xlu0 %557
    %559 = vrot.lane.b32.xlu0 %v139, 121
    %v560 = vpop.permute.xlu0 %559
    %v565 = vperm.slane %v114, 1
    %v566 = vunpack.c.l.bf16 %v558
    %v567 = vunpack.c.h.bf16 %v558
    %v568 = vunpack.c.l.bf16 %v560
    %v569 = vunpack.c.h.bf16 %v560
    %v570 = vunpack.c.l.bf16 %v565
    %v571 = vmul.f32 %v566, %v570
    %v572 = vmul.f32 %v567, %v570
    %v573 = vmul.f32 %v568, %v570
    %v574 = vmul.f32 %v569, %v570
    %v575 = vpack.c.bf16 %v571, %v571
    %v576 = vpack.c.bf16 %v572, %v572
    %v577 = vpack.c.bf16 %v573, %v573
    %v578 = vpack.c.bf16 %v574, %v574
    %v579 = vunpack.c.l.bf16 %v575
    %v580 = vunpack.c.l.bf16 %v576
    %v581 = vunpack.c.l.bf16 %v577
    %v582 = vunpack.c.l.bf16 %v578
    %v583 = vmul.f32 %v579, %v170
    %v584 = vmul.f32 %v580, %v170
    %v585 = vmul.f32 %v581, %v170
    %v586 = vmul.f32 %v582, %v170
    %v587 = vpack.c.bf16 %v584, %v583
    %v588 = vpack.c.bf16 %v586, %v585
    %s589 = scalar_lea.vmem [#allocation2], 80
    %v590 = vld [vmem:[%s589] sm:$0xf]
    %v591 = vld [vmem:[%s589 + $0x4] sm:$0xf]
    %v594 = vunpack.c.l.b16 %v590
    %v595 = vunpack.c.l.b16 %v591
    %v596 = vpack.c.b16 %v595, %v594
    %v598 = vsel %vm205, %v596, 0
    %600 = vmatpush.bf16.msra.mxu0 0
    %601 = vmatpush.bf16.msra.mxu0 0
    %602 = vmatpush.bf16.msra.mxu0 0
    %603 = vmatpush.bf16.msra.mxu0 0
    %604 = vmatpush.bf16.msra.mxu0 0
    %605 = vmatpush.bf16.msra.mxu0 0
    %606 = vmatpush.bf16.msra.mxu0 %v588
    %607 = vmatpush.bf16.msra.mxu0 %v587
    %608 = vmatmul.bf16.gmra.mxu0 %v598
    %v609 = vpop.f32.mrf.mxu0
    %v610 = vadd.f32 0.0, %v609
    %v611 = vpop.f32.mrf.mxu0
    %v612 = vadd.f32 0.0, %v611
    %613 = vdwg.mxu0
    %v614 = vadd.f32 %v553, %v610
    %v615 = vadd.f32 %v555, %v612
    %616 = vrot.lane.b32.xlu0 %v138, 120
    %v617 = vpop.permute.xlu0 %616
    %618 = vrot.lane.b32.xlu0 %v139, 120
    %v619 = vpop.permute.xlu0 %618
    %v624 = vunpack.c.l.bf16 %v617
    %v625 = vunpack.c.h.bf16 %v617
    %v626 = vunpack.c.l.bf16 %v619
    %v627 = vunpack.c.h.bf16 %v619
    %v628 = vmul.f32 %v624, %v570
    %v629 = vmul.f32 %v625, %v570
    %v630 = vmul.f32 %v626, %v570
    %v631 = vmul.f32 %v627, %v570
    %v632 = vpack.c.bf16 %v629, %v628
    %v633 = vpack.c.bf16 %v631, %v630
    %s634 = scalar_lea.vmem [#allocation2], 88
    %v635 = vld [vmem:[%s634] sm:$0xf]
    %v636 = vld [vmem:[%s634 + $0x4] sm:$0xf]
    %v639 = vunpack.c.l.b16 %v635
    %v640 = vunpack.c.l.b16 %v636
    %v641 = vpack.c.b16 %v640, %v639
    %v643 = vsel %vm205, %v641, 0
    %645 = vmatpush.bf16.msra.mxu0 0
    %646 = vmatpush.bf16.msra.mxu0 0
    %647 = vmatpush.bf16.msra.mxu0 0
    %648 = vmatpush.bf16.msra.mxu0 0
    %649 = vmatpush.bf16.msra.mxu0 0
    %650 = vmatpush.bf16.msra.mxu0 0
    %651 = vmatpush.bf16.msra.mxu0 %v633
    %652 = vmatpush.bf16.msra.mxu0 %v632
    %653 = vmatmul.bf16.gmra.mxu0 %v643
    %v654 = vpop.f32.mrf.mxu0
    %v655 = vadd.f32 0.0, %v654
    %v656 = vpop.f32.mrf.mxu0
    %v657 = vadd.f32 0.0, %v656
    %658 = vdwg.mxu0
    %v659 = vadd.f32 %v614, %v655
    %v660 = vadd.f32 %v615, %v657
    %v661 = vpack.c.bf16 %v659, %v659
    %v662 = vpack.c.bf16 %v660, %v660
    %s663 = scalar_lea.vmem %s5, 16
    %664 = vst [vmem:[%s663] sm:$0xf] %v661
    %665 = vst [vmem:[%s663 + $0x4] sm:$0xf] %v662
    %666 = vadd.xlane.f32.xlu0 %v659
    %v667 = vpop.xlane.xlu0 %666
    %668 = vadd.xlane.f32.xlu0 %v660
    %v669 = vpop.xlane.xlu0 %668
    %v670 = vmul.f32 %v659, %v659
    %v671 = vmul.f32 %v660, %v660
    %672 = vadd.xlane.f32.xlu0 %v670
    %v673 = vpop.xlane.xlu0 %672
    %674 = vadd.xlane.f32.xlu0 %v671
    %v675 = vpop.xlane.xlu0 %674
    %v676 = vadd.f32 %v503, %v667
    %v677 = vadd.f32 %v504, %v669
    %v678 = vadd.f32 %v505, %v673
    %v679 = vadd.f32 %v506, %v675
    %s680 = scalar_lea.vmem [#allocation2], 96
    %v681 = vld [vmem:[%s680] sm:$0xf]
    %v682 = vld [vmem:[%s680 + $0x4] sm:$0xf]
    %s683 = scalar_lea.vmem [#allocation2], 104
    %v684 = vld [vmem:[%s683] sm:$0xf]
    %v685 = vld [vmem:[%s683 + $0x4] sm:$0xf]
    %v688 = vunpack.c.l.b16 %v684
    %v689 = vunpack.c.l.b16 %v685
    %v690 = vpack.c.b16 %v689, %v688
    %v692 = vsel %vm205, %v690, 0
    %694 = vmatpush.bf16.msra.mxu0 0
    %695 = vmatpush.bf16.msra.mxu0 0
    %696 = vmatpush.bf16.msra.mxu0 0
    %697 = vmatpush.bf16.msra.mxu0 0
    %698 = vmatpush.bf16.msra.mxu0 0
    %699 = vmatpush.bf16.msra.mxu0 0
    %700 = vmatpush.bf16.msra.mxu0 %v460
    %701 = vmatpush.bf16.msra.mxu0 %v459
    %702 = vmatmul.bf16.gmra.mxu0 %v692
    %v703 = vpop.f32.mrf.mxu0
    %v704 = vadd.f32 0.0, %v703
    %v705 = vpop.f32.mrf.mxu0
    %v706 = vadd.f32 0.0, %v705
    %707 = vdwg.mxu0
    %v710 = vunpack.c.l.b16 %v681
    %v711 = vunpack.c.l.b16 %v682
    %v712 = vpack.c.b16 %v711, %v710
    %v714 = vsel %vm205, %v712, 0
    %716 = vmatpush.bf16.msra.mxu0 0
    %717 = vmatpush.bf16.msra.mxu0 0
    %718 = vmatpush.bf16.msra.mxu0 0
    %719 = vmatpush.bf16.msra.mxu0 0
    %720 = vmatpush.bf16.msra.mxu0 0
    %721 = vmatpush.bf16.msra.mxu0 0
    %722 = vmatpush.bf16.msra.mxu0 %v139
    %723 = vmatpush.bf16.msra.mxu0 %v138
    %724 = vmatmul.bf16.gmra.mxu0 %v714
    %v725 = vpop.f32.mrf.mxu0
    %v726 = vadd.f32 %v704, %v725
    %v727 = vpop.f32.mrf.mxu0
    %v728 = vadd.f32 %v706, %v727
    %729 = vdwg.mxu0
    %s730 = scalar_lea.vmem [#allocation2], 112
    %v731 = vld [vmem:[%s730] sm:$0xf]
    %v732 = vld [vmem:[%s730 + $0x4] sm:$0xf]
    %v735 = vunpack.c.l.b16 %v731
    %v736 = vunpack.c.l.b16 %v732
    %v737 = vpack.c.b16 %v736, %v735
    %v739 = vsel %vm205, %v737, 0
    %741 = vmatpush.bf16.msra.mxu0 0
    %742 = vmatpush.bf16.msra.mxu0 0
    %743 = vmatpush.bf16.msra.mxu0 0
    %744 = vmatpush.bf16.msra.mxu0 0
    %745 = vmatpush.bf16.msra.mxu0 0
    %746 = vmatpush.bf16.msra.mxu0 0
    %747 = vmatpush.bf16.msra.mxu0 %v633
    %748 = vmatpush.bf16.msra.mxu0 %v632
    %749 = vmatmul.bf16.gmra.mxu0 %v739
    %v750 = vpop.f32.mrf.mxu0
    %v751 = vadd.f32 0.0, %v750
    %v752 = vpop.f32.mrf.mxu0
    %v753 = vadd.f32 0.0, %v752
    %754 = vdwg.mxu0
    %v755 = vadd.f32 %v726, %v751
    %v756 = vadd.f32 %v728, %v753
    %757 = vrot.lane.b32.xlu0 %v138, 119
    %v758 = vpop.permute.xlu0 %757
    %759 = vrot.lane.b32.xlu0 %v139, 119
    %v760 = vpop.permute.xlu0 %759
    %v765 = vunpack.c.l.bf16 %v758
    %v766 = vunpack.c.h.bf16 %v758
    %v767 = vunpack.c.l.bf16 %v760
    %v768 = vunpack.c.h.bf16 %v760
    %v769 = vmul.f32 %v765, %v570
    %v770 = vmul.f32 %v766, %v570
    %v771 = vmul.f32 %v767, %v570
    %v772 = vmul.f32 %v768, %v570
    %v773 = vpack.c.bf16 %v769, %v769
    %v774 = vpack.c.bf16 %v770, %v770
    %v775 = vpack.c.bf16 %v771, %v771
    %v776 = vpack.c.bf16 %v772, %v772
    %v777 = vunpack.c.l.bf16 %v773
    %v778 = vunpack.c.l.bf16 %v774
    %v779 = vunpack.c.l.bf16 %v775
    %v780 = vunpack.c.l.bf16 %v776
    %v781 = vmul.f32 %v777, %v362
    %v782 = vmul.f32 %v778, %v362
    %v783 = vmul.f32 %v779, %v362
    %v784 = vmul.f32 %v780, %v362
    %v785 = vpack.c.bf16 %v782, %v781
    %v786 = vpack.c.bf16 %v784, %v783
    %s787 = scalar_lea.vmem [#allocation2], 120
    %v788 = vld [vmem:[%s787] sm:$0xf]
    %v789 = vld [vmem:[%s787 + $0x4] sm:$0xf]
    %v792 = vunpack.c.l.b16 %v788
    %v793 = vunpack.c.l.b16 %v789
    %v794 = vpack.c.b16 %v793, %v792
    %v796 = vsel %vm205, %v794, 0
    %798 = vmatpush.bf16.msra.mxu0 0
    %799 = vmatpush.bf16.msra.mxu0 0
    %800 = vmatpush.bf16.msra.mxu0 0
    %801 = vmatpush.bf16.msra.mxu0 0
    %802 = vmatpush.bf16.msra.mxu0 0
    %803 = vmatpush.bf16.msra.mxu0 0
    %804 = vmatpush.bf16.msra.mxu0 %v786
    %805 = vmatpush.bf16.msra.mxu0 %v785
    %806 = vmatmul.bf16.gmra.mxu0 %v796
    %v807 = vpop.f32.mrf.mxu0
    %v808 = vadd.f32 0.0, %v807
    %v809 = vpop.f32.mrf.mxu0
    %v810 = vadd.f32 0.0, %v809
    %811 = vdwg.mxu0
    %v812 = vadd.f32 %v755, %v808
    %v813 = vadd.f32 %v756, %v810
    %v814 = vpack.c.bf16 %v812, %v812
    %v815 = vpack.c.bf16 %v813, %v813
    %s816 = scalar_lea.vmem %s5, 24
    %817 = vst [vmem:[%s816] sm:$0xf] %v814
    %818 = vst [vmem:[%s816 + $0x4] sm:$0xf] %v815
    %819 = vadd.xlane.f32.xlu0 %v812
    %v820 = vpop.xlane.xlu0 %819
    %821 = vadd.xlane.f32.xlu0 %v813
    %v822 = vpop.xlane.xlu0 %821
    %v823 = vmul.f32 %v812, %v812
    %v824 = vmul.f32 %v813, %v813
    %825 = vadd.xlane.f32.xlu0 %v823
    %v826 = vpop.xlane.xlu0 %825
    %827 = vadd.xlane.f32.xlu0 %v824
    %v828 = vpop.xlane.xlu0 %827
    %v829 = vadd.f32 %v676, %v820
    %v830 = vadd.f32 %v677, %v822
    %v831 = vadd.f32 %v678, %v826
    %v832 = vadd.f32 %v679, %v828
    %833 = vst.msk [vmem:[%s6] sm:$0xff] %vm249, %v829
    %834 = vst.msk [vmem:[%s6 + $0x8] sm:$0xff] %vm249, %v830
    %835 = vst.msk [vmem:[%s7] sm:$0xff] %vm249, %v831
    %836 = vst.msk [vmem:[%s7 + $0x8] sm:$0xff] %vm249, %v832
    // Predicated region
    $region26: #{generator_forward.7} parent=1 // pred_check
      _
    $region27: #{generator_forward.7} parent=1 // pred_check_branch
      %838 = sbr.rel (0) target = $region29
    $region28: #{generator_forward.7} parent=1 // pred_region
      _
    $region29: #{generator_forward.7} parent=1 // pred_fallthru
      _
    // Predicated region
    $region30: #{generator_forward.7} parent=1 // pred_check
      _
    $region31: #{generator_forward.7} parent=1 // pred_check_branch
      %840 = sbr.rel (0) target = $region33
    $region32: #{generator_forward.7} parent=1 // pred_region
      _
    $region33: #{generator_forward.7} parent=1 // pred_fallthru
      _
    // Predicated region
    $region34: #{generator_forward.7} parent=1 // pred_check
      _
    $region35: #{generator_forward.7} parent=1 // pred_check_branch
      %842 = sbr.rel (0) target = $region37
    $region36: #{generator_forward.7} parent=1 // pred_region
      _
    $region37: #{generator_forward.7} parent=1 // pred_fallthru
      _
    // Predicated region
    $region38: #{generator_forward.7} parent=1 // pred_check
      _
    $region39: #{generator_forward.7} parent=1 // pred_check_branch
      %844 = sbr.rel (0) target = $region41
    $region40: #{generator_forward.7} parent=1 // pred_region
      _
    $region41: #{generator_forward.7} parent=1 // pred_fallthru
      _
    // Predicated region
    $region42: #{generator_forward.7} parent=1 // pred_check
      _
    $region43: #{generator_forward.7} parent=1 // pred_check_branch
      %846 = sbr.rel (0) target = $region45
    $region44: #{generator_forward.7} parent=1 // pred_region
      _
    $region45: #{generator_forward.7} parent=1 // pred_fallthru
      _
    // Predicated region
    $region46: #{generator_forward.7} parent=1 // pred_check
      _
    $region47: #{generator_forward.7} parent=1 // pred_check_branch
      %848 = sbr.rel (0) target = $region49
    $region48: #{generator_forward.7} parent=1 // pred_region
      _
    $region49: #{generator_forward.7} parent=1 // pred_fallthru
      _
    %849 = vsyncpa [#allocation3], 1

// kernel: generator_forward.8
$region0: #{generator_forward.8}
  #allocation0 [shape = 'u32[]', space=smem, size = 0x4, offset = 0x4, fixed_abs, tag = 'smem constant byte address 0x4 - core index']
  #allocation1 [shape = 'u32[72,128]{1,0:T(1,128)}', space=vmem, size = 0x9000, scoped, tag = 'internal scratch']
  %s0 = inlined_call_operand.vmem [shape: bf16[16,512], index: 0, kind: input, shape index: {}]
  %s1 = inlined_call_operand.vmem [shape: bf16[5,512], index: 1, kind: input, shape index: {}]
  %s2 = inlined_call_operand.hbm [shape: bf16[4,4,8,16], index: 2, kind: input, shape index: {}]
  %s3 = inlined_call_operand.vmem [shape: f32[16,1], index: 3, kind: input, shape index: {}]
  %s4 = inlined_call_operand.vmem [shape: f32[16,1], index: 4, kind: input, shape index: {}]
  %s5 = inlined_call_operand.vmem [shape: bf16[4,8,512], index: 5, kind: output, shape index: {0}]
  %s6 = inlined_call_operand.vmem [shape: f32[1,8,1], index: 6, kind: output, shape index: {1}]
  %s7 = inlined_call_operand.vmem [shape: f32[1,8,1], index: 7, kind: output, shape index: {2}]
  %8 = xla_tuple %s5, %s6, %s7
  %s9 = sld [smem:[#allocation0]]
  $region50: #{generator_forward.8} parent=0
    _
  %s11 = ssub.s32 1, %s9
  %s12 = scalar_select 0, %s11, %s9
  $region1: #{generator_forward.8} parent=0
    #allocation2 [shape = 'u8[32768]{0}', space=vmem, size = 0x8000, scoped, tag = 'input window, operand 2, single buffered']
    #allocation3 [shape = 's32[1]{0}', space=sflag, size = 0x4, scoped, tag = 'scoped memory for generator_forward.8']
    %13 = vsyncpa [#allocation3], 0
    // Predicated region
    $region2: #{generator_forward.8} parent=1 // pred_check
      _
    $region3: #{generator_forward.8} parent=1 // pred_check_branch
      %15 = sbr.rel (0) target = $region5
    $region4: #{generator_forward.8} parent=1 // pred_region
      _
    $region5: #{generator_forward.8} parent=1 // pred_fallthru
      _
    // Predicated region
    $region6: #{generator_forward.8} parent=1 // pred_check
      _
    $region7: #{generator_forward.8} parent=1 // pred_check_branch
      %17 = sbr.rel (0) target = $region9
    $region8: #{generator_forward.8} parent=1 // pred_region
      _
    $region9: #{generator_forward.8} parent=1 // pred_fallthru
      _
    // Predicated region
    $region10: #{generator_forward.8} parent=1 // pred_check
      _
    $region11: #{generator_forward.8} parent=1 // pred_check_branch
      %19 = sbr.rel (0) target = $region13
    $region12: #{generator_forward.8} parent=1 // pred_region
      %21 = vsyncadd [#allocation3], 0
      %s22 = sshll.u32 %s2, 4
      %s23 = int_to_ptr.hbm [resolvable:$true] %s22
      %s24 = sshll.u32 [#allocation2], 4
      %s25 = int_to_ptr.vmem [resolvable:$true] %s24
      %30 = dma.hbm_to_vmem [thread:$0]  %s23, 1024, %s25, [#allocation3], 64, 64, 4
    $region13: #{generator_forward.8} parent=1 // pred_fallthru
      _
    // Predicated region
    $region14: #{generator_forward.8} parent=1 // pred_check
      _
    $region15: #{generator_forward.8} parent=1 // pred_check_branch
      %32 = sbr.rel (0) target = $region17
    $region16: #{generator_forward.8} parent=1 // pred_region
      _
    $region17: #{generator_forward.8} parent=1 // pred_fallthru
      _
    // Predicated region
    $region18: #{generator_forward.8} parent=1 // pred_check
      _
    $region19: #{generator_forward.8} parent=1 // pred_check_branch
      %34 = sbr.rel (0) target = $region21
    $region20: #{generator_forward.8} parent=1 // pred_region
      _
    $region21: #{generator_forward.8} parent=1 // pred_fallthru
      _
    // Predicated region
    $region22: #{generator_forward.8} parent=1 // pred_check
      _
    $region23: #{generator_forward.8} parent=1 // pred_check_branch
      %36 = sbr.rel (0) target = $region25
    $region24: #{generator_forward.8} parent=1 // pred_region
      %38 = dma.done [#allocation3], 1024
    $region25: #{generator_forward.8} parent=1 // pred_fallthru
      _
    %v40 = vld [vmem:[%s1] sm:$0x77]
    %v41 = vld [vmem:[%s1 + $0x8] sm:$0x77]
    %v42 = vld [vmem:[%s0] sm:$0xff]
    %v43 = vld [vmem:[%s0 + $0x8] sm:$0xff]
    %v44 = vld [vmem:[%s0 + $0x10] sm:$0xff]
    %v45 = vld [vmem:[%s0 + $0x18] sm:$0xff]
    %v46 = vunpack.c.l.bf16 %v42
    %v47 = vunpack.c.h.bf16 %v42
    %v48 = vunpack.c.l.bf16 %v43
    %v49 = vunpack.c.h.bf16 %v43
    %v50 = vunpack.c.l.bf16 %v44
    %v51 = vunpack.c.h.bf16 %v44
    %v52 = vunpack.c.l.bf16 %v45
    %v53 = vunpack.c.h.bf16 %v45
    %v54 = vld [vmem:[%s3] sm:$0xff]
    %v55 = vld [vmem:[%s3 + $0x8] sm:$0xff]
    %57 = vset.pattern.permute.xlu0 0
    %58 = vperm.xlu0 %57, %v54
    %v59 = vpop.permute.xlu0 %58
    %62 = vset.pattern.permute.xlu0 0
    %63 = vperm.xlu0 %62, %v55
    %v64 = vpop.permute.xlu0 %63
    %v66 = vmul.f32 %v46, %v59
    %v67 = vmul.f32 %v47, %v59
    %v68 = vmul.f32 %v48, %v59
    %v69 = vmul.f32 %v49, %v59
    %v70 = vmul.f32 %v50, %v64
    %v71 = vmul.f32 %v51, %v64
    %v72 = vmul.f32 %v52, %v64
    %v73 = vmul.f32 %v53, %v64
    %v74 = vld [vmem:[%s4] sm:$0xff]
    %v75 = vld [vmem:[%s4 + $0x8] sm:$0xff]
    %77 = vset.pattern.permute.xlu0 0
    %78 = vperm.xlu0 %77, %v74
    %v79 = vpop.permute.xlu0 %78
    %82 = vset.pattern.permute.xlu0 0
    %83 = vperm.xlu0 %82, %v75
    %v84 = vpop.permute.xlu0 %83
    %v86 = vadd.f32 %v66, %v79
    %v87 = vadd.f32 %v67, %v79
    %v88 = vadd.f32 %v68, %v79
    %v89 = vadd.f32 %v69, %v79
    %v90 = vadd.f32 %v70, %v84
    %v91 = vadd.f32 %v71, %v84
    %v92 = vadd.f32 %v72, %v84
    %v93 = vadd.f32 %v73, %v84
    %v94 = vmax.f32 %v86, 0.0
    %v95 = vmax.f32 %v87, 0.0
    %v96 = vmax.f32 %v88, 0.0
    %v97 = vmax.f32 %v89, 0.0
    %v98 = vmax.f32 %v90, 0.0
    %v99 = vmax.f32 %v91, 0.0
    %v100 = vmax.f32 %v92, 0.0
    %v101 = vmax.f32 %v93, 0.0
    %v102 = vpack.c.bf16 %v95, %v94
    %v103 = vpack.c.bf16 %v97, %v96
    %v104 = vpack.c.bf16 %v99, %v98
    %v105 = vpack.c.bf16 %v101, %v100
    %v108 = vunpack.c.l.b16 %v40
    %v109 = vunpack.c.h.b16 %v40
    %v110 = vunpack.c.l.b16 %v41
    %v111 = vunpack.c.h.b16 %v41
    %v112 = vpack.c.b16 %v108, %v108
    %v113 = vpack.c.b16 %v109, %v109
    %v114 = vpack.c.b16 %v110, %v110
    %v115 = vpack.c.b16 %v111, %v111
    %v117 = vpack.i.b16 %v112, %v112
    %v119 = vperm.slane %v117, 0
    %v121 = vpack.i.b16 %v113, %v113
    %v123 = vperm.slane %v121, 0
    %v125 = vpack.i.b16 %v114, %v114
    %v127 = vperm.slane %v125, 0
    %v129 = vpack.i.b16 %v115, %v115
    %v131 = vperm.slane %v129, 0
    %v132 = vunpack.c.l.bf16 %v102
    %v133 = vunpack.c.h.bf16 %v102
    %v134 = vunpack.c.l.bf16 %v103
    %v135 = vunpack.c.h.bf16 %v103
    %v136 = vunpack.c.l.bf16 %v104
    %v137 = vunpack.c.h.bf16 %v104
    %v138 = vunpack.c.l.bf16 %v105
    %v139 = vunpack.c.h.bf16 %v105
    %v140 = vunpack.c.l.bf16 %v119
    %v141 = vunpack.c.l.bf16 %v123
    %v142 = vunpack.c.l.bf16 %v127
    %v143 = vunpack.c.l.bf16 %v131
    %v144 = vmul.f32 %v132, %v140
    %v145 = vmul.f32 %v133, %v141
    %v146 = vmul.f32 %v134, %v142
    %v147 = vmul.f32 %v135, %v143
    %v148 = vmul.f32 %v136, %v140
    %v149 = vmul.f32 %v137, %v141
    %v150 = vmul.f32 %v138, %v142
    %v151 = vmul.f32 %v139, %v143
    %v152 = vpack.c.bf16 %v145, %v144
    %v153 = vpack.c.bf16 %v147, %v146
    %v154 = vpack.c.bf16 %v149, %v148
    %v155 = vpack.c.bf16 %v151, %v150
    %v158 = vunpack.c.h.b16 %v153
    %v159 = vunpack.c.h.b16 %v155
    %v160 = vpack.c.b16 %v159, %v158
    %161 = vrot.lane.b32.xlu0 %v160, 17
    %v162 = vpop.permute.xlu0 %161
    %v165 = vunpack.c.l.b16 %v152
    %v166 = vunpack.c.h.b16 %v152
    %v167 = vunpack.c.l.b16 %v153
    %v168 = vunpack.c.l.b16 %v154
    %v169 = vunpack.c.h.b16 %v154
    %v170 = vunpack.c.l.b16 %v155
    %v171 = vpack.c.b16 %v168, %v165
    %v172 = vpack.c.b16 %v169, %v166
    %v173 = vpack.c.b16 %v170, %v167
    %174 = vrot.lane.b32.xlu0 %v171, 17
    %v175 = vpop.permute.xlu0 %174
    %176 = vrot.lane.b32.xlu0 %v172, 17
    %v177 = vpop.permute.xlu0 %176
    %178 = vrot.lane.b32.xlu0 %v173, 17
    %v179 = vpop.permute.xlu0 %178
    %vm180 = vcmask 138240
    %v181 = vsel %vm180, %v175, %v177
    %v182 = vsel %vm180, %v177, %v179
    %v183 = vsel %vm180, %v179, %v162
    %vm187 = vcmask 138240
    %v190 = vsel %vm187, %v162, %v175
    %v192 = vshrl.u32 %v112, 16
    %v193 = vpack.i.b16 %v192, %v192
    %v195 = vperm.slane %v193, 0
    %v196 = vshrl.u32 %v113, 16
    %v197 = vpack.i.b16 %v196, %v196
    %v199 = vperm.slane %v197, 0
    %v200 = vshrl.u32 %v114, 16
    %v201 = vpack.i.b16 %v200, %v200
    %v203 = vperm.slane %v201, 0
    %v204 = vshrl.u32 %v115, 16
    %v205 = vpack.i.b16 %v204, %v204
    %v207 = vperm.slane %v205, 0
    %v208 = vunpack.c.l.bf16 %v190
    %v209 = vunpack.c.l.bf16 %v181
    %v210 = vunpack.c.l.bf16 %v182
    %v211 = vunpack.c.l.bf16 %v183
    %v212 = vunpack.c.h.bf16 %v190
    %v213 = vunpack.c.h.bf16 %v181
    %v214 = vunpack.c.h.bf16 %v182
    %v215 = vunpack.c.h.bf16 %v183
    %v216 = vunpack.c.l.bf16 %v195
    %v217 = vunpack.c.l.bf16 %v199
    %v218 = vunpack.c.l.bf16 %v203
    %v219 = vunpack.c.l.bf16 %v207
    %v220 = vmul.f32 %v208, %v216
    %v221 = vmul.f32 %v209, %v217
    %v222 = vmul.f32 %v210, %v218
    %v223 = vmul.f32 %v211, %v219
    %v224 = vmul.f32 %v212, %v216
    %v225 = vmul.f32 %v213, %v217
    %v226 = vmul.f32 %v214, %v218
    %v227 = vmul.f32 %v215, %v219
    %v228 = vpack.c.bf16 %v221, %v220
    %v229 = vpack.c.bf16 %v223, %v222
    %v230 = vpack.c.bf16 %v225, %v224
    %v231 = vpack.c.bf16 %v227, %v226
    %v232 = vperm.slane %v193, 1
    %v233 = vperm.slane %v197, 1
    %v234 = vperm.slane %v201, 1
    %v235 = vperm.slane %v205, 1
    %v236 = vunpack.c.l.bf16 %v228
    %v237 = vunpack.c.h.bf16 %v228
    %v238 = vunpack.c.l.bf16 %v229
    %v239 = vunpack.c.h.bf16 %v229
    %v240 = vunpack.c.l.bf16 %v230
    %v241 = vunpack.c.h.bf16 %v230
    %v242 = vunpack.c.l.bf16 %v231
    %v243 = vunpack.c.h.bf16 %v231
    %v244 = vunpack.c.l.bf16 %v232
    %v245 = vunpack.c.l.bf16 %v233
    %v246 = vunpack.c.l.bf16 %v234
    %v247 = vunpack.c.l.bf16 %v235
    %v248 = vmul.f32 %v236, %v244
    %v249 = vmul.f32 %v237, %v245
    %v250 = vmul.f32 %v238, %v246
    %v251 = vmul.f32 %v239, %v247
    %v252 = vmul.f32 %v240, %v244
    %v253 = vmul.f32 %v241, %v245
    %v254 = vmul.f32 %v242, %v246
    %v255 = vmul.f32 %v243, %v247
    %v256 = vpack.c.bf16 %v252, %v248
    %v257 = vpack.c.bf16 %v253, %v249
    %v258 = vpack.c.bf16 %v254, %v250
    %v259 = vpack.c.bf16 %v255, %v251
    %v260 = vld [vmem:[#allocation2] sm:$0xf]
    %261 = vrot.lane.b32.xlu0 %v160, 16
    %v262 = vpop.permute.xlu0 %261
    %263 = vrot.lane.b32.xlu0 %v171, 16
    %v264 = vpop.permute.xlu0 %263
    %265 = vrot.lane.b32.xlu0 %v172, 16
    %v266 = vpop.permute.xlu0 %265
    %267 = vrot.lane.b32.xlu0 %v173, 16
    %v268 = vpop.permute.xlu0 %267
    %vm269 = vcmask 130048
    %v270 = vsel %vm269, %v264, %v266
    %v271 = vsel %vm269, %v266, %v268
    %v272 = vsel %vm269, %v268, %v262
    %vm276 = vcmask 130048
    %v279 = vsel %vm276, %v262, %v264
    %v281 = vunpack.c.l.bf16 %v279
    %v282 = vunpack.c.l.bf16 %v270
    %v283 = vunpack.c.l.bf16 %v271
    %v284 = vunpack.c.l.bf16 %v272
    %v285 = vunpack.c.h.bf16 %v279
    %v286 = vunpack.c.h.bf16 %v270
    %v287 = vunpack.c.h.bf16 %v271
    %v288 = vunpack.c.h.bf16 %v272
    %v289 = vmul.f32 %v281, %v216
    %v290 = vmul.f32 %v282, %v217
    %v291 = vmul.f32 %v283, %v218
    %v292 = vmul.f32 %v284, %v219
    %v293 = vmul.f32 %v285, %v216
    %v294 = vmul.f32 %v286, %v217
    %v295 = vmul.f32 %v287, %v218
    %v296 = vmul.f32 %v288, %v219
    %v297 = vpack.c.bf16 %v293, %v289
    %v298 = vpack.c.bf16 %v294, %v290
    %v299 = vpack.c.bf16 %v295, %v291
    %v300 = vpack.c.bf16 %v296, %v292
    %s301 = scalar_lea.vmem [#allocation2], 4
    %v302 = vld [vmem:[%s301] sm:$0xf]
    %v304 = vsel %vm276, %v302, 0
    %306 = vmatpush.bf16.msra.mxu0 0
    %307 = vmatpush.bf16.msra.mxu0 0
    %308 = vmatpush.bf16.msra.mxu0 0
    %309 = vmatpush.bf16.msra.mxu0 0
    %310 = vmatpush.bf16.msra.mxu0 0
    %311 = vmatpush.bf16.msra.mxu0 0
    %312 = vmatpush.bf16.msra.mxu0 0
    %313 = vmatpush.bf16.msra.mxu0 %v297
    %314 = vmatmul.bf16.gmra.mxu0 %v304
    %v315 = vpop.f32.mrf.mxu0
    %v316 = vadd.f32 0.0, %v315
    %v317 = vpop.f32.mrf.mxu0
    %318 = vdwg.mxu0
    %319 = vmatpush.bf16.msra.mxu0 0
    %320 = vmatpush.bf16.msra.mxu0 0
    %321 = vmatpush.bf16.msra.mxu0 0
    %322 = vmatpush.bf16.msra.mxu0 0
    %323 = vmatpush.bf16.msra.mxu0 0
    %324 = vmatpush.bf16.msra.mxu0 0
    %325 = vmatpush.bf16.msra.mxu0 0
    %326 = vmatpush.bf16.msra.mxu0 %v298
    %327 = vmatmul.bf16.gmra.mxu0 %v304
    %v328 = vpop.f32.mrf.mxu0
    %v329 = vadd.f32 0.0, %v328
    %v330 = vpop.f32.mrf.mxu0
    %331 = vdwg.mxu0
    %332 = vmatpush.bf16.msra.mxu0 0
    %333 = vmatpush.bf16.msra.mxu0 0
    %334 = vmatpush.bf16.msra.mxu0 0
    %335 = vmatpush.bf16.msra.mxu0 0
    %336 = vmatpush.bf16.msra.mxu0 0
    %337 = vmatpush.bf16.msra.mxu0 0
    %338 = vmatpush.bf16.msra.mxu0 0
    %339 = vmatpush.bf16.msra.mxu0 %v299
    %340 = vmatmul.bf16.gmra.mxu0 %v304
    %v341 = vpop.f32.mrf.mxu0
    %v342 = vadd.f32 0.0, %v341
    %v343 = vpop.f32.mrf.mxu0
    %344 = vdwg.mxu0
    %345 = vmatpush.bf16.msra.mxu0 0
    %346 = vmatpush.bf16.msra.mxu0 0
    %347 = vmatpush.bf16.msra.mxu0 0
    %348 = vmatpush.bf16.msra.mxu0 0
    %349 = vmatpush.bf16.msra.mxu0 0
    %350 = vmatpush.bf16.msra.mxu0 0
    %351 = vmatpush.bf16.msra.mxu0 0
    %352 = vmatpush.bf16.msra.mxu0 %v300
    %353 = vmatmul.bf16.gmra.mxu0 %v304
    %v354 = vpop.f32.mrf.mxu0
    %v355 = vadd.f32 0.0, %v354
    %v356 = vpop.f32.mrf.mxu0
    %357 = vdwg.mxu0
    %v359 = vsel %vm276, %v260, 0
    %361 = vmatpush.bf16.msra.mxu0 0
    %362 = vmatpush.bf16.msra.mxu0 0
    %363 = vmatpush.bf16.msra.mxu0 0
    %364 = vmatpush.bf16.msra.mxu0 0
    %365 = vmatpush.bf16.msra.mxu0 0
    %366 = vmatpush.bf16.msra.mxu0 0
    %367 = vmatpush.bf16.msra.mxu0 0
    %368 = vmatpush.bf16.msra.mxu0 %v256
    %369 = vmatmul.bf16.gmra.mxu0 %v359
    %v370 = vpop.f32.mrf.mxu0
    %v371 = vadd.f32 %v316, %v370
    %v372 = vpop.f32.mrf.mxu0
    %373 = vdwg.mxu0
    %374 = vmatpush.bf16.msra.mxu0 0
    %375 = vmatpush.bf16.msra.mxu0 0
    %376 = vmatpush.bf16.msra.mxu0 0
    %377 = vmatpush.bf16.msra.mxu0 0
    %378 = vmatpush.bf16.msra.mxu0 0
    %379 = vmatpush.bf16.msra.mxu0 0
    %380 = vmatpush.bf16.msra.mxu0 0
    %381 = vmatpush.bf16.msra.mxu0 %v257
    %382 = vmatmul.bf16.gmra.mxu0 %v359
    %v383 = vpop.f32.mrf.mxu0
    %v384 = vadd.f32 %v329, %v383
    %v385 = vpop.f32.mrf.mxu0
    %386 = vdwg.mxu0
    %387 = vmatpush.bf16.msra.mxu0 0
    %388 = vmatpush.bf16.msra.mxu0 0
    %389 = vmatpush.bf16.msra.mxu0 0
    %390 = vmatpush.bf16.msra.mxu0 0
    %391 = vmatpush.bf16.msra.mxu0 0
    %392 = vmatpush.bf16.msra.mxu0 0
    %393 = vmatpush.bf16.msra.mxu0 0
    %394 = vmatpush.bf16.msra.mxu0 %v258
    %395 = vmatmul.bf16.gmra.mxu0 %v359
    %v396 = vpop.f32.mrf.mxu0
    %v397 = vadd.f32 %v342, %v396
    %v398 = vpop.f32.mrf.mxu0
    %399 = vdwg.mxu0
    %400 = vmatpush.bf16.msra.mxu0 0
    %401 = vmatpush.bf16.msra.mxu0 0
    %402 = vmatpush.bf16.msra.mxu0 0
    %403 = vmatpush.bf16.msra.mxu0 0
    %404 = vmatpush.bf16.msra.mxu0 0
    %405 = vmatpush.bf16.msra.mxu0 0
    %406 = vmatpush.bf16.msra.mxu0 0
    %407 = vmatpush.bf16.msra.mxu0 %v259
    %408 = vmatmul.bf16.gmra.mxu0 %v359
    %v409 = vpop.f32.mrf.mxu0
    %v410 = vadd.f32 %v355, %v409
    %v411 = vpop.f32.mrf.mxu0
    %412 = vdwg.mxu0
    %413 = vrot.lane.b32.xlu0 %v160, 1
    %v414 = vpop.permute.xlu0 %413
    %415 = vrot.lane.b32.xlu0 %v171, 1
    %v416 = vpop.permute.xlu0 %415
    %417 = vrot.lane.b32.xlu0 %v172, 1
    %v418 = vpop.permute.xlu0 %417
    %419 = vrot.lane.b32.xlu0 %v173, 1
    %v420 = vpop.permute.xlu0 %419
    %vm421 = vcmask 7168
    %v422 = vsel %vm421, %v416, %v418
    %v423 = vsel %vm421, %v418, %v420
    %v424 = vsel %vm421, %v420, %v414
    %vm428 = vcmask 7168
    %v431 = vsel %vm428, %v414, %v416
    %v433 = vunpack.c.l.bf16 %v431
    %v434 = vunpack.c.l.bf16 %v422
    %v435 = vunpack.c.l.bf16 %v423
    %v436 = vunpack.c.l.bf16 %v424
    %v437 = vunpack.c.h.bf16 %v431
    %v438 = vunpack.c.h.bf16 %v422
    %v439 = vunpack.c.h.bf16 %v423
    %v440 = vunpack.c.h.bf16 %v424
    %v441 = vmul.f32 %v433, %v244
    %v442 = vmul.f32 %v434, %v245
    %v443 = vmul.f32 %v435, %v246
    %v444 = vmul.f32 %v436, %v247
    %v445 = vmul.f32 %v437, %v244
    %v446 = vmul.f32 %v438, %v245
    %v447 = vmul.f32 %v439, %v246
    %v448 = vmul.f32 %v440, %v247
    %v449 = vpack.c.bf16 %v445, %v441
    %v450 = vpack.c.bf16 %v446, %v442
    %v451 = vpack.c.bf16 %v447, %v443
    %v452 = vpack.c.bf16 %v448, %v444
    %s453 = scalar_lea.vmem [#allocation2], 8
    %v454 = vld [vmem:[%s453] sm:$0xf]
    %v456 = vsel %vm276, %v454, 0
    %458 = vmatpush.bf16.msra.mxu0 0
    %459 = vmatpush.bf16.msra.mxu0 0
    %460 = vmatpush.bf16.msra.mxu0 0
    %461 = vmatpush.bf16.msra.mxu0 0
    %462 = vmatpush.bf16.msra.mxu0 0
    %463 = vmatpush.bf16.msra.mxu0 0
    %464 = vmatpush.bf16.msra.mxu0 0
    %465 = vmatpush.bf16.msra.mxu0 %v449
    %466 = vmatmul.bf16.gmra.mxu0 %v456
    %v467 = vpop.f32.mrf.mxu0
    %v468 = vadd.f32 0.0, %v467
    %v469 = vpop.f32.mrf.mxu0
    %470 = vdwg.mxu0
    %471 = vmatpush.bf16.msra.mxu0 0
    %472 = vmatpush.bf16.msra.mxu0 0
    %473 = vmatpush.bf16.msra.mxu0 0
    %474 = vmatpush.bf16.msra.mxu0 0
    %475 = vmatpush.bf16.msra.mxu0 0
    %476 = vmatpush.bf16.msra.mxu0 0
    %477 = vmatpush.bf16.msra.mxu0 0
    %478 = vmatpush.bf16.msra.mxu0 %v450
    %479 = vmatmul.bf16.gmra.mxu0 %v456
    %v480 = vpop.f32.mrf.mxu0
    %v481 = vadd.f32 0.0, %v480
    %v482 = vpop.f32.mrf.mxu0
    %483 = vdwg.mxu0
    %484 = vmatpush.bf16.msra.mxu0 0
    %485 = vmatpush.bf16.msra.mxu0 0
    %486 = vmatpush.bf16.msra.mxu0 0
    %487 = vmatpush.bf16.msra.mxu0 0
    %488 = vmatpush.bf16.msra.mxu0 0
    %489 = vmatpush.bf16.msra.mxu0 0
    %490 = vmatpush.bf16.msra.mxu0 0
    %491 = vmatpush.bf16.msra.mxu0 %v451
    %492 = vmatmul.bf16.gmra.mxu0 %v456
    %v493 = vpop.f32.mrf.mxu0
    %v494 = vadd.f32 0.0, %v493
    %v495 = vpop.f32.mrf.mxu0
    %496 = vdwg.mxu0
    %497 = vmatpush.bf16.msra.mxu0 0
    %498 = vmatpush.bf16.msra.mxu0 0
    %499 = vmatpush.bf16.msra.mxu0 0
    %500 = vmatpush.bf16.msra.mxu0 0
    %501 = vmatpush.bf16.msra.mxu0 0
    %502 = vmatpush.bf16.msra.mxu0 0
    %503 = vmatpush.bf16.msra.mxu0 0
    %504 = vmatpush.bf16.msra.mxu0 %v452
    %505 = vmatmul.bf16.gmra.mxu0 %v456
    %v506 = vpop.f32.mrf.mxu0
    %v507 = vadd.f32 0.0, %v506
    %v508 = vpop.f32.mrf.mxu0
    %509 = vdwg.mxu0
    %v510 = vadd.f32 %v371, %v468
    %v511 = vadd.f32 %v384, %v481
    %v512 = vadd.f32 %v397, %v494
    %v513 = vadd.f32 %v410, %v507
    %s514 = scalar_lea.vmem [#allocation2], 12
    %v515 = vld [vmem:[%s514] sm:$0xf]
    %v521 = vsel %vm276, %v515, 0
    %523 = vmatpush.bf16.msra.mxu0 0
    %524 = vmatpush.bf16.msra.mxu0 0
    %525 = vmatpush.bf16.msra.mxu0 0
    %526 = vmatpush.bf16.msra.mxu0 0
    %527 = vmatpush.bf16.msra.mxu0 0
    %528 = vmatpush.bf16.msra.mxu0 0
    %529 = vmatpush.bf16.msra.mxu0 0
    %530 = vmatpush.bf16.msra.mxu0 %v171
    %531 = vmatmul.bf16.gmra.mxu0 %v521
    %v532 = vpop.f32.mrf.mxu0
    %v533 = vadd.f32 0.0, %v532
    %v534 = vpop.f32.mrf.mxu0
    %535 = vdwg.mxu0
    %536 = vmatpush.bf16.msra.mxu0 0
    %537 = vmatpush.bf16.msra.mxu0 0
    %538 = vmatpush.bf16.msra.mxu0 0
    %539 = vmatpush.bf16.msra.mxu0 0
    %540 = vmatpush.bf16.msra.mxu0 0
    %541 = vmatpush.bf16.msra.mxu0 0
    %542 = vmatpush.bf16.msra.mxu0 0
    %543 = vmatpush.bf16.msra.mxu0 %v172
    %544 = vmatmul.bf16.gmra.mxu0 %v521
    %v545 = vpop.f32.mrf.mxu0
    %v546 = vadd.f32 0.0, %v545
    %v547 = vpop.f32.mrf.mxu0
    %548 = vdwg.mxu0
    %549 = vmatpush.bf16.msra.mxu0 0
    %550 = vmatpush.bf16.msra.mxu0 0
    %551 = vmatpush.bf16.msra.mxu0 0
    %552 = vmatpush.bf16.msra.mxu0 0
    %553 = vmatpush.bf16.msra.mxu0 0
    %554 = vmatpush.bf16.msra.mxu0 0
    %555 = vmatpush.bf16.msra.mxu0 0
    %556 = vmatpush.bf16.msra.mxu0 %v173
    %557 = vmatmul.bf16.gmra.mxu0 %v521
    %v558 = vpop.f32.mrf.mxu0
    %v559 = vadd.f32 0.0, %v558
    %v560 = vpop.f32.mrf.mxu0
    %561 = vdwg.mxu0
    %562 = vmatpush.bf16.msra.mxu0 0
    %563 = vmatpush.bf16.msra.mxu0 0
    %564 = vmatpush.bf16.msra.mxu0 0
    %565 = vmatpush.bf16.msra.mxu0 0
    %566 = vmatpush.bf16.msra.mxu0 0
    %567 = vmatpush.bf16.msra.mxu0 0
    %568 = vmatpush.bf16.msra.mxu0 0
    %569 = vmatpush.bf16.msra.mxu0 %v160
    %570 = vmatmul.bf16.gmra.mxu0 %v521
    %v571 = vpop.f32.mrf.mxu0
    %v572 = vadd.f32 0.0, %v571
    %v573 = vpop.f32.mrf.mxu0
    %574 = vdwg.mxu0
    %v575 = vadd.f32 %v510, %v533
    %v576 = vadd.f32 %v511, %v546
    %v577 = vadd.f32 %v512, %v559
    %v578 = vadd.f32 %v513, %v572
    %v579 = vpack.c.bf16 %v576, %v575
    %v580 = vpack.c.bf16 %v578, %v577
    %581 = vst [vmem:[%s5] sm:$0xff] %v579
    %582 = vst [vmem:[%s5 + $0x8] sm:$0xff] %v580
    %v583 = vadd.f32 %v575, %v576
    %v584 = vadd.f32 %v583, %v577
    %v585 = vadd.f32 %v584, %v578
    %586 = vadd.xlane.f32.xlu0 %v585
    %v587 = vpop.xlane.xlu0 %586
    %v588 = vmul.f32 %v575, %v575
    %v589 = vmul.f32 %v576, %v576
    %v590 = vmul.f32 %v577, %v577
    %v591 = vmul.f32 %v578, %v578
    %v592 = vadd.f32 %v588, %v589
    %v593 = vadd.f32 %v592, %v590
    %v594 = vadd.f32 %v593, %v591
    %595 = vadd.xlane.f32.xlu0 %v594
    %v596 = vpop.xlane.xlu0 %595
    %s597 = scalar_lea.vmem [#allocation2], 16
    %v598 = vld [vmem:[%s597] sm:$0xf]
    %599 = vrot.lane.b32.xlu0 %v160, 15
    %v600 = vpop.permute.xlu0 %599
    %601 = vrot.lane.b32.xlu0 %v171, 15
    %v602 = vpop.permute.xlu0 %601
    %603 = vrot.lane.b32.xlu0 %v172, 15
    %v604 = vpop.permute.xlu0 %603
    %605 = vrot.lane.b32.xlu0 %v173, 15
    %v606 = vpop.permute.xlu0 %605
    %vm607 = vcmask 121856
    %v608 = vsel %vm607, %v602, %v604
    %v609 = vsel %vm607, %v604, %v606
    %v610 = vsel %vm607, %v606, %v600
    %vm614 = vcmask 121856
    %v617 = vsel %vm614, %v600, %v602
    %v619 = vunpack.c.l.bf16 %v617
    %v620 = vunpack.c.l.bf16 %v608
    %v621 = vunpack.c.l.bf16 %v609
    %v622 = vunpack.c.l.bf16 %v610
    %v623 = vunpack.c.h.bf16 %v617
    %v624 = vunpack.c.h.bf16 %v608
    %v625 = vunpack.c.h.bf16 %v609
    %v626 = vunpack.c.h.bf16 %v610
    %v627 = vmul.f32 %v619, %v216
    %v628 = vmul.f32 %v620, %v217
    %v629 = vmul.f32 %v621, %v218
    %v630 = vmul.f32 %v622, %v219
    %v631 = vmul.f32 %v623, %v216
    %v632 = vmul.f32 %v624, %v217
    %v633 = vmul.f32 %v625, %v218
    %v634 = vmul.f32 %v626, %v219
    %v635 = vpack.c.bf16 %v628, %v627
    %v636 = vpack.c.bf16 %v630, %v629
    %v637 = vpack.c.bf16 %v632, %v631
    %v638 = vpack.c.bf16 %v634, %v633
    %v639 = vperm.slane %v117, 2
    %v640 = vperm.slane %v121, 2
    %v641 = vperm.slane %v125, 2
    %v642 = vperm.slane %v129, 2
    %v643 = vunpack.c.l.bf16 %v635
    %v644 = vunpack.c.h.bf16 %v635
    %v645 = vunpack.c.l.bf16 %v636
    %v646 = vunpack.c.h.bf16 %v636
    %v647 = vunpack.c.l.bf16 %v637
    %v648 = vunpack.c.h.bf16 %v637
    %v649 = vunpack.c.l.bf16 %v638
    %v650 = vunpack.c.h.bf16 %v638
    %v651 = vunpack.c.l.bf16 %v639
    %v652 = vunpack.c.l.bf16 %v640
    %v653 = vunpack.c.l.bf16 %v641
    %v654 = vunpack.c.l.bf16 %v642
    %v655 = vmul.f32 %v643, %v651
    %v656 = vmul.f32 %v644, %v652
    %v657 = vmul.f32 %v645, %v653
    %v658 = vmul.f32 %v646, %v654
    %v659 = vmul.f32 %v647, %v651
    %v660 = vmul.f32 %v648, %v652
    %v661 = vmul.f32 %v649, %v653
    %v662 = vmul.f32 %v650, %v654
    %v663 = vpack.c.bf16 %v659, %v655
    %v664 = vpack.c.bf16 %v660, %v656
    %v665 = vpack.c.bf16 %v661, %v657
    %v666 = vpack.c.bf16 %v662, %v658
    %s667 = scalar_lea.vmem [#allocation2], 20
    %v668 = vld [vmem:[%s667] sm:$0xf]
    %v670 = vsel %vm276, %v668, 0
    %672 = vmatpush.bf16.msra.mxu0 0
    %673 = vmatpush.bf16.msra.mxu0 0
    %674 = vmatpush.bf16.msra.mxu0 0
    %675 = vmatpush.bf16.msra.mxu0 0
    %676 = vmatpush.bf16.msra.mxu0 0
    %677 = vmatpush.bf16.msra.mxu0 0
    %678 = vmatpush.bf16.msra.mxu0 0
    %679 = vmatpush.bf16.msra.mxu0 %v663
    %680 = vmatmul.bf16.gmra.mxu0 %v670
    %v681 = vpop.f32.mrf.mxu0
    %v682 = vadd.f32 0.0, %v681
    %v683 = vpop.f32.mrf.mxu0
    %684 = vdwg.mxu0
    %685 = vmatpush.bf16.msra.mxu0 0
    %686 = vmatpush.bf16.msra.mxu0 0
    %687 = vmatpush.bf16.msra.mxu0 0
    %688 = vmatpush.bf16.msra.mxu0 0
    %689 = vmatpush.bf16.msra.mxu0 0
    %690 = vmatpush.bf16.msra.mxu0 0
    %691 = vmatpush.bf16.msra.mxu0 0
    %692 = vmatpush.bf16.msra.mxu0 %v664
    %693 = vmatmul.bf16.gmra.mxu0 %v670
    %v694 = vpop.f32.mrf.mxu0
    %v695 = vadd.f32 0.0, %v694
    %v696 = vpop.f32.mrf.mxu0
    %697 = vdwg.mxu0
    %698 = vmatpush.bf16.msra.mxu0 0
    %699 = vmatpush.bf16.msra.mxu0 0
    %700 = vmatpush.bf16.msra.mxu0 0
    %701 = vmatpush.bf16.msra.mxu0 0
    %702 = vmatpush.bf16.msra.mxu0 0
    %703 = vmatpush.bf16.msra.mxu0 0
    %704 = vmatpush.bf16.msra.mxu0 0
    %705 = vmatpush.bf16.msra.mxu0 %v665
    %706 = vmatmul.bf16.gmra.mxu0 %v670
    %v707 = vpop.f32.mrf.mxu0
    %v708 = vadd.f32 0.0, %v707
    %v709 = vpop.f32.mrf.mxu0
    %710 = vdwg.mxu0
    %711 = vmatpush.bf16.msra.mxu0 0
    %712 = vmatpush.bf16.msra.mxu0 0
    %713 = vmatpush.bf16.msra.mxu0 0
    %714 = vmatpush.bf16.msra.mxu0 0
    %715 = vmatpush.bf16.msra.mxu0 0
    %716 = vmatpush.bf16.msra.mxu0 0
    %717 = vmatpush.bf16.msra.mxu0 0
    %718 = vmatpush.bf16.msra.mxu0 %v666
    %719 = vmatmul.bf16.gmra.mxu0 %v670
    %v720 = vpop.f32.mrf.mxu0
    %v721 = vadd.f32 0.0, %v720
    %v722 = vpop.f32.mrf.mxu0
    %723 = vdwg.mxu0
    %v725 = vsel %vm276, %v598, 0
    %727 = vmatpush.bf16.msra.mxu0 0
    %728 = vmatpush.bf16.msra.mxu0 0
    %729 = vmatpush.bf16.msra.mxu0 0
    %730 = vmatpush.bf16.msra.mxu0 0
    %731 = vmatpush.bf16.msra.mxu0 0
    %732 = vmatpush.bf16.msra.mxu0 0
    %733 = vmatpush.bf16.msra.mxu0 0
    %734 = vmatpush.bf16.msra.mxu0 %v297
    %735 = vmatmul.bf16.gmra.mxu0 %v725
    %v736 = vpop.f32.mrf.mxu0
    %v737 = vadd.f32 %v682, %v736
    %v738 = vpop.f32.mrf.mxu0
    %739 = vdwg.mxu0
    %740 = vmatpush.bf16.msra.mxu0 0
    %741 = vmatpush.bf16.msra.mxu0 0
    %742 = vmatpush.bf16.msra.mxu0 0
    %743 = vmatpush.bf16.msra.mxu0 0
    %744 = vmatpush.bf16.msra.mxu0 0
    %745 = vmatpush.bf16.msra.mxu0 0
    %746 = vmatpush.bf16.msra.mxu0 0
    %747 = vmatpush.bf16.msra.mxu0 %v298
    %748 = vmatmul.bf16.gmra.mxu0 %v725
    %v749 = vpop.f32.mrf.mxu0
    %v750 = vadd.f32 %v695, %v749
    %v751 = vpop.f32.mrf.mxu0
    %752 = vdwg.mxu0
    %753 = vmatpush.bf16.msra.mxu0 0
    %754 = vmatpush.bf16.msra.mxu0 0
    %755 = vmatpush.bf16.msra.mxu0 0
    %756 = vmatpush.bf16.msra.mxu0 0
    %757 = vmatpush.bf16.msra.mxu0 0
    %758 = vmatpush.bf16.msra.mxu0 0
    %759 = vmatpush.bf16.msra.mxu0 0
    %760 = vmatpush.bf16.msra.mxu0 %v299
    %761 = vmatmul.bf16.gmra.mxu0 %v725
    %v762 = vpop.f32.mrf.mxu0
    %v763 = vadd.f32 %v708, %v762
    %v764 = vpop.f32.mrf.mxu0
    %765 = vdwg.mxu0
    %766 = vmatpush.bf16.msra.mxu0 0
    %767 = vmatpush.bf16.msra.mxu0 0
    %768 = vmatpush.bf16.msra.mxu0 0
    %769 = vmatpush.bf16.msra.mxu0 0
    %770 = vmatpush.bf16.msra.mxu0 0
    %771 = vmatpush.bf16.msra.mxu0 0
    %772 = vmatpush.bf16.msra.mxu0 0
    %773 = vmatpush.bf16.msra.mxu0 %v300
    %774 = vmatmul.bf16.gmra.mxu0 %v725
    %v775 = vpop.f32.mrf.mxu0
    %v776 = vadd.f32 %v721, %v775
    %v777 = vpop.f32.mrf.mxu0
    %778 = vdwg.mxu0
    %s779 = scalar_lea.vmem [#allocation2], 24
    %v780 = vld [vmem:[%s779] sm:$0xf]
    %v782 = vsel %vm276, %v780, 0
    %784 = vmatpush.bf16.msra.mxu0 0
    %785 = vmatpush.bf16.msra.mxu0 0
    %786 = vmatpush.bf16.msra.mxu0 0
    %787 = vmatpush.bf16.msra.mxu0 0
    %788 = vmatpush.bf16.msra.mxu0 0
    %789 = vmatpush.bf16.msra.mxu0 0
    %790 = vmatpush.bf16.msra.mxu0 0
    %791 = vmatpush.bf16.msra.mxu0 %v171
    %792 = vmatmul.bf16.gmra.mxu0 %v782
    %v793 = vpop.f32.mrf.mxu0
    %v794 = vadd.f32 0.0, %v793
    %v795 = vpop.f32.mrf.mxu0
    %796 = vdwg.mxu0
    %797 = vmatpush.bf16.msra.mxu0 0
    %798 = vmatpush.bf16.msra.mxu0 0
    %799 = vmatpush.bf16.msra.mxu0 0
    %800 = vmatpush.bf16.msra.mxu0 0
    %801 = vmatpush.bf16.msra.mxu0 0
    %802 = vmatpush.bf16.msra.mxu0 0
    %803 = vmatpush.bf16.msra.mxu0 0
    %804 = vmatpush.bf16.msra.mxu0 %v172
    %805 = vmatmul.bf16.gmra.mxu0 %v782
    %v806 = vpop.f32.mrf.mxu0
    %v807 = vadd.f32 0.0, %v806
    %v808 = vpop.f32.mrf.mxu0
    %809 = vdwg.mxu0
    %810 = vmatpush.bf16.msra.mxu0 0
    %811 = vmatpush.bf16.msra.mxu0 0
    %812 = vmatpush.bf16.msra.mxu0 0
    %813 = vmatpush.bf16.msra.mxu0 0
    %814 = vmatpush.bf16.msra.mxu0 0
    %815 = vmatpush.bf16.msra.mxu0 0
    %816 = vmatpush.bf16.msra.mxu0 0
    %817 = vmatpush.bf16.msra.mxu0 %v173
    %818 = vmatmul.bf16.gmra.mxu0 %v782
    %v819 = vpop.f32.mrf.mxu0
    %v820 = vadd.f32 0.0, %v819
    %v821 = vpop.f32.mrf.mxu0
    %822 = vdwg.mxu0
    %823 = vmatpush.bf16.msra.mxu0 0
    %824 = vmatpush.bf16.msra.mxu0 0
    %825 = vmatpush.bf16.msra.mxu0 0
    %826 = vmatpush.bf16.msra.mxu0 0
    %827 = vmatpush.bf16.msra.mxu0 0
    %828 = vmatpush.bf16.msra.mxu0 0
    %829 = vmatpush.bf16.msra.mxu0 0
    %830 = vmatpush.bf16.msra.mxu0 %v160
    %831 = vmatmul.bf16.gmra.mxu0 %v782
    %v832 = vpop.f32.mrf.mxu0
    %v833 = vadd.f32 0.0, %v832
    %v834 = vpop.f32.mrf.mxu0
    %835 = vdwg.mxu0
    %v836 = vadd.f32 %v737, %v794
    %v837 = vadd.f32 %v750, %v807
    %v838 = vadd.f32 %v763, %v820
    %v839 = vadd.f32 %v776, %v833
    %840 = vrot.lane.b32.xlu0 %v171, 127
    %v841 = vpop.permute.xlu0 %840
    %842 = vrot.lane.b32.xlu0 %v172, 127
    %v843 = vpop.permute.xlu0 %842
    %844 = vrot.lane.b32.xlu0 %v173, 127
    %v845 = vpop.permute.xlu0 %844
    %846 = vrot.lane.b32.xlu0 %v160, 127
    %v847 = vpop.permute.xlu0 %846
    %vm848 = vcmask 1039360
    %v849 = vsel %vm848, %v841, %v843
    %v850 = vsel %vm848, %v843, %v845
    %v851 = vsel %vm848, %v845, %v847
    %vm855 = vcmask 1039360
    %v858 = vsel %vm855, %v847, %v841
    %v860 = vunpack.c.l.bf16 %v849
    %v861 = vunpack.c.l.bf16 %v850
    %v862 = vunpack.c.l.bf16 %v851
    %v863 = vunpack.c.l.bf16 %v858
    %v864 = vunpack.c.h.bf16 %v849
    %v865 = vunpack.c.h.bf16 %v850
    %v866 = vunpack.c.h.bf16 %v851
    %v867 = vunpack.c.h.bf16 %v858
    %v868 = vmul.f32 %v860, %v651
    %v869 = vmul.f32 %v861, %v652
    %v870 = vmul.f32 %v862, %v653
    %v871 = vmul.f32 %v863, %v654
    %v872 = vmul.f32 %v864, %v651
    %v873 = vmul.f32 %v865, %v652
    %v874 = vmul.f32 %v866, %v653
    %v875 = vmul.f32 %v867, %v654
    %v876 = vpack.c.bf16 %v872, %v868
    %v877 = vpack.c.bf16 %v873, %v869
    %v878 = vpack.c.bf16 %v874, %v870
    %v879 = vpack.c.bf16 %v875, %v871
    %s880 = scalar_lea.vmem [#allocation2], 28
    %v881 = vld [vmem:[%s880] sm:$0xf]
    %v883 = vsel %vm276, %v881, 0
    %885 = vmatpush.bf16.msra.mxu0 0
    %886 = vmatpush.bf16.msra.mxu0 0
    %887 = vmatpush.bf16.msra.mxu0 0
    %888 = vmatpush.bf16.msra.mxu0 0
    %889 = vmatpush.bf16.msra.mxu0 0
    %890 = vmatpush.bf16.msra.mxu0 0
    %891 = vmatpush.bf16.msra.mxu0 0
    %892 = vmatpush.bf16.msra.mxu0 %v876
    %893 = vmatmul.bf16.gmra.mxu0 %v883
    %v894 = vpop.f32.mrf.mxu0
    %v895 = vadd.f32 0.0, %v894
    %v896 = vpop.f32.mrf.mxu0
    %897 = vdwg.mxu0
    %898 = vmatpush.bf16.msra.mxu0 0
    %899 = vmatpush.bf16.msra.mxu0 0
    %900 = vmatpush.bf16.msra.mxu0 0
    %901 = vmatpush.bf16.msra.mxu0 0
    %902 = vmatpush.bf16.msra.mxu0 0
    %903 = vmatpush.bf16.msra.mxu0 0
    %904 = vmatpush.bf16.msra.mxu0 0
    %905 = vmatpush.bf16.msra.mxu0 %v877
    %906 = vmatmul.bf16.gmra.mxu0 %v883
    %v907 = vpop.f32.mrf.mxu0
    %v908 = vadd.f32 0.0, %v907
    %v909 = vpop.f32.mrf.mxu0
    %910 = vdwg.mxu0
    %911 = vmatpush.bf16.msra.mxu0 0
    %912 = vmatpush.bf16.msra.mxu0 0
    %913 = vmatpush.bf16.msra.mxu0 0
    %914 = vmatpush.bf16.msra.mxu0 0
    %915 = vmatpush.bf16.msra.mxu0 0
    %916 = vmatpush.bf16.msra.mxu0 0
    %917 = vmatpush.bf16.msra.mxu0 0
    %918 = vmatpush.bf16.msra.mxu0 %v878
    %919 = vmatmul.bf16.gmra.mxu0 %v883
    %v920 = vpop.f32.mrf.mxu0
    %v921 = vadd.f32 0.0, %v920
    %v922 = vpop.f32.mrf.mxu0
    %923 = vdwg.mxu0
    %924 = vmatpush.bf16.msra.mxu0 0
    %925 = vmatpush.bf16.msra.mxu0 0
    %926 = vmatpush.bf16.msra.mxu0 0
    %927 = vmatpush.bf16.msra.mxu0 0
    %928 = vmatpush.bf16.msra.mxu0 0
    %929 = vmatpush.bf16.msra.mxu0 0
    %930 = vmatpush.bf16.msra.mxu0 0
    %931 = vmatpush.bf16.msra.mxu0 %v879
    %932 = vmatmul.bf16.gmra.mxu0 %v883
    %v933 = vpop.f32.mrf.mxu0
    %v934 = vadd.f32 0.0, %v933
    %v935 = vpop.f32.mrf.mxu0
    %936 = vdwg.mxu0
    %v937 = vadd.f32 %v836, %v895
    %v938 = vadd.f32 %v837, %v908
    %v939 = vadd.f32 %v838, %v921
    %v940 = vadd.f32 %v839, %v934
    %v941 = vpack.c.bf16 %v938, %v937
    %v942 = vpack.c.bf16 %v940, %v939
    %s943 = scalar_lea.vmem %s5, 16
    %944 = vst [vmem:[%s943] sm:$0xff] %v941
    %945 = vst [vmem:[%s943 + $0x8] sm:$0xff] %v942
    %v946 = vadd.f32 %v937, %v938
    %v947 = vadd.f32 %v946, %v939
    %v948 = vadd.f32 %v947, %v940
    %949 = vadd.xlane.f32.xlu0 %v948
    %v950 = vpop.xlane.xlu0 %949
    %v951 = vmul.f32 %v937, %v937
    %v952 = vmul.f32 %v938, %v938
    %v953 = vmul.f32 %v939, %v939
    %v954 = vmul.f32 %v940, %v940
    %v955 = vadd.f32 %v951, %v952
    %v956 = vadd.f32 %v955, %v953
    %v957 = vadd.f32 %v956, %v954
    %958 = vadd.xlane.f32.xlu0 %v957
    %v959 = vpop.xlane.xlu0 %958
    %v960 = vadd.f32 %v587, %v950
    %v961 = vadd.f32 %v596, %v959
    %s962 = scalar_lea.vmem [#allocation2], 32
    %v963 = vld [vmem:[%s962] sm:$0xf]
    %s964 = scalar_lea.vmem [#allocation2], 36
    %v965 = vld [vmem:[%s964] sm:$0xf]
    %v967 = vsel %vm276, %v965, 0
    %969 = vmatpush.bf16.msra.mxu0 0
    %970 = vmatpush.bf16.msra.mxu0 0
    %971 = vmatpush.bf16.msra.mxu0 0
    %972 = vmatpush.bf16.msra.mxu0 0
    %973 = vmatpush.bf16.msra.mxu0 0
    %974 = vmatpush.bf16.msra.mxu0 0
    %975 = vmatpush.bf16.msra.mxu0 0
    %976 = vmatpush.bf16.msra.mxu0 %v171
    %977 = vmatmul.bf16.gmra.mxu0 %v967
    %v978 = vpop.f32.mrf.mxu0
    %v979 = vadd.f32 0.0, %v978
    %v980 = vpop.f32.mrf.mxu0
    %981 = vdwg.mxu0
    %982 = vmatpush.bf16.msra.mxu0 0
    %983 = vmatpush.bf16.msra.mxu0 0
    %984 = vmatpush.bf16.msra.mxu0 0
    %985 = vmatpush.bf16.msra.mxu0 0
    %986 = vmatpush.bf16.msra.mxu0 0
    %987 = vmatpush.bf16.msra.mxu0 0
    %988 = vmatpush.bf16.msra.mxu0 0
    %989 = vmatpush.bf16.msra.mxu0 %v172
    %990 = vmatmul.bf16.gmra.mxu0 %v967
    %v991 = vpop.f32.mrf.mxu0
    %v992 = vadd.f32 0.0, %v991
    %v993 = vpop.f32.mrf.mxu0
    %994 = vdwg.mxu0
    %995 = vmatpush.bf16.msra.mxu0 0
    %996 = vmatpush.bf16.msra.mxu0 0
    %997 = vmatpush.bf16.msra.mxu0 0
    %998 = vmatpush.bf16.msra.mxu0 0
    %999 = vmatpush.bf16.msra.mxu0 0
    %1000 = vmatpush.bf16.msra.mxu0 0
    %1001 = vmatpush.bf16.msra.mxu0 0
    %1002 = vmatpush.bf16.msra.mxu0 %v173
    %1003 = vmatmul.bf16.gmra.mxu0 %v967
    %v1004 = vpop.f32.mrf.mxu0
    %v1005 = vadd.f32 0.0, %v1004
    %v1006 = vpop.f32.mrf.mxu0
    %1007 = vdwg.mxu0
    %1008 = vmatpush.bf16.msra.mxu0 0
    %1009 = vmatpush.bf16.msra.mxu0 0
    %1010 = vmatpush.bf16.msra.mxu0 0
    %1011 = vmatpush.bf16.msra.mxu0 0
    %1012 = vmatpush.bf16.msra.mxu0 0
    %1013 = vmatpush.bf16.msra.mxu0 0
    %1014 = vmatpush.bf16.msra.mxu0 0
    %1015 = vmatpush.bf16.msra.mxu0 %v160
    %1016 = vmatmul.bf16.gmra.mxu0 %v967
    %v1017 = vpop.f32.mrf.mxu0
    %v1018 = vadd.f32 0.0, %v1017
    %v1019 = vpop.f32.mrf.mxu0
    %1020 = vdwg.mxu0
    %v1022 = vsel %vm276, %v963, 0
    %1024 = vmatpush.bf16.msra.mxu0 0
    %1025 = vmatpush.bf16.msra.mxu0 0
    %1026 = vmatpush.bf16.msra.mxu0 0
    %1027 = vmatpush.bf16.msra.mxu0 0
    %1028 = vmatpush.bf16.msra.mxu0 0
    %1029 = vmatpush.bf16.msra.mxu0 0
    %1030 = vmatpush.bf16.msra.mxu0 0
    %1031 = vmatpush.bf16.msra.mxu0 %v449
    %1032 = vmatmul.bf16.gmra.mxu0 %v1022
    %v1033 = vpop.f32.mrf.mxu0
    %v1034 = vadd.f32 %v979, %v1033
    %v1035 = vpop.f32.mrf.mxu0
    %1036 = vdwg.mxu0
    %1037 = vmatpush.bf16.msra.mxu0 0
    %1038 = vmatpush.bf16.msra.mxu0 0
    %1039 = vmatpush.bf16.msra.mxu0 0
    %1040 = vmatpush.bf16.msra.mxu0 0
    %1041 = vmatpush.bf16.msra.mxu0 0
    %1042 = vmatpush.bf16.msra.mxu0 0
    %1043 = vmatpush.bf16.msra.mxu0 0
    %1044 = vmatpush.bf16.msra.mxu0 %v450
    %1045 = vmatmul.bf16.gmra.mxu0 %v1022
    %v1046 = vpop.f32.mrf.mxu0
    %v1047 = vadd.f32 %v992, %v1046
    %v1048 = vpop.f32.mrf.mxu0
    %1049 = vdwg.mxu0
    %1050 = vmatpush.bf16.msra.mxu0 0
    %1051 = vmatpush.bf16.msra.mxu0 0
    %1052 = vmatpush.bf16.msra.mxu0 0
    %1053 = vmatpush.bf16.msra.mxu0 0
    %1054 = vmatpush.bf16.msra.mxu0 0
    %1055 = vmatpush.bf16.msra.mxu0 0
    %1056 = vmatpush.bf16.msra.mxu0 0
    %1057 = vmatpush.bf16.msra.mxu0 %v451
    %1058 = vmatmul.bf16.gmra.mxu0 %v1022
    %v1059 = vpop.f32.mrf.mxu0
    %v1060 = vadd.f32 %v1005, %v1059
    %v1061 = vpop.f32.mrf.mxu0
    %1062 = vdwg.mxu0
    %1063 = vmatpush.bf16.msra.mxu0 0
    %1064 = vmatpush.bf16.msra.mxu0 0
    %1065 = vmatpush.bf16.msra.mxu0 0
    %1066 = vmatpush.bf16.msra.mxu0 0
    %1067 = vmatpush.bf16.msra.mxu0 0
    %1068 = vmatpush.bf16.msra.mxu0 0
    %1069 = vmatpush.bf16.msra.mxu0 0
    %1070 = vmatpush.bf16.msra.mxu0 %v452
    %1071 = vmatmul.bf16.gmra.mxu0 %v1022
    %v1072 = vpop.f32.mrf.mxu0
    %v1073 = vadd.f32 %v1018, %v1072
    %v1074 = vpop.f32.mrf.mxu0
    %1075 = vdwg.mxu0
    %1076 = vrot.lane.b32.xlu0 %v171, 113
    %v1077 = vpop.permute.xlu0 %1076
    %1078 = vrot.lane.b32.xlu0 %v172, 113
    %v1079 = vpop.permute.xlu0 %1078
    %1080 = vrot.lane.b32.xlu0 %v173, 113
    %v1081 = vpop.permute.xlu0 %1080
    %1082 = vrot.lane.b32.xlu0 %v160, 113
    %v1083 = vpop.permute.xlu0 %1082
    %vm1084 = vcmask 924672
    %v1085 = vsel %vm1084, %v1077, %v1079
    %v1086 = vsel %vm1084, %v1079, %v1081
    %v1087 = vsel %vm1084, %v1081, %v1083
    %vm1091 = vcmask 924672
    %v1094 = vsel %vm1091, %v1083, %v1077
    %v1096 = vperm.slane %v117, 1
    %v1097 = vperm.slane %v121, 1
    %v1098 = vperm.slane %v125, 1
    %v1099 = vperm.slane %v129, 1
    %v1100 = vunpack.c.l.bf16 %v1085
    %v1101 = vunpack.c.l.bf16 %v1086
    %v1102 = vunpack.c.l.bf16 %v1087
    %v1103 = vunpack.c.l.bf16 %v1094
    %v1104 = vunpack.c.h.bf16 %v1085
    %v1105 = vunpack.c.h.bf16 %v1086
    %v1106 = vunpack.c.h.bf16 %v1087
    %v1107 = vunpack.c.h.bf16 %v1094
    %v1108 = vunpack.c.l.bf16 %v1096
    %v1109 = vunpack.c.l.bf16 %v1097
    %v1110 = vunpack.c.l.bf16 %v1098
    %v1111 = vunpack.c.l.bf16 %v1099
    %v1112 = vmul.f32 %v1100, %v1108
    %v1113 = vmul.f32 %v1101, %v1109
    %v1114 = vmul.f32 %v1102, %v1110
    %v1115 = vmul.f32 %v1103, %v1111
    %v1116 = vmul.f32 %v1104, %v1108
    %v1117 = vmul.f32 %v1105, %v1109
    %v1118 = vmul.f32 %v1106, %v1110
    %v1119 = vmul.f32 %v1107, %v1111
    %v1120 = vpack.c.bf16 %v1113, %v1112
    %v1121 = vpack.c.bf16 %v1115, %v1114
    %v1122 = vpack.c.bf16 %v1117, %v1116
    %v1123 = vpack.c.bf16 %v1119, %v1118
    %v1124 = vunpack.c.l.bf16 %v1120
    %v1125 = vunpack.c.h.bf16 %v1120
    %v1126 = vunpack.c.l.bf16 %v1121
    %v1127 = vunpack.c.h.bf16 %v1121
    %v1128 = vunpack.c.l.bf16 %v1122
    %v1129 = vunpack.c.h.bf16 %v1122
    %v1130 = vunpack.c.l.bf16 %v1123
    %v1131 = vunpack.c.h.bf16 %v1123
    %v1132 = vmul.f32 %v1124, %v244
    %v1133 = vmul.f32 %v1125, %v245
    %v1134 = vmul.f32 %v1126, %v246
    %v1135 = vmul.f32 %v1127, %v247
    %v1136 = vmul.f32 %v1128, %v244
    %v1137 = vmul.f32 %v1129, %v245
    %v1138 = vmul.f32 %v1130, %v246
    %v1139 = vmul.f32 %v1131, %v247
    %v1140 = vpack.c.bf16 %v1136, %v1132
    %v1141 = vpack.c.bf16 %v1137, %v1133
    %v1142 = vpack.c.bf16 %v1138, %v1134
    %v1143 = vpack.c.bf16 %v1139, %v1135
    %s1144 = scalar_lea.vmem [#allocation2], 40
    %v1145 = vld [vmem:[%s1144] sm:$0xf]
    %v1147 = vsel %vm276, %v1145, 0
    %1149 = vmatpush.bf16.msra.mxu0 0
    %1150 = vmatpush.bf16.msra.mxu0 0
    %1151 = vmatpush.bf16.msra.mxu0 0
    %1152 = vmatpush.bf16.msra.mxu0 0
    %1153 = vmatpush.bf16.msra.mxu0 0
    %1154 = vmatpush.bf16.msra.mxu0 0
    %1155 = vmatpush.bf16.msra.mxu0 0
    %1156 = vmatpush.bf16.msra.mxu0 %v1140
    %1157 = vmatmul.bf16.gmra.mxu0 %v1147
    %v1158 = vpop.f32.mrf.mxu0
    %v1159 = vadd.f32 0.0, %v1158
    %v1160 = vpop.f32.mrf.mxu0
    %1161 = vdwg.mxu0
    %1162 = vmatpush.bf16.msra.mxu0 0
    %1163 = vmatpush.bf16.msra.mxu0 0
    %1164 = vmatpush.bf16.msra.mxu0 0
    %1165 = vmatpush.bf16.msra.mxu0 0
    %1166 = vmatpush.bf16.msra.mxu0 0
    %1167 = vmatpush.bf16.msra.mxu0 0
    %1168 = vmatpush.bf16.msra.mxu0 0
    %1169 = vmatpush.bf16.msra.mxu0 %v1141
    %1170 = vmatmul.bf16.gmra.mxu0 %v1147
    %v1171 = vpop.f32.mrf.mxu0
    %v1172 = vadd.f32 0.0, %v1171
    %v1173 = vpop.f32.mrf.mxu0
    %1174 = vdwg.mxu0
    %1175 = vmatpush.bf16.msra.mxu0 0
    %1176 = vmatpush.bf16.msra.mxu0 0
    %1177 = vmatpush.bf16.msra.mxu0 0
    %1178 = vmatpush.bf16.msra.mxu0 0
    %1179 = vmatpush.bf16.msra.mxu0 0
    %1180 = vmatpush.bf16.msra.mxu0 0
    %1181 = vmatpush.bf16.msra.mxu0 0
    %1182 = vmatpush.bf16.msra.mxu0 %v1142
    %1183 = vmatmul.bf16.gmra.mxu0 %v1147
    %v1184 = vpop.f32.mrf.mxu0
    %v1185 = vadd.f32 0.0, %v1184
    %v1186 = vpop.f32.mrf.mxu0
    %1187 = vdwg.mxu0
    %1188 = vmatpush.bf16.msra.mxu0 0
    %1189 = vmatpush.bf16.msra.mxu0 0
    %1190 = vmatpush.bf16.msra.mxu0 0
    %1191 = vmatpush.bf16.msra.mxu0 0
    %1192 = vmatpush.bf16.msra.mxu0 0
    %1193 = vmatpush.bf16.msra.mxu0 0
    %1194 = vmatpush.bf16.msra.mxu0 0
    %1195 = vmatpush.bf16.msra.mxu0 %v1143
    %1196 = vmatmul.bf16.gmra.mxu0 %v1147
    %v1197 = vpop.f32.mrf.mxu0
    %v1198 = vadd.f32 0.0, %v1197
    %v1199 = vpop.f32.mrf.mxu0
    %1200 = vdwg.mxu0
    %v1201 = vadd.f32 %v1034, %v1159
    %v1202 = vadd.f32 %v1047, %v1172
    %v1203 = vadd.f32 %v1060, %v1185
    %v1204 = vadd.f32 %v1073, %v1198
    %1205 = vrot.lane.b32.xlu0 %v171, 112
    %v1206 = vpop.permute.xlu0 %1205
    %1207 = vrot.lane.b32.xlu0 %v172, 112
    %v1208 = vpop.permute.xlu0 %1207
    %1209 = vrot.lane.b32.xlu0 %v173, 112
    %v1210 = vpop.permute.xlu0 %1209
    %1211 = vrot.lane.b32.xlu0 %v160, 112
    %v1212 = vpop.permute.xlu0 %1211
    %vm1213 = vcmask 916480
    %v1214 = vsel %vm1213, %v1206, %v1208
    %v1215 = vsel %vm1213, %v1208, %v1210
    %v1216 = vsel %vm1213, %v1210, %v1212
    %vm1220 = vcmask 916480
    %v1223 = vsel %vm1220, %v1212, %v1206
    %v1225 = vunpack.c.l.bf16 %v1214
    %v1226 = vunpack.c.l.bf16 %v1215
    %v1227 = vunpack.c.l.bf16 %v1216
    %v1228 = vunpack.c.l.bf16 %v1223
    %v1229 = vunpack.c.h.bf16 %v1214
    %v1230 = vunpack.c.h.bf16 %v1215
    %v1231 = vunpack.c.h.bf16 %v1216
    %v1232 = vunpack.c.h.bf16 %v1223
    %v1233 = vmul.f32 %v1225, %v1108
    %v1234 = vmul.f32 %v1226, %v1109
    %v1235 = vmul.f32 %v1227, %v1110
    %v1236 = vmul.f32 %v1228, %v1111
    %v1237 = vmul.f32 %v1229, %v1108
    %v1238 = vmul.f32 %v1230, %v1109
    %v1239 = vmul.f32 %v1231, %v1110
    %v1240 = vmul.f32 %v1232, %v1111
    %v1241 = vpack.c.bf16 %v1237, %v1233
    %v1242 = vpack.c.bf16 %v1238, %v1234
    %v1243 = vpack.c.bf16 %v1239, %v1235
    %v1244 = vpack.c.bf16 %v1240, %v1236
    %s1245 = scalar_lea.vmem [#allocation2], 44
    %v1246 = vld [vmem:[%s1245] sm:$0xf]
    %v1248 = vsel %vm276, %v1246, 0
    %1250 = vmatpush.bf16.msra.mxu0 0
    %1251 = vmatpush.bf16.msra.mxu0 0
    %1252 = vmatpush.bf16.msra.mxu0 0
    %1253 = vmatpush.bf16.msra.mxu0 0
    %1254 = vmatpush.bf16.msra.mxu0 0
    %1255 = vmatpush.bf16.msra.mxu0 0
    %1256 = vmatpush.bf16.msra.mxu0 0
    %1257 = vmatpush.bf16.msra.mxu0 %v1241
    %1258 = vmatmul.bf16.gmra.mxu0 %v1248
    %v1259 = vpop.f32.mrf.mxu0
    %v1260 = vadd.f32 0.0, %v1259
    %v1261 = vpop.f32.mrf.mxu0
    %1262 = vdwg.mxu0
    %1263 = vmatpush.bf16.msra.mxu0 0
    %1264 = vmatpush.bf16.msra.mxu0 0
    %1265 = vmatpush.bf16.msra.mxu0 0
    %1266 = vmatpush.bf16.msra.mxu0 0
    %1267 = vmatpush.bf16.msra.mxu0 0
    %1268 = vmatpush.bf16.msra.mxu0 0
    %1269 = vmatpush.bf16.msra.mxu0 0
    %1270 = vmatpush.bf16.msra.mxu0 %v1242
    %1271 = vmatmul.bf16.gmra.mxu0 %v1248
    %v1272 = vpop.f32.mrf.mxu0
    %v1273 = vadd.f32 0.0, %v1272
    %v1274 = vpop.f32.mrf.mxu0
    %1275 = vdwg.mxu0
    %1276 = vmatpush.bf16.msra.mxu0 0
    %1277 = vmatpush.bf16.msra.mxu0 0
    %1278 = vmatpush.bf16.msra.mxu0 0
    %1279 = vmatpush.bf16.msra.mxu0 0
    %1280 = vmatpush.bf16.msra.mxu0 0
    %1281 = vmatpush.bf16.msra.mxu0 0
    %1282 = vmatpush.bf16.msra.mxu0 0
    %1283 = vmatpush.bf16.msra.mxu0 %v1243
    %1284 = vmatmul.bf16.gmra.mxu0 %v1248
    %v1285 = vpop.f32.mrf.mxu0
    %v1286 = vadd.f32 0.0, %v1285
    %v1287 = vpop.f32.mrf.mxu0
    %1288 = vdwg.mxu0
    %1289 = vmatpush.bf16.msra.mxu0 0
    %1290 = vmatpush.bf16.msra.mxu0 0
    %1291 = vmatpush.bf16.msra.mxu0 0
    %1292 = vmatpush.bf16.msra.mxu0 0
    %1293 = vmatpush.bf16.msra.mxu0 0
    %1294 = vmatpush.bf16.msra.mxu0 0
    %1295 = vmatpush.bf16.msra.mxu0 0
    %1296 = vmatpush.bf16.msra.mxu0 %v1244
    %1297 = vmatmul.bf16.gmra.mxu0 %v1248
    %v1298 = vpop.f32.mrf.mxu0
    %v1299 = vadd.f32 0.0, %v1298
    %v1300 = vpop.f32.mrf.mxu0
    %1301 = vdwg.mxu0
    %v1302 = vadd.f32 %v1201, %v1260
    %v1303 = vadd.f32 %v1202, %v1273
    %v1304 = vadd.f32 %v1203, %v1286
    %v1305 = vadd.f32 %v1204, %v1299
    %v1306 = vpack.c.bf16 %v1303, %v1302
    %v1307 = vpack.c.bf16 %v1305, %v1304
    %s1308 = scalar_lea.vmem %s5, 32
    %1309 = vst [vmem:[%s1308] sm:$0xff] %v1306
    %1310 = vst [vmem:[%s1308 + $0x8] sm:$0xff] %v1307
    %v1311 = vadd.f32 %v1302, %v1303
    %v1312 = vadd.f32 %v1311, %v1304
    %v1313 = vadd.f32 %v1312, %v1305
    %1314 = vadd.xlane.f32.xlu0 %v1313
    %v1315 = vpop.xlane.xlu0 %1314
    %v1316 = vmul.f32 %v1302, %v1302
    %v1317 = vmul.f32 %v1303, %v1303
    %v1318 = vmul.f32 %v1304, %v1304
    %v1319 = vmul.f32 %v1305, %v1305
    %v1320 = vadd.f32 %v1316, %v1317
    %v1321 = vadd.f32 %v1320, %v1318
    %v1322 = vadd.f32 %v1321, %v1319
    %1323 = vadd.xlane.f32.xlu0 %v1322
    %v1324 = vpop.xlane.xlu0 %1323
    %v1325 = vadd.f32 %v960, %v1315
    %v1326 = vadd.f32 %v961, %v1324
    %s1327 = scalar_lea.vmem [#allocation2], 48
    %v1328 = vld [vmem:[%s1327] sm:$0xf]
    %s1329 = scalar_lea.vmem [#allocation2], 52
    %v1330 = vld [vmem:[%s1329] sm:$0xf]
    %v1332 = vsel %vm276, %v1330, 0
    %1334 = vmatpush.bf16.msra.mxu0 0
    %1335 = vmatpush.bf16.msra.mxu0 0
    %1336 = vmatpush.bf16.msra.mxu0 0
    %1337 = vmatpush.bf16.msra.mxu0 0
    %1338 = vmatpush.bf16.msra.mxu0 0
    %1339 = vmatpush.bf16.msra.mxu0 0
    %1340 = vmatpush.bf16.msra.mxu0 0
    %1341 = vmatpush.bf16.msra.mxu0 %v876
    %1342 = vmatmul.bf16.gmra.mxu0 %v1332
    %v1343 = vpop.f32.mrf.mxu0
    %v1344 = vadd.f32 0.0, %v1343
    %v1345 = vpop.f32.mrf.mxu0
    %1346 = vdwg.mxu0
    %1347 = vmatpush.bf16.msra.mxu0 0
    %1348 = vmatpush.bf16.msra.mxu0 0
    %1349 = vmatpush.bf16.msra.mxu0 0
    %1350 = vmatpush.bf16.msra.mxu0 0
    %1351 = vmatpush.bf16.msra.mxu0 0
    %1352 = vmatpush.bf16.msra.mxu0 0
    %1353 = vmatpush.bf16.msra.mxu0 0
    %1354 = vmatpush.bf16.msra.mxu0 %v877
    %1355 = vmatmul.bf16.gmra.mxu0 %v1332
    %v1356 = vpop.f32.mrf.mxu0
    %v1357 = vadd.f32 0.0, %v1356
    %v1358 = vpop.f32.mrf.mxu0
    %1359 = vdwg.mxu0
    %1360 = vmatpush.bf16.msra.mxu0 0
    %1361 = vmatpush.bf16.msra.mxu0 0
    %1362 = vmatpush.bf16.msra.mxu0 0
    %1363 = vmatpush.bf16.msra.mxu0 0
    %1364 = vmatpush.bf16.msra.mxu0 0
    %1365 = vmatpush.bf16.msra.mxu0 0
    %1366 = vmatpush.bf16.msra.mxu0 0
    %1367 = vmatpush.bf16.msra.mxu0 %v878
    %1368 = vmatmul.bf16.gmra.mxu0 %v1332
    %v1369 = vpop.f32.mrf.mxu0
    %v1370 = vadd.f32 0.0, %v1369
    %v1371 = vpop.f32.mrf.mxu0
    %1372 = vdwg.mxu0
    %1373 = vmatpush.bf16.msra.mxu0 0
    %1374 = vmatpush.bf16.msra.mxu0 0
    %1375 = vmatpush.bf16.msra.mxu0 0
    %1376 = vmatpush.bf16.msra.mxu0 0
    %1377 = vmatpush.bf16.msra.mxu0 0
    %1378 = vmatpush.bf16.msra.mxu0 0
    %1379 = vmatpush.bf16.msra.mxu0 0
    %1380 = vmatpush.bf16.msra.mxu0 %v879
    %1381 = vmatmul.bf16.gmra.mxu0 %v1332
    %v1382 = vpop.f32.mrf.mxu0
    %v1383 = vadd.f32 0.0, %v1382
    %v1384 = vpop.f32.mrf.mxu0
    %1385 = vdwg.mxu0
    %v1387 = vsel %vm276, %v1328, 0
    %1389 = vmatpush.bf16.msra.mxu0 0
    %1390 = vmatpush.bf16.msra.mxu0 0
    %1391 = vmatpush.bf16.msra.mxu0 0
    %1392 = vmatpush.bf16.msra.mxu0 0
    %1393 = vmatpush.bf16.msra.mxu0 0
    %1394 = vmatpush.bf16.msra.mxu0 0
    %1395 = vmatpush.bf16.msra.mxu0 0
    %1396 = vmatpush.bf16.msra.mxu0 %v171
    %1397 = vmatmul.bf16.gmra.mxu0 %v1387
    %v1398 = vpop.f32.mrf.mxu0
    %v1399 = vadd.f32 %v1344, %v1398
    %v1400 = vpop.f32.mrf.mxu0
    %1401 = vdwg.mxu0
    %1402 = vmatpush.bf16.msra.mxu0 0
    %1403 = vmatpush.bf16.msra.mxu0 0
    %1404 = vmatpush.bf16.msra.mxu0 0
    %1405 = vmatpush.bf16.msra.mxu0 0
    %1406 = vmatpush.bf16.msra.mxu0 0
    %1407 = vmatpush.bf16.msra.mxu0 0
    %1408 = vmatpush.bf16.msra.mxu0 0
    %1409 = vmatpush.bf16.msra.mxu0 %v172
    %1410 = vmatmul.bf16.gmra.mxu0 %v1387
    %v1411 = vpop.f32.mrf.mxu0
    %v1412 = vadd.f32 %v1357, %v1411
    %v1413 = vpop.f32.mrf.mxu0
    %1414 = vdwg.mxu0
    %1415 = vmatpush.bf16.msra.mxu0 0
    %1416 = vmatpush.bf16.msra.mxu0 0
    %1417 = vmatpush.bf16.msra.mxu0 0
    %1418 = vmatpush.bf16.msra.mxu0 0
    %1419 = vmatpush.bf16.msra.mxu0 0
    %1420 = vmatpush.bf16.msra.mxu0 0
    %1421 = vmatpush.bf16.msra.mxu0 0
    %1422 = vmatpush.bf16.msra.mxu0 %v173
    %1423 = vmatmul.bf16.gmra.mxu0 %v1387
    %v1424 = vpop.f32.mrf.mxu0
    %v1425 = vadd.f32 %v1370, %v1424
    %v1426 = vpop.f32.mrf.mxu0
    %1427 = vdwg.mxu0
    %1428 = vmatpush.bf16.msra.mxu0 0
    %1429 = vmatpush.bf16.msra.mxu0 0
    %1430 = vmatpush.bf16.msra.mxu0 0
    %1431 = vmatpush.bf16.msra.mxu0 0
    %1432 = vmatpush.bf16.msra.mxu0 0
    %1433 = vmatpush.bf16.msra.mxu0 0
    %1434 = vmatpush.bf16.msra.mxu0 0
    %1435 = vmatpush.bf16.msra.mxu0 %v160
    %1436 = vmatmul.bf16.gmra.mxu0 %v1387
    %v1437 = vpop.f32.mrf.mxu0
    %v1438 = vadd.f32 %v1383, %v1437
    %v1439 = vpop.f32.mrf.mxu0
    %1440 = vdwg.mxu0
    %s1441 = scalar_lea.vmem [#allocation2], 56
    %v1442 = vld [vmem:[%s1441] sm:$0xf]
    %v1444 = vsel %vm276, %v1442, 0
    %1446 = vmatpush.bf16.msra.mxu0 0
    %1447 = vmatpush.bf16.msra.mxu0 0
    %1448 = vmatpush.bf16.msra.mxu0 0
    %1449 = vmatpush.bf16.msra.mxu0 0
    %1450 = vmatpush.bf16.msra.mxu0 0
    %1451 = vmatpush.bf16.msra.mxu0 0
    %1452 = vmatpush.bf16.msra.mxu0 0
    %1453 = vmatpush.bf16.msra.mxu0 %v1241
    %1454 = vmatmul.bf16.gmra.mxu0 %v1444
    %v1455 = vpop.f32.mrf.mxu0
    %v1456 = vadd.f32 0.0, %v1455
    %v1457 = vpop.f32.mrf.mxu0
    %1458 = vdwg.mxu0
    %1459 = vmatpush.bf16.msra.mxu0 0
    %1460 = vmatpush.bf16.msra.mxu0 0
    %1461 = vmatpush.bf16.msra.mxu0 0
    %1462 = vmatpush.bf16.msra.mxu0 0
    %1463 = vmatpush.bf16.msra.mxu0 0
    %1464 = vmatpush.bf16.msra.mxu0 0
    %1465 = vmatpush.bf16.msra.mxu0 0
    %1466 = vmatpush.bf16.msra.mxu0 %v1242
    %1467 = vmatmul.bf16.gmra.mxu0 %v1444
    %v1468 = vpop.f32.mrf.mxu0
    %v1469 = vadd.f32 0.0, %v1468
    %v1470 = vpop.f32.mrf.mxu0
    %1471 = vdwg.mxu0
    %1472 = vmatpush.bf16.msra.mxu0 0
    %1473 = vmatpush.bf16.msra.mxu0 0
    %1474 = vmatpush.bf16.msra.mxu0 0
    %1475 = vmatpush.bf16.msra.mxu0 0
    %1476 = vmatpush.bf16.msra.mxu0 0
    %1477 = vmatpush.bf16.msra.mxu0 0
    %1478 = vmatpush.bf16.msra.mxu0 0
    %1479 = vmatpush.bf16.msra.mxu0 %v1243
    %1480 = vmatmul.bf16.gmra.mxu0 %v1444
    %v1481 = vpop.f32.mrf.mxu0
    %v1482 = vadd.f32 0.0, %v1481
    %v1483 = vpop.f32.mrf.mxu0
    %1484 = vdwg.mxu0
    %1485 = vmatpush.bf16.msra.mxu0 0
    %1486 = vmatpush.bf16.msra.mxu0 0
    %1487 = vmatpush.bf16.msra.mxu0 0
    %1488 = vmatpush.bf16.msra.mxu0 0
    %1489 = vmatpush.bf16.msra.mxu0 0
    %1490 = vmatpush.bf16.msra.mxu0 0
    %1491 = vmatpush.bf16.msra.mxu0 0
    %1492 = vmatpush.bf16.msra.mxu0 %v1244
    %1493 = vmatmul.bf16.gmra.mxu0 %v1444
    %v1494 = vpop.f32.mrf.mxu0
    %v1495 = vadd.f32 0.0, %v1494
    %v1496 = vpop.f32.mrf.mxu0
    %1497 = vdwg.mxu0
    %v1498 = vadd.f32 %v1399, %v1456
    %v1499 = vadd.f32 %v1412, %v1469
    %v1500 = vadd.f32 %v1425, %v1482
    %v1501 = vadd.f32 %v1438, %v1495
    %1502 = vrot.lane.b32.xlu0 %v171, 111
    %v1503 = vpop.permute.xlu0 %1502
    %1504 = vrot.lane.b32.xlu0 %v172, 111
    %v1505 = vpop.permute.xlu0 %1504
    %1506 = vrot.lane.b32.xlu0 %v173, 111
    %v1507 = vpop.permute.xlu0 %1506
    %1508 = vrot.lane.b32.xlu0 %v160, 111
    %v1509 = vpop.permute.xlu0 %1508
    %vm1510 = vcmask 908288
    %v1511 = vsel %vm1510, %v1503, %v1505
    %v1512 = vsel %vm1510, %v1505, %v1507
    %v1513 = vsel %vm1510, %v1507, %v1509
    %vm1517 = vcmask 908288
    %v1520 = vsel %vm1517, %v1509, %v1503
    %v1522 = vunpack.c.l.bf16 %v1511
    %v1523 = vunpack.c.l.bf16 %v1512
    %v1524 = vunpack.c.l.bf16 %v1513
    %v1525 = vunpack.c.l.bf16 %v1520
    %v1526 = vunpack.c.h.bf16 %v1511
    %v1527 = vunpack.c.h.bf16 %v1512
    %v1528 = vunpack.c.h.bf16 %v1513
    %v1529 = vunpack.c.h.bf16 %v1520
    %v1530 = vmul.f32 %v1522, %v1108
    %v1531 = vmul.f32 %v1523, %v1109
    %v1532 = vmul.f32 %v1524, %v1110
    %v1533 = vmul.f32 %v1525, %v1111
    %v1534 = vmul.f32 %v1526, %v1108
    %v1535 = vmul.f32 %v1527, %v1109
    %v1536 = vmul.f32 %v1528, %v1110
    %v1537 = vmul.f32 %v1529, %v1111
    %v1538 = vpack.c.bf16 %v1531, %v1530
    %v1539 = vpack.c.bf16 %v1533, %v1532
    %v1540 = vpack.c.bf16 %v1535, %v1534
    %v1541 = vpack.c.bf16 %v1537, %v1536
    %v1542 = vunpack.c.l.bf16 %v1538
    %v1543 = vunpack.c.h.bf16 %v1538
    %v1544 = vunpack.c.l.bf16 %v1539
    %v1545 = vunpack.c.h.bf16 %v1539
    %v1546 = vunpack.c.l.bf16 %v1540
    %v1547 = vunpack.c.h.bf16 %v1540
    %v1548 = vunpack.c.l.bf16 %v1541
    %v1549 = vunpack.c.h.bf16 %v1541
    %v1550 = vmul.f32 %v1542, %v651
    %v1551 = vmul.f32 %v1543, %v652
    %v1552 = vmul.f32 %v1544, %v653
    %v1553 = vmul.f32 %v1545, %v654
    %v1554 = vmul.f32 %v1546, %v651
    %v1555 = vmul.f32 %v1547, %v652
    %v1556 = vmul.f32 %v1548, %v653
    %v1557 = vmul.f32 %v1549, %v654
    %v1558 = vpack.c.bf16 %v1554, %v1550
    %v1559 = vpack.c.bf16 %v1555, %v1551
    %v1560 = vpack.c.bf16 %v1556, %v1552
    %v1561 = vpack.c.bf16 %v1557, %v1553
    %s1562 = scalar_lea.vmem [#allocation2], 60
    %v1563 = vld [vmem:[%s1562] sm:$0xf]
    %v1565 = vsel %vm276, %v1563, 0
    %1567 = vmatpush.bf16.msra.mxu0 0
    %1568 = vmatpush.bf16.msra.mxu0 0
    %1569 = vmatpush.bf16.msra.mxu0 0
    %1570 = vmatpush.bf16.msra.mxu0 0
    %1571 = vmatpush.bf16.msra.mxu0 0
    %1572 = vmatpush.bf16.msra.mxu0 0
    %1573 = vmatpush.bf16.msra.mxu0 0
    %1574 = vmatpush.bf16.msra.mxu0 %v1558
    %1575 = vmatmul.bf16.gmra.mxu0 %v1565
    %v1576 = vpop.f32.mrf.mxu0
    %v1577 = vadd.f32 0.0, %v1576
    %v1578 = vpop.f32.mrf.mxu0
    %1579 = vdwg.mxu0
    %1580 = vmatpush.bf16.msra.mxu0 0
    %1581 = vmatpush.bf16.msra.mxu0 0
    %1582 = vmatpush.bf16.msra.mxu0 0
    %1583 = vmatpush.bf16.msra.mxu0 0
    %1584 = vmatpush.bf16.msra.mxu0 0
    %1585 = vmatpush.bf16.msra.mxu0 0
    %1586 = vmatpush.bf16.msra.mxu0 0
    %1587 = vmatpush.bf16.msra.mxu0 %v1559
    %1588 = vmatmul.bf16.gmra.mxu0 %v1565
    %v1589 = vpop.f32.mrf.mxu0
    %v1590 = vadd.f32 0.0, %v1589
    %v1591 = vpop.f32.mrf.mxu0
    %1592 = vdwg.mxu0
    %1593 = vmatpush.bf16.msra.mxu0 0
    %1594 = vmatpush.bf16.msra.mxu0 0
    %1595 = vmatpush.bf16.msra.mxu0 0
    %1596 = vmatpush.bf16.msra.mxu0 0
    %1597 = vmatpush.bf16.msra.mxu0 0
    %1598 = vmatpush.bf16.msra.mxu0 0
    %1599 = vmatpush.bf16.msra.mxu0 0
    %1600 = vmatpush.bf16.msra.mxu0 %v1560
    %1601 = vmatmul.bf16.gmra.mxu0 %v1565
    %v1602 = vpop.f32.mrf.mxu0
    %v1603 = vadd.f32 0.0, %v1602
    %v1604 = vpop.f32.mrf.mxu0
    %1605 = vdwg.mxu0
    %1606 = vmatpush.bf16.msra.mxu0 0
    %1607 = vmatpush.bf16.msra.mxu0 0
    %1608 = vmatpush.bf16.msra.mxu0 0
    %1609 = vmatpush.bf16.msra.mxu0 0
    %1610 = vmatpush.bf16.msra.mxu0 0
    %1611 = vmatpush.bf16.msra.mxu0 0
    %1612 = vmatpush.bf16.msra.mxu0 0
    %1613 = vmatpush.bf16.msra.mxu0 %v1561
    %1614 = vmatmul.bf16.gmra.mxu0 %v1565
    %v1615 = vpop.f32.mrf.mxu0
    %v1616 = vadd.f32 0.0, %v1615
    %v1617 = vpop.f32.mrf.mxu0
    %1618 = vdwg.mxu0
    %v1619 = vadd.f32 %v1498, %v1577
    %v1620 = vadd.f32 %v1499, %v1590
    %v1621 = vadd.f32 %v1500, %v1603
    %v1622 = vadd.f32 %v1501, %v1616
    %v1623 = vpack.c.bf16 %v1620, %v1619
    %v1624 = vpack.c.bf16 %v1622, %v1621
    %s1625 = scalar_lea.vmem %s5, 48
    %1626 = vst [vmem:[%s1625] sm:$0xff] %v1623
    %1627 = vst [vmem:[%s1625 + $0x8] sm:$0xff] %v1624
    %v1628 = vadd.f32 %v1619, %v1620
    %v1629 = vadd.f32 %v1628, %v1621
    %v1630 = vadd.f32 %v1629, %v1622
    %1631 = vadd.xlane.f32.xlu0 %v1630
    %v1632 = vpop.xlane.xlu0 %1631
    %v1633 = vmul.f32 %v1619, %v1619
    %v1634 = vmul.f32 %v1620, %v1620
    %v1635 = vmul.f32 %v1621, %v1621
    %v1636 = vmul.f32 %v1622, %v1622
    %v1637 = vadd.f32 %v1633, %v1634
    %v1638 = vadd.f32 %v1637, %v1635
    %v1639 = vadd.f32 %v1638, %v1636
    %1640 = vadd.xlane.f32.xlu0 %v1639
    %v1641 = vpop.xlane.xlu0 %1640
    %v1642 = vadd.f32 %v1325, %v1632
    %v1643 = vadd.f32 %v1326, %v1641
    %1644 = vst.msk [vmem:[%s6] sm:$0xff] %vm428, %v1642
    %1645 = vst.msk [vmem:[%s7] sm:$0xff] %vm428, %v1643
    // Predicated region
    $region26: #{generator_forward.8} parent=1 // pred_check
      _
    $region27: #{generator_forward.8} parent=1 // pred_check_branch
      %1647 = sbr.rel (0) target = $region29
    $region28: #{generator_forward.8} parent=1 // pred_region
      _
    $region29: #{generator_forward.8} parent=1 // pred_fallthru
      _
    // Predicated region
    $region30: #{generator_forward.8} parent=1 // pred_check
      _
    $region31: #{generator_forward.8} parent=1 // pred_check_branch
      %1649 = sbr.rel (0) target = $region33
    $region32: #{generator_forward.8} parent=1 // pred_region
      _
    $region33: #{generator_forward.8} parent=1 // pred_fallthru
      _
    // Predicated region
    $region34: #{generator_forward.8} parent=1 // pred_check
      _
    $region35: #{generator_forward.8} parent=1 // pred_check_branch
      %1651 = sbr.rel (0) target = $region37
    $region36: #{generator_forward.8} parent=1 // pred_region
      _
    $region37: #{generator_forward.8} parent=1 // pred_fallthru
      _
    // Predicated region
    $region38: #{generator_forward.8} parent=1 // pred_check
      _
    $region39: #{generator_forward.8} parent=1 // pred_check_branch
      %1653 = sbr.rel (0) target = $region41
    $region40: #{generator_forward.8} parent=1 // pred_region
      _
    $region41: #{generator_forward.8} parent=1 // pred_fallthru
      _
    // Predicated region
    $region42: #{generator_forward.8} parent=1 // pred_check
      _
    $region43: #{generator_forward.8} parent=1 // pred_check_branch
      %1655 = sbr.rel (0) target = $region45
    $region44: #{generator_forward.8} parent=1 // pred_region
      _
    $region45: #{generator_forward.8} parent=1 // pred_fallthru
      _
    // Predicated region
    $region46: #{generator_forward.8} parent=1 // pred_check
      _
    $region47: #{generator_forward.8} parent=1 // pred_check_branch
      %1657 = sbr.rel (0) target = $region49
    $region48: #{generator_forward.8} parent=1 // pred_region
      _
    $region49: #{generator_forward.8} parent=1 // pred_fallthru
      _
    %1658 = vsyncpa [#allocation3], 1

// kernel: generator_forward.9
$region0: #{generator_forward.9}
  #allocation0 [shape = 'u32[]', space=smem, size = 0x4, offset = 0x4, fixed_abs, tag = 'smem constant byte address 0x4 - core index']
  #allocation1 [shape = 'u32[72,128]{1,0:T(1,128)}', space=vmem, size = 0x9000, scoped, tag = 'internal scratch']
  %s0 = inlined_call_operand.vmem [shape: bf16[8,2048], index: 0, kind: input, shape index: {}]
  %s1 = inlined_call_operand.vmem [shape: bf16[5,2048], index: 1, kind: input, shape index: {}]
  %s2 = inlined_call_operand.vmem [shape: bf16[4,4,3,8], index: 2, kind: input, shape index: {}]
  %s3 = inlined_call_operand.vmem [shape: f32[8,1], index: 3, kind: input, shape index: {}]
  %s4 = inlined_call_operand.vmem [shape: f32[8,1], index: 4, kind: input, shape index: {}]
  %s5 = inlined_call_operand.vmem [shape: f32[3,1], index: 5, kind: input, shape index: {}]
  %s6 = inlined_call_operand.vmem [shape: f32[4,3,2048], index: 6, kind: output, shape index: {}]
  %s7 = sld [smem:[#allocation0]]
  $region34: #{generator_forward.9} parent=0
    _
  %s9 = ssub.s32 1, %s7
  %s10 = scalar_select 0, %s9, %s7
  // Predicated region
  $region2: #{generator_forward.9} parent=0 // pred_check
    _
  $region3: #{generator_forward.9} parent=0 // pred_check_branch
    %12 = sbr.rel (0) target = $region5
  $region4: #{generator_forward.9} parent=0 // pred_region
    _
  $region5: #{generator_forward.9} parent=0 // pred_fallthru
    _
  // Predicated region
  $region6: #{generator_forward.9} parent=0 // pred_check
    _
  $region7: #{generator_forward.9} parent=0 // pred_check_branch
    %14 = sbr.rel (0) target = $region9
  $region8: #{generator_forward.9} parent=0 // pred_region
    _
  $region9: #{generator_forward.9} parent=0 // pred_fallthru
    _
  // Predicated region
  $region10: #{generator_forward.9} parent=0 // pred_check
    _
  $region11: #{generator_forward.9} parent=0 // pred_check_branch
    %16 = sbr.rel (0) target = $region13
  $region12: #{generator_forward.9} parent=0 // pred_region
    _
  $region13: #{generator_forward.9} parent=0 // pred_fallthru
    _
  // Predicated region
  $region14: #{generator_forward.9} parent=0 // pred_check
    _
  $region15: #{generator_forward.9} parent=0 // pred_check_branch
    %18 = sbr.rel (0) target = $region17
  $region16: #{generator_forward.9} parent=0 // pred_region
    _
  $region17: #{generator_forward.9} parent=0 // pred_fallthru
    _
  // Predicated region
  $region18: #{generator_forward.9} parent=0 // pred_check
    _
  $region19: #{generator_forward.9} parent=0 // pred_check_branch
    %20 = sbr.rel (0) target = $region21
  $region20: #{generator_forward.9} parent=0 // pred_region
    _
  $region21: #{generator_forward.9} parent=0 // pred_fallthru
    _
  // Predicated region
  $region22: #{generator_forward.9} parent=0 // pred_check
    _
  $region23: #{generator_forward.9} parent=0 // pred_check_branch
    %22 = sbr.rel (0) target = $region25
  $region24: #{generator_forward.9} parent=0 // pred_region
    _
  $region25: #{generator_forward.9} parent=0 // pred_fallthru
    _
  %v24 = vld [vmem:[%s1] sm:$0x77]
  %v25 = vld [vmem:[%s1 + $0x8] sm:$0x77]
  %v26 = vld [vmem:[%s1 + $0x10] sm:$0x77]
  %v27 = vld [vmem:[%s1 + $0x18] sm:$0x77]
  %v28 = vld [vmem:[%s1 + $0x20] sm:$0x77]
  %v29 = vld [vmem:[%s1 + $0x28] sm:$0x77]
  %v30 = vld [vmem:[%s1 + $0x30] sm:$0x77]
  %v31 = vld [vmem:[%s1 + $0x38] sm:$0x77]
  %v32 = vld [vmem:[%s0] sm:$0xff]
  %v33 = vld [vmem:[%s0 + $0x8] sm:$0xff]
  %v34 = vld [vmem:[%s0 + $0x10] sm:$0xff]
  %v35 = vld [vmem:[%s0 + $0x18] sm:$0xff]
  %v36 = vld [vmem:[%s0 + $0x20] sm:$0xff]
  %v37 = vld [vmem:[%s0 + $0x28] sm:$0xff]
  %v38 = vld [vmem:[%s0 + $0x30] sm:$0xff]
  %v39 = vld [vmem:[%s0 + $0x38] sm:$0xff]
  %v40 = vunpack.c.l.bf16 %v32
  %v41 = vunpack.c.h.bf16 %v32
  %v42 = vunpack.c.l.bf16 %v33
  %v43 = vunpack.c.h.bf16 %v33
  %v44 = vunpack.c.l.bf16 %v34
  %v45 = vunpack.c.h.bf16 %v34
  %v46 = vunpack.c.l.bf16 %v35
  %v47 = vunpack.c.h.bf16 %v35
  %v48 = vunpack.c.l.bf16 %v36
  %v49 = vunpack.c.h.bf16 %v36
  %v50 = vunpack.c.l.bf16 %v37
  %v51 = vunpack.c.h.bf16 %v37
  %v52 = vunpack.c.l.bf16 %v38
  %v53 = vunpack.c.h.bf16 %v38
  %v54 = vunpack.c.l.bf16 %v39
  %v55 = vunpack.c.h.bf16 %v39
  %v56 = vld [vmem:[%s3] sm:$0xff]
  %58 = vset.pattern.permute.xlu0 0
  %59 = vperm.xlu0 %58, %v56
  %v60 = vpop.permute.xlu0 %59
  %v62 = vmul.f32 %v40, %v60
  %v63 = vmul.f32 %v41, %v60
  %v64 = vmul.f32 %v42, %v60
  %v65 = vmul.f32 %v43, %v60
  %v66 = vmul.f32 %v44, %v60
  %v67 = vmul.f32 %v45, %v60
  %v68 = vmul.f32 %v46, %v60
  %v69 = vmul.f32 %v47, %v60
  %v70 = vmul.f32 %v48, %v60
  %v71 = vmul.f32 %v49, %v60
  %v72 = vmul.f32 %v50, %v60
  %v73 = vmul.f32 %v51, %v60
  %v74 = vmul.f32 %v52, %v60
  %v75 = vmul.f32 %v53, %v60
  %v76 = vmul.f32 %v54, %v60
  %v77 = vmul.f32 %v55, %v60
  %v78 = vld [vmem:[%s4] sm:$0xff]
  %80 = vset.pattern.permute.xlu0 0
  %81 = vperm.xlu0 %80, %v78
  %v82 = vpop.permute.xlu0 %81
  %v84 = vadd.f32 %v62, %v82
  %v85 = vadd.f32 %v63, %v82
  %v86 = vadd.f32 %v64, %v82
  %v87 = vadd.f32 %v65, %v82
  %v88 = vadd.f32 %v66, %v82
  %v89 = vadd.f32 %v67, %v82
  %v90 = vadd.f32 %v68, %v82
  %v91 = vadd.f32 %v69, %v82
  %v92 = vadd.f32 %v70, %v82
  %v93 = vadd.f32 %v71, %v82
  %v94 = vadd.f32 %v72, %v82
  %v95 = vadd.f32 %v73, %v82
  %v96 = vadd.f32 %v74, %v82
  %v97 = vadd.f32 %v75, %v82
  %v98 = vadd.f32 %v76, %v82
  %v99 = vadd.f32 %v77, %v82
  %v100 = vmax.f32 %v84, 0.0
  %v101 = vmax.f32 %v85, 0.0
  %v102 = vmax.f32 %v86, 0.0
  %v103 = vmax.f32 %v87, 0.0
  %v104 = vmax.f32 %v88, 0.0
  %v105 = vmax.f32 %v89, 0.0
  %v106 = vmax.f32 %v90, 0.0
  %v107 = vmax.f32 %v91, 0.0
  %v108 = vmax.f32 %v92, 0.0
  %v109 = vmax.f32 %v93, 0.0
  %v110 = vmax.f32 %v94, 0.0
  %v111 = vmax.f32 %v95, 0.0
  %v112 = vmax.f32 %v96, 0.0
  %v113 = vmax.f32 %v97, 0.0
  %v114 = vmax.f32 %v98, 0.0
  %v115 = vmax.f32 %v99, 0.0
  %v116 = vpack.c.bf16 %v101, %v100
  %v117 = vpack.c.bf16 %v103, %v102
  %v118 = vpack.c.bf16 %v105, %v104
  %v119 = vpack.c.bf16 %v107, %v106
  %v120 = vpack.c.bf16 %v109, %v108
  %v121 = vpack.c.bf16 %v111, %v110
  %v122 = vpack.c.bf16 %v113, %v112
  %v123 = vpack.c.bf16 %v115, %v114
  %v132 = vunpack.c.l.b16 %v24
  %v133 = vunpack.c.h.b16 %v24
  %v134 = vunpack.c.l.b16 %v25
  %v135 = vunpack.c.h.b16 %v25
  %v136 = vunpack.c.l.b16 %v26
  %v137 = vunpack.c.h.b16 %v26
  %v138 = vunpack.c.l.b16 %v27
  %v139 = vunpack.c.h.b16 %v27
  %v140 = vunpack.c.l.b16 %v28
  %v141 = vunpack.c.h.b16 %v28
  %v142 = vunpack.c.l.b16 %v29
  %v143 = vunpack.c.h.b16 %v29
  %v144 = vunpack.c.l.b16 %v30
  %v145 = vunpack.c.h.b16 %v30
  %v146 = vunpack.c.l.b16 %v31
  %v147 = vunpack.c.h.b16 %v31
  %v148 = vpack.c.b16 %v132, %v132
  %v149 = vpack.c.b16 %v133, %v133
  %v150 = vpack.c.b16 %v134, %v134
  %v151 = vpack.c.b16 %v135, %v135
  %v152 = vpack.c.b16 %v136, %v136
  %v153 = vpack.c.b16 %v137, %v137
  %v154 = vpack.c.b16 %v138, %v138
  %v155 = vpack.c.b16 %v139, %v139
  %v156 = vpack.c.b16 %v140, %v140
  %v157 = vpack.c.b16 %v141, %v141
  %v158 = vpack.c.b16 %v142, %v142
  %v159 = vpack.c.b16 %v143, %v143
  %v160 = vpack.c.b16 %v144, %v144
  %v161 = vpack.c.b16 %v145, %v145
  %v162 = vpack.c.b16 %v146, %v146
  %v163 = vpack.c.b16 %v147, %v147
  %v165 = vpack.i.b16 %v148, %v148
  %v167 = vperm.slane %v165, 0
  %v169 = vpack.i.b16 %v149, %v149
  %v171 = vperm.slane %v169, 0
  %v173 = vpack.i.b16 %v150, %v150
  %v175 = vperm.slane %v173, 0
  %v177 = vpack.i.b16 %v151, %v151
  %v179 = vperm.slane %v177, 0
  %v181 = vpack.i.b16 %v152, %v152
  %v183 = vperm.slane %v181, 0
  %v185 = vpack.i.b16 %v153, %v153
  %v187 = vperm.slane %v185, 0
  %v189 = vpack.i.b16 %v154, %v154
  %v191 = vperm.slane %v189, 0
  %v193 = vpack.i.b16 %v155, %v155
  %v195 = vperm.slane %v193, 0
  %v197 = vpack.i.b16 %v156, %v156
  %v199 = vperm.slane %v197, 0
  %v201 = vpack.i.b16 %v157, %v157
  %v203 = vperm.slane %v201, 0
  %v205 = vpack.i.b16 %v158, %v158
  %v207 = vperm.slane %v205, 0
  %v209 = vpack.i.b16 %v159, %v159
  %v211 = vperm.slane %v209, 0
  %v213 = vpack.i.b16 %v160, %v160
  %v215 = vperm.slane %v213, 0
  %v217 = vpack.i.b16 %v161, %v161
  %v219 = vperm.slane %v217, 0
  %v221 = vpack.i.b16 %v162, %v162
  %v223 = vperm.slane %v221, 0
  %v225 = vpack.i.b16 %v163, %v163
  %v227 = vperm.slane %v225, 0
  %v228 = vunpack.c.l.bf16 %v116
  %v229 = vunpack.c.h.bf16 %v116
  %v230 = vunpack.c.l.bf16 %v117
  %v231 = vunpack.c.h.bf16 %v117
  %v232 = vunpack.c.l.bf16 %v118
  %v233 = vunpack.c.h.bf16 %v118
  %v234 = vunpack.c.l.bf16 %v119
  %v235 = vunpack.c.h.bf16 %v119
  %v236 = vunpack.c.l.bf16 %v120
  %v237 = vunpack.c.h.bf16 %v120
  %v238 = vunpack.c.l.bf16 %v121
  %v239 = vunpack.c.h.bf16 %v121
  %v240 = vunpack.c.l.bf16 %v122
  %v241 = vunpack.c.h.bf16 %v122
  %v242 = vunpack.c.l.bf16 %v123
  %v243 = vunpack.c.h.bf16 %v123
  %v244 = vunpack.c.l.bf16 %v167
  %v245 = vunpack.c.l.bf16 %v171
  %v246 = vunpack.c.l.bf16 %v175
  %v247 = vunpack.c.l.bf16 %v179
  %v248 = vunpack.c.l.bf16 %v183
  %v249 = vunpack.c.l.bf16 %v187
  %v250 = vunpack.c.l.bf16 %v191
  %v251 = vunpack.c.l.bf16 %v195
  %v252 = vunpack.c.l.bf16 %v199
  %v253 = vunpack.c.l.bf16 %v203
  %v254 = vunpack.c.l.bf16 %v207
  %v255 = vunpack.c.l.bf16 %v211
  %v256 = vunpack.c.l.bf16 %v215
  %v257 = vunpack.c.l.bf16 %v219
  %v258 = vunpack.c.l.bf16 %v223
  %v259 = vunpack.c.l.bf16 %v227
  %v260 = vmul.f32 %v228, %v244
  %v261 = vmul.f32 %v229, %v245
  %v262 = vmul.f32 %v230, %v246
  %v263 = vmul.f32 %v231, %v247
  %v264 = vmul.f32 %v232, %v248
  %v265 = vmul.f32 %v233, %v249
  %v266 = vmul.f32 %v234, %v250
  %v267 = vmul.f32 %v235, %v251
  %v268 = vmul.f32 %v236, %v252
  %v269 = vmul.f32 %v237, %v253
  %v270 = vmul.f32 %v238, %v254
  %v271 = vmul.f32 %v239, %v255
  %v272 = vmul.f32 %v240, %v256
  %v273 = vmul.f32 %v241, %v257
  %v274 = vmul.f32 %v242, %v258
  %v275 = vmul.f32 %v243, %v259
  %v276 = vpack.c.bf16 %v261, %v260
  %v277 = vpack.c.bf16 %v263, %v262
  %v278 = vpack.c.bf16 %v265, %v264
  %v279 = vpack.c.bf16 %v267, %v266
  %v280 = vpack.c.bf16 %v269, %v268
  %v281 = vpack.c.bf16 %v271, %v270
  %v282 = vpack.c.bf16 %v273, %v272
  %v283 = vpack.c.bf16 %v275, %v274
  %v285 = vunpack.c.h.b16 %v283
  %v286 = vpack.c.b16 %v285, %v285
  %287 = vrot.lane.b32.xlu0 %v286, 33
  %v288 = vpop.permute.xlu0 %287
  %v296 = vunpack.c.l.b16 %v276
  %v297 = vunpack.c.h.b16 %v276
  %v298 = vunpack.c.l.b16 %v277
  %v299 = vunpack.c.h.b16 %v277
  %v300 = vunpack.c.l.b16 %v278
  %v301 = vunpack.c.h.b16 %v278
  %v302 = vunpack.c.l.b16 %v279
  %v303 = vunpack.c.h.b16 %v279
  %v304 = vunpack.c.l.b16 %v280
  %v305 = vunpack.c.h.b16 %v280
  %v306 = vunpack.c.l.b16 %v281
  %v307 = vunpack.c.h.b16 %v281
  %v308 = vunpack.c.l.b16 %v282
  %v309 = vunpack.c.h.b16 %v282
  %v310 = vunpack.c.l.b16 %v283
  %v311 = vpack.c.b16 %v296, %v296
  %v312 = vpack.c.b16 %v297, %v297
  %v313 = vpack.c.b16 %v298, %v298
  %v314 = vpack.c.b16 %v299, %v299
  %v315 = vpack.c.b16 %v300, %v300
  %v316 = vpack.c.b16 %v301, %v301
  %v317 = vpack.c.b16 %v302, %v302
  %v318 = vpack.c.b16 %v303, %v303
  %v319 = vpack.c.b16 %v304, %v304
  %v320 = vpack.c.b16 %v305, %v305
  %v321 = vpack.c.b16 %v306, %v306
  %v322 = vpack.c.b16 %v307, %v307
  %v323 = vpack.c.b16 %v308, %v308
  %v324 = vpack.c.b16 %v309, %v309
  %v325 = vpack.c.b16 %v310, %v310
  %326 = vrot.lane.b32.xlu0 %v311, 33
  %v327 = vpop.permute.xlu0 %326
  %328 = vrot.lane.b32.xlu0 %v312, 33
  %v329 = vpop.permute.xlu0 %328
  %330 = vrot.lane.b32.xlu0 %v313, 33
  %v331 = vpop.permute.xlu0 %330
  %332 = vrot.lane.b32.xlu0 %v314, 33
  %v333 = vpop.permute.xlu0 %332
  %334 = vrot.lane.b32.xlu0 %v315, 33
  %v335 = vpop.permute.xlu0 %334
  %336 = vrot.lane.b32.xlu0 %v316, 33
  %v337 = vpop.permute.xlu0 %336
  %338 = vrot.lane.b32.xlu0 %v317, 33
  %v339 = vpop.permute.xlu0 %338
  %340 = vrot.lane.b32.xlu0 %v318, 33
  %v341 = vpop.permute.xlu0 %340
  %342 = vrot.lane.b32.xlu0 %v319, 33
  %v343 = vpop.permute.xlu0 %342
  %344 = vrot.lane.b32.xlu0 %v320, 33
  %v345 = vpop.permute.xlu0 %344
  %346 = vrot.lane.b32.xlu0 %v321, 33
  %v347 = vpop.permute.xlu0 %346
  %348 = vrot.lane.b32.xlu0 %v322, 33
  %v349 = vpop.permute.xlu0 %348
  %350 = vrot.lane.b32.xlu0 %v323, 33
  %v351 = vpop.permute.xlu0 %350
  %352 = vrot.lane.b32.xlu0 %v324, 33
  %v353 = vpop.permute.xlu0 %352
  %354 = vrot.lane.b32.xlu0 %v325, 33
  %v355 = vpop.permute.xlu0 %354
  %vm356 = vcmask 269312
  %v357 = vsel %vm356, %v327, %v329
  %v358 = vsel %vm356, %v329, %v331
  %v359 = vsel %vm356, %v331, %v333
  %v360 = vsel %vm356, %v333, %v335
  %v361 = vsel %vm356, %v335, %v337
  %v362 = vsel %vm356, %v337, %v339
  %v363 = vsel %vm356, %v339, %v341
  %v364 = vsel %vm356, %v341, %v343
  %v365 = vsel %vm356, %v343, %v345
  %v366 = vsel %vm356, %v345, %v347
  %v367 = vsel %vm356, %v347, %v349
  %v368 = vsel %vm356, %v349, %v351
  %v369 = vsel %vm356, %v351, %v353
  %v370 = vsel %vm356, %v353, %v355
  %v371 = vsel %vm356, %v355, %v288
  %vm387 = vcmask 269312
  %v390 = vsel %vm387, %v288, %v327
  %v392 = vshrl.u32 %v148, 16
  %v393 = vpack.i.b16 %v392, %v392
  %v395 = vperm.slane %v393, 0
  %v396 = vshrl.u32 %v149, 16
  %v397 = vpack.i.b16 %v396, %v396
  %v399 = vperm.slane %v397, 0
  %v400 = vshrl.u32 %v150, 16
  %v401 = vpack.i.b16 %v400, %v400
  %v403 = vperm.slane %v401, 0
  %v404 = vshrl.u32 %v151, 16
  %v405 = vpack.i.b16 %v404, %v404
  %v407 = vperm.slane %v405, 0
  %v408 = vshrl.u32 %v152, 16
  %v409 = vpack.i.b16 %v408, %v408
  %v411 = vperm.slane %v409, 0
  %v412 = vshrl.u32 %v153, 16
  %v413 = vpack.i.b16 %v412, %v412
  %v415 = vperm.slane %v413, 0
  %v416 = vshrl.u32 %v154, 16
  %v417 = vpack.i.b16 %v416, %v416
  %v419 = vperm.slane %v417, 0
  %v420 = vshrl.u32 %v155, 16
  %v421 = vpack.i.b16 %v420, %v420
  %v423 = vperm.slane %v421, 0
  %v424 = vshrl.u32 %v156, 16
  %v425 = vpack.i.b16 %v424, %v424
  %v427 = vperm.slane %v425, 0
  %v428 = vshrl.u32 %v157, 16
  %v429 = vpack.i.b16 %v428, %v428
  %v431 = vperm.slane %v429, 0
  %v432 = vshrl.u32 %v158, 16
  %v433 = vpack.i.b16 %v432, %v432
  %v435 = vperm.slane %v433, 0
  %v436 = vshrl.u32 %v159, 16
  %v437 = vpack.i.b16 %v436, %v436
  %v439 = vperm.slane %v437, 0
  %v440 = vshrl.u32 %v160, 16
  %v441 = vpack.i.b16 %v440, %v440
  %v443 = vperm.slane %v441, 0
  %v444 = vshrl.u32 %v161, 16
  %v445 = vpack.i.b16 %v444, %v444
  %v447 = vperm.slane %v445, 0
  %v448 = vshrl.u32 %v162, 16
  %v449 = vpack.i.b16 %v448, %v448
  %v451 = vperm.slane %v449, 0
  %v452 = vshrl.u32 %v163, 16
  %v453 = vpack.i.b16 %v452, %v452
  %v455 = vperm.slane %v453, 0
  %v456 = vunpack.c.l.bf16 %v390
  %v457 = vunpack.c.l.bf16 %v357
  %v458 = vunpack.c.l.bf16 %v358
  %v459 = vunpack.c.l.bf16 %v359
  %v460 = vunpack.c.l.bf16 %v360
  %v461 = vunpack.c.l.bf16 %v361
  %v462 = vunpack.c.l.bf16 %v362
  %v463 = vunpack.c.l.bf16 %v363
  %v464 = vunpack.c.l.bf16 %v364
  %v465 = vunpack.c.l.bf16 %v365
  %v466 = vunpack.c.l.bf16 %v366
  %v467 = vunpack.c.l.bf16 %v367
  %v468 = vunpack.c.l.bf16 %v368
  %v469 = vunpack.c.l.bf16 %v369
  %v470 = vunpack.c.l.bf16 %v370
  %v471 = vunpack.c.l.bf16 %v371
  %v472 = vunpack.c.l.bf16 %v395
  %v473 = vunpack.c.l.bf16 %v399
  %v474 = vunpack.c.l.bf16 %v403
  %v475 = vunpack.c.l.bf16 %v407
  %v476 = vunpack.c.l.bf16 %v411
  %v477 = vunpack.c.l.bf16 %v415
  %v478 = vunpack.c.l.bf16 %v419
  %v479 = vunpack.c.l.bf16 %v423
  %v480 = vunpack.c.l.bf16 %v427
  %v481 = vunpack.c.l.bf16 %v431
  %v482 = vunpack.c.l.bf16 %v435
  %v483 = vunpack.c.l.bf16 %v439
  %v484 = vunpack.c.l.bf16 %v443
  %v485 = vunpack.c.l.bf16 %v447
  %v486 = vunpack.c.l.bf16 %v451
  %v487 = vunpack.c.l.bf16 %v455
  %v488 = vmul.f32 %v456, %v472
  %v489 = vmul.f32 %v457, %v473
  %v490 = vmul.f32 %v458, %v474
  %v491 = vmul.f32 %v459, %v475
  %v492 = vmul.f32 %v460, %v476
  %v493 = vmul.f32 %v461, %v477
  %v494 = vmul.f32 %v462, %v478
  %v495 = vmul.f32 %v463, %v479
  %v496 = vmul.f32 %v464, %v480
  %v497 = vmul.f32 %v465, %v481
  %v498 = vmul.f32 %v466, %v482
  %v499 = vmul.f32 %v467, %v483
  %v500 = vmul.f32 %v468, %v484
  %v501 = vmul.f32 %v469, %v485
  %v502 = vmul.f32 %v470, %v486
  %v503 = vmul.f32 %v471, %v487
  %v504 = vpack.c.bf16 %v489, %v488
  %v505 = vpack.c.bf16 %v491, %v490
  %v506 = vpack.c.bf16 %v493, %v492
  %v507 = vpack.c.bf16 %v495, %v494
  %v508 = vpack.c.bf16 %v497, %v496
  %v509 = vpack.c.bf16 %v499, %v498
  %v510 = vpack.c.bf16 %v501, %v500
  %v511 = vpack.c.bf16 %v503, %v502
  %v512 = vperm.slane %v393, 1
  %v513 = vperm.slane %v397, 1
  %v514 = vperm.slane %v401, 1
  %v515 = vperm.slane %v405, 1
  %v516 = vperm.slane %v409, 1
  %v517 = vperm.slane %v413, 1
  %v518 = vperm.slane %v417, 1
  %v519 = vperm.slane %v421, 1
  %v520 = vperm.slane %v425, 1
  %v521 = vperm.slane %v429, 1
  %v522 = vperm.slane %v433, 1
  %v523 = vperm.slane %v437, 1
  %v524 = vperm.slane %v441, 1
  %v525 = vperm.slane %v445, 1
  %v526 = vperm.slane %v449, 1
  %v527 = vperm.slane %v453, 1
  %v528 = vunpack.c.l.bf16 %v504
  %v529 = vunpack.c.h.bf16 %v504
  %v530 = vunpack.c.l.bf16 %v505
  %v531 = vunpack.c.h.bf16 %v505
  %v532 = vunpack.c.l.bf16 %v506
  %v533 = vunpack.c.h.bf16 %v506
  %v534 = vunpack.c.l.bf16 %v507
  %v535 = vunpack.c.h.bf16 %v507
  %v536 = vunpack.c.l.bf16 %v508
  %v537 = vunpack.c.h.bf16 %v508
  %v538 = vunpack.c.l.bf16 %v509
  %v539 = vunpack.c.h.bf16 %v509
  %v540 = vunpack.c.l.bf16 %v510
  %v541 = vunpack.c.h.bf16 %v510
  %v542 = vunpack.c.l.bf16 %v511
  %v543 = vunpack.c.h.bf16 %v511
  %v544 = vunpack.c.l.bf16 %v512
  %v545 = vunpack.c.l.bf16 %v513
  %v546 = vunpack.c.l.bf16 %v514
  %v547 = vunpack.c.l.bf16 %v515
  %v548 = vunpack.c.l.bf16 %v516
  %v549 = vunpack.c.l.bf16 %v517
  %v550 = vunpack.c.l.bf16 %v518
  %v551 = vunpack.c.l.bf16 %v519
  %v552 = vunpack.c.l.bf16 %v520
  %v553 = vunpack.c.l.bf16 %v521
  %v554 = vunpack.c.l.bf16 %v522
  %v555 = vunpack.c.l.bf16 %v523
  %v556 = vunpack.c.l.bf16 %v524
  %v557 = vunpack.c.l.bf16 %v525
  %v558 = vunpack.c.l.bf16 %v526
  %v559 = vunpack.c.l.bf16 %v527
  %v560 = vmul.f32 %v528, %v544
  %v561 = vmul.f32 %v529, %v545
  %v562 = vmul.f32 %v530, %v546
  %v563 = vmul.f32 %v531, %v547
  %v564 = vmul.f32 %v532, %v548
  %v565 = vmul.f32 %v533, %v549
  %v566 = vmul.f32 %v534, %v550
  %v567 = vmul.f32 %v535, %v551
  %v568 = vmul.f32 %v536, %v552
  %v569 = vmul.f32 %v537, %v553
  %v570 = vmul.f32 %v538, %v554
  %v571 = vmul.f32 %v539, %v555
  %v572 = vmul.f32 %v540, %v556
  %v573 = vmul.f32 %v541, %v557
  %v574 = vmul.f32 %v542, %v558
  %v575 = vmul.f32 %v543, %v559
  %v576 = vpack.c.bf16 %v560, %v560
  %v577 = vpack.c.bf16 %v561, %v561
  %v578 = vpack.c.bf16 %v562, %v562
  %v579 = vpack.c.bf16 %v563, %v563
  %v580 = vpack.c.bf16 %v564, %v564
  %v581 = vpack.c.bf16 %v565, %v565
  %v582 = vpack.c.bf16 %v566, %v566
  %v583 = vpack.c.bf16 %v567, %v567
  %v584 = vpack.c.bf16 %v568, %v568
  %v585 = vpack.c.bf16 %v569, %v569
  %v586 = vpack.c.bf16 %v570, %v570
  %v587 = vpack.c.bf16 %v571, %v571
  %v588 = vpack.c.bf16 %v572, %v572
  %v589 = vpack.c.bf16 %v573, %v573
  %v590 = vpack.c.bf16 %v574, %v574
  %v591 = vpack.c.bf16 %v575, %v575
  %v592 = vld [vmem:[%s2] sm:$0x3]
  %593 = vrot.lane.b32.xlu0 %v286, 32
  %v594 = vpop.permute.xlu0 %593
  %595 = vrot.lane.b32.xlu0 %v311, 32
  %v596 = vpop.permute.xlu0 %595
  %597 = vrot.lane.b32.xlu0 %v312, 32
  %v598 = vpop.permute.xlu0 %597
  %599 = vrot.lane.b32.xlu0 %v313, 32
  %v600 = vpop.permute.xlu0 %599
  %601 = vrot.lane.b32.xlu0 %v314, 32
  %v602 = vpop.permute.xlu0 %601
  %603 = vrot.lane.b32.xlu0 %v315, 32
  %v604 = vpop.permute.xlu0 %603
  %605 = vrot.lane.b32.xlu0 %v316, 32
  %v606 = vpop.permute.xlu0 %605
  %607 = vrot.lane.b32.xlu0 %v317, 32
  %v608 = vpop.permute.xlu0 %607
  %609 = vrot.lane.b32.xlu0 %v318, 32
  %v610 = vpop.permute.xlu0 %609
  %611 = vrot.lane.b32.xlu0 %v319, 32
  %v612 = vpop.permute.xlu0 %611
  %613 = vrot.lane.b32.xlu0 %v320, 32
  %v614 = vpop.permute.xlu0 %613
  %615 = vrot.lane.b32.xlu0 %v321, 32
  %v616 = vpop.permute.xlu0 %615
  %617 = vrot.lane.b32.xlu0 %v322, 32
  %v618 = vpop.permute.xlu0 %617
  %619 = vrot.lane.b32.xlu0 %v323, 32
  %v620 = vpop.permute.xlu0 %619
  %621 = vrot.lane.b32.xlu0 %v324, 32
  %v622 = vpop.permute.xlu0 %621
  %623 = vrot.lane.b32.xlu0 %v325, 32
  %v624 = vpop.permute.xlu0 %623
  %vm625 = vcmask 261120
  %v626 = vsel %vm625, %v596, %v598
  %v627 = vsel %vm625, %v598, %v600
  %v628 = vsel %vm625, %v600, %v602
  %v629 = vsel %vm625, %v602, %v604
  %v630 = vsel %vm625, %v604, %v606
  %v631 = vsel %vm625, %v606, %v608
  %v632 = vsel %vm625, %v608, %v610
  %v633 = vsel %vm625, %v610, %v612
  %v634 = vsel %vm625, %v612, %v614
  %v635 = vsel %vm625, %v614, %v616
  %v636 = vsel %vm625, %v616, %v618
  %v637 = vsel %vm625, %v618, %v620
  %v638 = vsel %vm625, %v620, %v622
  %v639 = vsel %vm625, %v622, %v624
  %v640 = vsel %vm625, %v624, %v594
  %vm656 = vcmask 261120
  %v659 = vsel %vm656, %v594, %v596
  %v661 = vunpack.c.l.bf16 %v659
  %v662 = vunpack.c.l.bf16 %v626
  %v663 = vunpack.c.l.bf16 %v627
  %v664 = vunpack.c.l.bf16 %v628
  %v665 = vunpack.c.l.bf16 %v629
  %v666 = vunpack.c.l.bf16 %v630
  %v667 = vunpack.c.l.bf16 %v631
  %v668 = vunpack.c.l.bf16 %v632
  %v669 = vunpack.c.l.bf16 %v633
  %v670 = vunpack.c.l.bf16 %v634
  %v671 = vunpack.c.l.bf16 %v635
  %v672 = vunpack.c.l.bf16 %v636
  %v673 = vunpack.c.l.bf16 %v637
  %v674 = vunpack.c.l.bf16 %v638
  %v675 = vunpack.c.l.bf16 %v639
  %v676 = vunpack.c.l.bf16 %v640
  %v677 = vmul.f32 %v661, %v472
  %v678 = vmul.f32 %v662, %v473
  %v679 = vmul.f32 %v663, %v474
  %v680 = vmul.f32 %v664, %v475
  %v681 = vmul.f32 %v665, %v476
  %v682 = vmul.f32 %v666, %v477
  %v683 = vmul.f32 %v667, %v478
  %v684 = vmul.f32 %v668, %v479
  %v685 = vmul.f32 %v669, %v480
  %v686 = vmul.f32 %v670, %v481
  %v687 = vmul.f32 %v671, %v482
  %v688 = vmul.f32 %v672, %v483
  %v689 = vmul.f32 %v673, %v484
  %v690 = vmul.f32 %v674, %v485
  %v691 = vmul.f32 %v675, %v486
  %v692 = vmul.f32 %v676, %v487
  %v693 = vpack.c.bf16 %v677, %v677
  %v694 = vpack.c.bf16 %v678, %v678
  %v695 = vpack.c.bf16 %v679, %v679
  %v696 = vpack.c.bf16 %v680, %v680
  %v697 = vpack.c.bf16 %v681, %v681
  %v698 = vpack.c.bf16 %v682, %v682
  %v699 = vpack.c.bf16 %v683, %v683
  %v700 = vpack.c.bf16 %v684, %v684
  %v701 = vpack.c.bf16 %v685, %v685
  %v702 = vpack.c.bf16 %v686, %v686
  %v703 = vpack.c.bf16 %v687, %v687
  %v704 = vpack.c.bf16 %v688, %v688
  %v705 = vpack.c.bf16 %v689, %v689
  %v706 = vpack.c.bf16 %v690, %v690
  %v707 = vpack.c.bf16 %v691, %v691
  %v708 = vpack.c.bf16 %v692, %v692
  %s709 = scalar_lea.vmem %s2, 2
  %v710 = vld [vmem:[%s709] sm:$0x3]
  %vm711 = vcmask 64512
  %v713 = vsel %vm711, %v710, 0
  %vm715 = vcmask 1043456
  %v717 = vsel %vm715, %v693, 0
  %v720 = vsel %vm715, %v694, 0
  %v723 = vsel %vm715, %v695, 0
  %v726 = vsel %vm715, %v696, 0
  %v729 = vsel %vm715, %v697, 0
  %v732 = vsel %vm715, %v698, 0
  %v735 = vsel %vm715, %v699, 0
  %v738 = vsel %vm715, %v700, 0
  %v741 = vsel %vm715, %v701, 0
  %v744 = vsel %vm715, %v702, 0
  %v747 = vsel %vm715, %v703, 0
  %v750 = vsel %vm715, %v704, 0
  %v753 = vsel %vm715, %v705, 0
  %v756 = vsel %vm715, %v706, 0
  %v759 = vsel %vm715, %v707, 0
  %v762 = vsel %vm715, %v708, 0
  %764 = vmatpush.bf16.msra.mxu0 0
  %765 = vmatpush.bf16.msra.mxu0 0
  %766 = vmatpush.bf16.msra.mxu0 0
  %767 = vmatpush.bf16.msra.mxu0 0
  %768 = vmatpush.bf16.msra.mxu0 0
  %769 = vmatpush.bf16.msra.mxu0 0
  %770 = vmatpush.bf16.msra.mxu0 0
  %771 = vmatpush.bf16.msra.mxu0 %v717
  %772 = vmatmul.bf16.gmra.mxu0 %v713
  %v773 = vpop.f32.mrf.mxu0
  %v774 = vadd.f32 0.0, %v773
  %v775 = vpop.f32.mrf.mxu0
  %776 = vdwg.mxu0
  %777 = vmatpush.bf16.msra.mxu0 0
  %778 = vmatpush.bf16.msra.mxu0 0
  %779 = vmatpush.bf16.msra.mxu0 0
  %780 = vmatpush.bf16.msra.mxu0 0
  %781 = vmatpush.bf16.msra.mxu0 0
  %782 = vmatpush.bf16.msra.mxu0 0
  %783 = vmatpush.bf16.msra.mxu0 0
  %784 = vmatpush.bf16.msra.mxu0 %v720
  %785 = vmatmul.bf16.gmra.mxu0 %v713
  %v786 = vpop.f32.mrf.mxu0
  %v787 = vadd.f32 0.0, %v786
  %v788 = vpop.f32.mrf.mxu0
  %789 = vdwg.mxu0
  %790 = vmatpush.bf16.msra.mxu0 0
  %791 = vmatpush.bf16.msra.mxu0 0
  %792 = vmatpush.bf16.msra.mxu0 0
  %793 = vmatpush.bf16.msra.mxu0 0
  %794 = vmatpush.bf16.msra.mxu0 0
  %795 = vmatpush.bf16.msra.mxu0 0
  %796 = vmatpush.bf16.msra.mxu0 0
  %797 = vmatpush.bf16.msra.mxu0 %v723
  %798 = vmatmul.bf16.gmra.mxu0 %v713
  %v799 = vpop.f32.mrf.mxu0
  %v800 = vadd.f32 0.0, %v799
  %v801 = vpop.f32.mrf.mxu0
  %802 = vdwg.mxu0
  %803 = vmatpush.bf16.msra.mxu0 0
  %804 = vmatpush.bf16.msra.mxu0 0
  %805 = vmatpush.bf16.msra.mxu0 0
  %806 = vmatpush.bf16.msra.mxu0 0
  %807 = vmatpush.bf16.msra.mxu0 0
  %808 = vmatpush.bf16.msra.mxu0 0
  %809 = vmatpush.bf16.msra.mxu0 0
  %810 = vmatpush.bf16.msra.mxu0 %v726
  %811 = vmatmul.bf16.gmra.mxu0 %v713
  %v812 = vpop.f32.mrf.mxu0
  %v813 = vadd.f32 0.0, %v812
  %v814 = vpop.f32.mrf.mxu0
  %815 = vdwg.mxu0
  %816 = vmatpush.bf16.msra.mxu0 0
  %817 = vmatpush.bf16.msra.mxu0 0
  %818 = vmatpush.bf16.msra.mxu0 0
  %819 = vmatpush.bf16.msra.mxu0 0
  %820 = vmatpush.bf16.msra.mxu0 0
  %821 = vmatpush.bf16.msra.mxu0 0
  %822 = vmatpush.bf16.msra.mxu0 0
  %823 = vmatpush.bf16.msra.mxu0 %v729
  %824 = vmatmul.bf16.gmra.mxu0 %v713
  %v825 = vpop.f32.mrf.mxu0
  %v826 = vadd.f32 0.0, %v825
  %v827 = vpop.f32.mrf.mxu0
  %828 = vdwg.mxu0
  %829 = vmatpush.bf16.msra.mxu0 0
  %830 = vmatpush.bf16.msra.mxu0 0
  %831 = vmatpush.bf16.msra.mxu0 0
  %832 = vmatpush.bf16.msra.mxu0 0
  %833 = vmatpush.bf16.msra.mxu0 0
  %834 = vmatpush.bf16.msra.mxu0 0
  %835 = vmatpush.bf16.msra.mxu0 0
  %836 = vmatpush.bf16.msra.mxu0 %v732
  %837 = vmatmul.bf16.gmra.mxu0 %v713
  %v838 = vpop.f32.mrf.mxu0
  %v839 = vadd.f32 0.0, %v838
  %v840 = vpop.f32.mrf.mxu0
  %841 = vdwg.mxu0
  %842 = vmatpush.bf16.msra.mxu0 0
  %843 = vmatpush.bf16.msra.mxu0 0
  %844 = vmatpush.bf16.msra.mxu0 0
  %845 = vmatpush.bf16.msra.mxu0 0
  %846 = vmatpush.bf16.msra.mxu0 0
  %847 = vmatpush.bf16.msra.mxu0 0
  %848 = vmatpush.bf16.msra.mxu0 0
  %849 = vmatpush.bf16.msra.mxu0 %v735
  %850 = vmatmul.bf16.gmra.mxu0 %v713
  %v851 = vpop.f32.mrf.mxu0
  %v852 = vadd.f32 0.0, %v851
  %v853 = vpop.f32.mrf.mxu0
  %854 = vdwg.mxu0
  %855 = vmatpush.bf16.msra.mxu0 0
  %856 = vmatpush.bf16.msra.mxu0 0
  %857 = vmatpush.bf16.msra.mxu0 0
  %858 = vmatpush.bf16.msra.mxu0 0
  %859 = vmatpush.bf16.msra.mxu0 0
  %860 = vmatpush.bf16.msra.mxu0 0
  %861 = vmatpush.bf16.msra.mxu0 0
  %862 = vmatpush.bf16.msra.mxu0 %v738
  %863 = vmatmul.bf16.gmra.mxu0 %v713
  %v864 = vpop.f32.mrf.mxu0
  %v865 = vadd.f32 0.0, %v864
  %v866 = vpop.f32.mrf.mxu0
  %867 = vdwg.mxu0
  %868 = vmatpush.bf16.msra.mxu0 0
  %869 = vmatpush.bf16.msra.mxu0 0
  %870 = vmatpush.bf16.msra.mxu0 0
  %871 = vmatpush.bf16.msra.mxu0 0
  %872 = vmatpush.bf16.msra.mxu0 0
  %873 = vmatpush.bf16.msra.mxu0 0
  %874 = vmatpush.bf16.msra.mxu0 0
  %875 = vmatpush.bf16.msra.mxu0 %v741
  %876 = vmatmul.bf16.gmra.mxu0 %v713
  %v877 = vpop.f32.mrf.mxu0
  %v878 = vadd.f32 0.0, %v877
  %v879 = vpop.f32.mrf.mxu0
  %880 = vdwg.mxu0
  %881 = vmatpush.bf16.msra.mxu0 0
  %882 = vmatpush.bf16.msra.mxu0 0
  %883 = vmatpush.bf16.msra.mxu0 0
  %884 = vmatpush.bf16.msra.mxu0 0
  %885 = vmatpush.bf16.msra.mxu0 0
  %886 = vmatpush.bf16.msra.mxu0 0
  %887 = vmatpush.bf16.msra.mxu0 0
  %888 = vmatpush.bf16.msra.mxu0 %v744
  %889 = vmatmul.bf16.gmra.mxu0 %v713
  %v890 = vpop.f32.mrf.mxu0
  %v891 = vadd.f32 0.0, %v890
  %v892 = vpop.f32.mrf.mxu0
  %893 = vdwg.mxu0
  %894 = vmatpush.bf16.msra.mxu0 0
  %895 = vmatpush.bf16.msra.mxu0 0
  %896 = vmatpush.bf16.msra.mxu0 0
  %897 = vmatpush.bf16.msra.mxu0 0
  %898 = vmatpush.bf16.msra.mxu0 0
  %899 = vmatpush.bf16.msra.mxu0 0
  %900 = vmatpush.bf16.msra.mxu0 0
  %901 = vmatpush.bf16.msra.mxu0 %v747
  %902 = vmatmul.bf16.gmra.mxu0 %v713
  %v903 = vpop.f32.mrf.mxu0
  %v904 = vadd.f32 0.0, %v903
  %v905 = vpop.f32.mrf.mxu0
  %906 = vdwg.mxu0
  %907 = vmatpush.bf16.msra.mxu0 0
  %908 = vmatpush.bf16.msra.mxu0 0
  %909 = vmatpush.bf16.msra.mxu0 0
  %910 = vmatpush.bf16.msra.mxu0 0
  %911 = vmatpush.bf16.msra.mxu0 0
  %912 = vmatpush.bf16.msra.mxu0 0
  %913 = vmatpush.bf16.msra.mxu0 0
  %914 = vmatpush.bf16.msra.mxu0 %v750
  %915 = vmatmul.bf16.gmra.mxu0 %v713
  %v916 = vpop.f32.mrf.mxu0
  %v917 = vadd.f32 0.0, %v916
  %v918 = vpop.f32.mrf.mxu0
  %919 = vdwg.mxu0
  %920 = vmatpush.bf16.msra.mxu0 0
  %921 = vmatpush.bf16.msra.mxu0 0
  %922 = vmatpush.bf16.msra.mxu0 0
  %923 = vmatpush.bf16.msra.mxu0 0
  %924 = vmatpush.bf16.msra.mxu0 0
  %925 = vmatpush.bf16.msra.mxu0 0
  %926 = vmatpush.bf16.msra.mxu0 0
  %927 = vmatpush.bf16.msra.mxu0 %v753
  %928 = vmatmul.bf16.gmra.mxu0 %v713
  %v929 = vpop.f32.mrf.mxu0
  %v930 = vadd.f32 0.0, %v929
  %v931 = vpop.f32.mrf.mxu0
  %932 = vdwg.mxu0
  %933 = vmatpush.bf16.msra.mxu0 0
  %934 = vmatpush.bf16.msra.mxu0 0
  %935 = vmatpush.bf16.msra.mxu0 0
  %936 = vmatpush.bf16.msra.mxu0 0
  %937 = vmatpush.bf16.msra.mxu0 0
  %938 = vmatpush.bf16.msra.mxu0 0
  %939 = vmatpush.bf16.msra.mxu0 0
  %940 = vmatpush.bf16.msra.mxu0 %v756
  %941 = vmatmul.bf16.gmra.mxu0 %v713
  %v942 = vpop.f32.mrf.mxu0
  %v943 = vadd.f32 0.0, %v942
  %v944 = vpop.f32.mrf.mxu0
  %945 = vdwg.mxu0
  %946 = vmatpush.bf16.msra.mxu0 0
  %947 = vmatpush.bf16.msra.mxu0 0
  %948 = vmatpush.bf16.msra.mxu0 0
  %949 = vmatpush.bf16.msra.mxu0 0
  %950 = vmatpush.bf16.msra.mxu0 0
  %951 = vmatpush.bf16.msra.mxu0 0
  %952 = vmatpush.bf16.msra.mxu0 0
  %953 = vmatpush.bf16.msra.mxu0 %v759
  %954 = vmatmul.bf16.gmra.mxu0 %v713
  %v955 = vpop.f32.mrf.mxu0
  %v956 = vadd.f32 0.0, %v955
  %v957 = vpop.f32.mrf.mxu0
  %958 = vdwg.mxu0
  %959 = vmatpush.bf16.msra.mxu0 0
  %960 = vmatpush.bf16.msra.mxu0 0
  %961 = vmatpush.bf16.msra.mxu0 0
  %962 = vmatpush.bf16.msra.mxu0 0
  %963 = vmatpush.bf16.msra.mxu0 0
  %964 = vmatpush.bf16.msra.mxu0 0
  %965 = vmatpush.bf16.msra.mxu0 0
  %966 = vmatpush.bf16.msra.mxu0 %v762
  %967 = vmatmul.bf16.gmra.mxu0 %v713
  %v968 = vpop.f32.mrf.mxu0
  %v969 = vadd.f32 0.0, %v968
  %v970 = vpop.f32.mrf.mxu0
  %971 = vdwg.mxu0
  %v973 = vsel %vm711, %v592, 0
  %v976 = vsel %vm715, %v576, 0
  %v979 = vsel %vm715, %v577, 0
  %v982 = vsel %vm715, %v578, 0
  %v985 = vsel %vm715, %v579, 0
  %v988 = vsel %vm715, %v580, 0
  %v991 = vsel %vm715, %v581, 0
  %v994 = vsel %vm715, %v582, 0
  %v997 = vsel %vm715, %v583, 0
  %v1000 = vsel %vm715, %v584, 0
  %v1003 = vsel %vm715, %v585, 0
  %v1006 = vsel %vm715, %v586, 0
  %v1009 = vsel %vm715, %v587, 0
  %v1012 = vsel %vm715, %v588, 0
  %v1015 = vsel %vm715, %v589, 0
  %v1018 = vsel %vm715, %v590, 0
  %v1021 = vsel %vm715, %v591, 0
  %1023 = vmatpush.bf16.msra.mxu0 0
  %1024 = vmatpush.bf16.msra.mxu0 0
  %1025 = vmatpush.bf16.msra.mxu0 0
  %1026 = vmatpush.bf16.msra.mxu0 0
  %1027 = vmatpush.bf16.msra.mxu0 0
  %1028 = vmatpush.bf16.msra.mxu0 0
  %1029 = vmatpush.bf16.msra.mxu0 0
  %1030 = vmatpush.bf16.msra.mxu0 %v976
  %1031 = vmatmul.bf16.gmra.mxu0 %v973
  %v1032 = vpop.f32.mrf.mxu0
  %v1033 = vadd.f32 %v774, %v1032
  %v1034 = vpop.f32.mrf.mxu0
  %1035 = vdwg.mxu0
  %1036 = vmatpush.bf16.msra.mxu0 0
  %1037 = vmatpush.bf16.msra.mxu0 0
  %1038 = vmatpush.bf16.msra.mxu0 0
  %1039 = vmatpush.bf16.msra.mxu0 0
  %1040 = vmatpush.bf16.msra.mxu0 0
  %1041 = vmatpush.bf16.msra.mxu0 0
  %1042 = vmatpush.bf16.msra.mxu0 0
  %1043 = vmatpush.bf16.msra.mxu0 %v979
  %1044 = vmatmul.bf16.gmra.mxu0 %v973
  %v1045 = vpop.f32.mrf.mxu0
  %v1046 = vadd.f32 %v787, %v1045
  %v1047 = vpop.f32.mrf.mxu0
  %1048 = vdwg.mxu0
  %1049 = vmatpush.bf16.msra.mxu0 0
  %1050 = vmatpush.bf16.msra.mxu0 0
  %1051 = vmatpush.bf16.msra.mxu0 0
  %1052 = vmatpush.bf16.msra.mxu0 0
  %1053 = vmatpush.bf16.msra.mxu0 0
  %1054 = vmatpush.bf16.msra.mxu0 0
  %1055 = vmatpush.bf16.msra.mxu0 0
  %1056 = vmatpush.bf16.msra.mxu0 %v982
  %1057 = vmatmul.bf16.gmra.mxu0 %v973
  %v1058 = vpop.f32.mrf.mxu0
  %v1059 = vadd.f32 %v800, %v1058
  %v1060 = vpop.f32.mrf.mxu0
  %1061 = vdwg.mxu0
  %1062 = vmatpush.bf16.msra.mxu0 0
  %1063 = vmatpush.bf16.msra.mxu0 0
  %1064 = vmatpush.bf16.msra.mxu0 0
  %1065 = vmatpush.bf16.msra.mxu0 0
  %1066 = vmatpush.bf16.msra.mxu0 0
  %1067 = vmatpush.bf16.msra.mxu0 0
  %1068 = vmatpush.bf16.msra.mxu0 0
  %1069 = vmatpush.bf16.msra.mxu0 %v985
  %1070 = vmatmul.bf16.gmra.mxu0 %v973
  %v1071 = vpop.f32.mrf.mxu0
  %v1072 = vadd.f32 %v813, %v1071
  %v1073 = vpop.f32.mrf.mxu0
  %1074 = vdwg.mxu0
  %1075 = vmatpush.bf16.msra.mxu0 0
  %1076 = vmatpush.bf16.msra.mxu0 0
  %1077 = vmatpush.bf16.msra.mxu0 0
  %1078 = vmatpush.bf16.msra.mxu0 0
  %1079 = vmatpush.bf16.msra.mxu0 0
  %1080 = vmatpush.bf16.msra.mxu0 0
  %1081 = vmatpush.bf16.msra.mxu0 0
  %1082 = vmatpush.bf16.msra.mxu0 %v988
  %1083 = vmatmul.bf16.gmra.mxu0 %v973
  %v1084 = vpop.f32.mrf.mxu0
  %v1085 = vadd.f32 %v826, %v1084
  %v1086 = vpop.f32.mrf.mxu0
  %1087 = vdwg.mxu0
  %1088 = vmatpush.bf16.msra.mxu0 0
  %1089 = vmatpush.bf16.msra.mxu0 0
  %1090 = vmatpush.bf16.msra.mxu0 0
  %1091 = vmatpush.bf16.msra.mxu0 0
  %1092 = vmatpush.bf16.msra.mxu0 0
  %1093 = vmatpush.bf16.msra.mxu0 0
  %1094 = vmatpush.bf16.msra.mxu0 0
  %1095 = vmatpush.bf16.msra.mxu0 %v991
  %1096 = vmatmul.bf16.gmra.mxu0 %v973
  %v1097 = vpop.f32.mrf.mxu0
  %v1098 = vadd.f32 %v839, %v1097
  %v1099 = vpop.f32.mrf.mxu0
  %1100 = vdwg.mxu0
  %1101 = vmatpush.bf16.msra.mxu0 0
  %1102 = vmatpush.bf16.msra.mxu0 0
  %1103 = vmatpush.bf16.msra.mxu0 0
  %1104 = vmatpush.bf16.msra.mxu0 0
  %1105 = vmatpush.bf16.msra.mxu0 0
  %1106 = vmatpush.bf16.msra.mxu0 0
  %1107 = vmatpush.bf16.msra.mxu0 0
  %1108 = vmatpush.bf16.msra.mxu0 %v994
  %1109 = vmatmul.bf16.gmra.mxu0 %v973
  %v1110 = vpop.f32.mrf.mxu0
  %v1111 = vadd.f32 %v852, %v1110
  %v1112 = vpop.f32.mrf.mxu0
  %1113 = vdwg.mxu0
  %1114 = vmatpush.bf16.msra.mxu0 0
  %1115 = vmatpush.bf16.msra.mxu0 0
  %1116 = vmatpush.bf16.msra.mxu0 0
  %1117 = vmatpush.bf16.msra.mxu0 0
  %1118 = vmatpush.bf16.msra.mxu0 0
  %1119 = vmatpush.bf16.msra.mxu0 0
  %1120 = vmatpush.bf16.msra.mxu0 0
  %1121 = vmatpush.bf16.msra.mxu0 %v997
  %1122 = vmatmul.bf16.gmra.mxu0 %v973
  %v1123 = vpop.f32.mrf.mxu0
  %v1124 = vadd.f32 %v865, %v1123
  %v1125 = vpop.f32.mrf.mxu0
  %1126 = vdwg.mxu0
  %1127 = vmatpush.bf16.msra.mxu0 0
  %1128 = vmatpush.bf16.msra.mxu0 0
  %1129 = vmatpush.bf16.msra.mxu0 0
  %1130 = vmatpush.bf16.msra.mxu0 0
  %1131 = vmatpush.bf16.msra.mxu0 0
  %1132 = vmatpush.bf16.msra.mxu0 0
  %1133 = vmatpush.bf16.msra.mxu0 0
  %1134 = vmatpush.bf16.msra.mxu0 %v1000
  %1135 = vmatmul.bf16.gmra.mxu0 %v973
  %v1136 = vpop.f32.mrf.mxu0
  %v1137 = vadd.f32 %v878, %v1136
  %v1138 = vpop.f32.mrf.mxu0
  %1139 = vdwg.mxu0
  %1140 = vmatpush.bf16.msra.mxu0 0
  %1141 = vmatpush.bf16.msra.mxu0 0
  %1142 = vmatpush.bf16.msra.mxu0 0
  %1143 = vmatpush.bf16.msra.mxu0 0
  %1144 = vmatpush.bf16.msra.mxu0 0
  %1145 = vmatpush.bf16.msra.mxu0 0
  %1146 = vmatpush.bf16.msra.mxu0 0
  %1147 = vmatpush.bf16.msra.mxu0 %v1003
  %1148 = vmatmul.bf16.gmra.mxu0 %v973
  %v1149 = vpop.f32.mrf.mxu0
  %v1150 = vadd.f32 %v891, %v1149
  %v1151 = vpop.f32.mrf.mxu0
  %1152 = vdwg.mxu0
  %1153 = vmatpush.bf16.msra.mxu0 0
  %1154 = vmatpush.bf16.msra.mxu0 0
  %1155 = vmatpush.bf16.msra.mxu0 0
  %1156 = vmatpush.bf16.msra.mxu0 0
  %1157 = vmatpush.bf16.msra.mxu0 0
  %1158 = vmatpush.bf16.msra.mxu0 0
  %1159 = vmatpush.bf16.msra.mxu0 0
  %1160 = vmatpush.bf16.msra.mxu0 %v1006
  %1161 = vmatmul.bf16.gmra.mxu0 %v973
  %v1162 = vpop.f32.mrf.mxu0
  %v1163 = vadd.f32 %v904, %v1162
  %v1164 = vpop.f32.mrf.mxu0
  %1165 = vdwg.mxu0
  %1166 = vmatpush.bf16.msra.mxu0 0
  %1167 = vmatpush.bf16.msra.mxu0 0
  %1168 = vmatpush.bf16.msra.mxu0 0
  %1169 = vmatpush.bf16.msra.mxu0 0
  %1170 = vmatpush.bf16.msra.mxu0 0
  %1171 = vmatpush.bf16.msra.mxu0 0
  %1172 = vmatpush.bf16.msra.mxu0 0
  %1173 = vmatpush.bf16.msra.mxu0 %v1009
  %1174 = vmatmul.bf16.gmra.mxu0 %v973
  %v1175 = vpop.f32.mrf.mxu0
  %v1176 = vadd.f32 %v917, %v1175
  %v1177 = vpop.f32.mrf.mxu0
  %1178 = vdwg.mxu0
  %1179 = vmatpush.bf16.msra.mxu0 0
  %1180 = vmatpush.bf16.msra.mxu0 0
  %1181 = vmatpush.bf16.msra.mxu0 0
  %1182 = vmatpush.bf16.msra.mxu0 0
  %1183 = vmatpush.bf16.msra.mxu0 0
  %1184 = vmatpush.bf16.msra.mxu0 0
  %1185 = vmatpush.bf16.msra.mxu0 0
  %1186 = vmatpush.bf16.msra.mxu0 %v1012
  %1187 = vmatmul.bf16.gmra.mxu0 %v973
  %v1188 = vpop.f32.mrf.mxu0
  %v1189 = vadd.f32 %v930, %v1188
  %v1190 = vpop.f32.mrf.mxu0
  %1191 = vdwg.mxu0
  %1192 = vmatpush.bf16.msra.mxu0 0
  %1193 = vmatpush.bf16.msra.mxu0 0
  %1194 = vmatpush.bf16.msra.mxu0 0
  %1195 = vmatpush.bf16.msra.mxu0 0
  %1196 = vmatpush.bf16.msra.mxu0 0
  %1197 = vmatpush.bf16.msra.mxu0 0
  %1198 = vmatpush.bf16.msra.mxu0 0
  %1199 = vmatpush.bf16.msra.mxu0 %v1015
  %1200 = vmatmul.bf16.gmra.mxu0 %v973
  %v1201 = vpop.f32.mrf.mxu0
  %v1202 = vadd.f32 %v943, %v1201
  %v1203 = vpop.f32.mrf.mxu0
  %1204 = vdwg.mxu0
  %1205 = vmatpush.bf16.msra.mxu0 0
  %1206 = vmatpush.bf16.msra.mxu0 0
  %1207 = vmatpush.bf16.msra.mxu0 0
  %1208 = vmatpush.bf16.msra.mxu0 0
  %1209 = vmatpush.bf16.msra.mxu0 0
  %1210 = vmatpush.bf16.msra.mxu0 0
  %1211 = vmatpush.bf16.msra.mxu0 0
  %1212 = vmatpush.bf16.msra.mxu0 %v1018
  %1213 = vmatmul.bf16.gmra.mxu0 %v973
  %v1214 = vpop.f32.mrf.mxu0
  %v1215 = vadd.f32 %v956, %v1214
  %v1216 = vpop.f32.mrf.mxu0
  %1217 = vdwg.mxu0
  %1218 = vmatpush.bf16.msra.mxu0 0
  %1219 = vmatpush.bf16.msra.mxu0 0
  %1220 = vmatpush.bf16.msra.mxu0 0
  %1221 = vmatpush.bf16.msra.mxu0 0
  %1222 = vmatpush.bf16.msra.mxu0 0
  %1223 = vmatpush.bf16.msra.mxu0 0
  %1224 = vmatpush.bf16.msra.mxu0 0
  %1225 = vmatpush.bf16.msra.mxu0 %v1021
  %1226 = vmatmul.bf16.gmra.mxu0 %v973
  %v1227 = vpop.f32.mrf.mxu0
  %v1228 = vadd.f32 %v969, %v1227
  %v1229 = vpop.f32.mrf.mxu0
  %1230 = vdwg.mxu0
  %1231 = vrot.lane.b32.xlu0 %v286, 1
  %v1232 = vpop.permute.xlu0 %1231
  %1233 = vrot.lane.b32.xlu0 %v311, 1
  %v1234 = vpop.permute.xlu0 %1233
  %1235 = vrot.lane.b32.xlu0 %v312, 1
  %v1236 = vpop.permute.xlu0 %1235
  %1237 = vrot.lane.b32.xlu0 %v313, 1
  %v1238 = vpop.permute.xlu0 %1237
  %1239 = vrot.lane.b32.xlu0 %v314, 1
  %v1240 = vpop.permute.xlu0 %1239
  %1241 = vrot.lane.b32.xlu0 %v315, 1
  %v1242 = vpop.permute.xlu0 %1241
  %1243 = vrot.lane.b32.xlu0 %v316, 1
  %v1244 = vpop.permute.xlu0 %1243
  %1245 = vrot.lane.b32.xlu0 %v317, 1
  %v1246 = vpop.permute.xlu0 %1245
  %1247 = vrot.lane.b32.xlu0 %v318, 1
  %v1248 = vpop.permute.xlu0 %1247
  %1249 = vrot.lane.b32.xlu0 %v319, 1
  %v1250 = vpop.permute.xlu0 %1249
  %1251 = vrot.lane.b32.xlu0 %v320, 1
  %v1252 = vpop.permute.xlu0 %1251
  %1253 = vrot.lane.b32.xlu0 %v321, 1
  %v1254 = vpop.permute.xlu0 %1253
  %1255 = vrot.lane.b32.xlu0 %v322, 1
  %v1256 = vpop.permute.xlu0 %1255
  %1257 = vrot.lane.b32.xlu0 %v323, 1
  %v1258 = vpop.permute.xlu0 %1257
  %1259 = vrot.lane.b32.xlu0 %v324, 1
  %v1260 = vpop.permute.xlu0 %1259
  %1261 = vrot.lane.b32.xlu0 %v325, 1
  %v1262 = vpop.permute.xlu0 %1261
  %vm1263 = vcmask 7168
  %v1264 = vsel %vm1263, %v1234, %v1236
  %v1265 = vsel %vm1263, %v1236, %v1238
  %v1266 = vsel %vm1263, %v1238, %v1240
  %v1267 = vsel %vm1263, %v1240, %v1242
  %v1268 = vsel %vm1263, %v1242, %v1244
  %v1269 = vsel %vm1263, %v1244, %v1246
  %v1270 = vsel %vm1263, %v1246, %v1248
  %v1271 = vsel %vm1263, %v1248, %v1250
  %v1272 = vsel %vm1263, %v1250, %v1252
  %v1273 = vsel %vm1263, %v1252, %v1254
  %v1274 = vsel %vm1263, %v1254, %v1256
  %v1275 = vsel %vm1263, %v1256, %v1258
  %v1276 = vsel %vm1263, %v1258, %v1260
  %v1277 = vsel %vm1263, %v1260, %v1262
  %v1278 = vsel %vm1263, %v1262, %v1232
  %vm1294 = vcmask 7168
  %v1297 = vsel %vm1294, %v1232, %v1234
  %v1299 = vunpack.c.l.bf16 %v1297
  %v1300 = vunpack.c.l.bf16 %v1264
  %v1301 = vunpack.c.l.bf16 %v1265
  %v1302 = vunpack.c.l.bf16 %v1266
  %v1303 = vunpack.c.l.bf16 %v1267
  %v1304 = vunpack.c.l.bf16 %v1268
  %v1305 = vunpack.c.l.bf16 %v1269
  %v1306 = vunpack.c.l.bf16 %v1270
  %v1307 = vunpack.c.l.bf16 %v1271
  %v1308 = vunpack.c.l.bf16 %v1272
  %v1309 = vunpack.c.l.bf16 %v1273
  %v1310 = vunpack.c.l.bf16 %v1274
  %v1311 = vunpack.c.l.bf16 %v1275
  %v1312 = vunpack.c.l.bf16 %v1276
  %v1313 = vunpack.c.l.bf16 %v1277
  %v1314 = vunpack.c.l.bf16 %v1278
  %v1315 = vmul.f32 %v1299, %v544
  %v1316 = vmul.f32 %v1300, %v545
  %v1317 = vmul.f32 %v1301, %v546
  %v1318 = vmul.f32 %v1302, %v547
  %v1319 = vmul.f32 %v1303, %v548
  %v1320 = vmul.f32 %v1304, %v549
  %v1321 = vmul.f32 %v1305, %v550
  %v1322 = vmul.f32 %v1306, %v551
  %v1323 = vmul.f32 %v1307, %v552
  %v1324 = vmul.f32 %v1308, %v553
  %v1325 = vmul.f32 %v1309, %v554
  %v1326 = vmul.f32 %v1310, %v555
  %v1327 = vmul.f32 %v1311, %v556
  %v1328 = vmul.f32 %v1312, %v557
  %v1329 = vmul.f32 %v1313, %v558
  %v1330 = vmul.f32 %v1314, %v559
  %v1331 = vpack.c.bf16 %v1315, %v1315
  %v1332 = vpack.c.bf16 %v1316, %v1316
  %v1333 = vpack.c.bf16 %v1317, %v1317
  %v1334 = vpack.c.bf16 %v1318, %v1318
  %v1335 = vpack.c.bf16 %v1319, %v1319
  %v1336 = vpack.c.bf16 %v1320, %v1320
  %v1337 = vpack.c.bf16 %v1321, %v1321
  %v1338 = vpack.c.bf16 %v1322, %v1322
  %v1339 = vpack.c.bf16 %v1323, %v1323
  %v1340 = vpack.c.bf16 %v1324, %v1324
  %v1341 = vpack.c.bf16 %v1325, %v1325
  %v1342 = vpack.c.bf16 %v1326, %v1326
  %v1343 = vpack.c.bf16 %v1327, %v1327
  %v1344 = vpack.c.bf16 %v1328, %v1328
  %v1345 = vpack.c.bf16 %v1329, %v1329
  %v1346 = vpack.c.bf16 %v1330, %v1330
  %s1347 = scalar_lea.vmem %s2, 4
  %v1348 = vld [vmem:[%s1347] sm:$0x3]
  %v1350 = vsel %vm711, %v1348, 0
  %v1353 = vsel %vm715, %v1331, 0
  %v1356 = vsel %vm715, %v1332, 0
  %v1359 = vsel %vm715, %v1333, 0
  %v1362 = vsel %vm715, %v1334, 0
  %v1365 = vsel %vm715, %v1335, 0
  %v1368 = vsel %vm715, %v1336, 0
  %v1371 = vsel %vm715, %v1337, 0
  %v1374 = vsel %vm715, %v1338, 0
  %v1377 = vsel %vm715, %v1339, 0
  %v1380 = vsel %vm715, %v1340, 0
  %v1383 = vsel %vm715, %v1341, 0
  %v1386 = vsel %vm715, %v1342, 0
  %v1389 = vsel %vm715, %v1343, 0
  %v1392 = vsel %vm715, %v1344, 0
  %v1395 = vsel %vm715, %v1345, 0
  %v1398 = vsel %vm715, %v1346, 0
  %1400 = vmatpush.bf16.msra.mxu0 0
  %1401 = vmatpush.bf16.msra.mxu0 0
  %1402 = vmatpush.bf16.msra.mxu0 0
  %1403 = vmatpush.bf16.msra.mxu0 0
  %1404 = vmatpush.bf16.msra.mxu0 0
  %1405 = vmatpush.bf16.msra.mxu0 0
  %1406 = vmatpush.bf16.msra.mxu0 0
  %1407 = vmatpush.bf16.msra.mxu0 %v1353
  %1408 = vmatmul.bf16.gmra.mxu0 %v1350
  %v1409 = vpop.f32.mrf.mxu0
  %v1410 = vadd.f32 0.0, %v1409
  %v1411 = vpop.f32.mrf.mxu0
  %1412 = vdwg.mxu0
  %1413 = vmatpush.bf16.msra.mxu0 0
  %1414 = vmatpush.bf16.msra.mxu0 0
  %1415 = vmatpush.bf16.msra.mxu0 0
  %1416 = vmatpush.bf16.msra.mxu0 0
  %1417 = vmatpush.bf16.msra.mxu0 0
  %1418 = vmatpush.bf16.msra.mxu0 0
  %1419 = vmatpush.bf16.msra.mxu0 0
  %1420 = vmatpush.bf16.msra.mxu0 %v1356
  %1421 = vmatmul.bf16.gmra.mxu0 %v1350
  %v1422 = vpop.f32.mrf.mxu0
  %v1423 = vadd.f32 0.0, %v1422
  %v1424 = vpop.f32.mrf.mxu0
  %1425 = vdwg.mxu0
  %1426 = vmatpush.bf16.msra.mxu0 0
  %1427 = vmatpush.bf16.msra.mxu0 0
  %1428 = vmatpush.bf16.msra.mxu0 0
  %1429 = vmatpush.bf16.msra.mxu0 0
  %1430 = vmatpush.bf16.msra.mxu0 0
  %1431 = vmatpush.bf16.msra.mxu0 0
  %1432 = vmatpush.bf16.msra.mxu0 0
  %1433 = vmatpush.bf16.msra.mxu0 %v1359
  %1434 = vmatmul.bf16.gmra.mxu0 %v1350
  %v1435 = vpop.f32.mrf.mxu0
  %v1436 = vadd.f32 0.0, %v1435
  %v1437 = vpop.f32.mrf.mxu0
  %1438 = vdwg.mxu0
  %1439 = vmatpush.bf16.msra.mxu0 0
  %1440 = vmatpush.bf16.msra.mxu0 0
  %1441 = vmatpush.bf16.msra.mxu0 0
  %1442 = vmatpush.bf16.msra.mxu0 0
  %1443 = vmatpush.bf16.msra.mxu0 0
  %1444 = vmatpush.bf16.msra.mxu0 0
  %1445 = vmatpush.bf16.msra.mxu0 0
  %1446 = vmatpush.bf16.msra.mxu0 %v1362
  %1447 = vmatmul.bf16.gmra.mxu0 %v1350
  %v1448 = vpop.f32.mrf.mxu0
  %v1449 = vadd.f32 0.0, %v1448
  %v1450 = vpop.f32.mrf.mxu0
  %1451 = vdwg.mxu0
  %1452 = vmatpush.bf16.msra.mxu0 0
  %1453 = vmatpush.bf16.msra.mxu0 0
  %1454 = vmatpush.bf16.msra.mxu0 0
  %1455 = vmatpush.bf16.msra.mxu0 0
  %1456 = vmatpush.bf16.msra.mxu0 0
  %1457 = vmatpush.bf16.msra.mxu0 0
  %1458 = vmatpush.bf16.msra.mxu0 0
  %1459 = vmatpush.bf16.msra.mxu0 %v1365
  %1460 = vmatmul.bf16.gmra.mxu0 %v1350
  %v1461 = vpop.f32.mrf.mxu0
  %v1462 = vadd.f32 0.0, %v1461
  %v1463 = vpop.f32.mrf.mxu0
  %1464 = vdwg.mxu0
  %1465 = vmatpush.bf16.msra.mxu0 0
  %1466 = vmatpush.bf16.msra.mxu0 0
  %1467 = vmatpush.bf16.msra.mxu0 0
  %1468 = vmatpush.bf16.msra.mxu0 0
  %1469 = vmatpush.bf16.msra.mxu0 0
  %1470 = vmatpush.bf16.msra.mxu0 0
  %1471 = vmatpush.bf16.msra.mxu0 0
  %1472 = vmatpush.bf16.msra.mxu0 %v1368
  %1473 = vmatmul.bf16.gmra.mxu0 %v1350
  %v1474 = vpop.f32.mrf.mxu0
  %v1475 = vadd.f32 0.0, %v1474
  %v1476 = vpop.f32.mrf.mxu0
  %1477 = vdwg.mxu0
  %1478 = vmatpush.bf16.msra.mxu0 0
  %1479 = vmatpush.bf16.msra.mxu0 0
  %1480 = vmatpush.bf16.msra.mxu0 0
  %1481 = vmatpush.bf16.msra.mxu0 0
  %1482 = vmatpush.bf16.msra.mxu0 0
  %1483 = vmatpush.bf16.msra.mxu0 0
  %1484 = vmatpush.bf16.msra.mxu0 0
  %1485 = vmatpush.bf16.msra.mxu0 %v1371
  %1486 = vmatmul.bf16.gmra.mxu0 %v1350
  %v1487 = vpop.f32.mrf.mxu0
  %v1488 = vadd.f32 0.0, %v1487
  %v1489 = vpop.f32.mrf.mxu0
  %1490 = vdwg.mxu0
  %1491 = vmatpush.bf16.msra.mxu0 0
  %1492 = vmatpush.bf16.msra.mxu0 0
  %1493 = vmatpush.bf16.msra.mxu0 0
  %1494 = vmatpush.bf16.msra.mxu0 0
  %1495 = vmatpush.bf16.msra.mxu0 0
  %1496 = vmatpush.bf16.msra.mxu0 0
  %1497 = vmatpush.bf16.msra.mxu0 0
  %1498 = vmatpush.bf16.msra.mxu0 %v1374
  %1499 = vmatmul.bf16.gmra.mxu0 %v1350
  %v1500 = vpop.f32.mrf.mxu0
  %v1501 = vadd.f32 0.0, %v1500
  %v1502 = vpop.f32.mrf.mxu0
  %1503 = vdwg.mxu0
  %1504 = vmatpush.bf16.msra.mxu0 0
  %1505 = vmatpush.bf16.msra.mxu0 0
  %1506 = vmatpush.bf16.msra.mxu0 0
  %1507 = vmatpush.bf16.msra.mxu0 0
  %1508 = vmatpush.bf16.msra.mxu0 0
  %1509 = vmatpush.bf16.msra.mxu0 0
  %1510 = vmatpush.bf16.msra.mxu0 0
  %1511 = vmatpush.bf16.msra.mxu0 %v1377
  %1512 = vmatmul.bf16.gmra.mxu0 %v1350
  %v1513 = vpop.f32.mrf.mxu0
  %v1514 = vadd.f32 0.0, %v1513
  %v1515 = vpop.f32.mrf.mxu0
  %1516 = vdwg.mxu0
  %1517 = vmatpush.bf16.msra.mxu0 0
  %1518 = vmatpush.bf16.msra.mxu0 0
  %1519 = vmatpush.bf16.msra.mxu0 0
  %1520 = vmatpush.bf16.msra.mxu0 0
  %1521 = vmatpush.bf16.msra.mxu0 0
  %1522 = vmatpush.bf16.msra.mxu0 0
  %1523 = vmatpush.bf16.msra.mxu0 0
  %1524 = vmatpush.bf16.msra.mxu0 %v1380
  %1525 = vmatmul.bf16.gmra.mxu0 %v1350
  %v1526 = vpop.f32.mrf.mxu0
  %v1527 = vadd.f32 0.0, %v1526
  %v1528 = vpop.f32.mrf.mxu0
  %1529 = vdwg.mxu0
  %1530 = vmatpush.bf16.msra.mxu0 0
  %1531 = vmatpush.bf16.msra.mxu0 0
  %1532 = vmatpush.bf16.msra.mxu0 0
  %1533 = vmatpush.bf16.msra.mxu0 0
  %1534 = vmatpush.bf16.msra.mxu0 0
  %1535 = vmatpush.bf16.msra.mxu0 0
  %1536 = vmatpush.bf16.msra.mxu0 0
  %1537 = vmatpush.bf16.msra.mxu0 %v1383
  %1538 = vmatmul.bf16.gmra.mxu0 %v1350
  %v1539 = vpop.f32.mrf.mxu0
  %v1540 = vadd.f32 0.0, %v1539
  %v1541 = vpop.f32.mrf.mxu0
  %1542 = vdwg.mxu0
  %1543 = vmatpush.bf16.msra.mxu0 0
  %1544 = vmatpush.bf16.msra.mxu0 0
  %1545 = vmatpush.bf16.msra.mxu0 0
  %1546 = vmatpush.bf16.msra.mxu0 0
  %1547 = vmatpush.bf16.msra.mxu0 0
  %1548 = vmatpush.bf16.msra.mxu0 0
  %1549 = vmatpush.bf16.msra.mxu0 0
  %1550 = vmatpush.bf16.msra.mxu0 %v1386
  %1551 = vmatmul.bf16.gmra.mxu0 %v1350
  %v1552 = vpop.f32.mrf.mxu0
  %v1553 = vadd.f32 0.0, %v1552
  %v1554 = vpop.f32.mrf.mxu0
  %1555 = vdwg.mxu0
  %1556 = vmatpush.bf16.msra.mxu0 0
  %1557 = vmatpush.bf16.msra.mxu0 0
  %1558 = vmatpush.bf16.msra.mxu0 0
  %1559 = vmatpush.bf16.msra.mxu0 0
  %1560 = vmatpush.bf16.msra.mxu0 0
  %1561 = vmatpush.bf16.msra.mxu0 0
  %1562 = vmatpush.bf16.msra.mxu0 0
  %1563 = vmatpush.bf16.msra.mxu0 %v1389
  %1564 = vmatmul.bf16.gmra.mxu0 %v1350
  %v1565 = vpop.f32.mrf.mxu0
  %v1566 = vadd.f32 0.0, %v1565
  %v1567 = vpop.f32.mrf.mxu0
  %1568 = vdwg.mxu0
  %1569 = vmatpush.bf16.msra.mxu0 0
  %1570 = vmatpush.bf16.msra.mxu0 0
  %1571 = vmatpush.bf16.msra.mxu0 0
  %1572 = vmatpush.bf16.msra.mxu0 0
  %1573 = vmatpush.bf16.msra.mxu0 0
  %1574 = vmatpush.bf16.msra.mxu0 0
  %1575 = vmatpush.bf16.msra.mxu0 0
  %1576 = vmatpush.bf16.msra.mxu0 %v1392
  %1577 = vmatmul.bf16.gmra.mxu0 %v1350
  %v1578 = vpop.f32.mrf.mxu0
  %v1579 = vadd.f32 0.0, %v1578
  %v1580 = vpop.f32.mrf.mxu0
  %1581 = vdwg.mxu0
  %1582 = vmatpush.bf16.msra.mxu0 0
  %1583 = vmatpush.bf16.msra.mxu0 0
  %1584 = vmatpush.bf16.msra.mxu0 0
  %1585 = vmatpush.bf16.msra.mxu0 0
  %1586 = vmatpush.bf16.msra.mxu0 0
  %1587 = vmatpush.bf16.msra.mxu0 0
  %1588 = vmatpush.bf16.msra.mxu0 0
  %1589 = vmatpush.bf16.msra.mxu0 %v1395
  %1590 = vmatmul.bf16.gmra.mxu0 %v1350
  %v1591 = vpop.f32.mrf.mxu0
  %v1592 = vadd.f32 0.0, %v1591
  %v1593 = vpop.f32.mrf.mxu0
  %1594 = vdwg.mxu0
  %1595 = vmatpush.bf16.msra.mxu0 0
  %1596 = vmatpush.bf16.msra.mxu0 0
  %1597 = vmatpush.bf16.msra.mxu0 0
  %1598 = vmatpush.bf16.msra.mxu0 0
  %1599 = vmatpush.bf16.msra.mxu0 0
  %1600 = vmatpush.bf16.msra.mxu0 0
  %1601 = vmatpush.bf16.msra.mxu0 0
  %1602 = vmatpush.bf16.msra.mxu0 %v1398
  %1603 = vmatmul.bf16.gmra.mxu0 %v1350
  %v1604 = vpop.f32.mrf.mxu0
  %v1605 = vadd.f32 0.0, %v1604
  %v1606 = vpop.f32.mrf.mxu0
  %1607 = vdwg.mxu0
  %v1608 = vadd.f32 %v1033, %v1410
  %v1609 = vadd.f32 %v1046, %v1423
  %v1610 = vadd.f32 %v1059, %v1436
  %v1611 = vadd.f32 %v1072, %v1449
  %v1612 = vadd.f32 %v1085, %v1462
  %v1613 = vadd.f32 %v1098, %v1475
  %v1614 = vadd.f32 %v1111, %v1488
  %v1615 = vadd.f32 %v1124, %v1501
  %v1616 = vadd.f32 %v1137, %v1514
  %v1617 = vadd.f32 %v1150, %v1527
  %v1618 = vadd.f32 %v1163, %v1540
  %v1619 = vadd.f32 %v1176, %v1553
  %v1620 = vadd.f32 %v1189, %v1566
  %v1621 = vadd.f32 %v1202, %v1579
  %v1622 = vadd.f32 %v1215, %v1592
  %v1623 = vadd.f32 %v1228, %v1605
  %s1624 = scalar_lea.vmem %s2, 6
  %v1625 = vld [vmem:[%s1624] sm:$0x3]
  %v1627 = vsel %vm711, %v1625, 0
  %v1630 = vsel %vm715, %v311, 0
  %v1633 = vsel %vm715, %v312, 0
  %v1636 = vsel %vm715, %v313, 0
  %v1639 = vsel %vm715, %v314, 0
  %v1642 = vsel %vm715, %v315, 0
  %v1645 = vsel %vm715, %v316, 0
  %v1648 = vsel %vm715, %v317, 0
  %v1651 = vsel %vm715, %v318, 0
  %v1654 = vsel %vm715, %v319, 0
  %v1657 = vsel %vm715, %v320, 0
  %v1660 = vsel %vm715, %v321, 0
  %v1663 = vsel %vm715, %v322, 0
  %v1666 = vsel %vm715, %v323, 0
  %v1669 = vsel %vm715, %v324, 0
  %v1672 = vsel %vm715, %v325, 0
  %v1675 = vsel %vm715, %v286, 0
  %1677 = vmatpush.bf16.msra.mxu0 0
  %1678 = vmatpush.bf16.msra.mxu0 0
  %1679 = vmatpush.bf16.msra.mxu0 0
  %1680 = vmatpush.bf16.msra.mxu0 0
  %1681 = vmatpush.bf16.msra.mxu0 0
  %1682 = vmatpush.bf16.msra.mxu0 0
  %1683 = vmatpush.bf16.msra.mxu0 0
  %1684 = vmatpush.bf16.msra.mxu0 %v1630
  %1685 = vmatmul.bf16.gmra.mxu0 %v1627
  %v1686 = vpop.f32.mrf.mxu0
  %v1687 = vadd.f32 0.0, %v1686
  %v1688 = vpop.f32.mrf.mxu0
  %1689 = vdwg.mxu0
  %1690 = vmatpush.bf16.msra.mxu0 0
  %1691 = vmatpush.bf16.msra.mxu0 0
  %1692 = vmatpush.bf16.msra.mxu0 0
  %1693 = vmatpush.bf16.msra.mxu0 0
  %1694 = vmatpush.bf16.msra.mxu0 0
  %1695 = vmatpush.bf16.msra.mxu0 0
  %1696 = vmatpush.bf16.msra.mxu0 0
  %1697 = vmatpush.bf16.msra.mxu0 %v1633
  %1698 = vmatmul.bf16.gmra.mxu0 %v1627
  %v1699 = vpop.f32.mrf.mxu0
  %v1700 = vadd.f32 0.0, %v1699
  %v1701 = vpop.f32.mrf.mxu0
  %1702 = vdwg.mxu0
  %1703 = vmatpush.bf16.msra.mxu0 0
  %1704 = vmatpush.bf16.msra.mxu0 0
  %1705 = vmatpush.bf16.msra.mxu0 0
  %1706 = vmatpush.bf16.msra.mxu0 0
  %1707 = vmatpush.bf16.msra.mxu0 0
  %1708 = vmatpush.bf16.msra.mxu0 0
  %1709 = vmatpush.bf16.msra.mxu0 0
  %1710 = vmatpush.bf16.msra.mxu0 %v1636
  %1711 = vmatmul.bf16.gmra.mxu0 %v1627
  %v1712 = vpop.f32.mrf.mxu0
  %v1713 = vadd.f32 0.0, %v1712
  %v1714 = vpop.f32.mrf.mxu0
  %1715 = vdwg.mxu0
  %1716 = vmatpush.bf16.msra.mxu0 0
  %1717 = vmatpush.bf16.msra.mxu0 0
  %1718 = vmatpush.bf16.msra.mxu0 0
  %1719 = vmatpush.bf16.msra.mxu0 0
  %1720 = vmatpush.bf16.msra.mxu0 0
  %1721 = vmatpush.bf16.msra.mxu0 0
  %1722 = vmatpush.bf16.msra.mxu0 0
  %1723 = vmatpush.bf16.msra.mxu0 %v1639
  %1724 = vmatmul.bf16.gmra.mxu0 %v1627
  %v1725 = vpop.f32.mrf.mxu0
  %v1726 = vadd.f32 0.0, %v1725
  %v1727 = vpop.f32.mrf.mxu0
  %1728 = vdwg.mxu0
  %1729 = vmatpush.bf16.msra.mxu0 0
  %1730 = vmatpush.bf16.msra.mxu0 0
  %1731 = vmatpush.bf16.msra.mxu0 0
  %1732 = vmatpush.bf16.msra.mxu0 0
  %1733 = vmatpush.bf16.msra.mxu0 0
  %1734 = vmatpush.bf16.msra.mxu0 0
  %1735 = vmatpush.bf16.msra.mxu0 0
  %1736 = vmatpush.bf16.msra.mxu0 %v1642
  %1737 = vmatmul.bf16.gmra.mxu0 %v1627
  %v1738 = vpop.f32.mrf.mxu0
  %v1739 = vadd.f32 0.0, %v1738
  %v1740 = vpop.f32.mrf.mxu0
  %1741 = vdwg.mxu0
  %1742 = vmatpush.bf16.msra.mxu0 0
  %1743 = vmatpush.bf16.msra.mxu0 0
  %1744 = vmatpush.bf16.msra.mxu0 0
  %1745 = vmatpush.bf16.msra.mxu0 0
  %1746 = vmatpush.bf16.msra.mxu0 0
  %1747 = vmatpush.bf16.msra.mxu0 0
  %1748 = vmatpush.bf16.msra.mxu0 0
  %1749 = vmatpush.bf16.msra.mxu0 %v1645
  %1750 = vmatmul.bf16.gmra.mxu0 %v1627
  %v1751 = vpop.f32.mrf.mxu0
  %v1752 = vadd.f32 0.0, %v1751
  %v1753 = vpop.f32.mrf.mxu0
  %1754 = vdwg.mxu0
  %1755 = vmatpush.bf16.msra.mxu0 0
  %1756 = vmatpush.bf16.msra.mxu0 0
  %1757 = vmatpush.bf16.msra.mxu0 0
  %1758 = vmatpush.bf16.msra.mxu0 0
  %1759 = vmatpush.bf16.msra.mxu0 0
  %1760 = vmatpush.bf16.msra.mxu0 0
  %1761 = vmatpush.bf16.msra.mxu0 0
  %1762 = vmatpush.bf16.msra.mxu0 %v1648
  %1763 = vmatmul.bf16.gmra.mxu0 %v1627
  %v1764 = vpop.f32.mrf.mxu0
  %v1765 = vadd.f32 0.0, %v1764
  %v1766 = vpop.f32.mrf.mxu0
  %1767 = vdwg.mxu0
  %1768 = vmatpush.bf16.msra.mxu0 0
  %1769 = vmatpush.bf16.msra.mxu0 0
  %1770 = vmatpush.bf16.msra.mxu0 0
  %1771 = vmatpush.bf16.msra.mxu0 0
  %1772 = vmatpush.bf16.msra.mxu0 0
  %1773 = vmatpush.bf16.msra.mxu0 0
  %1774 = vmatpush.bf16.msra.mxu0 0
  %1775 = vmatpush.bf16.msra.mxu0 %v1651
  %1776 = vmatmul.bf16.gmra.mxu0 %v1627
  %v1777 = vpop.f32.mrf.mxu0
  %v1778 = vadd.f32 0.0, %v1777
  %v1779 = vpop.f32.mrf.mxu0
  %1780 = vdwg.mxu0
  %1781 = vmatpush.bf16.msra.mxu0 0
  %1782 = vmatpush.bf16.msra.mxu0 0
  %1783 = vmatpush.bf16.msra.mxu0 0
  %1784 = vmatpush.bf16.msra.mxu0 0
  %1785 = vmatpush.bf16.msra.mxu0 0
  %1786 = vmatpush.bf16.msra.mxu0 0
  %1787 = vmatpush.bf16.msra.mxu0 0
  %1788 = vmatpush.bf16.msra.mxu0 %v1654
  %1789 = vmatmul.bf16.gmra.mxu0 %v1627
  %v1790 = vpop.f32.mrf.mxu0
  %v1791 = vadd.f32 0.0, %v1790
  %v1792 = vpop.f32.mrf.mxu0
  %1793 = vdwg.mxu0
  %1794 = vmatpush.bf16.msra.mxu0 0
  %1795 = vmatpush.bf16.msra.mxu0 0
  %1796 = vmatpush.bf16.msra.mxu0 0
  %1797 = vmatpush.bf16.msra.mxu0 0
  %1798 = vmatpush.bf16.msra.mxu0 0
  %1799 = vmatpush.bf16.msra.mxu0 0
  %1800 = vmatpush.bf16.msra.mxu0 0
  %1801 = vmatpush.bf16.msra.mxu0 %v1657
  %1802 = vmatmul.bf16.gmra.mxu0 %v1627
  %v1803 = vpop.f32.mrf.mxu0
  %v1804 = vadd.f32 0.0, %v1803
  %v1805 = vpop.f32.mrf.mxu0
  %1806 = vdwg.mxu0
  %1807 = vmatpush.bf16.msra.mxu0 0
  %1808 = vmatpush.bf16.msra.mxu0 0
  %1809 = vmatpush.bf16.msra.mxu0 0
  %1810 = vmatpush.bf16.msra.mxu0 0
  %1811 = vmatpush.bf16.msra.mxu0 0
  %1812 = vmatpush.bf16.msra.mxu0 0
  %1813 = vmatpush.bf16.msra.mxu0 0
  %1814 = vmatpush.bf16.msra.mxu0 %v1660
  %1815 = vmatmul.bf16.gmra.mxu0 %v1627
  %v1816 = vpop.f32.mrf.mxu0
  %v1817 = vadd.f32 0.0, %v1816
  %v1818 = vpop.f32.mrf.mxu0
  %1819 = vdwg.mxu0
  %1820 = vmatpush.bf16.msra.mxu0 0
  %1821 = vmatpush.bf16.msra.mxu0 0
  %1822 = vmatpush.bf16.msra.mxu0 0
  %1823 = vmatpush.bf16.msra.mxu0 0
  %1824 = vmatpush.bf16.msra.mxu0 0
  %1825 = vmatpush.bf16.msra.mxu0 0
  %1826 = vmatpush.bf16.msra.mxu0 0
  %1827 = vmatpush.bf16.msra.mxu0 %v1663
  %1828 = vmatmul.bf16.gmra.mxu0 %v1627
  %v1829 = vpop.f32.mrf.mxu0
  %v1830 = vadd.f32 0.0, %v1829
  %v1831 = vpop.f32.mrf.mxu0
  %1832 = vdwg.mxu0
  %1833 = vmatpush.bf16.msra.mxu0 0
  %1834 = vmatpush.bf16.msra.mxu0 0
  %1835 = vmatpush.bf16.msra.mxu0 0
  %1836 = vmatpush.bf16.msra.mxu0 0
  %1837 = vmatpush.bf16.msra.mxu0 0
  %1838 = vmatpush.bf16.msra.mxu0 0
  %1839 = vmatpush.bf16.msra.mxu0 0
  %1840 = vmatpush.bf16.msra.mxu0 %v1666
  %1841 = vmatmul.bf16.gmra.mxu0 %v1627
  %v1842 = vpop.f32.mrf.mxu0
  %v1843 = vadd.f32 0.0, %v1842
  %v1844 = vpop.f32.mrf.mxu0
  %1845 = vdwg.mxu0
  %1846 = vmatpush.bf16.msra.mxu0 0
  %1847 = vmatpush.bf16.msra.mxu0 0
  %1848 = vmatpush.bf16.msra.mxu0 0
  %1849 = vmatpush.bf16.msra.mxu0 0
  %1850 = vmatpush.bf16.msra.mxu0 0
  %1851 = vmatpush.bf16.msra.mxu0 0
  %1852 = vmatpush.bf16.msra.mxu0 0
  %1853 = vmatpush.bf16.msra.mxu0 %v1669
  %1854 = vmatmul.bf16.gmra.mxu0 %v1627
  %v1855 = vpop.f32.mrf.mxu0
  %v1856 = vadd.f32 0.0, %v1855
  %v1857 = vpop.f32.mrf.mxu0
  %1858 = vdwg.mxu0
  %1859 = vmatpush.bf16.msra.mxu0 0
  %1860 = vmatpush.bf16.msra.mxu0 0
  %1861 = vmatpush.bf16.msra.mxu0 0
  %1862 = vmatpush.bf16.msra.mxu0 0
  %1863 = vmatpush.bf16.msra.mxu0 0
  %1864 = vmatpush.bf16.msra.mxu0 0
  %1865 = vmatpush.bf16.msra.mxu0 0
  %1866 = vmatpush.bf16.msra.mxu0 %v1672
  %1867 = vmatmul.bf16.gmra.mxu0 %v1627
  %v1868 = vpop.f32.mrf.mxu0
  %v1869 = vadd.f32 0.0, %v1868
  %v1870 = vpop.f32.mrf.mxu0
  %1871 = vdwg.mxu0
  %1872 = vmatpush.bf16.msra.mxu0 0
  %1873 = vmatpush.bf16.msra.mxu0 0
  %1874 = vmatpush.bf16.msra.mxu0 0
  %1875 = vmatpush.bf16.msra.mxu0 0
  %1876 = vmatpush.bf16.msra.mxu0 0
  %1877 = vmatpush.bf16.msra.mxu0 0
  %1878 = vmatpush.bf16.msra.mxu0 0
  %1879 = vmatpush.bf16.msra.mxu0 %v1675
  %1880 = vmatmul.bf16.gmra.mxu0 %v1627
  %v1881 = vpop.f32.mrf.mxu0
  %v1882 = vadd.f32 0.0, %v1881
  %v1883 = vpop.f32.mrf.mxu0
  %1884 = vdwg.mxu0
  %v1885 = vadd.f32 %v1608, %v1687
  %v1886 = vadd.f32 %v1609, %v1700
  %v1887 = vadd.f32 %v1610, %v1713
  %v1888 = vadd.f32 %v1611, %v1726
  %v1889 = vadd.f32 %v1612, %v1739
  %v1890 = vadd.f32 %v1613, %v1752
  %v1891 = vadd.f32 %v1614, %v1765
  %v1892 = vadd.f32 %v1615, %v1778
  %v1893 = vadd.f32 %v1616, %v1791
  %v1894 = vadd.f32 %v1617, %v1804
  %v1895 = vadd.f32 %v1618, %v1817
  %v1896 = vadd.f32 %v1619, %v1830
  %v1897 = vadd.f32 %v1620, %v1843
  %v1898 = vadd.f32 %v1621, %v1856
  %v1899 = vadd.f32 %v1622, %v1869
  %v1900 = vadd.f32 %v1623, %v1882
  %v1901 = vld [vmem:[%s5] sm:$0x7]
  %1903 = vset.pattern.permute.xlu0 0
  %1904 = vperm.xlu0 %1903, %v1901
  %v1905 = vpop.permute.xlu0 %1904
  %v1907 = vadd.f32 %v1885, %v1905
  %v1908 = vadd.f32 %v1886, %v1905
  %v1909 = vadd.f32 %v1887, %v1905
  %v1910 = vadd.f32 %v1888, %v1905
  %v1911 = vadd.f32 %v1889, %v1905
  %v1912 = vadd.f32 %v1890, %v1905
  %v1913 = vadd.f32 %v1891, %v1905
  %v1914 = vadd.f32 %v1892, %v1905
  %v1915 = vadd.f32 %v1893, %v1905
  %v1916 = vadd.f32 %v1894, %v1905
  %v1917 = vadd.f32 %v1895, %v1905
  %v1918 = vadd.f32 %v1896, %v1905
  %v1919 = vadd.f32 %v1897, %v1905
  %v1920 = vadd.f32 %v1898, %v1905
  %v1921 = vadd.f32 %v1899, %v1905
  %v1922 = vadd.f32 %v1900, %v1905
  %v1923 = vtanh.pop %v1907
  %v1924 = vtanh.pop %v1908
  %v1925 = vtanh.pop %v1909
  %v1926 = vtanh.pop %v1910
  %v1927 = vtanh.pop %v1911
  %v1928 = vtanh.pop %v1912
  %v1929 = vtanh.pop %v1913
  %v1930 = vtanh.pop %v1914
  %v1931 = vtanh.pop %v1915
  %v1932 = vtanh.pop %v1916
  %v1933 = vtanh.pop %v1917
  %v1934 = vtanh.pop %v1918
  %v1935 = vtanh.pop %v1919
  %v1936 = vtanh.pop %v1920
  %v1937 = vtanh.pop %v1921
  %v1938 = vtanh.pop %v1922
  %v1955 = vrot.slane %v1924, 4
  %v1956 = vrot.slane %v1926, 4
  %v1957 = vrot.slane %v1928, 4
  %v1958 = vrot.slane %v1930, 4
  %v1959 = vrot.slane %v1932, 4
  %v1960 = vrot.slane %v1934, 4
  %v1961 = vrot.slane %v1936, 4
  %v1962 = vrot.slane %v1938, 4
  %v1963 = vsel %vm715, %v1923, %v1955
  %v1964 = vsel %vm715, %v1925, %v1956
  %v1965 = vsel %vm715, %v1927, %v1957
  %v1966 = vsel %vm715, %v1929, %v1958
  %v1967 = vsel %vm715, %v1931, %v1959
  %v1968 = vsel %vm715, %v1933, %v1960
  %v1969 = vsel %vm715, %v1935, %v1961
  %v1970 = vsel %vm715, %v1937, %v1962
  %1979 = vst [vmem:[%s6] sm:$0x77] %v1963
  %1980 = vst [vmem:[%s6 + $0x8] sm:$0x77] %v1964
  %1981 = vst [vmem:[%s6 + $0x10] sm:$0x77] %v1965
  %1982 = vst [vmem:[%s6 + $0x18] sm:$0x77] %v1966
  %1983 = vst [vmem:[%s6 + $0x20] sm:$0x77] %v1967
  %1984 = vst [vmem:[%s6 + $0x28] sm:$0x77] %v1968
  %1985 = vst [vmem:[%s6 + $0x30] sm:$0x77] %v1969
  %1986 = vst [vmem:[%s6 + $0x38] sm:$0x77] %v1970
  %s1987 = scalar_lea.vmem %s2, 8
  %v1988 = vld [vmem:[%s1987] sm:$0x3]
  %1989 = vrot.lane.b32.xlu0 %v286, 31
  %v1990 = vpop.permute.xlu0 %1989
  %1991 = vrot.lane.b32.xlu0 %v311, 31
  %v1992 = vpop.permute.xlu0 %1991
  %1993 = vrot.lane.b32.xlu0 %v312, 31
  %v1994 = vpop.permute.xlu0 %1993
  %1995 = vrot.lane.b32.xlu0 %v313, 31
  %v1996 = vpop.permute.xlu0 %1995
  %1997 = vrot.lane.b32.xlu0 %v314, 31
  %v1998 = vpop.permute.xlu0 %1997
  %1999 = vrot.lane.b32.xlu0 %v315, 31
  %v2000 = vpop.permute.xlu0 %1999
  %2001 = vrot.lane.b32.xlu0 %v316, 31
  %v2002 = vpop.permute.xlu0 %2001
  %2003 = vrot.lane.b32.xlu0 %v317, 31
  %v2004 = vpop.permute.xlu0 %2003
  %2005 = vrot.lane.b32.xlu0 %v318, 31
  %v2006 = vpop.permute.xlu0 %2005
  %2007 = vrot.lane.b32.xlu0 %v319, 31
  %v2008 = vpop.permute.xlu0 %2007
  %2009 = vrot.lane.b32.xlu0 %v320, 31
  %v2010 = vpop.permute.xlu0 %2009
  %2011 = vrot.lane.b32.xlu0 %v321, 31
  %v2012 = vpop.permute.xlu0 %2011
  %2013 = vrot.lane.b32.xlu0 %v322, 31
  %v2014 = vpop.permute.xlu0 %2013
  %2015 = vrot.lane.b32.xlu0 %v323, 31
  %v2016 = vpop.permute.xlu0 %2015
  %2017 = vrot.lane.b32.xlu0 %v324, 31
  %v2018 = vpop.permute.xlu0 %2017
  %2019 = vrot.lane.b32.xlu0 %v325, 31
  %v2020 = vpop.permute.xlu0 %2019
  %vm2021 = vcmask 252928
  %v2022 = vsel %vm2021, %v1992, %v1994
  %v2023 = vsel %vm2021, %v1994, %v1996
  %v2024 = vsel %vm2021, %v1996, %v1998
  %v2025 = vsel %vm2021, %v1998, %v2000
  %v2026 = vsel %vm2021, %v2000, %v2002
  %v2027 = vsel %vm2021, %v2002, %v2004
  %v2028 = vsel %vm2021, %v2004, %v2006
  %v2029 = vsel %vm2021, %v2006, %v2008
  %v2030 = vsel %vm2021, %v2008, %v2010
  %v2031 = vsel %vm2021, %v2010, %v2012
  %v2032 = vsel %vm2021, %v2012, %v2014
  %v2033 = vsel %vm2021, %v2014, %v2016
  %v2034 = vsel %vm2021, %v2016, %v2018
  %v2035 = vsel %vm2021, %v2018, %v2020
  %v2036 = vsel %vm2021, %v2020, %v1990
  %vm2052 = vcmask 252928
  %v2055 = vsel %vm2052, %v1990, %v1992
  %v2057 = vunpack.c.l.bf16 %v2055
  %v2058 = vunpack.c.l.bf16 %v2022
  %v2059 = vunpack.c.l.bf16 %v2023
  %v2060 = vunpack.c.l.bf16 %v2024
  %v2061 = vunpack.c.l.bf16 %v2025
  %v2062 = vunpack.c.l.bf16 %v2026
  %v2063 = vunpack.c.l.bf16 %v2027
  %v2064 = vunpack.c.l.bf16 %v2028
  %v2065 = vunpack.c.l.bf16 %v2029
  %v2066 = vunpack.c.l.bf16 %v2030
  %v2067 = vunpack.c.l.bf16 %v2031
  %v2068 = vunpack.c.l.bf16 %v2032
  %v2069 = vunpack.c.l.bf16 %v2033
  %v2070 = vunpack.c.l.bf16 %v2034
  %v2071 = vunpack.c.l.bf16 %v2035
  %v2072 = vunpack.c.l.bf16 %v2036
  %v2073 = vmul.f32 %v2057, %v472
  %v2074 = vmul.f32 %v2058, %v473
  %v2075 = vmul.f32 %v2059, %v474
  %v2076 = vmul.f32 %v2060, %v475
  %v2077 = vmul.f32 %v2061, %v476
  %v2078 = vmul.f32 %v2062, %v477
  %v2079 = vmul.f32 %v2063, %v478
  %v2080 = vmul.f32 %v2064, %v479
  %v2081 = vmul.f32 %v2065, %v480
  %v2082 = vmul.f32 %v2066, %v481
  %v2083 = vmul.f32 %v2067, %v482
  %v2084 = vmul.f32 %v2068, %v483
  %v2085 = vmul.f32 %v2069, %v484
  %v2086 = vmul.f32 %v2070, %v485
  %v2087 = vmul.f32 %v2071, %v486
  %v2088 = vmul.f32 %v2072, %v487
  %v2089 = vpack.c.bf16 %v2074, %v2073
  %v2090 = vpack.c.bf16 %v2076, %v2075
  %v2091 = vpack.c.bf16 %v2078, %v2077
  %v2092 = vpack.c.bf16 %v2080, %v2079
  %v2093 = vpack.c.bf16 %v2082, %v2081
  %v2094 = vpack.c.bf16 %v2084, %v2083
  %v2095 = vpack.c.bf16 %v2086, %v2085
  %v2096 = vpack.c.bf16 %v2088, %v2087
  %v2097 = vperm.slane %v165, 2
  %v2098 = vperm.slane %v169, 2
  %v2099 = vperm.slane %v173, 2
  %v2100 = vperm.slane %v177, 2
  %v2101 = vperm.slane %v181, 2
  %v2102 = vperm.slane %v185, 2
  %v2103 = vperm.slane %v189, 2
  %v2104 = vperm.slane %v193, 2
  %v2105 = vperm.slane %v197, 2
  %v2106 = vperm.slane %v201, 2
  %v2107 = vperm.slane %v205, 2
  %v2108 = vperm.slane %v209, 2
  %v2109 = vperm.slane %v213, 2
  %v2110 = vperm.slane %v217, 2
  %v2111 = vperm.slane %v221, 2
  %v2112 = vperm.slane %v225, 2
  %v2113 = vunpack.c.l.bf16 %v2089
  %v2114 = vunpack.c.h.bf16 %v2089
  %v2115 = vunpack.c.l.bf16 %v2090
  %v2116 = vunpack.c.h.bf16 %v2090
  %v2117 = vunpack.c.l.bf16 %v2091
  %v2118 = vunpack.c.h.bf16 %v2091
  %v2119 = vunpack.c.l.bf16 %v2092
  %v2120 = vunpack.c.h.bf16 %v2092
  %v2121 = vunpack.c.l.bf16 %v2093
  %v2122 = vunpack.c.h.bf16 %v2093
  %v2123 = vunpack.c.l.bf16 %v2094
  %v2124 = vunpack.c.h.bf16 %v2094
  %v2125 = vunpack.c.l.bf16 %v2095
  %v2126 = vunpack.c.h.bf16 %v2095
  %v2127 = vunpack.c.l.bf16 %v2096
  %v2128 = vunpack.c.h.bf16 %v2096
  %v2129 = vunpack.c.l.bf16 %v2097
  %v2130 = vunpack.c.l.bf16 %v2098
  %v2131 = vunpack.c.l.bf16 %v2099
  %v2132 = vunpack.c.l.bf16 %v2100
  %v2133 = vunpack.c.l.bf16 %v2101
  %v2134 = vunpack.c.l.bf16 %v2102
  %v2135 = vunpack.c.l.bf16 %v2103
  %v2136 = vunpack.c.l.bf16 %v2104
  %v2137 = vunpack.c.l.bf16 %v2105
  %v2138 = vunpack.c.l.bf16 %v2106
  %v2139 = vunpack.c.l.bf16 %v2107
  %v2140 = vunpack.c.l.bf16 %v2108
  %v2141 = vunpack.c.l.bf16 %v2109
  %v2142 = vunpack.c.l.bf16 %v2110
  %v2143 = vunpack.c.l.bf16 %v2111
  %v2144 = vunpack.c.l.bf16 %v2112
  %v2145 = vmul.f32 %v2113, %v2129
  %v2146 = vmul.f32 %v2114, %v2130
  %v2147 = vmul.f32 %v2115, %v2131
  %v2148 = vmul.f32 %v2116, %v2132
  %v2149 = vmul.f32 %v2117, %v2133
  %v2150 = vmul.f32 %v2118, %v2134
  %v2151 = vmul.f32 %v2119, %v2135
  %v2152 = vmul.f32 %v2120, %v2136
  %v2153 = vmul.f32 %v2121, %v2137
  %v2154 = vmul.f32 %v2122, %v2138
  %v2155 = vmul.f32 %v2123, %v2139
  %v2156 = vmul.f32 %v2124, %v2140
  %v2157 = vmul.f32 %v2125, %v2141
  %v2158 = vmul.f32 %v2126, %v2142
  %v2159 = vmul.f32 %v2127, %v2143
  %v2160 = vmul.f32 %v2128, %v2144
  %v2161 = vpack.c.bf16 %v2145, %v2145
  %v2162 = vpack.c.bf16 %v2146, %v2146
  %v2163 = vpack.c.bf16 %v2147, %v2147
  %v2164 = vpack.c.bf16 %v2148, %v2148
  %v2165 = vpack.c.bf16 %v2149, %v2149
  %v2166 = vpack.c.bf16 %v2150, %v2150
  %v2167 = vpack.c.bf16 %v2151, %v2151
  %v2168 = vpack.c.bf16 %v2152, %v2152
  %v2169 = vpack.c.bf16 %v2153, %v2153
  %v2170 = vpack.c.bf16 %v2154, %v2154
  %v2171 = vpack.c.bf16 %v2155, %v2155
  %v2172 = vpack.c.bf16 %v2156, %v2156
  %v2173 = vpack.c.bf16 %v2157, %v2157
  %v2174 = vpack.c.bf16 %v2158, %v2158
  %v2175 = vpack.c.bf16 %v2159, %v2159
  %v2176 = vpack.c.bf16 %v2160, %v2160
  %s2177 = scalar_lea.vmem %s2, 10
  %v2178 = vld [vmem:[%s2177] sm:$0x3]
  %v2180 = vsel %vm711, %v2178, 0
  %v2183 = vsel %vm715, %v2161, 0
  %v2186 = vsel %vm715, %v2162, 0
  %v2189 = vsel %vm715, %v2163, 0
  %v2192 = vsel %vm715, %v2164, 0
  %v2195 = vsel %vm715, %v2165, 0
  %v2198 = vsel %vm715, %v2166, 0
  %v2201 = vsel %vm715, %v2167, 0
  %v2204 = vsel %vm715, %v2168, 0
  %v2207 = vsel %vm715, %v2169, 0
  %v2210 = vsel %vm715, %v2170, 0
  %v2213 = vsel %vm715, %v2171, 0
  %v2216 = vsel %vm715, %v2172, 0
  %v2219 = vsel %vm715, %v2173, 0
  %v2222 = vsel %vm715, %v2174, 0
  %v2225 = vsel %vm715, %v2175, 0
  %v2228 = vsel %vm715, %v2176, 0
  %2230 = vmatpush.bf16.msra.mxu0 0
  %2231 = vmatpush.bf16.msra.mxu0 0
  %2232 = vmatpush.bf16.msra.mxu0 0
  %2233 = vmatpush.bf16.msra.mxu0 0
  %2234 = vmatpush.bf16.msra.mxu0 0
  %2235 = vmatpush.bf16.msra.mxu0 0
  %2236 = vmatpush.bf16.msra.mxu0 0
  %2237 = vmatpush.bf16.msra.mxu0 %v2183
  %2238 = vmatmul.bf16.gmra.mxu0 %v2180
  %v2239 = vpop.f32.mrf.mxu0
  %v2240 = vadd.f32 0.0, %v2239
  %v2241 = vpop.f32.mrf.mxu0
  %2242 = vdwg.mxu0
  %2243 = vmatpush.bf16.msra.mxu0 0
  %2244 = vmatpush.bf16.msra.mxu0 0
  %2245 = vmatpush.bf16.msra.mxu0 0
  %2246 = vmatpush.bf16.msra.mxu0 0
  %2247 = vmatpush.bf16.msra.mxu0 0
  %2248 = vmatpush.bf16.msra.mxu0 0
  %2249 = vmatpush.bf16.msra.mxu0 0
  %2250 = vmatpush.bf16.msra.mxu0 %v2186
  %2251 = vmatmul.bf16.gmra.mxu0 %v2180
  %v2252 = vpop.f32.mrf.mxu0
  %v2253 = vadd.f32 0.0, %v2252
  %v2254 = vpop.f32.mrf.mxu0
  %2255 = vdwg.mxu0
  %2256 = vmatpush.bf16.msra.mxu0 0
  %2257 = vmatpush.bf16.msra.mxu0 0
  %2258 = vmatpush.bf16.msra.mxu0 0
  %2259 = vmatpush.bf16.msra.mxu0 0
  %2260 = vmatpush.bf16.msra.mxu0 0
  %2261 = vmatpush.bf16.msra.mxu0 0
  %2262 = vmatpush.bf16.msra.mxu0 0
  %2263 = vmatpush.bf16.msra.mxu0 %v2189
  %2264 = vmatmul.bf16.gmra.mxu0 %v2180
  %v2265 = vpop.f32.mrf.mxu0
  %v2266 = vadd.f32 0.0, %v2265
  %v2267 = vpop.f32.mrf.mxu0
  %2268 = vdwg.mxu0
  %2269 = vmatpush.bf16.msra.mxu0 0
  %2270 = vmatpush.bf16.msra.mxu0 0
  %2271 = vmatpush.bf16.msra.mxu0 0
  %2272 = vmatpush.bf16.msra.mxu0 0
  %2273 = vmatpush.bf16.msra.mxu0 0
  %2274 = vmatpush.bf16.msra.mxu0 0
  %2275 = vmatpush.bf16.msra.mxu0 0
  %2276 = vmatpush.bf16.msra.mxu0 %v2192
  %2277 = vmatmul.bf16.gmra.mxu0 %v2180
  %v2278 = vpop.f32.mrf.mxu0
  %v2279 = vadd.f32 0.0, %v2278
  %v2280 = vpop.f32.mrf.mxu0
  %2281 = vdwg.mxu0
  %2282 = vmatpush.bf16.msra.mxu0 0
  %2283 = vmatpush.bf16.msra.mxu0 0
  %2284 = vmatpush.bf16.msra.mxu0 0
  %2285 = vmatpush.bf16.msra.mxu0 0
  %2286 = vmatpush.bf16.msra.mxu0 0
  %2287 = vmatpush.bf16.msra.mxu0 0
  %2288 = vmatpush.bf16.msra.mxu0 0
  %2289 = vmatpush.bf16.msra.mxu0 %v2195
  %2290 = vmatmul.bf16.gmra.mxu0 %v2180
  %v2291 = vpop.f32.mrf.mxu0
  %v2292 = vadd.f32 0.0, %v2291
  %v2293 = vpop.f32.mrf.mxu0
  %2294 = vdwg.mxu0
  %2295 = vmatpush.bf16.msra.mxu0 0
  %2296 = vmatpush.bf16.msra.mxu0 0
  %2297 = vmatpush.bf16.msra.mxu0 0
  %2298 = vmatpush.bf16.msra.mxu0 0
  %2299 = vmatpush.bf16.msra.mxu0 0
  %2300 = vmatpush.bf16.msra.mxu0 0
  %2301 = vmatpush.bf16.msra.mxu0 0
  %2302 = vmatpush.bf16.msra.mxu0 %v2198
  %2303 = vmatmul.bf16.gmra.mxu0 %v2180
  %v2304 = vpop.f32.mrf.mxu0
  %v2305 = vadd.f32 0.0, %v2304
  %v2306 = vpop.f32.mrf.mxu0
  %2307 = vdwg.mxu0
  %2308 = vmatpush.bf16.msra.mxu0 0
  %2309 = vmatpush.bf16.msra.mxu0 0
  %2310 = vmatpush.bf16.msra.mxu0 0
  %2311 = vmatpush.bf16.msra.mxu0 0
  %2312 = vmatpush.bf16.msra.mxu0 0
  %2313 = vmatpush.bf16.msra.mxu0 0
  %2314 = vmatpush.bf16.msra.mxu0 0
  %2315 = vmatpush.bf16.msra.mxu0 %v2201
  %2316 = vmatmul.bf16.gmra.mxu0 %v2180
  %v2317 = vpop.f32.mrf.mxu0
  %v2318 = vadd.f32 0.0, %v2317
  %v2319 = vpop.f32.mrf.mxu0
  %2320 = vdwg.mxu0
  %2321 = vmatpush.bf16.msra.mxu0 0
  %2322 = vmatpush.bf16.msra.mxu0 0
  %2323 = vmatpush.bf16.msra.mxu0 0
  %2324 = vmatpush.bf16.msra.mxu0 0
  %2325 = vmatpush.bf16.msra.mxu0 0
  %2326 = vmatpush.bf16.msra.mxu0 0
  %2327 = vmatpush.bf16.msra.mxu0 0
  %2328 = vmatpush.bf16.msra.mxu0 %v2204
  %2329 = vmatmul.bf16.gmra.mxu0 %v2180
  %v2330 = vpop.f32.mrf.mxu0
  %v2331 = vadd.f32 0.0, %v2330
  %v2332 = vpop.f32.mrf.mxu0
  %2333 = vdwg.mxu0
  %2334 = vmatpush.bf16.msra.mxu0 0
  %2335 = vmatpush.bf16.msra.mxu0 0
  %2336 = vmatpush.bf16.msra.mxu0 0
  %2337 = vmatpush.bf16.msra.mxu0 0
  %2338 = vmatpush.bf16.msra.mxu0 0
  %2339 = vmatpush.bf16.msra.mxu0 0
  %2340 = vmatpush.bf16.msra.mxu0 0
  %2341 = vmatpush.bf16.msra.mxu0 %v2207
  %2342 = vmatmul.bf16.gmra.mxu0 %v2180
  %v2343 = vpop.f32.mrf.mxu0
  %v2344 = vadd.f32 0.0, %v2343
  %v2345 = vpop.f32.mrf.mxu0
  %2346 = vdwg.mxu0
  %2347 = vmatpush.bf16.msra.mxu0 0
  %2348 = vmatpush.bf16.msra.mxu0 0
  %2349 = vmatpush.bf16.msra.mxu0 0
  %2350 = vmatpush.bf16.msra.mxu0 0
  %2351 = vmatpush.bf16.msra.mxu0 0
  %2352 = vmatpush.bf16.msra.mxu0 0
  %2353 = vmatpush.bf16.msra.mxu0 0
  %2354 = vmatpush.bf16.msra.mxu0 %v2210
  %2355 = vmatmul.bf16.gmra.mxu0 %v2180
  %v2356 = vpop.f32.mrf.mxu0
  %v2357 = vadd.f32 0.0, %v2356
  %v2358 = vpop.f32.mrf.mxu0
  %2359 = vdwg.mxu0
  %2360 = vmatpush.bf16.msra.mxu0 0
  %2361 = vmatpush.bf16.msra.mxu0 0
  %2362 = vmatpush.bf16.msra.mxu0 0
  %2363 = vmatpush.bf16.msra.mxu0 0
  %2364 = vmatpush.bf16.msra.mxu0 0
  %2365 = vmatpush.bf16.msra.mxu0 0
  %2366 = vmatpush.bf16.msra.mxu0 0
  %2367 = vmatpush.bf16.msra.mxu0 %v2213
  %2368 = vmatmul.bf16.gmra.mxu0 %v2180
  %v2369 = vpop.f32.mrf.mxu0
  %v2370 = vadd.f32 0.0, %v2369
  %v2371 = vpop.f32.mrf.mxu0
  %2372 = vdwg.mxu0
  %2373 = vmatpush.bf16.msra.mxu0 0
  %2374 = vmatpush.bf16.msra.mxu0 0
  %2375 = vmatpush.bf16.msra.mxu0 0
  %2376 = vmatpush.bf16.msra.mxu0 0
  %2377 = vmatpush.bf16.msra.mxu0 0
  %2378 = vmatpush.bf16.msra.mxu0 0
  %2379 = vmatpush.bf16.msra.mxu0 0
  %2380 = vmatpush.bf16.msra.mxu0 %v2216
  %2381 = vmatmul.bf16.gmra.mxu0 %v2180
  %v2382 = vpop.f32.mrf.mxu0
  %v2383 = vadd.f32 0.0, %v2382
  %v2384 = vpop.f32.mrf.mxu0
  %2385 = vdwg.mxu0
  %2386 = vmatpush.bf16.msra.mxu0 0
  %2387 = vmatpush.bf16.msra.mxu0 0
  %2388 = vmatpush.bf16.msra.mxu0 0
  %2389 = vmatpush.bf16.msra.mxu0 0
  %2390 = vmatpush.bf16.msra.mxu0 0
  %2391 = vmatpush.bf16.msra.mxu0 0
  %2392 = vmatpush.bf16.msra.mxu0 0
  %2393 = vmatpush.bf16.msra.mxu0 %v2219
  %2394 = vmatmul.bf16.gmra.mxu0 %v2180
  %v2395 = vpop.f32.mrf.mxu0
  %v2396 = vadd.f32 0.0, %v2395
  %v2397 = vpop.f32.mrf.mxu0
  %2398 = vdwg.mxu0
  %2399 = vmatpush.bf16.msra.mxu0 0
  %2400 = vmatpush.bf16.msra.mxu0 0
  %2401 = vmatpush.bf16.msra.mxu0 0
  %2402 = vmatpush.bf16.msra.mxu0 0
  %2403 = vmatpush.bf16.msra.mxu0 0
  %2404 = vmatpush.bf16.msra.mxu0 0
  %2405 = vmatpush.bf16.msra.mxu0 0
  %2406 = vmatpush.bf16.msra.mxu0 %v2222
  %2407 = vmatmul.bf16.gmra.mxu0 %v2180
  %v2408 = vpop.f32.mrf.mxu0
  %v2409 = vadd.f32 0.0, %v2408
  %v2410 = vpop.f32.mrf.mxu0
  %2411 = vdwg.mxu0
  %2412 = vmatpush.bf16.msra.mxu0 0
  %2413 = vmatpush.bf16.msra.mxu0 0
  %2414 = vmatpush.bf16.msra.mxu0 0
  %2415 = vmatpush.bf16.msra.mxu0 0
  %2416 = vmatpush.bf16.msra.mxu0 0
  %2417 = vmatpush.bf16.msra.mxu0 0
  %2418 = vmatpush.bf16.msra.mxu0 0
  %2419 = vmatpush.bf16.msra.mxu0 %v2225
  %2420 = vmatmul.bf16.gmra.mxu0 %v2180
  %v2421 = vpop.f32.mrf.mxu0
  %v2422 = vadd.f32 0.0, %v2421
  %v2423 = vpop.f32.mrf.mxu0
  %2424 = vdwg.mxu0
  %2425 = vmatpush.bf16.msra.mxu0 0
  %2426 = vmatpush.bf16.msra.mxu0 0
  %2427 = vmatpush.bf16.msra.mxu0 0
  %2428 = vmatpush.bf16.msra.mxu0 0
  %2429 = vmatpush.bf16.msra.mxu0 0
  %2430 = vmatpush.bf16.msra.mxu0 0
  %2431 = vmatpush.bf16.msra.mxu0 0
  %2432 = vmatpush.bf16.msra.mxu0 %v2228
  %2433 = vmatmul.bf16.gmra.mxu0 %v2180
  %v2434 = vpop.f32.mrf.mxu0
  %v2435 = vadd.f32 0.0, %v2434
  %v2436 = vpop.f32.mrf.mxu0
  %2437 = vdwg.mxu0
  %v2439 = vsel %vm711, %v1988, 0
  %2441 = vmatpush.bf16.msra.mxu0 0
  %2442 = vmatpush.bf16.msra.mxu0 0
  %2443 = vmatpush.bf16.msra.mxu0 0
  %2444 = vmatpush.bf16.msra.mxu0 0
  %2445 = vmatpush.bf16.msra.mxu0 0
  %2446 = vmatpush.bf16.msra.mxu0 0
  %2447 = vmatpush.bf16.msra.mxu0 0
  %2448 = vmatpush.bf16.msra.mxu0 %v717
  %2449 = vmatmul.bf16.gmra.mxu0 %v2439
  %v2450 = vpop.f32.mrf.mxu0
  %v2451 = vadd.f32 %v2240, %v2450
  %v2452 = vpop.f32.mrf.mxu0
  %2453 = vdwg.mxu0
  %2454 = vmatpush.bf16.msra.mxu0 0
  %2455 = vmatpush.bf16.msra.mxu0 0
  %2456 = vmatpush.bf16.msra.mxu0 0
  %2457 = vmatpush.bf16.msra.mxu0 0
  %2458 = vmatpush.bf16.msra.mxu0 0
  %2459 = vmatpush.bf16.msra.mxu0 0
  %2460 = vmatpush.bf16.msra.mxu0 0
  %2461 = vmatpush.bf16.msra.mxu0 %v720
  %2462 = vmatmul.bf16.gmra.mxu0 %v2439
  %v2463 = vpop.f32.mrf.mxu0
  %v2464 = vadd.f32 %v2253, %v2463
  %v2465 = vpop.f32.mrf.mxu0
  %2466 = vdwg.mxu0
  %2467 = vmatpush.bf16.msra.mxu0 0
  %2468 = vmatpush.bf16.msra.mxu0 0
  %2469 = vmatpush.bf16.msra.mxu0 0
  %2470 = vmatpush.bf16.msra.mxu0 0
  %2471 = vmatpush.bf16.msra.mxu0 0
  %2472 = vmatpush.bf16.msra.mxu0 0
  %2473 = vmatpush.bf16.msra.mxu0 0
  %2474 = vmatpush.bf16.msra.mxu0 %v723
  %2475 = vmatmul.bf16.gmra.mxu0 %v2439
  %v2476 = vpop.f32.mrf.mxu0
  %v2477 = vadd.f32 %v2266, %v2476
  %v2478 = vpop.f32.mrf.mxu0
  %2479 = vdwg.mxu0
  %2480 = vmatpush.bf16.msra.mxu0 0
  %2481 = vmatpush.bf16.msra.mxu0 0
  %2482 = vmatpush.bf16.msra.mxu0 0
  %2483 = vmatpush.bf16.msra.mxu0 0
  %2484 = vmatpush.bf16.msra.mxu0 0
  %2485 = vmatpush.bf16.msra.mxu0 0
  %2486 = vmatpush.bf16.msra.mxu0 0
  %2487 = vmatpush.bf16.msra.mxu0 %v726
  %2488 = vmatmul.bf16.gmra.mxu0 %v2439
  %v2489 = vpop.f32.mrf.mxu0
  %v2490 = vadd.f32 %v2279, %v2489
  %v2491 = vpop.f32.mrf.mxu0
  %2492 = vdwg.mxu0
  %2493 = vmatpush.bf16.msra.mxu0 0
  %2494 = vmatpush.bf16.msra.mxu0 0
  %2495 = vmatpush.bf16.msra.mxu0 0
  %2496 = vmatpush.bf16.msra.mxu0 0
  %2497 = vmatpush.bf16.msra.mxu0 0
  %2498 = vmatpush.bf16.msra.mxu0 0
  %2499 = vmatpush.bf16.msra.mxu0 0
  %2500 = vmatpush.bf16.msra.mxu0 %v729
  %2501 = vmatmul.bf16.gmra.mxu0 %v2439
  %v2502 = vpop.f32.mrf.mxu0
  %v2503 = vadd.f32 %v2292, %v2502
  %v2504 = vpop.f32.mrf.mxu0
  %2505 = vdwg.mxu0
  %2506 = vmatpush.bf16.msra.mxu0 0
  %2507 = vmatpush.bf16.msra.mxu0 0
  %2508 = vmatpush.bf16.msra.mxu0 0
  %2509 = vmatpush.bf16.msra.mxu0 0
  %2510 = vmatpush.bf16.msra.mxu0 0
  %2511 = vmatpush.bf16.msra.mxu0 0
  %2512 = vmatpush.bf16.msra.mxu0 0
  %2513 = vmatpush.bf16.msra.mxu0 %v732
  %2514 = vmatmul.bf16.gmra.mxu0 %v2439
  %v2515 = vpop.f32.mrf.mxu0
  %v2516 = vadd.f32 %v2305, %v2515
  %v2517 = vpop.f32.mrf.mxu0
  %2518 = vdwg.mxu0
  %2519 = vmatpush.bf16.msra.mxu0 0
  %2520 = vmatpush.bf16.msra.mxu0 0
  %2521 = vmatpush.bf16.msra.mxu0 0
  %2522 = vmatpush.bf16.msra.mxu0 0
  %2523 = vmatpush.bf16.msra.mxu0 0
  %2524 = vmatpush.bf16.msra.mxu0 0
  %2525 = vmatpush.bf16.msra.mxu0 0
  %2526 = vmatpush.bf16.msra.mxu0 %v735
  %2527 = vmatmul.bf16.gmra.mxu0 %v2439
  %v2528 = vpop.f32.mrf.mxu0
  %v2529 = vadd.f32 %v2318, %v2528
  %v2530 = vpop.f32.mrf.mxu0
  %2531 = vdwg.mxu0
  %2532 = vmatpush.bf16.msra.mxu0 0
  %2533 = vmatpush.bf16.msra.mxu0 0
  %2534 = vmatpush.bf16.msra.mxu0 0
  %2535 = vmatpush.bf16.msra.mxu0 0
  %2536 = vmatpush.bf16.msra.mxu0 0
  %2537 = vmatpush.bf16.msra.mxu0 0
  %2538 = vmatpush.bf16.msra.mxu0 0
  %2539 = vmatpush.bf16.msra.mxu0 %v738
  %2540 = vmatmul.bf16.gmra.mxu0 %v2439
  %v2541 = vpop.f32.mrf.mxu0
  %v2542 = vadd.f32 %v2331, %v2541
  %v2543 = vpop.f32.mrf.mxu0
  %2544 = vdwg.mxu0
  %2545 = vmatpush.bf16.msra.mxu0 0
  %2546 = vmatpush.bf16.msra.mxu0 0
  %2547 = vmatpush.bf16.msra.mxu0 0
  %2548 = vmatpush.bf16.msra.mxu0 0
  %2549 = vmatpush.bf16.msra.mxu0 0
  %2550 = vmatpush.bf16.msra.mxu0 0
  %2551 = vmatpush.bf16.msra.mxu0 0
  %2552 = vmatpush.bf16.msra.mxu0 %v741
  %2553 = vmatmul.bf16.gmra.mxu0 %v2439
  %v2554 = vpop.f32.mrf.mxu0
  %v2555 = vadd.f32 %v2344, %v2554
  %v2556 = vpop.f32.mrf.mxu0
  %2557 = vdwg.mxu0
  %2558 = vmatpush.bf16.msra.mxu0 0
  %2559 = vmatpush.bf16.msra.mxu0 0
  %2560 = vmatpush.bf16.msra.mxu0 0
  %2561 = vmatpush.bf16.msra.mxu0 0
  %2562 = vmatpush.bf16.msra.mxu0 0
  %2563 = vmatpush.bf16.msra.mxu0 0
  %2564 = vmatpush.bf16.msra.mxu0 0
  %2565 = vmatpush.bf16.msra.mxu0 %v744
  %2566 = vmatmul.bf16.gmra.mxu0 %v2439
  %v2567 = vpop.f32.mrf.mxu0
  %v2568 = vadd.f32 %v2357, %v2567
  %v2569 = vpop.f32.mrf.mxu0
  %2570 = vdwg.mxu0
  %2571 = vmatpush.bf16.msra.mxu0 0
  %2572 = vmatpush.bf16.msra.mxu0 0
  %2573 = vmatpush.bf16.msra.mxu0 0
  %2574 = vmatpush.bf16.msra.mxu0 0
  %2575 = vmatpush.bf16.msra.mxu0 0
  %2576 = vmatpush.bf16.msra.mxu0 0
  %2577 = vmatpush.bf16.msra.mxu0 0
  %2578 = vmatpush.bf16.msra.mxu0 %v747
  %2579 = vmatmul.bf16.gmra.mxu0 %v2439
  %v2580 = vpop.f32.mrf.mxu0
  %v2581 = vadd.f32 %v2370, %v2580
  %v2582 = vpop.f32.mrf.mxu0
  %2583 = vdwg.mxu0
  %2584 = vmatpush.bf16.msra.mxu0 0
  %2585 = vmatpush.bf16.msra.mxu0 0
  %2586 = vmatpush.bf16.msra.mxu0 0
  %2587 = vmatpush.bf16.msra.mxu0 0
  %2588 = vmatpush.bf16.msra.mxu0 0
  %2589 = vmatpush.bf16.msra.mxu0 0
  %2590 = vmatpush.bf16.msra.mxu0 0
  %2591 = vmatpush.bf16.msra.mxu0 %v750
  %2592 = vmatmul.bf16.gmra.mxu0 %v2439
  %v2593 = vpop.f32.mrf.mxu0
  %v2594 = vadd.f32 %v2383, %v2593
  %v2595 = vpop.f32.mrf.mxu0
  %2596 = vdwg.mxu0
  %2597 = vmatpush.bf16.msra.mxu0 0
  %2598 = vmatpush.bf16.msra.mxu0 0
  %2599 = vmatpush.bf16.msra.mxu0 0
  %2600 = vmatpush.bf16.msra.mxu0 0
  %2601 = vmatpush.bf16.msra.mxu0 0
  %2602 = vmatpush.bf16.msra.mxu0 0
  %2603 = vmatpush.bf16.msra.mxu0 0
  %2604 = vmatpush.bf16.msra.mxu0 %v753
  %2605 = vmatmul.bf16.gmra.mxu0 %v2439
  %v2606 = vpop.f32.mrf.mxu0
  %v2607 = vadd.f32 %v2396, %v2606
  %v2608 = vpop.f32.mrf.mxu0
  %2609 = vdwg.mxu0
  %2610 = vmatpush.bf16.msra.mxu0 0
  %2611 = vmatpush.bf16.msra.mxu0 0
  %2612 = vmatpush.bf16.msra.mxu0 0
  %2613 = vmatpush.bf16.msra.mxu0 0
  %2614 = vmatpush.bf16.msra.mxu0 0
  %2615 = vmatpush.bf16.msra.mxu0 0
  %2616 = vmatpush.bf16.msra.mxu0 0
  %2617 = vmatpush.bf16.msra.mxu0 %v756
  %2618 = vmatmul.bf16.gmra.mxu0 %v2439
  %v2619 = vpop.f32.mrf.mxu0
  %v2620 = vadd.f32 %v2409, %v2619
  %v2621 = vpop.f32.mrf.mxu0
  %2622 = vdwg.mxu0
  %2623 = vmatpush.bf16.msra.mxu0 0
  %2624 = vmatpush.bf16.msra.mxu0 0
  %2625 = vmatpush.bf16.msra.mxu0 0
  %2626 = vmatpush.bf16.msra.mxu0 0
  %2627 = vmatpush.bf16.msra.mxu0 0
  %2628 = vmatpush.bf16.msra.mxu0 0
  %2629 = vmatpush.bf16.msra.mxu0 0
  %2630 = vmatpush.bf16.msra.mxu0 %v759
  %2631 = vmatmul.bf16.gmra.mxu0 %v2439
  %v2632 = vpop.f32.mrf.mxu0
  %v2633 = vadd.f32 %v2422, %v2632
  %v2634 = vpop.f32.mrf.mxu0
  %2635 = vdwg.mxu0
  %2636 = vmatpush.bf16.msra.mxu0 0
  %2637 = vmatpush.bf16.msra.mxu0 0
  %2638 = vmatpush.bf16.msra.mxu0 0
  %2639 = vmatpush.bf16.msra.mxu0 0
  %2640 = vmatpush.bf16.msra.mxu0 0
  %2641 = vmatpush.bf16.msra.mxu0 0
  %2642 = vmatpush.bf16.msra.mxu0 0
  %2643 = vmatpush.bf16.msra.mxu0 %v762
  %2644 = vmatmul.bf16.gmra.mxu0 %v2439
  %v2645 = vpop.f32.mrf.mxu0
  %v2646 = vadd.f32 %v2435, %v2645
  %v2647 = vpop.f32.mrf.mxu0
  %2648 = vdwg.mxu0
  %s2649 = scalar_lea.vmem %s2, 12
  %v2650 = vld [vmem:[%s2649] sm:$0x3]
  %v2652 = vsel %vm711, %v2650, 0
  %2654 = vmatpush.bf16.msra.mxu0 0
  %2655 = vmatpush.bf16.msra.mxu0 0
  %2656 = vmatpush.bf16.msra.mxu0 0
  %2657 = vmatpush.bf16.msra.mxu0 0
  %2658 = vmatpush.bf16.msra.mxu0 0
  %2659 = vmatpush.bf16.msra.mxu0 0
  %2660 = vmatpush.bf16.msra.mxu0 0
  %2661 = vmatpush.bf16.msra.mxu0 %v1630
  %2662 = vmatmul.bf16.gmra.mxu0 %v2652
  %v2663 = vpop.f32.mrf.mxu0
  %v2664 = vadd.f32 0.0, %v2663
  %v2665 = vpop.f32.mrf.mxu0
  %2666 = vdwg.mxu0
  %2667 = vmatpush.bf16.msra.mxu0 0
  %2668 = vmatpush.bf16.msra.mxu0 0
  %2669 = vmatpush.bf16.msra.mxu0 0
  %2670 = vmatpush.bf16.msra.mxu0 0
  %2671 = vmatpush.bf16.msra.mxu0 0
  %2672 = vmatpush.bf16.msra.mxu0 0
  %2673 = vmatpush.bf16.msra.mxu0 0
  %2674 = vmatpush.bf16.msra.mxu0 %v1633
  %2675 = vmatmul.bf16.gmra.mxu0 %v2652
  %v2676 = vpop.f32.mrf.mxu0
  %v2677 = vadd.f32 0.0, %v2676
  %v2678 = vpop.f32.mrf.mxu0
  %2679 = vdwg.mxu0
  %2680 = vmatpush.bf16.msra.mxu0 0
  %2681 = vmatpush.bf16.msra.mxu0 0
  %2682 = vmatpush.bf16.msra.mxu0 0
  %2683 = vmatpush.bf16.msra.mxu0 0
  %2684 = vmatpush.bf16.msra.mxu0 0
  %2685 = vmatpush.bf16.msra.mxu0 0
  %2686 = vmatpush.bf16.msra.mxu0 0
  %2687 = vmatpush.bf16.msra.mxu0 %v1636
  %2688 = vmatmul.bf16.gmra.mxu0 %v2652
  %v2689 = vpop.f32.mrf.mxu0
  %v2690 = vadd.f32 0.0, %v2689
  %v2691 = vpop.f32.mrf.mxu0
  %2692 = vdwg.mxu0
  %2693 = vmatpush.bf16.msra.mxu0 0
  %2694 = vmatpush.bf16.msra.mxu0 0
  %2695 = vmatpush.bf16.msra.mxu0 0
  %2696 = vmatpush.bf16.msra.mxu0 0
  %2697 = vmatpush.bf16.msra.mxu0 0
  %2698 = vmatpush.bf16.msra.mxu0 0
  %2699 = vmatpush.bf16.msra.mxu0 0
  %2700 = vmatpush.bf16.msra.mxu0 %v1639
  %2701 = vmatmul.bf16.gmra.mxu0 %v2652
  %v2702 = vpop.f32.mrf.mxu0
  %v2703 = vadd.f32 0.0, %v2702
  %v2704 = vpop.f32.mrf.mxu0
  %2705 = vdwg.mxu0
  %2706 = vmatpush.bf16.msra.mxu0 0
  %2707 = vmatpush.bf16.msra.mxu0 0
  %2708 = vmatpush.bf16.msra.mxu0 0
  %2709 = vmatpush.bf16.msra.mxu0 0
  %2710 = vmatpush.bf16.msra.mxu0 0
  %2711 = vmatpush.bf16.msra.mxu0 0
  %2712 = vmatpush.bf16.msra.mxu0 0
  %2713 = vmatpush.bf16.msra.mxu0 %v1642
  %2714 = vmatmul.bf16.gmra.mxu0 %v2652
  %v2715 = vpop.f32.mrf.mxu0
  %v2716 = vadd.f32 0.0, %v2715
  %v2717 = vpop.f32.mrf.mxu0
  %2718 = vdwg.mxu0
  %2719 = vmatpush.bf16.msra.mxu0 0
  %2720 = vmatpush.bf16.msra.mxu0 0
  %2721 = vmatpush.bf16.msra.mxu0 0
  %2722 = vmatpush.bf16.msra.mxu0 0
  %2723 = vmatpush.bf16.msra.mxu0 0
  %2724 = vmatpush.bf16.msra.mxu0 0
  %2725 = vmatpush.bf16.msra.mxu0 0
  %2726 = vmatpush.bf16.msra.mxu0 %v1645
  %2727 = vmatmul.bf16.gmra.mxu0 %v2652
  %v2728 = vpop.f32.mrf.mxu0
  %v2729 = vadd.f32 0.0, %v2728
  %v2730 = vpop.f32.mrf.mxu0
  %2731 = vdwg.mxu0
  %2732 = vmatpush.bf16.msra.mxu0 0
  %2733 = vmatpush.bf16.msra.mxu0 0
  %2734 = vmatpush.bf16.msra.mxu0 0
  %2735 = vmatpush.bf16.msra.mxu0 0
  %2736 = vmatpush.bf16.msra.mxu0 0
  %2737 = vmatpush.bf16.msra.mxu0 0
  %2738 = vmatpush.bf16.msra.mxu0 0
  %2739 = vmatpush.bf16.msra.mxu0 %v1648
  %2740 = vmatmul.bf16.gmra.mxu0 %v2652
  %v2741 = vpop.f32.mrf.mxu0
  %v2742 = vadd.f32 0.0, %v2741
  %v2743 = vpop.f32.mrf.mxu0
  %2744 = vdwg.mxu0
  %2745 = vmatpush.bf16.msra.mxu0 0
  %2746 = vmatpush.bf16.msra.mxu0 0
  %2747 = vmatpush.bf16.msra.mxu0 0
  %2748 = vmatpush.bf16.msra.mxu0 0
  %2749 = vmatpush.bf16.msra.mxu0 0
  %2750 = vmatpush.bf16.msra.mxu0 0
  %2751 = vmatpush.bf16.msra.mxu0 0
  %2752 = vmatpush.bf16.msra.mxu0 %v1651
  %2753 = vmatmul.bf16.gmra.mxu0 %v2652
  %v2754 = vpop.f32.mrf.mxu0
  %v2755 = vadd.f32 0.0, %v2754
  %v2756 = vpop.f32.mrf.mxu0
  %2757 = vdwg.mxu0
  %2758 = vmatpush.bf16.msra.mxu0 0
  %2759 = vmatpush.bf16.msra.mxu0 0
  %2760 = vmatpush.bf16.msra.mxu0 0
  %2761 = vmatpush.bf16.msra.mxu0 0
  %2762 = vmatpush.bf16.msra.mxu0 0
  %2763 = vmatpush.bf16.msra.mxu0 0
  %2764 = vmatpush.bf16.msra.mxu0 0
  %2765 = vmatpush.bf16.msra.mxu0 %v1654
  %2766 = vmatmul.bf16.gmra.mxu0 %v2652
  %v2767 = vpop.f32.mrf.mxu0
  %v2768 = vadd.f32 0.0, %v2767
  %v2769 = vpop.f32.mrf.mxu0
  %2770 = vdwg.mxu0
  %2771 = vmatpush.bf16.msra.mxu0 0
  %2772 = vmatpush.bf16.msra.mxu0 0
  %2773 = vmatpush.bf16.msra.mxu0 0
  %2774 = vmatpush.bf16.msra.mxu0 0
  %2775 = vmatpush.bf16.msra.mxu0 0
  %2776 = vmatpush.bf16.msra.mxu0 0
  %2777 = vmatpush.bf16.msra.mxu0 0
  %2778 = vmatpush.bf16.msra.mxu0 %v1657
  %2779 = vmatmul.bf16.gmra.mxu0 %v2652
  %v2780 = vpop.f32.mrf.mxu0
  %v2781 = vadd.f32 0.0, %v2780
  %v2782 = vpop.f32.mrf.mxu0
  %2783 = vdwg.mxu0
  %2784 = vmatpush.bf16.msra.mxu0 0
  %2785 = vmatpush.bf16.msra.mxu0 0
  %2786 = vmatpush.bf16.msra.mxu0 0
  %2787 = vmatpush.bf16.msra.mxu0 0
  %2788 = vmatpush.bf16.msra.mxu0 0
  %2789 = vmatpush.bf16.msra.mxu0 0
  %2790 = vmatpush.bf16.msra.mxu0 0
  %2791 = vmatpush.bf16.msra.mxu0 %v1660
  %2792 = vmatmul.bf16.gmra.mxu0 %v2652
  %v2793 = vpop.f32.mrf.mxu0
  %v2794 = vadd.f32 0.0, %v2793
  %v2795 = vpop.f32.mrf.mxu0
  %2796 = vdwg.mxu0
  %2797 = vmatpush.bf16.msra.mxu0 0
  %2798 = vmatpush.bf16.msra.mxu0 0
  %2799 = vmatpush.bf16.msra.mxu0 0
  %2800 = vmatpush.bf16.msra.mxu0 0
  %2801 = vmatpush.bf16.msra.mxu0 0
  %2802 = vmatpush.bf16.msra.mxu0 0
  %2803 = vmatpush.bf16.msra.mxu0 0
  %2804 = vmatpush.bf16.msra.mxu0 %v1663
  %2805 = vmatmul.bf16.gmra.mxu0 %v2652
  %v2806 = vpop.f32.mrf.mxu0
  %v2807 = vadd.f32 0.0, %v2806
  %v2808 = vpop.f32.mrf.mxu0
  %2809 = vdwg.mxu0
  %2810 = vmatpush.bf16.msra.mxu0 0
  %2811 = vmatpush.bf16.msra.mxu0 0
  %2812 = vmatpush.bf16.msra.mxu0 0
  %2813 = vmatpush.bf16.msra.mxu0 0
  %2814 = vmatpush.bf16.msra.mxu0 0
  %2815 = vmatpush.bf16.msra.mxu0 0
  %2816 = vmatpush.bf16.msra.mxu0 0
  %2817 = vmatpush.bf16.msra.mxu0 %v1666
  %2818 = vmatmul.bf16.gmra.mxu0 %v2652
  %v2819 = vpop.f32.mrf.mxu0
  %v2820 = vadd.f32 0.0, %v2819
  %v2821 = vpop.f32.mrf.mxu0
  %2822 = vdwg.mxu0
  %2823 = vmatpush.bf16.msra.mxu0 0
  %2824 = vmatpush.bf16.msra.mxu0 0
  %2825 = vmatpush.bf16.msra.mxu0 0
  %2826 = vmatpush.bf16.msra.mxu0 0
  %2827 = vmatpush.bf16.msra.mxu0 0
  %2828 = vmatpush.bf16.msra.mxu0 0
  %2829 = vmatpush.bf16.msra.mxu0 0
  %2830 = vmatpush.bf16.msra.mxu0 %v1669
  %2831 = vmatmul.bf16.gmra.mxu0 %v2652
  %v2832 = vpop.f32.mrf.mxu0
  %v2833 = vadd.f32 0.0, %v2832
  %v2834 = vpop.f32.mrf.mxu0
  %2835 = vdwg.mxu0
  %2836 = vmatpush.bf16.msra.mxu0 0
  %2837 = vmatpush.bf16.msra.mxu0 0
  %2838 = vmatpush.bf16.msra.mxu0 0
  %2839 = vmatpush.bf16.msra.mxu0 0
  %2840 = vmatpush.bf16.msra.mxu0 0
  %2841 = vmatpush.bf16.msra.mxu0 0
  %2842 = vmatpush.bf16.msra.mxu0 0
  %2843 = vmatpush.bf16.msra.mxu0 %v1672
  %2844 = vmatmul.bf16.gmra.mxu0 %v2652
  %v2845 = vpop.f32.mrf.mxu0
  %v2846 = vadd.f32 0.0, %v2845
  %v2847 = vpop.f32.mrf.mxu0
  %2848 = vdwg.mxu0
  %2849 = vmatpush.bf16.msra.mxu0 0
  %2850 = vmatpush.bf16.msra.mxu0 0
  %2851 = vmatpush.bf16.msra.mxu0 0
  %2852 = vmatpush.bf16.msra.mxu0 0
  %2853 = vmatpush.bf16.msra.mxu0 0
  %2854 = vmatpush.bf16.msra.mxu0 0
  %2855 = vmatpush.bf16.msra.mxu0 0
  %2856 = vmatpush.bf16.msra.mxu0 %v1675
  %2857 = vmatmul.bf16.gmra.mxu0 %v2652
  %v2858 = vpop.f32.mrf.mxu0
  %v2859 = vadd.f32 0.0, %v2858
  %v2860 = vpop.f32.mrf.mxu0
  %2861 = vdwg.mxu0
  %v2862 = vadd.f32 %v2451, %v2664
  %v2863 = vadd.f32 %v2464, %v2677
  %v2864 = vadd.f32 %v2477, %v2690
  %v2865 = vadd.f32 %v2490, %v2703
  %v2866 = vadd.f32 %v2503, %v2716
  %v2867 = vadd.f32 %v2516, %v2729
  %v2868 = vadd.f32 %v2529, %v2742
  %v2869 = vadd.f32 %v2542, %v2755
  %v2870 = vadd.f32 %v2555, %v2768
  %v2871 = vadd.f32 %v2568, %v2781
  %v2872 = vadd.f32 %v2581, %v2794
  %v2873 = vadd.f32 %v2594, %v2807
  %v2874 = vadd.f32 %v2607, %v2820
  %v2875 = vadd.f32 %v2620, %v2833
  %v2876 = vadd.f32 %v2633, %v2846
  %v2877 = vadd.f32 %v2646, %v2859
  %2878 = vrot.lane.b32.xlu0 %v311, 127
  %v2879 = vpop.permute.xlu0 %2878
  %2880 = vrot.lane.b32.xlu0 %v312, 127
  %v2881 = vpop.permute.xlu0 %2880
  %2882 = vrot.lane.b32.xlu0 %v313, 127
  %v2883 = vpop.permute.xlu0 %2882
  %2884 = vrot.lane.b32.xlu0 %v314, 127
  %v2885 = vpop.permute.xlu0 %2884
  %2886 = vrot.lane.b32.xlu0 %v315, 127
  %v2887 = vpop.permute.xlu0 %2886
  %2888 = vrot.lane.b32.xlu0 %v316, 127
  %v2889 = vpop.permute.xlu0 %2888
  %2890 = vrot.lane.b32.xlu0 %v317, 127
  %v2891 = vpop.permute.xlu0 %2890
  %2892 = vrot.lane.b32.xlu0 %v318, 127
  %v2893 = vpop.permute.xlu0 %2892
  %2894 = vrot.lane.b32.xlu0 %v319, 127
  %v2895 = vpop.permute.xlu0 %2894
  %2896 = vrot.lane.b32.xlu0 %v320, 127
  %v2897 = vpop.permute.xlu0 %2896
  %2898 = vrot.lane.b32.xlu0 %v321, 127
  %v2899 = vpop.permute.xlu0 %2898
  %2900 = vrot.lane.b32.xlu0 %v322, 127
  %v2901 = vpop.permute.xlu0 %2900
  %2902 = vrot.lane.b32.xlu0 %v323, 127
  %v2903 = vpop.permute.xlu0 %2902
  %2904 = vrot.lane.b32.xlu0 %v324, 127
  %v2905 = vpop.permute.xlu0 %2904
  %2906 = vrot.lane.b32.xlu0 %v325, 127
  %v2907 = vpop.permute.xlu0 %2906
  %2908 = vrot.lane.b32.xlu0 %v286, 127
  %v2909 = vpop.permute.xlu0 %2908
  %vm2910 = vcmask 1039360
  %v2911 = vsel %vm2910, %v2879, %v2881
  %v2912 = vsel %vm2910, %v2881, %v2883
  %v2913 = vsel %vm2910, %v2883, %v2885
  %v2914 = vsel %vm2910, %v2885, %v2887
  %v2915 = vsel %vm2910, %v2887, %v2889
  %v2916 = vsel %vm2910, %v2889, %v2891
  %v2917 = vsel %vm2910, %v2891, %v2893
  %v2918 = vsel %vm2910, %v2893, %v2895
  %v2919 = vsel %vm2910, %v2895, %v2897
  %v2920 = vsel %vm2910, %v2897, %v2899
  %v2921 = vsel %vm2910, %v2899, %v2901
  %v2922 = vsel %vm2910, %v2901, %v2903
  %v2923 = vsel %vm2910, %v2903, %v2905
  %v2924 = vsel %vm2910, %v2905, %v2907
  %v2925 = vsel %vm2910, %v2907, %v2909
  %vm2941 = vcmask 1039360
  %v2944 = vsel %vm2941, %v2909, %v2879
  %v2946 = vunpack.c.l.bf16 %v2911
  %v2947 = vunpack.c.l.bf16 %v2912
  %v2948 = vunpack.c.l.bf16 %v2913
  %v2949 = vunpack.c.l.bf16 %v2914
  %v2950 = vunpack.c.l.bf16 %v2915
  %v2951 = vunpack.c.l.bf16 %v2916
  %v2952 = vunpack.c.l.bf16 %v2917
  %v2953 = vunpack.c.l.bf16 %v2918
  %v2954 = vunpack.c.l.bf16 %v2919
  %v2955 = vunpack.c.l.bf16 %v2920
  %v2956 = vunpack.c.l.bf16 %v2921
  %v2957 = vunpack.c.l.bf16 %v2922
  %v2958 = vunpack.c.l.bf16 %v2923
  %v2959 = vunpack.c.l.bf16 %v2924
  %v2960 = vunpack.c.l.bf16 %v2925
  %v2961 = vunpack.c.l.bf16 %v2944
  %v2962 = vmul.f32 %v2946, %v2129
  %v2963 = vmul.f32 %v2947, %v2130
  %v2964 = vmul.f32 %v2948, %v2131
  %v2965 = vmul.f32 %v2949, %v2132
  %v2966 = vmul.f32 %v2950, %v2133
  %v2967 = vmul.f32 %v2951, %v2134
  %v2968 = vmul.f32 %v2952, %v2135
  %v2969 = vmul.f32 %v2953, %v2136
  %v2970 = vmul.f32 %v2954, %v2137
  %v2971 = vmul.f32 %v2955, %v2138
  %v2972 = vmul.f32 %v2956, %v2139
  %v2973 = vmul.f32 %v2957, %v2140
  %v2974 = vmul.f32 %v2958, %v2141
  %v2975 = vmul.f32 %v2959, %v2142
  %v2976 = vmul.f32 %v2960, %v2143
  %v2977 = vmul.f32 %v2961, %v2144
  %v2978 = vpack.c.bf16 %v2962, %v2962
  %v2979 = vpack.c.bf16 %v2963, %v2963
  %v2980 = vpack.c.bf16 %v2964, %v2964
  %v2981 = vpack.c.bf16 %v2965, %v2965
  %v2982 = vpack.c.bf16 %v2966, %v2966
  %v2983 = vpack.c.bf16 %v2967, %v2967
  %v2984 = vpack.c.bf16 %v2968, %v2968
  %v2985 = vpack.c.bf16 %v2969, %v2969
  %v2986 = vpack.c.bf16 %v2970, %v2970
  %v2987 = vpack.c.bf16 %v2971, %v2971
  %v2988 = vpack.c.bf16 %v2972, %v2972
  %v2989 = vpack.c.bf16 %v2973, %v2973
  %v2990 = vpack.c.bf16 %v2974, %v2974
  %v2991 = vpack.c.bf16 %v2975, %v2975
  %v2992 = vpack.c.bf16 %v2976, %v2976
  %v2993 = vpack.c.bf16 %v2977, %v2977
  %s2994 = scalar_lea.vmem %s2, 14
  %v2995 = vld [vmem:[%s2994] sm:$0x3]
  %v2997 = vsel %vm711, %v2995, 0
  %v3000 = vsel %vm715, %v2978, 0
  %v3003 = vsel %vm715, %v2979, 0
  %v3006 = vsel %vm715, %v2980, 0
  %v3009 = vsel %vm715, %v2981, 0
  %v3012 = vsel %vm715, %v2982, 0
  %v3015 = vsel %vm715, %v2983, 0
  %v3018 = vsel %vm715, %v2984, 0
  %v3021 = vsel %vm715, %v2985, 0
  %v3024 = vsel %vm715, %v2986, 0
  %v3027 = vsel %vm715, %v2987, 0
  %v3030 = vsel %vm715, %v2988, 0
  %v3033 = vsel %vm715, %v2989, 0
  %v3036 = vsel %vm715, %v2990, 0
  %v3039 = vsel %vm715, %v2991, 0
  %v3042 = vsel %vm715, %v2992, 0
  %v3045 = vsel %vm715, %v2993, 0
  %3047 = vmatpush.bf16.msra.mxu0 0
  %3048 = vmatpush.bf16.msra.mxu0 0
  %3049 = vmatpush.bf16.msra.mxu0 0
  %3050 = vmatpush.bf16.msra.mxu0 0
  %3051 = vmatpush.bf16.msra.mxu0 0
  %3052 = vmatpush.bf16.msra.mxu0 0
  %3053 = vmatpush.bf16.msra.mxu0 0
  %3054 = vmatpush.bf16.msra.mxu0 %v3000
  %3055 = vmatmul.bf16.gmra.mxu0 %v2997
  %v3056 = vpop.f32.mrf.mxu0
  %v3057 = vadd.f32 0.0, %v3056
  %v3058 = vpop.f32.mrf.mxu0
  %3059 = vdwg.mxu0
  %3060 = vmatpush.bf16.msra.mxu0 0
  %3061 = vmatpush.bf16.msra.mxu0 0
  %3062 = vmatpush.bf16.msra.mxu0 0
  %3063 = vmatpush.bf16.msra.mxu0 0
  %3064 = vmatpush.bf16.msra.mxu0 0
  %3065 = vmatpush.bf16.msra.mxu0 0
  %3066 = vmatpush.bf16.msra.mxu0 0
  %3067 = vmatpush.bf16.msra.mxu0 %v3003
  %3068 = vmatmul.bf16.gmra.mxu0 %v2997
  %v3069 = vpop.f32.mrf.mxu0
  %v3070 = vadd.f32 0.0, %v3069
  %v3071 = vpop.f32.mrf.mxu0
  %3072 = vdwg.mxu0
  %3073 = vmatpush.bf16.msra.mxu0 0
  %3074 = vmatpush.bf16.msra.mxu0 0
  %3075 = vmatpush.bf16.msra.mxu0 0
  %3076 = vmatpush.bf16.msra.mxu0 0
  %3077 = vmatpush.bf16.msra.mxu0 0
  %3078 = vmatpush.bf16.msra.mxu0 0
  %3079 = vmatpush.bf16.msra.mxu0 0
  %3080 = vmatpush.bf16.msra.mxu0 %v3006
  %3081 = vmatmul.bf16.gmra.mxu0 %v2997
  %v3082 = vpop.f32.mrf.mxu0
  %v3083 = vadd.f32 0.0, %v3082
  %v3084 = vpop.f32.mrf.mxu0
  %3085 = vdwg.mxu0
  %3086 = vmatpush.bf16.msra.mxu0 0
  %3087 = vmatpush.bf16.msra.mxu0 0
  %3088 = vmatpush.bf16.msra.mxu0 0
  %3089 = vmatpush.bf16.msra.mxu0 0
  %3090 = vmatpush.bf16.msra.mxu0 0
  %3091 = vmatpush.bf16.msra.mxu0 0
  %3092 = vmatpush.bf16.msra.mxu0 0
  %3093 = vmatpush.bf16.msra.mxu0 %v3009
  %3094 = vmatmul.bf16.gmra.mxu0 %v2997
  %v3095 = vpop.f32.mrf.mxu0
  %v3096 = vadd.f32 0.0, %v3095
  %v3097 = vpop.f32.mrf.mxu0
  %3098 = vdwg.mxu0
  %3099 = vmatpush.bf16.msra.mxu0 0
  %3100 = vmatpush.bf16.msra.mxu0 0
  %3101 = vmatpush.bf16.msra.mxu0 0
  %3102 = vmatpush.bf16.msra.mxu0 0
  %3103 = vmatpush.bf16.msra.mxu0 0
  %3104 = vmatpush.bf16.msra.mxu0 0
  %3105 = vmatpush.bf16.msra.mxu0 0
  %3106 = vmatpush.bf16.msra.mxu0 %v3012
  %3107 = vmatmul.bf16.gmra.mxu0 %v2997
  %v3108 = vpop.f32.mrf.mxu0
  %v3109 = vadd.f32 0.0, %v3108
  %v3110 = vpop.f32.mrf.mxu0
  %3111 = vdwg.mxu0
  %3112 = vmatpush.bf16.msra.mxu0 0
  %3113 = vmatpush.bf16.msra.mxu0 0
  %3114 = vmatpush.bf16.msra.mxu0 0
  %3115 = vmatpush.bf16.msra.mxu0 0
  %3116 = vmatpush.bf16.msra.mxu0 0
  %3117 = vmatpush.bf16.msra.mxu0 0
  %3118 = vmatpush.bf16.msra.mxu0 0
  %3119 = vmatpush.bf16.msra.mxu0 %v3015
  %3120 = vmatmul.bf16.gmra.mxu0 %v2997
  %v3121 = vpop.f32.mrf.mxu0
  %v3122 = vadd.f32 0.0, %v3121
  %v3123 = vpop.f32.mrf.mxu0
  %3124 = vdwg.mxu0
  %3125 = vmatpush.bf16.msra.mxu0 0
  %3126 = vmatpush.bf16.msra.mxu0 0
  %3127 = vmatpush.bf16.msra.mxu0 0
  %3128 = vmatpush.bf16.msra.mxu0 0
  %3129 = vmatpush.bf16.msra.mxu0 0
  %3130 = vmatpush.bf16.msra.mxu0 0
  %3131 = vmatpush.bf16.msra.mxu0 0
  %3132 = vmatpush.bf16.msra.mxu0 %v3018
  %3133 = vmatmul.bf16.gmra.mxu0 %v2997
  %v3134 = vpop.f32.mrf.mxu0
  %v3135 = vadd.f32 0.0, %v3134
  %v3136 = vpop.f32.mrf.mxu0
  %3137 = vdwg.mxu0
  %3138 = vmatpush.bf16.msra.mxu0 0
  %3139 = vmatpush.bf16.msra.mxu0 0
  %3140 = vmatpush.bf16.msra.mxu0 0
  %3141 = vmatpush.bf16.msra.mxu0 0
  %3142 = vmatpush.bf16.msra.mxu0 0
  %3143 = vmatpush.bf16.msra.mxu0 0
  %3144 = vmatpush.bf16.msra.mxu0 0
  %3145 = vmatpush.bf16.msra.mxu0 %v3021
  %3146 = vmatmul.bf16.gmra.mxu0 %v2997
  %v3147 = vpop.f32.mrf.mxu0
  %v3148 = vadd.f32 0.0, %v3147
  %v3149 = vpop.f32.mrf.mxu0
  %3150 = vdwg.mxu0
  %3151 = vmatpush.bf16.msra.mxu0 0
  %3152 = vmatpush.bf16.msra.mxu0 0
  %3153 = vmatpush.bf16.msra.mxu0 0
  %3154 = vmatpush.bf16.msra.mxu0 0
  %3155 = vmatpush.bf16.msra.mxu0 0
  %3156 = vmatpush.bf16.msra.mxu0 0
  %3157 = vmatpush.bf16.msra.mxu0 0
  %3158 = vmatpush.bf16.msra.mxu0 %v3024
  %3159 = vmatmul.bf16.gmra.mxu0 %v2997
  %v3160 = vpop.f32.mrf.mxu0
  %v3161 = vadd.f32 0.0, %v3160
  %v3162 = vpop.f32.mrf.mxu0
  %3163 = vdwg.mxu0
  %3164 = vmatpush.bf16.msra.mxu0 0
  %3165 = vmatpush.bf16.msra.mxu0 0
  %3166 = vmatpush.bf16.msra.mxu0 0
  %3167 = vmatpush.bf16.msra.mxu0 0
  %3168 = vmatpush.bf16.msra.mxu0 0
  %3169 = vmatpush.bf16.msra.mxu0 0
  %3170 = vmatpush.bf16.msra.mxu0 0
  %3171 = vmatpush.bf16.msra.mxu0 %v3027
  %3172 = vmatmul.bf16.gmra.mxu0 %v2997
  %v3173 = vpop.f32.mrf.mxu0
  %v3174 = vadd.f32 0.0, %v3173
  %v3175 = vpop.f32.mrf.mxu0
  %3176 = vdwg.mxu0
  %3177 = vmatpush.bf16.msra.mxu0 0
  %3178 = vmatpush.bf16.msra.mxu0 0
  %3179 = vmatpush.bf16.msra.mxu0 0
  %3180 = vmatpush.bf16.msra.mxu0 0
  %3181 = vmatpush.bf16.msra.mxu0 0
  %3182 = vmatpush.bf16.msra.mxu0 0
  %3183 = vmatpush.bf16.msra.mxu0 0
  %3184 = vmatpush.bf16.msra.mxu0 %v3030
  %3185 = vmatmul.bf16.gmra.mxu0 %v2997
  %v3186 = vpop.f32.mrf.mxu0
  %v3187 = vadd.f32 0.0, %v3186
  %v3188 = vpop.f32.mrf.mxu0
  %3189 = vdwg.mxu0
  %3190 = vmatpush.bf16.msra.mxu0 0
  %3191 = vmatpush.bf16.msra.mxu0 0
  %3192 = vmatpush.bf16.msra.mxu0 0
  %3193 = vmatpush.bf16.msra.mxu0 0
  %3194 = vmatpush.bf16.msra.mxu0 0
  %3195 = vmatpush.bf16.msra.mxu0 0
  %3196 = vmatpush.bf16.msra.mxu0 0
  %3197 = vmatpush.bf16.msra.mxu0 %v3033
  %3198 = vmatmul.bf16.gmra.mxu0 %v2997
  %v3199 = vpop.f32.mrf.mxu0
  %v3200 = vadd.f32 0.0, %v3199
  %v3201 = vpop.f32.mrf.mxu0
  %3202 = vdwg.mxu0
  %3203 = vmatpush.bf16.msra.mxu0 0
  %3204 = vmatpush.bf16.msra.mxu0 0
  %3205 = vmatpush.bf16.msra.mxu0 0
  %3206 = vmatpush.bf16.msra.mxu0 0
  %3207 = vmatpush.bf16.msra.mxu0 0
  %3208 = vmatpush.bf16.msra.mxu0 0
  %3209 = vmatpush.bf16.msra.mxu0 0
  %3210 = vmatpush.bf16.msra.mxu0 %v3036
  %3211 = vmatmul.bf16.gmra.mxu0 %v2997
  %v3212 = vpop.f32.mrf.mxu0
  %v3213 = vadd.f32 0.0, %v3212
  %v3214 = vpop.f32.mrf.mxu0
  %3215 = vdwg.mxu0
  %3216 = vmatpush.bf16.msra.mxu0 0
  %3217 = vmatpush.bf16.msra.mxu0 0
  %3218 = vmatpush.bf16.msra.mxu0 0
  %3219 = vmatpush.bf16.msra.mxu0 0
  %3220 = vmatpush.bf16.msra.mxu0 0
  %3221 = vmatpush.bf16.msra.mxu0 0
  %3222 = vmatpush.bf16.msra.mxu0 0
  %3223 = vmatpush.bf16.msra.mxu0 %v3039
  %3224 = vmatmul.bf16.gmra.mxu0 %v2997
  %v3225 = vpop.f32.mrf.mxu0
  %v3226 = vadd.f32 0.0, %v3225
  %v3227 = vpop.f32.mrf.mxu0
  %3228 = vdwg.mxu0
  %3229 = vmatpush.bf16.msra.mxu0 0
  %3230 = vmatpush.bf16.msra.mxu0 0
  %3231 = vmatpush.bf16.msra.mxu0 0
  %3232 = vmatpush.bf16.msra.mxu0 0
  %3233 = vmatpush.bf16.msra.mxu0 0
  %3234 = vmatpush.bf16.msra.mxu0 0
  %3235 = vmatpush.bf16.msra.mxu0 0
  %3236 = vmatpush.bf16.msra.mxu0 %v3042
  %3237 = vmatmul.bf16.gmra.mxu0 %v2997
  %v3238 = vpop.f32.mrf.mxu0
  %v3239 = vadd.f32 0.0, %v3238
  %v3240 = vpop.f32.mrf.mxu0
  %3241 = vdwg.mxu0
  %3242 = vmatpush.bf16.msra.mxu0 0
  %3243 = vmatpush.bf16.msra.mxu0 0
  %3244 = vmatpush.bf16.msra.mxu0 0
  %3245 = vmatpush.bf16.msra.mxu0 0
  %3246 = vmatpush.bf16.msra.mxu0 0
  %3247 = vmatpush.bf16.msra.mxu0 0
  %3248 = vmatpush.bf16.msra.mxu0 0
  %3249 = vmatpush.bf16.msra.mxu0 %v3045
  %3250 = vmatmul.bf16.gmra.mxu0 %v2997
  %v3251 = vpop.f32.mrf.mxu0
  %v3252 = vadd.f32 0.0, %v3251
  %v3253 = vpop.f32.mrf.mxu0
  %3254 = vdwg.mxu0
  %v3255 = vadd.f32 %v2862, %v3057
  %v3256 = vadd.f32 %v2863, %v3070
  %v3257 = vadd.f32 %v2864, %v3083
  %v3258 = vadd.f32 %v2865, %v3096
  %v3259 = vadd.f32 %v2866, %v3109
  %v3260 = vadd.f32 %v2867, %v3122
  %v3261 = vadd.f32 %v2868, %v3135
  %v3262 = vadd.f32 %v2869, %v3148
  %v3263 = vadd.f32 %v2870, %v3161
  %v3264 = vadd.f32 %v2871, %v3174
  %v3265 = vadd.f32 %v2872, %v3187
  %v3266 = vadd.f32 %v2873, %v3200
  %v3267 = vadd.f32 %v2874, %v3213
  %v3268 = vadd.f32 %v2875, %v3226
  %v3269 = vadd.f32 %v2876, %v3239
  %v3270 = vadd.f32 %v2877, %v3252
  %v3271 = vld [vmem:[%s5] sm:$0x7]
  %3273 = vset.pattern.permute.xlu0 0
  %3274 = vperm.xlu0 %3273, %v3271
  %v3275 = vpop.permute.xlu0 %3274
  %v3277 = vadd.f32 %v3255, %v3275
  %v3278 = vadd.f32 %v3256, %v3275
  %v3279 = vadd.f32 %v3257, %v3275
  %v3280 = vadd.f32 %v3258, %v3275
  %v3281 = vadd.f32 %v3259, %v3275
  %v3282 = vadd.f32 %v3260, %v3275
  %v3283 = vadd.f32 %v3261, %v3275
  %v3284 = vadd.f32 %v3262, %v3275
  %v3285 = vadd.f32 %v3263, %v3275
  %v3286 = vadd.f32 %v3264, %v3275
  %v3287 = vadd.f32 %v3265, %v3275
  %v3288 = vadd.f32 %v3266, %v3275
  %v3289 = vadd.f32 %v3267, %v3275
  %v3290 = vadd.f32 %v3268, %v3275
  %v3291 = vadd.f32 %v3269, %v3275
  %v3292 = vadd.f32 %v3270, %v3275
  %v3293 = vtanh.pop %v3277
  %v3294 = vtanh.pop %v3278
  %v3295 = vtanh.pop %v3279
  %v3296 = vtanh.pop %v3280
  %v3297 = vtanh.pop %v3281
  %v3298 = vtanh.pop %v3282
  %v3299 = vtanh.pop %v3283
  %v3300 = vtanh.pop %v3284
  %v3301 = vtanh.pop %v3285
  %v3302 = vtanh.pop %v3286
  %v3303 = vtanh.pop %v3287
  %v3304 = vtanh.pop %v3288
  %v3305 = vtanh.pop %v3289
  %v3306 = vtanh.pop %v3290
  %v3307 = vtanh.pop %v3291
  %v3308 = vtanh.pop %v3292
  %v3325 = vrot.slane %v3294, 4
  %v3326 = vrot.slane %v3296, 4
  %v3327 = vrot.slane %v3298, 4
  %v3328 = vrot.slane %v3300, 4
  %v3329 = vrot.slane %v3302, 4
  %v3330 = vrot.slane %v3304, 4
  %v3331 = vrot.slane %v3306, 4
  %v3332 = vrot.slane %v3308, 4
  %v3333 = vsel %vm715, %v3293, %v3325
  %v3334 = vsel %vm715, %v3295, %v3326
  %v3335 = vsel %vm715, %v3297, %v3327
  %v3336 = vsel %vm715, %v3299, %v3328
  %v3337 = vsel %vm715, %v3301, %v3329
  %v3338 = vsel %vm715, %v3303, %v3330
  %v3339 = vsel %vm715, %v3305, %v3331
  %v3340 = vsel %vm715, %v3307, %v3332
  %s3349 = scalar_lea.vmem %s6, 64
  %3350 = vst [vmem:[%s3349] sm:$0x77] %v3333
  %3351 = vst [vmem:[%s3349 + $0x8] sm:$0x77] %v3334
  %3352 = vst [vmem:[%s3349 + $0x10] sm:$0x77] %v3335
  %3353 = vst [vmem:[%s3349 + $0x18] sm:$0x77] %v3336
  %3354 = vst [vmem:[%s3349 + $0x20] sm:$0x77] %v3337
  %3355 = vst [vmem:[%s3349 + $0x28] sm:$0x77] %v3338
  %3356 = vst [vmem:[%s3349 + $0x30] sm:$0x77] %v3339
  %3357 = vst [vmem:[%s3349 + $0x38] sm:$0x77] %v3340
  %s3358 = scalar_lea.vmem %s2, 16
  %v3359 = vld [vmem:[%s3358] sm:$0x3]
  %s3360 = scalar_lea.vmem %s2, 18
  %v3361 = vld [vmem:[%s3360] sm:$0x3]
  %v3363 = vsel %vm711, %v3361, 0
  %3365 = vmatpush.bf16.msra.mxu0 0
  %3366 = vmatpush.bf16.msra.mxu0 0
  %3367 = vmatpush.bf16.msra.mxu0 0
  %3368 = vmatpush.bf16.msra.mxu0 0
  %3369 = vmatpush.bf16.msra.mxu0 0
  %3370 = vmatpush.bf16.msra.mxu0 0
  %3371 = vmatpush.bf16.msra.mxu0 0
  %3372 = vmatpush.bf16.msra.mxu0 %v1630
  %3373 = vmatmul.bf16.gmra.mxu0 %v3363
  %v3374 = vpop.f32.mrf.mxu0
  %v3375 = vadd.f32 0.0, %v3374
  %v3376 = vpop.f32.mrf.mxu0
  %3377 = vdwg.mxu0
  %3378 = vmatpush.bf16.msra.mxu0 0
  %3379 = vmatpush.bf16.msra.mxu0 0
  %3380 = vmatpush.bf16.msra.mxu0 0
  %3381 = vmatpush.bf16.msra.mxu0 0
  %3382 = vmatpush.bf16.msra.mxu0 0
  %3383 = vmatpush.bf16.msra.mxu0 0
  %3384 = vmatpush.bf16.msra.mxu0 0
  %3385 = vmatpush.bf16.msra.mxu0 %v1633
  %3386 = vmatmul.bf16.gmra.mxu0 %v3363
  %v3387 = vpop.f32.mrf.mxu0
  %v3388 = vadd.f32 0.0, %v3387
  %v3389 = vpop.f32.mrf.mxu0
  %3390 = vdwg.mxu0
  %3391 = vmatpush.bf16.msra.mxu0 0
  %3392 = vmatpush.bf16.msra.mxu0 0
  %3393 = vmatpush.bf16.msra.mxu0 0
  %3394 = vmatpush.bf16.msra.mxu0 0
  %3395 = vmatpush.bf16.msra.mxu0 0
  %3396 = vmatpush.bf16.msra.mxu0 0
  %3397 = vmatpush.bf16.msra.mxu0 0
  %3398 = vmatpush.bf16.msra.mxu0 %v1636
  %3399 = vmatmul.bf16.gmra.mxu0 %v3363
  %v3400 = vpop.f32.mrf.mxu0
  %v3401 = vadd.f32 0.0, %v3400
  %v3402 = vpop.f32.mrf.mxu0
  %3403 = vdwg.mxu0
  %3404 = vmatpush.bf16.msra.mxu0 0
  %3405 = vmatpush.bf16.msra.mxu0 0
  %3406 = vmatpush.bf16.msra.mxu0 0
  %3407 = vmatpush.bf16.msra.mxu0 0
  %3408 = vmatpush.bf16.msra.mxu0 0
  %3409 = vmatpush.bf16.msra.mxu0 0
  %3410 = vmatpush.bf16.msra.mxu0 0
  %3411 = vmatpush.bf16.msra.mxu0 %v1639
  %3412 = vmatmul.bf16.gmra.mxu0 %v3363
  %v3413 = vpop.f32.mrf.mxu0
  %v3414 = vadd.f32 0.0, %v3413
  %v3415 = vpop.f32.mrf.mxu0
  %3416 = vdwg.mxu0
  %3417 = vmatpush.bf16.msra.mxu0 0
  %3418 = vmatpush.bf16.msra.mxu0 0
  %3419 = vmatpush.bf16.msra.mxu0 0
  %3420 = vmatpush.bf16.msra.mxu0 0
  %3421 = vmatpush.bf16.msra.mxu0 0
  %3422 = vmatpush.bf16.msra.mxu0 0
  %3423 = vmatpush.bf16.msra.mxu0 0
  %3424 = vmatpush.bf16.msra.mxu0 %v1642
  %3425 = vmatmul.bf16.gmra.mxu0 %v3363
  %v3426 = vpop.f32.mrf.mxu0
  %v3427 = vadd.f32 0.0, %v3426
  %v3428 = vpop.f32.mrf.mxu0
  %3429 = vdwg.mxu0
  %3430 = vmatpush.bf16.msra.mxu0 0
  %3431 = vmatpush.bf16.msra.mxu0 0
  %3432 = vmatpush.bf16.msra.mxu0 0
  %3433 = vmatpush.bf16.msra.mxu0 0
  %3434 = vmatpush.bf16.msra.mxu0 0
  %3435 = vmatpush.bf16.msra.mxu0 0
  %3436 = vmatpush.bf16.msra.mxu0 0
  %3437 = vmatpush.bf16.msra.mxu0 %v1645
  %3438 = vmatmul.bf16.gmra.mxu0 %v3363
  %v3439 = vpop.f32.mrf.mxu0
  %v3440 = vadd.f32 0.0, %v3439
  %v3441 = vpop.f32.mrf.mxu0
  %3442 = vdwg.mxu0
  %3443 = vmatpush.bf16.msra.mxu0 0
  %3444 = vmatpush.bf16.msra.mxu0 0
  %3445 = vmatpush.bf16.msra.mxu0 0
  %3446 = vmatpush.bf16.msra.mxu0 0
  %3447 = vmatpush.bf16.msra.mxu0 0
  %3448 = vmatpush.bf16.msra.mxu0 0
  %3449 = vmatpush.bf16.msra.mxu0 0
  %3450 = vmatpush.bf16.msra.mxu0 %v1648
  %3451 = vmatmul.bf16.gmra.mxu0 %v3363
  %v3452 = vpop.f32.mrf.mxu0
  %v3453 = vadd.f32 0.0, %v3452
  %v3454 = vpop.f32.mrf.mxu0
  %3455 = vdwg.mxu0
  %3456 = vmatpush.bf16.msra.mxu0 0
  %3457 = vmatpush.bf16.msra.mxu0 0
  %3458 = vmatpush.bf16.msra.mxu0 0
  %3459 = vmatpush.bf16.msra.mxu0 0
  %3460 = vmatpush.bf16.msra.mxu0 0
  %3461 = vmatpush.bf16.msra.mxu0 0
  %3462 = vmatpush.bf16.msra.mxu0 0
  %3463 = vmatpush.bf16.msra.mxu0 %v1651
  %3464 = vmatmul.bf16.gmra.mxu0 %v3363
  %v3465 = vpop.f32.mrf.mxu0
  %v3466 = vadd.f32 0.0, %v3465
  %v3467 = vpop.f32.mrf.mxu0
  %3468 = vdwg.mxu0
  %3469 = vmatpush.bf16.msra.mxu0 0
  %3470 = vmatpush.bf16.msra.mxu0 0
  %3471 = vmatpush.bf16.msra.mxu0 0
  %3472 = vmatpush.bf16.msra.mxu0 0
  %3473 = vmatpush.bf16.msra.mxu0 0
  %3474 = vmatpush.bf16.msra.mxu0 0
  %3475 = vmatpush.bf16.msra.mxu0 0
  %3476 = vmatpush.bf16.msra.mxu0 %v1654
  %3477 = vmatmul.bf16.gmra.mxu0 %v3363
  %v3478 = vpop.f32.mrf.mxu0
  %v3479 = vadd.f32 0.0, %v3478
  %v3480 = vpop.f32.mrf.mxu0
  %3481 = vdwg.mxu0
  %3482 = vmatpush.bf16.msra.mxu0 0
  %3483 = vmatpush.bf16.msra.mxu0 0
  %3484 = vmatpush.bf16.msra.mxu0 0
  %3485 = vmatpush.bf16.msra.mxu0 0
  %3486 = vmatpush.bf16.msra.mxu0 0
  %3487 = vmatpush.bf16.msra.mxu0 0
  %3488 = vmatpush.bf16.msra.mxu0 0
  %3489 = vmatpush.bf16.msra.mxu0 %v1657
  %3490 = vmatmul.bf16.gmra.mxu0 %v3363
  %v3491 = vpop.f32.mrf.mxu0
  %v3492 = vadd.f32 0.0, %v3491
  %v3493 = vpop.f32.mrf.mxu0
  %3494 = vdwg.mxu0
  %3495 = vmatpush.bf16.msra.mxu0 0
  %3496 = vmatpush.bf16.msra.mxu0 0
  %3497 = vmatpush.bf16.msra.mxu0 0
  %3498 = vmatpush.bf16.msra.mxu0 0
  %3499 = vmatpush.bf16.msra.mxu0 0
  %3500 = vmatpush.bf16.msra.mxu0 0
  %3501 = vmatpush.bf16.msra.mxu0 0
  %3502 = vmatpush.bf16.msra.mxu0 %v1660
  %3503 = vmatmul.bf16.gmra.mxu0 %v3363
  %v3504 = vpop.f32.mrf.mxu0
  %v3505 = vadd.f32 0.0, %v3504
  %v3506 = vpop.f32.mrf.mxu0
  %3507 = vdwg.mxu0
  %3508 = vmatpush.bf16.msra.mxu0 0
  %3509 = vmatpush.bf16.msra.mxu0 0
  %3510 = vmatpush.bf16.msra.mxu0 0
  %3511 = vmatpush.bf16.msra.mxu0 0
  %3512 = vmatpush.bf16.msra.mxu0 0
  %3513 = vmatpush.bf16.msra.mxu0 0
  %3514 = vmatpush.bf16.msra.mxu0 0
  %3515 = vmatpush.bf16.msra.mxu0 %v1663
  %3516 = vmatmul.bf16.gmra.mxu0 %v3363
  %v3517 = vpop.f32.mrf.mxu0
  %v3518 = vadd.f32 0.0, %v3517
  %v3519 = vpop.f32.mrf.mxu0
  %3520 = vdwg.mxu0
  %3521 = vmatpush.bf16.msra.mxu0 0
  %3522 = vmatpush.bf16.msra.mxu0 0
  %3523 = vmatpush.bf16.msra.mxu0 0
  %3524 = vmatpush.bf16.msra.mxu0 0
  %3525 = vmatpush.bf16.msra.mxu0 0
  %3526 = vmatpush.bf16.msra.mxu0 0
  %3527 = vmatpush.bf16.msra.mxu0 0
  %3528 = vmatpush.bf16.msra.mxu0 %v1666
  %3529 = vmatmul.bf16.gmra.mxu0 %v3363
  %v3530 = vpop.f32.mrf.mxu0
  %v3531 = vadd.f32 0.0, %v3530
  %v3532 = vpop.f32.mrf.mxu0
  %3533 = vdwg.mxu0
  %3534 = vmatpush.bf16.msra.mxu0 0
  %3535 = vmatpush.bf16.msra.mxu0 0
  %3536 = vmatpush.bf16.msra.mxu0 0
  %3537 = vmatpush.bf16.msra.mxu0 0
  %3538 = vmatpush.bf16.msra.mxu0 0
  %3539 = vmatpush.bf16.msra.mxu0 0
  %3540 = vmatpush.bf16.msra.mxu0 0
  %3541 = vmatpush.bf16.msra.mxu0 %v1669
  %3542 = vmatmul.bf16.gmra.mxu0 %v3363
  %v3543 = vpop.f32.mrf.mxu0
  %v3544 = vadd.f32 0.0, %v3543
  %v3545 = vpop.f32.mrf.mxu0
  %3546 = vdwg.mxu0
  %3547 = vmatpush.bf16.msra.mxu0 0
  %3548 = vmatpush.bf16.msra.mxu0 0
  %3549 = vmatpush.bf16.msra.mxu0 0
  %3550 = vmatpush.bf16.msra.mxu0 0
  %3551 = vmatpush.bf16.msra.mxu0 0
  %3552 = vmatpush.bf16.msra.mxu0 0
  %3553 = vmatpush.bf16.msra.mxu0 0
  %3554 = vmatpush.bf16.msra.mxu0 %v1672
  %3555 = vmatmul.bf16.gmra.mxu0 %v3363
  %v3556 = vpop.f32.mrf.mxu0
  %v3557 = vadd.f32 0.0, %v3556
  %v3558 = vpop.f32.mrf.mxu0
  %3559 = vdwg.mxu0
  %3560 = vmatpush.bf16.msra.mxu0 0
  %3561 = vmatpush.bf16.msra.mxu0 0
  %3562 = vmatpush.bf16.msra.mxu0 0
  %3563 = vmatpush.bf16.msra.mxu0 0
  %3564 = vmatpush.bf16.msra.mxu0 0
  %3565 = vmatpush.bf16.msra.mxu0 0
  %3566 = vmatpush.bf16.msra.mxu0 0
  %3567 = vmatpush.bf16.msra.mxu0 %v1675
  %3568 = vmatmul.bf16.gmra.mxu0 %v3363
  %v3569 = vpop.f32.mrf.mxu0
  %v3570 = vadd.f32 0.0, %v3569
  %v3571 = vpop.f32.mrf.mxu0
  %3572 = vdwg.mxu0
  %v3574 = vsel %vm711, %v3359, 0
  %3576 = vmatpush.bf16.msra.mxu0 0
  %3577 = vmatpush.bf16.msra.mxu0 0
  %3578 = vmatpush.bf16.msra.mxu0 0
  %3579 = vmatpush.bf16.msra.mxu0 0
  %3580 = vmatpush.bf16.msra.mxu0 0
  %3581 = vmatpush.bf16.msra.mxu0 0
  %3582 = vmatpush.bf16.msra.mxu0 0
  %3583 = vmatpush.bf16.msra.mxu0 %v1353
  %3584 = vmatmul.bf16.gmra.mxu0 %v3574
  %v3585 = vpop.f32.mrf.mxu0
  %v3586 = vadd.f32 %v3375, %v3585
  %v3587 = vpop.f32.mrf.mxu0
  %3588 = vdwg.mxu0
  %3589 = vmatpush.bf16.msra.mxu0 0
  %3590 = vmatpush.bf16.msra.mxu0 0
  %3591 = vmatpush.bf16.msra.mxu0 0
  %3592 = vmatpush.bf16.msra.mxu0 0
  %3593 = vmatpush.bf16.msra.mxu0 0
  %3594 = vmatpush.bf16.msra.mxu0 0
  %3595 = vmatpush.bf16.msra.mxu0 0
  %3596 = vmatpush.bf16.msra.mxu0 %v1356
  %3597 = vmatmul.bf16.gmra.mxu0 %v3574
  %v3598 = vpop.f32.mrf.mxu0
  %v3599 = vadd.f32 %v3388, %v3598
  %v3600 = vpop.f32.mrf.mxu0
  %3601 = vdwg.mxu0
  %3602 = vmatpush.bf16.msra.mxu0 0
  %3603 = vmatpush.bf16.msra.mxu0 0
  %3604 = vmatpush.bf16.msra.mxu0 0
  %3605 = vmatpush.bf16.msra.mxu0 0
  %3606 = vmatpush.bf16.msra.mxu0 0
  %3607 = vmatpush.bf16.msra.mxu0 0
  %3608 = vmatpush.bf16.msra.mxu0 0
  %3609 = vmatpush.bf16.msra.mxu0 %v1359
  %3610 = vmatmul.bf16.gmra.mxu0 %v3574
  %v3611 = vpop.f32.mrf.mxu0
  %v3612 = vadd.f32 %v3401, %v3611
  %v3613 = vpop.f32.mrf.mxu0
  %3614 = vdwg.mxu0
  %3615 = vmatpush.bf16.msra.mxu0 0
  %3616 = vmatpush.bf16.msra.mxu0 0
  %3617 = vmatpush.bf16.msra.mxu0 0
  %3618 = vmatpush.bf16.msra.mxu0 0
  %3619 = vmatpush.bf16.msra.mxu0 0
  %3620 = vmatpush.bf16.msra.mxu0 0
  %3621 = vmatpush.bf16.msra.mxu0 0
  %3622 = vmatpush.bf16.msra.mxu0 %v1362
  %3623 = vmatmul.bf16.gmra.mxu0 %v3574
  %v3624 = vpop.f32.mrf.mxu0
  %v3625 = vadd.f32 %v3414, %v3624
  %v3626 = vpop.f32.mrf.mxu0
  %3627 = vdwg.mxu0
  %3628 = vmatpush.bf16.msra.mxu0 0
  %3629 = vmatpush.bf16.msra.mxu0 0
  %3630 = vmatpush.bf16.msra.mxu0 0
  %3631 = vmatpush.bf16.msra.mxu0 0
  %3632 = vmatpush.bf16.msra.mxu0 0
  %3633 = vmatpush.bf16.msra.mxu0 0
  %3634 = vmatpush.bf16.msra.mxu0 0
  %3635 = vmatpush.bf16.msra.mxu0 %v1365
  %3636 = vmatmul.bf16.gmra.mxu0 %v3574
  %v3637 = vpop.f32.mrf.mxu0
  %v3638 = vadd.f32 %v3427, %v3637
  %v3639 = vpop.f32.mrf.mxu0
  %3640 = vdwg.mxu0
  %3641 = vmatpush.bf16.msra.mxu0 0
  %3642 = vmatpush.bf16.msra.mxu0 0
  %3643 = vmatpush.bf16.msra.mxu0 0
  %3644 = vmatpush.bf16.msra.mxu0 0
  %3645 = vmatpush.bf16.msra.mxu0 0
  %3646 = vmatpush.bf16.msra.mxu0 0
  %3647 = vmatpush.bf16.msra.mxu0 0
  %3648 = vmatpush.bf16.msra.mxu0 %v1368
  %3649 = vmatmul.bf16.gmra.mxu0 %v3574
  %v3650 = vpop.f32.mrf.mxu0
  %v3651 = vadd.f32 %v3440, %v3650
  %v3652 = vpop.f32.mrf.mxu0
  %3653 = vdwg.mxu0
  %3654 = vmatpush.bf16.msra.mxu0 0
  %3655 = vmatpush.bf16.msra.mxu0 0
  %3656 = vmatpush.bf16.msra.mxu0 0
  %3657 = vmatpush.bf16.msra.mxu0 0
  %3658 = vmatpush.bf16.msra.mxu0 0
  %3659 = vmatpush.bf16.msra.mxu0 0
  %3660 = vmatpush.bf16.msra.mxu0 0
  %3661 = vmatpush.bf16.msra.mxu0 %v1371
  %3662 = vmatmul.bf16.gmra.mxu0 %v3574
  %v3663 = vpop.f32.mrf.mxu0
  %v3664 = vadd.f32 %v3453, %v3663
  %v3665 = vpop.f32.mrf.mxu0
  %3666 = vdwg.mxu0
  %3667 = vmatpush.bf16.msra.mxu0 0
  %3668 = vmatpush.bf16.msra.mxu0 0
  %3669 = vmatpush.bf16.msra.mxu0 0
  %3670 = vmatpush.bf16.msra.mxu0 0
  %3671 = vmatpush.bf16.msra.mxu0 0
  %3672 = vmatpush.bf16.msra.mxu0 0
  %3673 = vmatpush.bf16.msra.mxu0 0
  %3674 = vmatpush.bf16.msra.mxu0 %v1374
  %3675 = vmatmul.bf16.gmra.mxu0 %v3574
  %v3676 = vpop.f32.mrf.mxu0
  %v3677 = vadd.f32 %v3466, %v3676
  %v3678 = vpop.f32.mrf.mxu0
  %3679 = vdwg.mxu0
  %3680 = vmatpush.bf16.msra.mxu0 0
  %3681 = vmatpush.bf16.msra.mxu0 0
  %3682 = vmatpush.bf16.msra.mxu0 0
  %3683 = vmatpush.bf16.msra.mxu0 0
  %3684 = vmatpush.bf16.msra.mxu0 0
  %3685 = vmatpush.bf16.msra.mxu0 0
  %3686 = vmatpush.bf16.msra.mxu0 0
  %3687 = vmatpush.bf16.msra.mxu0 %v1377
  %3688 = vmatmul.bf16.gmra.mxu0 %v3574
  %v3689 = vpop.f32.mrf.mxu0
  %v3690 = vadd.f32 %v3479, %v3689
  %v3691 = vpop.f32.mrf.mxu0
  %3692 = vdwg.mxu0
  %3693 = vmatpush.bf16.msra.mxu0 0
  %3694 = vmatpush.bf16.msra.mxu0 0
  %3695 = vmatpush.bf16.msra.mxu0 0
  %3696 = vmatpush.bf16.msra.mxu0 0
  %3697 = vmatpush.bf16.msra.mxu0 0
  %3698 = vmatpush.bf16.msra.mxu0 0
  %3699 = vmatpush.bf16.msra.mxu0 0
  %3700 = vmatpush.bf16.msra.mxu0 %v1380
  %3701 = vmatmul.bf16.gmra.mxu0 %v3574
  %v3702 = vpop.f32.mrf.mxu0
  %v3703 = vadd.f32 %v3492, %v3702
  %v3704 = vpop.f32.mrf.mxu0
  %3705 = vdwg.mxu0
  %3706 = vmatpush.bf16.msra.mxu0 0
  %3707 = vmatpush.bf16.msra.mxu0 0
  %3708 = vmatpush.bf16.msra.mxu0 0
  %3709 = vmatpush.bf16.msra.mxu0 0
  %3710 = vmatpush.bf16.msra.mxu0 0
  %3711 = vmatpush.bf16.msra.mxu0 0
  %3712 = vmatpush.bf16.msra.mxu0 0
  %3713 = vmatpush.bf16.msra.mxu0 %v1383
  %3714 = vmatmul.bf16.gmra.mxu0 %v3574
  %v3715 = vpop.f32.mrf.mxu0
  %v3716 = vadd.f32 %v3505, %v3715
  %v3717 = vpop.f32.mrf.mxu0
  %3718 = vdwg.mxu0
  %3719 = vmatpush.bf16.msra.mxu0 0
  %3720 = vmatpush.bf16.msra.mxu0 0
  %3721 = vmatpush.bf16.msra.mxu0 0
  %3722 = vmatpush.bf16.msra.mxu0 0
  %3723 = vmatpush.bf16.msra.mxu0 0
  %3724 = vmatpush.bf16.msra.mxu0 0
  %3725 = vmatpush.bf16.msra.mxu0 0
  %3726 = vmatpush.bf16.msra.mxu0 %v1386
  %3727 = vmatmul.bf16.gmra.mxu0 %v3574
  %v3728 = vpop.f32.mrf.mxu0
  %v3729 = vadd.f32 %v3518, %v3728
  %v3730 = vpop.f32.mrf.mxu0
  %3731 = vdwg.mxu0
  %3732 = vmatpush.bf16.msra.mxu0 0
  %3733 = vmatpush.bf16.msra.mxu0 0
  %3734 = vmatpush.bf16.msra.mxu0 0
  %3735 = vmatpush.bf16.msra.mxu0 0
  %3736 = vmatpush.bf16.msra.mxu0 0
  %3737 = vmatpush.bf16.msra.mxu0 0
  %3738 = vmatpush.bf16.msra.mxu0 0
  %3739 = vmatpush.bf16.msra.mxu0 %v1389
  %3740 = vmatmul.bf16.gmra.mxu0 %v3574
  %v3741 = vpop.f32.mrf.mxu0
  %v3742 = vadd.f32 %v3531, %v3741
  %v3743 = vpop.f32.mrf.mxu0
  %3744 = vdwg.mxu0
  %3745 = vmatpush.bf16.msra.mxu0 0
  %3746 = vmatpush.bf16.msra.mxu0 0
  %3747 = vmatpush.bf16.msra.mxu0 0
  %3748 = vmatpush.bf16.msra.mxu0 0
  %3749 = vmatpush.bf16.msra.mxu0 0
  %3750 = vmatpush.bf16.msra.mxu0 0
  %3751 = vmatpush.bf16.msra.mxu0 0
  %3752 = vmatpush.bf16.msra.mxu0 %v1392
  %3753 = vmatmul.bf16.gmra.mxu0 %v3574
  %v3754 = vpop.f32.mrf.mxu0
  %v3755 = vadd.f32 %v3544, %v3754
  %v3756 = vpop.f32.mrf.mxu0
  %3757 = vdwg.mxu0
  %3758 = vmatpush.bf16.msra.mxu0 0
  %3759 = vmatpush.bf16.msra.mxu0 0
  %3760 = vmatpush.bf16.msra.mxu0 0
  %3761 = vmatpush.bf16.msra.mxu0 0
  %3762 = vmatpush.bf16.msra.mxu0 0
  %3763 = vmatpush.bf16.msra.mxu0 0
  %3764 = vmatpush.bf16.msra.mxu0 0
  %3765 = vmatpush.bf16.msra.mxu0 %v1395
  %3766 = vmatmul.bf16.gmra.mxu0 %v3574
  %v3767 = vpop.f32.mrf.mxu0
  %v3768 = vadd.f32 %v3557, %v3767
  %v3769 = vpop.f32.mrf.mxu0
  %3770 = vdwg.mxu0
  %3771 = vmatpush.bf16.msra.mxu0 0
  %3772 = vmatpush.bf16.msra.mxu0 0
  %3773 = vmatpush.bf16.msra.mxu0 0
  %3774 = vmatpush.bf16.msra.mxu0 0
  %3775 = vmatpush.bf16.msra.mxu0 0
  %3776 = vmatpush.bf16.msra.mxu0 0
  %3777 = vmatpush.bf16.msra.mxu0 0
  %3778 = vmatpush.bf16.msra.mxu0 %v1398
  %3779 = vmatmul.bf16.gmra.mxu0 %v3574
  %v3780 = vpop.f32.mrf.mxu0
  %v3781 = vadd.f32 %v3570, %v3780
  %v3782 = vpop.f32.mrf.mxu0
  %3783 = vdwg.mxu0
  %3784 = vrot.lane.b32.xlu0 %v311, 97
  %v3785 = vpop.permute.xlu0 %3784
  %3786 = vrot.lane.b32.xlu0 %v312, 97
  %v3787 = vpop.permute.xlu0 %3786
  %3788 = vrot.lane.b32.xlu0 %v313, 97
  %v3789 = vpop.permute.xlu0 %3788
  %3790 = vrot.lane.b32.xlu0 %v314, 97
  %v3791 = vpop.permute.xlu0 %3790
  %3792 = vrot.lane.b32.xlu0 %v315, 97
  %v3793 = vpop.permute.xlu0 %3792
  %3794 = vrot.lane.b32.xlu0 %v316, 97
  %v3795 = vpop.permute.xlu0 %3794
  %3796 = vrot.lane.b32.xlu0 %v317, 97
  %v3797 = vpop.permute.xlu0 %3796
  %3798 = vrot.lane.b32.xlu0 %v318, 97
  %v3799 = vpop.permute.xlu0 %3798
  %3800 = vrot.lane.b32.xlu0 %v319, 97
  %v3801 = vpop.permute.xlu0 %3800
  %3802 = vrot.lane.b32.xlu0 %v320, 97
  %v3803 = vpop.permute.xlu0 %3802
  %3804 = vrot.lane.b32.xlu0 %v321, 97
  %v3805 = vpop.permute.xlu0 %3804
  %3806 = vrot.lane.b32.xlu0 %v322, 97
  %v3807 = vpop.permute.xlu0 %3806
  %3808 = vrot.lane.b32.xlu0 %v323, 97
  %v3809 = vpop.permute.xlu0 %3808
  %3810 = vrot.lane.b32.xlu0 %v324, 97
  %v3811 = vpop.permute.xlu0 %3810
  %3812 = vrot.lane.b32.xlu0 %v325, 97
  %v3813 = vpop.permute.xlu0 %3812
  %3814 = vrot.lane.b32.xlu0 %v286, 97
  %v3815 = vpop.permute.xlu0 %3814
  %vm3816 = vcmask 793600
  %v3817 = vsel %vm3816, %v3785, %v3787
  %v3818 = vsel %vm3816, %v3787, %v3789
  %v3819 = vsel %vm3816, %v3789, %v3791
  %v3820 = vsel %vm3816, %v3791, %v3793
  %v3821 = vsel %vm3816, %v3793, %v3795
  %v3822 = vsel %vm3816, %v3795, %v3797
  %v3823 = vsel %vm3816, %v3797, %v3799
  %v3824 = vsel %vm3816, %v3799, %v3801
  %v3825 = vsel %vm3816, %v3801, %v3803
  %v3826 = vsel %vm3816, %v3803, %v3805
  %v3827 = vsel %vm3816, %v3805, %v3807
  %v3828 = vsel %vm3816, %v3807, %v3809
  %v3829 = vsel %vm3816, %v3809, %v3811
  %v3830 = vsel %vm3816, %v3811, %v3813
  %v3831 = vsel %vm3816, %v3813, %v3815
  %vm3847 = vcmask 793600
  %v3850 = vsel %vm3847, %v3815, %v3785
  %v3852 = vperm.slane %v165, 1
  %v3853 = vperm.slane %v169, 1
  %v3854 = vperm.slane %v173, 1
  %v3855 = vperm.slane %v177, 1
  %v3856 = vperm.slane %v181, 1
  %v3857 = vperm.slane %v185, 1
  %v3858 = vperm.slane %v189, 1
  %v3859 = vperm.slane %v193, 1
  %v3860 = vperm.slane %v197, 1
  %v3861 = vperm.slane %v201, 1
  %v3862 = vperm.slane %v205, 1
  %v3863 = vperm.slane %v209, 1
  %v3864 = vperm.slane %v213, 1
  %v3865 = vperm.slane %v217, 1
  %v3866 = vperm.slane %v221, 1
  %v3867 = vperm.slane %v225, 1
  %v3868 = vunpack.c.l.bf16 %v3817
  %v3869 = vunpack.c.l.bf16 %v3818
  %v3870 = vunpack.c.l.bf16 %v3819
  %v3871 = vunpack.c.l.bf16 %v3820
  %v3872 = vunpack.c.l.bf16 %v3821
  %v3873 = vunpack.c.l.bf16 %v3822
  %v3874 = vunpack.c.l.bf16 %v3823
  %v3875 = vunpack.c.l.bf16 %v3824
  %v3876 = vunpack.c.l.bf16 %v3825
  %v3877 = vunpack.c.l.bf16 %v3826
  %v3878 = vunpack.c.l.bf16 %v3827
  %v3879 = vunpack.c.l.bf16 %v3828
  %v3880 = vunpack.c.l.bf16 %v3829
  %v3881 = vunpack.c.l.bf16 %v3830
  %v3882 = vunpack.c.l.bf16 %v3831
  %v3883 = vunpack.c.l.bf16 %v3850
  %v3884 = vunpack.c.l.bf16 %v3852
  %v3885 = vunpack.c.l.bf16 %v3853
  %v3886 = vunpack.c.l.bf16 %v3854
  %v3887 = vunpack.c.l.bf16 %v3855
  %v3888 = vunpack.c.l.bf16 %v3856
  %v3889 = vunpack.c.l.bf16 %v3857
  %v3890 = vunpack.c.l.bf16 %v3858
  %v3891 = vunpack.c.l.bf16 %v3859
  %v3892 = vunpack.c.l.bf16 %v3860
  %v3893 = vunpack.c.l.bf16 %v3861
  %v3894 = vunpack.c.l.bf16 %v3862
  %v3895 = vunpack.c.l.bf16 %v3863
  %v3896 = vunpack.c.l.bf16 %v3864
  %v3897 = vunpack.c.l.bf16 %v3865
  %v3898 = vunpack.c.l.bf16 %v3866
  %v3899 = vunpack.c.l.bf16 %v3867
  %v3900 = vmul.f32 %v3868, %v3884
  %v3901 = vmul.f32 %v3869, %v3885
  %v3902 = vmul.f32 %v3870, %v3886
  %v3903 = vmul.f32 %v3871, %v3887
  %v3904 = vmul.f32 %v3872, %v3888
  %v3905 = vmul.f32 %v3873, %v3889
  %v3906 = vmul.f32 %v3874, %v3890
  %v3907 = vmul.f32 %v3875, %v3891
  %v3908 = vmul.f32 %v3876, %v3892
  %v3909 = vmul.f32 %v3877, %v3893
  %v3910 = vmul.f32 %v3878, %v3894
  %v3911 = vmul.f32 %v3879, %v3895
  %v3912 = vmul.f32 %v3880, %v3896
  %v3913 = vmul.f32 %v3881, %v3897
  %v3914 = vmul.f32 %v3882, %v3898
  %v3915 = vmul.f32 %v3883, %v3899
  %v3916 = vpack.c.bf16 %v3901, %v3900
  %v3917 = vpack.c.bf16 %v3903, %v3902
  %v3918 = vpack.c.bf16 %v3905, %v3904
  %v3919 = vpack.c.bf16 %v3907, %v3906
  %v3920 = vpack.c.bf16 %v3909, %v3908
  %v3921 = vpack.c.bf16 %v3911, %v3910
  %v3922 = vpack.c.bf16 %v3913, %v3912
  %v3923 = vpack.c.bf16 %v3915, %v3914
  %v3924 = vunpack.c.l.bf16 %v3916
  %v3925 = vunpack.c.h.bf16 %v3916
  %v3926 = vunpack.c.l.bf16 %v3917
  %v3927 = vunpack.c.h.bf16 %v3917
  %v3928 = vunpack.c.l.bf16 %v3918
  %v3929 = vunpack.c.h.bf16 %v3918
  %v3930 = vunpack.c.l.bf16 %v3919
  %v3931 = vunpack.c.h.bf16 %v3919
  %v3932 = vunpack.c.l.bf16 %v3920
  %v3933 = vunpack.c.h.bf16 %v3920
  %v3934 = vunpack.c.l.bf16 %v3921
  %v3935 = vunpack.c.h.bf16 %v3921
  %v3936 = vunpack.c.l.bf16 %v3922
  %v3937 = vunpack.c.h.bf16 %v3922
  %v3938 = vunpack.c.l.bf16 %v3923
  %v3939 = vunpack.c.h.bf16 %v3923
  %v3940 = vmul.f32 %v3924, %v544
  %v3941 = vmul.f32 %v3925, %v545
  %v3942 = vmul.f32 %v3926, %v546
  %v3943 = vmul.f32 %v3927, %v547
  %v3944 = vmul.f32 %v3928, %v548
  %v3945 = vmul.f32 %v3929, %v549
  %v3946 = vmul.f32 %v3930, %v550
  %v3947 = vmul.f32 %v3931, %v551
  %v3948 = vmul.f32 %v3932, %v552
  %v3949 = vmul.f32 %v3933, %v553
  %v3950 = vmul.f32 %v3934, %v554
  %v3951 = vmul.f32 %v3935, %v555
  %v3952 = vmul.f32 %v3936, %v556
  %v3953 = vmul.f32 %v3937, %v557
  %v3954 = vmul.f32 %v3938, %v558
  %v3955 = vmul.f32 %v3939, %v559
  %v3956 = vpack.c.bf16 %v3940, %v3940
  %v3957 = vpack.c.bf16 %v3941, %v3941
  %v3958 = vpack.c.bf16 %v3942, %v3942
  %v3959 = vpack.c.bf16 %v3943, %v3943
  %v3960 = vpack.c.bf16 %v3944, %v3944
  %v3961 = vpack.c.bf16 %v3945, %v3945
  %v3962 = vpack.c.bf16 %v3946, %v3946
  %v3963 = vpack.c.bf16 %v3947, %v3947
  %v3964 = vpack.c.bf16 %v3948, %v3948
  %v3965 = vpack.c.bf16 %v3949, %v3949
  %v3966 = vpack.c.bf16 %v3950, %v3950
  %v3967 = vpack.c.bf16 %v3951, %v3951
  %v3968 = vpack.c.bf16 %v3952, %v3952
  %v3969 = vpack.c.bf16 %v3953, %v3953
  %v3970 = vpack.c.bf16 %v3954, %v3954
  %v3971 = vpack.c.bf16 %v3955, %v3955
  %s3972 = scalar_lea.vmem %s2, 20
  %v3973 = vld [vmem:[%s3972] sm:$0x3]
  %v3975 = vsel %vm711, %v3973, 0
  %v3978 = vsel %vm715, %v3956, 0
  %v3981 = vsel %vm715, %v3957, 0
  %v3984 = vsel %vm715, %v3958, 0
  %v3987 = vsel %vm715, %v3959, 0
  %v3990 = vsel %vm715, %v3960, 0
  %v3993 = vsel %vm715, %v3961, 0
  %v3996 = vsel %vm715, %v3962, 0
  %v3999 = vsel %vm715, %v3963, 0
  %v4002 = vsel %vm715, %v3964, 0
  %v4005 = vsel %vm715, %v3965, 0
  %v4008 = vsel %vm715, %v3966, 0
  %v4011 = vsel %vm715, %v3967, 0
  %v4014 = vsel %vm715, %v3968, 0
  %v4017 = vsel %vm715, %v3969, 0
  %v4020 = vsel %vm715, %v3970, 0
  %v4023 = vsel %vm715, %v3971, 0
  %4025 = vmatpush.bf16.msra.mxu0 0
  %4026 = vmatpush.bf16.msra.mxu0 0
  %4027 = vmatpush.bf16.msra.mxu0 0
  %4028 = vmatpush.bf16.msra.mxu0 0
  %4029 = vmatpush.bf16.msra.mxu0 0
  %4030 = vmatpush.bf16.msra.mxu0 0
  %4031 = vmatpush.bf16.msra.mxu0 0
  %4032 = vmatpush.bf16.msra.mxu0 %v3978
  %4033 = vmatmul.bf16.gmra.mxu0 %v3975
  %v4034 = vpop.f32.mrf.mxu0
  %v4035 = vadd.f32 0.0, %v4034
  %v4036 = vpop.f32.mrf.mxu0
  %4037 = vdwg.mxu0
  %4038 = vmatpush.bf16.msra.mxu0 0
  %4039 = vmatpush.bf16.msra.mxu0 0
  %4040 = vmatpush.bf16.msra.mxu0 0
  %4041 = vmatpush.bf16.msra.mxu0 0
  %4042 = vmatpush.bf16.msra.mxu0 0
  %4043 = vmatpush.bf16.msra.mxu0 0
  %4044 = vmatpush.bf16.msra.mxu0 0
  %4045 = vmatpush.bf16.msra.mxu0 %v3981
  %4046 = vmatmul.bf16.gmra.mxu0 %v3975
  %v4047 = vpop.f32.mrf.mxu0
  %v4048 = vadd.f32 0.0, %v4047
  %v4049 = vpop.f32.mrf.mxu0
  %4050 = vdwg.mxu0
  %4051 = vmatpush.bf16.msra.mxu0 0
  %4052 = vmatpush.bf16.msra.mxu0 0
  %4053 = vmatpush.bf16.msra.mxu0 0
  %4054 = vmatpush.bf16.msra.mxu0 0
  %4055 = vmatpush.bf16.msra.mxu0 0
  %4056 = vmatpush.bf16.msra.mxu0 0
  %4057 = vmatpush.bf16.msra.mxu0 0
  %4058 = vmatpush.bf16.msra.mxu0 %v3984
  %4059 = vmatmul.bf16.gmra.mxu0 %v3975
  %v4060 = vpop.f32.mrf.mxu0
  %v4061 = vadd.f32 0.0, %v4060
  %v4062 = vpop.f32.mrf.mxu0
  %4063 = vdwg.mxu0
  %4064 = vmatpush.bf16.msra.mxu0 0
  %4065 = vmatpush.bf16.msra.mxu0 0
  %4066 = vmatpush.bf16.msra.mxu0 0
  %4067 = vmatpush.bf16.msra.mxu0 0
  %4068 = vmatpush.bf16.msra.mxu0 0
  %4069 = vmatpush.bf16.msra.mxu0 0
  %4070 = vmatpush.bf16.msra.mxu0 0
  %4071 = vmatpush.bf16.msra.mxu0 %v3987
  %4072 = vmatmul.bf16.gmra.mxu0 %v3975
  %v4073 = vpop.f32.mrf.mxu0
  %v4074 = vadd.f32 0.0, %v4073
  %v4075 = vpop.f32.mrf.mxu0
  %4076 = vdwg.mxu0
  %4077 = vmatpush.bf16.msra.mxu0 0
  %4078 = vmatpush.bf16.msra.mxu0 0
  %4079 = vmatpush.bf16.msra.mxu0 0
  %4080 = vmatpush.bf16.msra.mxu0 0
  %4081 = vmatpush.bf16.msra.mxu0 0
  %4082 = vmatpush.bf16.msra.mxu0 0
  %4083 = vmatpush.bf16.msra.mxu0 0
  %4084 = vmatpush.bf16.msra.mxu0 %v3990
  %4085 = vmatmul.bf16.gmra.mxu0 %v3975
  %v4086 = vpop.f32.mrf.mxu0
  %v4087 = vadd.f32 0.0, %v4086
  %v4088 = vpop.f32.mrf.mxu0
  %4089 = vdwg.mxu0
  %4090 = vmatpush.bf16.msra.mxu0 0
  %4091 = vmatpush.bf16.msra.mxu0 0
  %4092 = vmatpush.bf16.msra.mxu0 0
  %4093 = vmatpush.bf16.msra.mxu0 0
  %4094 = vmatpush.bf16.msra.mxu0 0
  %4095 = vmatpush.bf16.msra.mxu0 0
  %4096 = vmatpush.bf16.msra.mxu0 0
  %4097 = vmatpush.bf16.msra.mxu0 %v3993
  %4098 = vmatmul.bf16.gmra.mxu0 %v3975
  %v4099 = vpop.f32.mrf.mxu0
  %v4100 = vadd.f32 0.0, %v4099
  %v4101 = vpop.f32.mrf.mxu0
  %4102 = vdwg.mxu0
  %4103 = vmatpush.bf16.msra.mxu0 0
  %4104 = vmatpush.bf16.msra.mxu0 0
  %4105 = vmatpush.bf16.msra.mxu0 0
  %4106 = vmatpush.bf16.msra.mxu0 0
  %4107 = vmatpush.bf16.msra.mxu0 0
  %4108 = vmatpush.bf16.msra.mxu0 0
  %4109 = vmatpush.bf16.msra.mxu0 0
  %4110 = vmatpush.bf16.msra.mxu0 %v3996
  %4111 = vmatmul.bf16.gmra.mxu0 %v3975
  %v4112 = vpop.f32.mrf.mxu0
  %v4113 = vadd.f32 0.0, %v4112
  %v4114 = vpop.f32.mrf.mxu0
  %4115 = vdwg.mxu0
  %4116 = vmatpush.bf16.msra.mxu0 0
  %4117 = vmatpush.bf16.msra.mxu0 0
  %4118 = vmatpush.bf16.msra.mxu0 0
  %4119 = vmatpush.bf16.msra.mxu0 0
  %4120 = vmatpush.bf16.msra.mxu0 0
  %4121 = vmatpush.bf16.msra.mxu0 0
  %4122 = vmatpush.bf16.msra.mxu0 0
  %4123 = vmatpush.bf16.msra.mxu0 %v3999
  %4124 = vmatmul.bf16.gmra.mxu0 %v3975
  %v4125 = vpop.f32.mrf.mxu0
  %v4126 = vadd.f32 0.0, %v4125
  %v4127 = vpop.f32.mrf.mxu0
  %4128 = vdwg.mxu0
  %4129 = vmatpush.bf16.msra.mxu0 0
  %4130 = vmatpush.bf16.msra.mxu0 0
  %4131 = vmatpush.bf16.msra.mxu0 0
  %4132 = vmatpush.bf16.msra.mxu0 0
  %4133 = vmatpush.bf16.msra.mxu0 0
  %4134 = vmatpush.bf16.msra.mxu0 0
  %4135 = vmatpush.bf16.msra.mxu0 0
  %4136 = vmatpush.bf16.msra.mxu0 %v4002
  %4137 = vmatmul.bf16.gmra.mxu0 %v3975
  %v4138 = vpop.f32.mrf.mxu0
  %v4139 = vadd.f32 0.0, %v4138
  %v4140 = vpop.f32.mrf.mxu0
  %4141 = vdwg.mxu0
  %4142 = vmatpush.bf16.msra.mxu0 0
  %4143 = vmatpush.bf16.msra.mxu0 0
  %4144 = vmatpush.bf16.msra.mxu0 0
  %4145 = vmatpush.bf16.msra.mxu0 0
  %4146 = vmatpush.bf16.msra.mxu0 0
  %4147 = vmatpush.bf16.msra.mxu0 0
  %4148 = vmatpush.bf16.msra.mxu0 0
  %4149 = vmatpush.bf16.msra.mxu0 %v4005
  %4150 = vmatmul.bf16.gmra.mxu0 %v3975
  %v4151 = vpop.f32.mrf.mxu0
  %v4152 = vadd.f32 0.0, %v4151
  %v4153 = vpop.f32.mrf.mxu0
  %4154 = vdwg.mxu0
  %4155 = vmatpush.bf16.msra.mxu0 0
  %4156 = vmatpush.bf16.msra.mxu0 0
  %4157 = vmatpush.bf16.msra.mxu0 0
  %4158 = vmatpush.bf16.msra.mxu0 0
  %4159 = vmatpush.bf16.msra.mxu0 0
  %4160 = vmatpush.bf16.msra.mxu0 0
  %4161 = vmatpush.bf16.msra.mxu0 0
  %4162 = vmatpush.bf16.msra.mxu0 %v4008
  %4163 = vmatmul.bf16.gmra.mxu0 %v3975
  %v4164 = vpop.f32.mrf.mxu0
  %v4165 = vadd.f32 0.0, %v4164
  %v4166 = vpop.f32.mrf.mxu0
  %4167 = vdwg.mxu0
  %4168 = vmatpush.bf16.msra.mxu0 0
  %4169 = vmatpush.bf16.msra.mxu0 0
  %4170 = vmatpush.bf16.msra.mxu0 0
  %4171 = vmatpush.bf16.msra.mxu0 0
  %4172 = vmatpush.bf16.msra.mxu0 0
  %4173 = vmatpush.bf16.msra.mxu0 0
  %4174 = vmatpush.bf16.msra.mxu0 0
  %4175 = vmatpush.bf16.msra.mxu0 %v4011
  %4176 = vmatmul.bf16.gmra.mxu0 %v3975
  %v4177 = vpop.f32.mrf.mxu0
  %v4178 = vadd.f32 0.0, %v4177
  %v4179 = vpop.f32.mrf.mxu0
  %4180 = vdwg.mxu0
  %4181 = vmatpush.bf16.msra.mxu0 0
  %4182 = vmatpush.bf16.msra.mxu0 0
  %4183 = vmatpush.bf16.msra.mxu0 0
  %4184 = vmatpush.bf16.msra.mxu0 0
  %4185 = vmatpush.bf16.msra.mxu0 0
  %4186 = vmatpush.bf16.msra.mxu0 0
  %4187 = vmatpush.bf16.msra.mxu0 0
  %4188 = vmatpush.bf16.msra.mxu0 %v4014
  %4189 = vmatmul.bf16.gmra.mxu0 %v3975
  %v4190 = vpop.f32.mrf.mxu0
  %v4191 = vadd.f32 0.0, %v4190
  %v4192 = vpop.f32.mrf.mxu0
  %4193 = vdwg.mxu0
  %4194 = vmatpush.bf16.msra.mxu0 0
  %4195 = vmatpush.bf16.msra.mxu0 0
  %4196 = vmatpush.bf16.msra.mxu0 0
  %4197 = vmatpush.bf16.msra.mxu0 0
  %4198 = vmatpush.bf16.msra.mxu0 0
  %4199 = vmatpush.bf16.msra.mxu0 0
  %4200 = vmatpush.bf16.msra.mxu0 0
  %4201 = vmatpush.bf16.msra.mxu0 %v4017
  %4202 = vmatmul.bf16.gmra.mxu0 %v3975
  %v4203 = vpop.f32.mrf.mxu0
  %v4204 = vadd.f32 0.0, %v4203
  %v4205 = vpop.f32.mrf.mxu0
  %4206 = vdwg.mxu0
  %4207 = vmatpush.bf16.msra.mxu0 0
  %4208 = vmatpush.bf16.msra.mxu0 0
  %4209 = vmatpush.bf16.msra.mxu0 0
  %4210 = vmatpush.bf16.msra.mxu0 0
  %4211 = vmatpush.bf16.msra.mxu0 0
  %4212 = vmatpush.bf16.msra.mxu0 0
  %4213 = vmatpush.bf16.msra.mxu0 0
  %4214 = vmatpush.bf16.msra.mxu0 %v4020
  %4215 = vmatmul.bf16.gmra.mxu0 %v3975
  %v4216 = vpop.f32.mrf.mxu0
  %v4217 = vadd.f32 0.0, %v4216
  %v4218 = vpop.f32.mrf.mxu0
  %4219 = vdwg.mxu0
  %4220 = vmatpush.bf16.msra.mxu0 0
  %4221 = vmatpush.bf16.msra.mxu0 0
  %4222 = vmatpush.bf16.msra.mxu0 0
  %4223 = vmatpush.bf16.msra.mxu0 0
  %4224 = vmatpush.bf16.msra.mxu0 0
  %4225 = vmatpush.bf16.msra.mxu0 0
  %4226 = vmatpush.bf16.msra.mxu0 0
  %4227 = vmatpush.bf16.msra.mxu0 %v4023
  %4228 = vmatmul.bf16.gmra.mxu0 %v3975
  %v4229 = vpop.f32.mrf.mxu0
  %v4230 = vadd.f32 0.0, %v4229
  %v4231 = vpop.f32.mrf.mxu0
  %4232 = vdwg.mxu0
  %v4233 = vadd.f32 %v3586, %v4035
  %v4234 = vadd.f32 %v3599, %v4048
  %v4235 = vadd.f32 %v3612, %v4061
  %v4236 = vadd.f32 %v3625, %v4074
  %v4237 = vadd.f32 %v3638, %v4087
  %v4238 = vadd.f32 %v3651, %v4100
  %v4239 = vadd.f32 %v3664, %v4113
  %v4240 = vadd.f32 %v3677, %v4126
  %v4241 = vadd.f32 %v3690, %v4139
  %v4242 = vadd.f32 %v3703, %v4152
  %v4243 = vadd.f32 %v3716, %v4165
  %v4244 = vadd.f32 %v3729, %v4178
  %v4245 = vadd.f32 %v3742, %v4191
  %v4246 = vadd.f32 %v3755, %v4204
  %v4247 = vadd.f32 %v3768, %v4217
  %v4248 = vadd.f32 %v3781, %v4230
  %4249 = vrot.lane.b32.xlu0 %v311, 96
  %v4250 = vpop.permute.xlu0 %4249
  %4251 = vrot.lane.b32.xlu0 %v312, 96
  %v4252 = vpop.permute.xlu0 %4251
  %4253 = vrot.lane.b32.xlu0 %v313, 96
  %v4254 = vpop.permute.xlu0 %4253
  %4255 = vrot.lane.b32.xlu0 %v314, 96
  %v4256 = vpop.permute.xlu0 %4255
  %4257 = vrot.lane.b32.xlu0 %v315, 96
  %v4258 = vpop.permute.xlu0 %4257
  %4259 = vrot.lane.b32.xlu0 %v316, 96
  %v4260 = vpop.permute.xlu0 %4259
  %4261 = vrot.lane.b32.xlu0 %v317, 96
  %v4262 = vpop.permute.xlu0 %4261
  %4263 = vrot.lane.b32.xlu0 %v318, 96
  %v4264 = vpop.permute.xlu0 %4263
  %4265 = vrot.lane.b32.xlu0 %v319, 96
  %v4266 = vpop.permute.xlu0 %4265
  %4267 = vrot.lane.b32.xlu0 %v320, 96
  %v4268 = vpop.permute.xlu0 %4267
  %4269 = vrot.lane.b32.xlu0 %v321, 96
  %v4270 = vpop.permute.xlu0 %4269
  %4271 = vrot.lane.b32.xlu0 %v322, 96
  %v4272 = vpop.permute.xlu0 %4271
  %4273 = vrot.lane.b32.xlu0 %v323, 96
  %v4274 = vpop.permute.xlu0 %4273
  %4275 = vrot.lane.b32.xlu0 %v324, 96
  %v4276 = vpop.permute.xlu0 %4275
  %4277 = vrot.lane.b32.xlu0 %v325, 96
  %v4278 = vpop.permute.xlu0 %4277
  %4279 = vrot.lane.b32.xlu0 %v286, 96
  %v4280 = vpop.permute.xlu0 %4279
  %vm4281 = vcmask 785408
  %v4282 = vsel %vm4281, %v4250, %v4252
  %v4283 = vsel %vm4281, %v4252, %v4254
  %v4284 = vsel %vm4281, %v4254, %v4256
  %v4285 = vsel %vm4281, %v4256, %v4258
  %v4286 = vsel %vm4281, %v4258, %v4260
  %v4287 = vsel %vm4281, %v4260, %v4262
  %v4288 = vsel %vm4281, %v4262, %v4264
  %v4289 = vsel %vm4281, %v4264, %v4266
  %v4290 = vsel %vm4281, %v4266, %v4268
  %v4291 = vsel %vm4281, %v4268, %v4270
  %v4292 = vsel %vm4281, %v4270, %v4272
  %v4293 = vsel %vm4281, %v4272, %v4274
  %v4294 = vsel %vm4281, %v4274, %v4276
  %v4295 = vsel %vm4281, %v4276, %v4278
  %v4296 = vsel %vm4281, %v4278, %v4280
  %vm4312 = vcmask 785408
  %v4315 = vsel %vm4312, %v4280, %v4250
  %v4317 = vunpack.c.l.bf16 %v4282
  %v4318 = vunpack.c.l.bf16 %v4283
  %v4319 = vunpack.c.l.bf16 %v4284
  %v4320 = vunpack.c.l.bf16 %v4285
  %v4321 = vunpack.c.l.bf16 %v4286
  %v4322 = vunpack.c.l.bf16 %v4287
  %v4323 = vunpack.c.l.bf16 %v4288
  %v4324 = vunpack.c.l.bf16 %v4289
  %v4325 = vunpack.c.l.bf16 %v4290
  %v4326 = vunpack.c.l.bf16 %v4291
  %v4327 = vunpack.c.l.bf16 %v4292
  %v4328 = vunpack.c.l.bf16 %v4293
  %v4329 = vunpack.c.l.bf16 %v4294
  %v4330 = vunpack.c.l.bf16 %v4295
  %v4331 = vunpack.c.l.bf16 %v4296
  %v4332 = vunpack.c.l.bf16 %v4315
  %v4333 = vmul.f32 %v4317, %v3884
  %v4334 = vmul.f32 %v4318, %v3885
  %v4335 = vmul.f32 %v4319, %v3886
  %v4336 = vmul.f32 %v4320, %v3887
  %v4337 = vmul.f32 %v4321, %v3888
  %v4338 = vmul.f32 %v4322, %v3889
  %v4339 = vmul.f32 %v4323, %v3890
  %v4340 = vmul.f32 %v4324, %v3891
  %v4341 = vmul.f32 %v4325, %v3892
  %v4342 = vmul.f32 %v4326, %v3893
  %v4343 = vmul.f32 %v4327, %v3894
  %v4344 = vmul.f32 %v4328, %v3895
  %v4345 = vmul.f32 %v4329, %v3896
  %v4346 = vmul.f32 %v4330, %v3897
  %v4347 = vmul.f32 %v4331, %v3898
  %v4348 = vmul.f32 %v4332, %v3899
  %v4349 = vpack.c.bf16 %v4333, %v4333
  %v4350 = vpack.c.bf16 %v4334, %v4334
  %v4351 = vpack.c.bf16 %v4335, %v4335
  %v4352 = vpack.c.bf16 %v4336, %v4336
  %v4353 = vpack.c.bf16 %v4337, %v4337
  %v4354 = vpack.c.bf16 %v4338, %v4338
  %v4355 = vpack.c.bf16 %v4339, %v4339
  %v4356 = vpack.c.bf16 %v4340, %v4340
  %v4357 = vpack.c.bf16 %v4341, %v4341
  %v4358 = vpack.c.bf16 %v4342, %v4342
  %v4359 = vpack.c.bf16 %v4343, %v4343
  %v4360 = vpack.c.bf16 %v4344, %v4344
  %v4361 = vpack.c.bf16 %v4345, %v4345
  %v4362 = vpack.c.bf16 %v4346, %v4346
  %v4363 = vpack.c.bf16 %v4347, %v4347
  %v4364 = vpack.c.bf16 %v4348, %v4348
  %s4365 = scalar_lea.vmem %s2, 22
  %v4366 = vld [vmem:[%s4365] sm:$0x3]
  %v4368 = vsel %vm711, %v4366, 0
  %v4371 = vsel %vm715, %v4349, 0
  %v4374 = vsel %vm715, %v4350, 0
  %v4377 = vsel %vm715, %v4351, 0
  %v4380 = vsel %vm715, %v4352, 0
  %v4383 = vsel %vm715, %v4353, 0
  %v4386 = vsel %vm715, %v4354, 0
  %v4389 = vsel %vm715, %v4355, 0
  %v4392 = vsel %vm715, %v4356, 0
  %v4395 = vsel %vm715, %v4357, 0
  %v4398 = vsel %vm715, %v4358, 0
  %v4401 = vsel %vm715, %v4359, 0
  %v4404 = vsel %vm715, %v4360, 0
  %v4407 = vsel %vm715, %v4361, 0
  %v4410 = vsel %vm715, %v4362, 0
  %v4413 = vsel %vm715, %v4363, 0
  %v4416 = vsel %vm715, %v4364, 0
  %4418 = vmatpush.bf16.msra.mxu0 0
  %4419 = vmatpush.bf16.msra.mxu0 0
  %4420 = vmatpush.bf16.msra.mxu0 0
  %4421 = vmatpush.bf16.msra.mxu0 0
  %4422 = vmatpush.bf16.msra.mxu0 0
  %4423 = vmatpush.bf16.msra.mxu0 0
  %4424 = vmatpush.bf16.msra.mxu0 0
  %4425 = vmatpush.bf16.msra.mxu0 %v4371
  %4426 = vmatmul.bf16.gmra.mxu0 %v4368
  %v4427 = vpop.f32.mrf.mxu0
  %v4428 = vadd.f32 0.0, %v4427
  %v4429 = vpop.f32.mrf.mxu0
  %4430 = vdwg.mxu0
  %4431 = vmatpush.bf16.msra.mxu0 0
  %4432 = vmatpush.bf16.msra.mxu0 0
  %4433 = vmatpush.bf16.msra.mxu0 0
  %4434 = vmatpush.bf16.msra.mxu0 0
  %4435 = vmatpush.bf16.msra.mxu0 0
  %4436 = vmatpush.bf16.msra.mxu0 0
  %4437 = vmatpush.bf16.msra.mxu0 0
  %4438 = vmatpush.bf16.msra.mxu0 %v4374
  %4439 = vmatmul.bf16.gmra.mxu0 %v4368
  %v4440 = vpop.f32.mrf.mxu0
  %v4441 = vadd.f32 0.0, %v4440
  %v4442 = vpop.f32.mrf.mxu0
  %4443 = vdwg.mxu0
  %4444 = vmatpush.bf16.msra.mxu0 0
  %4445 = vmatpush.bf16.msra.mxu0 0
  %4446 = vmatpush.bf16.msra.mxu0 0
  %4447 = vmatpush.bf16.msra.mxu0 0
  %4448 = vmatpush.bf16.msra.mxu0 0
  %4449 = vmatpush.bf16.msra.mxu0 0
  %4450 = vmatpush.bf16.msra.mxu0 0
  %4451 = vmatpush.bf16.msra.mxu0 %v4377
  %4452 = vmatmul.bf16.gmra.mxu0 %v4368
  %v4453 = vpop.f32.mrf.mxu0
  %v4454 = vadd.f32 0.0, %v4453
  %v4455 = vpop.f32.mrf.mxu0
  %4456 = vdwg.mxu0
  %4457 = vmatpush.bf16.msra.mxu0 0
  %4458 = vmatpush.bf16.msra.mxu0 0
  %4459 = vmatpush.bf16.msra.mxu0 0
  %4460 = vmatpush.bf16.msra.mxu0 0
  %4461 = vmatpush.bf16.msra.mxu0 0
  %4462 = vmatpush.bf16.msra.mxu0 0
  %4463 = vmatpush.bf16.msra.mxu0 0
  %4464 = vmatpush.bf16.msra.mxu0 %v4380
  %4465 = vmatmul.bf16.gmra.mxu0 %v4368
  %v4466 = vpop.f32.mrf.mxu0
  %v4467 = vadd.f32 0.0, %v4466
  %v4468 = vpop.f32.mrf.mxu0
  %4469 = vdwg.mxu0
  %4470 = vmatpush.bf16.msra.mxu0 0
  %4471 = vmatpush.bf16.msra.mxu0 0
  %4472 = vmatpush.bf16.msra.mxu0 0
  %4473 = vmatpush.bf16.msra.mxu0 0
  %4474 = vmatpush.bf16.msra.mxu0 0
  %4475 = vmatpush.bf16.msra.mxu0 0
  %4476 = vmatpush.bf16.msra.mxu0 0
  %4477 = vmatpush.bf16.msra.mxu0 %v4383
  %4478 = vmatmul.bf16.gmra.mxu0 %v4368
  %v4479 = vpop.f32.mrf.mxu0
  %v4480 = vadd.f32 0.0, %v4479
  %v4481 = vpop.f32.mrf.mxu0
  %4482 = vdwg.mxu0
  %4483 = vmatpush.bf16.msra.mxu0 0
  %4484 = vmatpush.bf16.msra.mxu0 0
  %4485 = vmatpush.bf16.msra.mxu0 0
  %4486 = vmatpush.bf16.msra.mxu0 0
  %4487 = vmatpush.bf16.msra.mxu0 0
  %4488 = vmatpush.bf16.msra.mxu0 0
  %4489 = vmatpush.bf16.msra.mxu0 0
  %4490 = vmatpush.bf16.msra.mxu0 %v4386
  %4491 = vmatmul.bf16.gmra.mxu0 %v4368
  %v4492 = vpop.f32.mrf.mxu0
  %v4493 = vadd.f32 0.0, %v4492
  %v4494 = vpop.f32.mrf.mxu0
  %4495 = vdwg.mxu0
  %4496 = vmatpush.bf16.msra.mxu0 0
  %4497 = vmatpush.bf16.msra.mxu0 0
  %4498 = vmatpush.bf16.msra.mxu0 0
  %4499 = vmatpush.bf16.msra.mxu0 0
  %4500 = vmatpush.bf16.msra.mxu0 0
  %4501 = vmatpush.bf16.msra.mxu0 0
  %4502 = vmatpush.bf16.msra.mxu0 0
  %4503 = vmatpush.bf16.msra.mxu0 %v4389
  %4504 = vmatmul.bf16.gmra.mxu0 %v4368
  %v4505 = vpop.f32.mrf.mxu0
  %v4506 = vadd.f32 0.0, %v4505
  %v4507 = vpop.f32.mrf.mxu0
  %4508 = vdwg.mxu0
  %4509 = vmatpush.bf16.msra.mxu0 0
  %4510 = vmatpush.bf16.msra.mxu0 0
  %4511 = vmatpush.bf16.msra.mxu0 0
  %4512 = vmatpush.bf16.msra.mxu0 0
  %4513 = vmatpush.bf16.msra.mxu0 0
  %4514 = vmatpush.bf16.msra.mxu0 0
  %4515 = vmatpush.bf16.msra.mxu0 0
  %4516 = vmatpush.bf16.msra.mxu0 %v4392
  %4517 = vmatmul.bf16.gmra.mxu0 %v4368
  %v4518 = vpop.f32.mrf.mxu0
  %v4519 = vadd.f32 0.0, %v4518
  %v4520 = vpop.f32.mrf.mxu0
  %4521 = vdwg.mxu0
  %4522 = vmatpush.bf16.msra.mxu0 0
  %4523 = vmatpush.bf16.msra.mxu0 0
  %4524 = vmatpush.bf16.msra.mxu0 0
  %4525 = vmatpush.bf16.msra.mxu0 0
  %4526 = vmatpush.bf16.msra.mxu0 0
  %4527 = vmatpush.bf16.msra.mxu0 0
  %4528 = vmatpush.bf16.msra.mxu0 0
  %4529 = vmatpush.bf16.msra.mxu0 %v4395
  %4530 = vmatmul.bf16.gmra.mxu0 %v4368
  %v4531 = vpop.f32.mrf.mxu0
  %v4532 = vadd.f32 0.0, %v4531
  %v4533 = vpop.f32.mrf.mxu0
  %4534 = vdwg.mxu0
  %4535 = vmatpush.bf16.msra.mxu0 0
  %4536 = vmatpush.bf16.msra.mxu0 0
  %4537 = vmatpush.bf16.msra.mxu0 0
  %4538 = vmatpush.bf16.msra.mxu0 0
  %4539 = vmatpush.bf16.msra.mxu0 0
  %4540 = vmatpush.bf16.msra.mxu0 0
  %4541 = vmatpush.bf16.msra.mxu0 0
  %4542 = vmatpush.bf16.msra.mxu0 %v4398
  %4543 = vmatmul.bf16.gmra.mxu0 %v4368
  %v4544 = vpop.f32.mrf.mxu0
  %v4545 = vadd.f32 0.0, %v4544
  %v4546 = vpop.f32.mrf.mxu0
  %4547 = vdwg.mxu0
  %4548 = vmatpush.bf16.msra.mxu0 0
  %4549 = vmatpush.bf16.msra.mxu0 0
  %4550 = vmatpush.bf16.msra.mxu0 0
  %4551 = vmatpush.bf16.msra.mxu0 0
  %4552 = vmatpush.bf16.msra.mxu0 0
  %4553 = vmatpush.bf16.msra.mxu0 0
  %4554 = vmatpush.bf16.msra.mxu0 0
  %4555 = vmatpush.bf16.msra.mxu0 %v4401
  %4556 = vmatmul.bf16.gmra.mxu0 %v4368
  %v4557 = vpop.f32.mrf.mxu0
  %v4558 = vadd.f32 0.0, %v4557
  %v4559 = vpop.f32.mrf.mxu0
  %4560 = vdwg.mxu0
  %4561 = vmatpush.bf16.msra.mxu0 0
  %4562 = vmatpush.bf16.msra.mxu0 0
  %4563 = vmatpush.bf16.msra.mxu0 0
  %4564 = vmatpush.bf16.msra.mxu0 0
  %4565 = vmatpush.bf16.msra.mxu0 0
  %4566 = vmatpush.bf16.msra.mxu0 0
  %4567 = vmatpush.bf16.msra.mxu0 0
  %4568 = vmatpush.bf16.msra.mxu0 %v4404
  %4569 = vmatmul.bf16.gmra.mxu0 %v4368
  %v4570 = vpop.f32.mrf.mxu0
  %v4571 = vadd.f32 0.0, %v4570
  %v4572 = vpop.f32.mrf.mxu0
  %4573 = vdwg.mxu0
  %4574 = vmatpush.bf16.msra.mxu0 0
  %4575 = vmatpush.bf16.msra.mxu0 0
  %4576 = vmatpush.bf16.msra.mxu0 0
  %4577 = vmatpush.bf16.msra.mxu0 0
  %4578 = vmatpush.bf16.msra.mxu0 0
  %4579 = vmatpush.bf16.msra.mxu0 0
  %4580 = vmatpush.bf16.msra.mxu0 0
  %4581 = vmatpush.bf16.msra.mxu0 %v4407
  %4582 = vmatmul.bf16.gmra.mxu0 %v4368
  %v4583 = vpop.f32.mrf.mxu0
  %v4584 = vadd.f32 0.0, %v4583
  %v4585 = vpop.f32.mrf.mxu0
  %4586 = vdwg.mxu0
  %4587 = vmatpush.bf16.msra.mxu0 0
  %4588 = vmatpush.bf16.msra.mxu0 0
  %4589 = vmatpush.bf16.msra.mxu0 0
  %4590 = vmatpush.bf16.msra.mxu0 0
  %4591 = vmatpush.bf16.msra.mxu0 0
  %4592 = vmatpush.bf16.msra.mxu0 0
  %4593 = vmatpush.bf16.msra.mxu0 0
  %4594 = vmatpush.bf16.msra.mxu0 %v4410
  %4595 = vmatmul.bf16.gmra.mxu0 %v4368
  %v4596 = vpop.f32.mrf.mxu0
  %v4597 = vadd.f32 0.0, %v4596
  %v4598 = vpop.f32.mrf.mxu0
  %4599 = vdwg.mxu0
  %4600 = vmatpush.bf16.msra.mxu0 0
  %4601 = vmatpush.bf16.msra.mxu0 0
  %4602 = vmatpush.bf16.msra.mxu0 0
  %4603 = vmatpush.bf16.msra.mxu0 0
  %4604 = vmatpush.bf16.msra.mxu0 0
  %4605 = vmatpush.bf16.msra.mxu0 0
  %4606 = vmatpush.bf16.msra.mxu0 0
  %4607 = vmatpush.bf16.msra.mxu0 %v4413
  %4608 = vmatmul.bf16.gmra.mxu0 %v4368
  %v4609 = vpop.f32.mrf.mxu0
  %v4610 = vadd.f32 0.0, %v4609
  %v4611 = vpop.f32.mrf.mxu0
  %4612 = vdwg.mxu0
  %4613 = vmatpush.bf16.msra.mxu0 0
  %4614 = vmatpush.bf16.msra.mxu0 0
  %4615 = vmatpush.bf16.msra.mxu0 0
  %4616 = vmatpush.bf16.msra.mxu0 0
  %4617 = vmatpush.bf16.msra.mxu0 0
  %4618 = vmatpush.bf16.msra.mxu0 0
  %4619 = vmatpush.bf16.msra.mxu0 0
  %4620 = vmatpush.bf16.msra.mxu0 %v4416
  %4621 = vmatmul.bf16.gmra.mxu0 %v4368
  %v4622 = vpop.f32.mrf.mxu0
  %v4623 = vadd.f32 0.0, %v4622
  %v4624 = vpop.f32.mrf.mxu0
  %4625 = vdwg.mxu0
  %v4626 = vadd.f32 %v4233, %v4428
  %v4627 = vadd.f32 %v4234, %v4441
  %v4628 = vadd.f32 %v4235, %v4454
  %v4629 = vadd.f32 %v4236, %v4467
  %v4630 = vadd.f32 %v4237, %v4480
  %v4631 = vadd.f32 %v4238, %v4493
  %v4632 = vadd.f32 %v4239, %v4506
  %v4633 = vadd.f32 %v4240, %v4519
  %v4634 = vadd.f32 %v4241, %v4532
  %v4635 = vadd.f32 %v4242, %v4545
  %v4636 = vadd.f32 %v4243, %v4558
  %v4637 = vadd.f32 %v4244, %v4571
  %v4638 = vadd.f32 %v4245, %v4584
  %v4639 = vadd.f32 %v4246, %v4597
  %v4640 = vadd.f32 %v4247, %v4610
  %v4641 = vadd.f32 %v4248, %v4623
  %v4642 = vld [vmem:[%s5] sm:$0x7]
  %4644 = vset.pattern.permute.xlu0 0
  %4645 = vperm.xlu0 %4644, %v4642
  %v4646 = vpop.permute.xlu0 %4645
  %v4648 = vadd.f32 %v4626, %v4646
  %v4649 = vadd.f32 %v4627, %v4646
  %v4650 = vadd.f32 %v4628, %v4646
  %v4651 = vadd.f32 %v4629, %v4646
  %v4652 = vadd.f32 %v4630, %v4646
  %v4653 = vadd.f32 %v4631, %v4646
  %v4654 = vadd.f32 %v4632, %v4646
  %v4655 = vadd.f32 %v4633, %v4646
  %v4656 = vadd.f32 %v4634, %v4646
  %v4657 = vadd.f32 %v4635, %v4646
  %v4658 = vadd.f32 %v4636, %v4646
  %v4659 = vadd.f32 %v4637, %v4646
  %v4660 = vadd.f32 %v4638, %v4646
  %v4661 = vadd.f32 %v4639, %v4646
  %v4662 = vadd.f32 %v4640, %v4646
  %v4663 = vadd.f32 %v4641, %v4646
  %v4664 = vtanh.pop %v4648
  %v4665 = vtanh.pop %v4649
  %v4666 = vtanh.pop %v4650
  %v4667 = vtanh.pop %v4651
  %v4668 = vtanh.pop %v4652
  %v4669 = vtanh.pop %v4653
  %v4670 = vtanh.pop %v4654
  %v4671 = vtanh.pop %v4655
  %v4672 = vtanh.pop %v4656
  %v4673 = vtanh.pop %v4657
  %v4674 = vtanh.pop %v4658
  %v4675 = vtanh.pop %v4659
  %v4676 = vtanh.pop %v4660
  %v4677 = vtanh.pop %v4661
  %v4678 = vtanh.pop %v4662
  %v4679 = vtanh.pop %v4663
  %v4696 = vrot.slane %v4665, 4
  %v4697 = vrot.slane %v4667, 4
  %v4698 = vrot.slane %v4669, 4
  %v4699 = vrot.slane %v4671, 4
  %v4700 = vrot.slane %v4673, 4
  %v4701 = vrot.slane %v4675, 4
  %v4702 = vrot.slane %v4677, 4
  %v4703 = vrot.slane %v4679, 4
  %v4704 = vsel %vm715, %v4664, %v4696
  %v4705 = vsel %vm715, %v4666, %v4697
  %v4706 = vsel %vm715, %v4668, %v4698
  %v4707 = vsel %vm715, %v4670, %v4699
  %v4708 = vsel %vm715, %v4672, %v4700
  %v4709 = vsel %vm715, %v4674, %v4701
  %v4710 = vsel %vm715, %v4676, %v4702
  %v4711 = vsel %vm715, %v4678, %v4703
  %s4720 = scalar_lea.vmem %s6, 128
  %4721 = vst [vmem:[%s4720] sm:$0x77] %v4704
  %4722 = vst [vmem:[%s4720 + $0x8] sm:$0x77] %v4705
  %4723 = vst [vmem:[%s4720 + $0x10] sm:$0x77] %v4706
  %4724 = vst [vmem:[%s4720 + $0x18] sm:$0x77] %v4707
  %4725 = vst [vmem:[%s4720 + $0x20] sm:$0x77] %v4708
  %4726 = vst [vmem:[%s4720 + $0x28] sm:$0x77] %v4709
  %4727 = vst [vmem:[%s4720 + $0x30] sm:$0x77] %v4710
  %4728 = vst [vmem:[%s4720 + $0x38] sm:$0x77] %v4711
  %s4729 = scalar_lea.vmem %s2, 24
  %v4730 = vld [vmem:[%s4729] sm:$0x3]
  %s4731 = scalar_lea.vmem %s2, 26
  %v4732 = vld [vmem:[%s4731] sm:$0x3]
  %v4734 = vsel %vm711, %v4732, 0
  %4736 = vmatpush.bf16.msra.mxu0 0
  %4737 = vmatpush.bf16.msra.mxu0 0
  %4738 = vmatpush.bf16.msra.mxu0 0
  %4739 = vmatpush.bf16.msra.mxu0 0
  %4740 = vmatpush.bf16.msra.mxu0 0
  %4741 = vmatpush.bf16.msra.mxu0 0
  %4742 = vmatpush.bf16.msra.mxu0 0
  %4743 = vmatpush.bf16.msra.mxu0 %v3000
  %4744 = vmatmul.bf16.gmra.mxu0 %v4734
  %v4745 = vpop.f32.mrf.mxu0
  %v4746 = vadd.f32 0.0, %v4745
  %v4747 = vpop.f32.mrf.mxu0
  %4748 = vdwg.mxu0
  %4749 = vmatpush.bf16.msra.mxu0 0
  %4750 = vmatpush.bf16.msra.mxu0 0
  %4751 = vmatpush.bf16.msra.mxu0 0
  %4752 = vmatpush.bf16.msra.mxu0 0
  %4753 = vmatpush.bf16.msra.mxu0 0
  %4754 = vmatpush.bf16.msra.mxu0 0
  %4755 = vmatpush.bf16.msra.mxu0 0
  %4756 = vmatpush.bf16.msra.mxu0 %v3003
  %4757 = vmatmul.bf16.gmra.mxu0 %v4734
  %v4758 = vpop.f32.mrf.mxu0
  %v4759 = vadd.f32 0.0, %v4758
  %v4760 = vpop.f32.mrf.mxu0
  %4761 = vdwg.mxu0
  %4762 = vmatpush.bf16.msra.mxu0 0
  %4763 = vmatpush.bf16.msra.mxu0 0
  %4764 = vmatpush.bf16.msra.mxu0 0
  %4765 = vmatpush.bf16.msra.mxu0 0
  %4766 = vmatpush.bf16.msra.mxu0 0
  %4767 = vmatpush.bf16.msra.mxu0 0
  %4768 = vmatpush.bf16.msra.mxu0 0
  %4769 = vmatpush.bf16.msra.mxu0 %v3006
  %4770 = vmatmul.bf16.gmra.mxu0 %v4734
  %v4771 = vpop.f32.mrf.mxu0
  %v4772 = vadd.f32 0.0, %v4771
  %v4773 = vpop.f32.mrf.mxu0
  %4774 = vdwg.mxu0
  %4775 = vmatpush.bf16.msra.mxu0 0
  %4776 = vmatpush.bf16.msra.mxu0 0
  %4777 = vmatpush.bf16.msra.mxu0 0
  %4778 = vmatpush.bf16.msra.mxu0 0
  %4779 = vmatpush.bf16.msra.mxu0 0
  %4780 = vmatpush.bf16.msra.mxu0 0
  %4781 = vmatpush.bf16.msra.mxu0 0
  %4782 = vmatpush.bf16.msra.mxu0 %v3009
  %4783 = vmatmul.bf16.gmra.mxu0 %v4734
  %v4784 = vpop.f32.mrf.mxu0
  %v4785 = vadd.f32 0.0, %v4784
  %v4786 = vpop.f32.mrf.mxu0
  %4787 = vdwg.mxu0
  %4788 = vmatpush.bf16.msra.mxu0 0
  %4789 = vmatpush.bf16.msra.mxu0 0
  %4790 = vmatpush.bf16.msra.mxu0 0
  %4791 = vmatpush.bf16.msra.mxu0 0
  %4792 = vmatpush.bf16.msra.mxu0 0
  %4793 = vmatpush.bf16.msra.mxu0 0
  %4794 = vmatpush.bf16.msra.mxu0 0
  %4795 = vmatpush.bf16.msra.mxu0 %v3012
  %4796 = vmatmul.bf16.gmra.mxu0 %v4734
  %v4797 = vpop.f32.mrf.mxu0
  %v4798 = vadd.f32 0.0, %v4797
  %v4799 = vpop.f32.mrf.mxu0
  %4800 = vdwg.mxu0
  %4801 = vmatpush.bf16.msra.mxu0 0
  %4802 = vmatpush.bf16.msra.mxu0 0
  %4803 = vmatpush.bf16.msra.mxu0 0
  %4804 = vmatpush.bf16.msra.mxu0 0
  %4805 = vmatpush.bf16.msra.mxu0 0
  %4806 = vmatpush.bf16.msra.mxu0 0
  %4807 = vmatpush.bf16.msra.mxu0 0
  %4808 = vmatpush.bf16.msra.mxu0 %v3015
  %4809 = vmatmul.bf16.gmra.mxu0 %v4734
  %v4810 = vpop.f32.mrf.mxu0
  %v4811 = vadd.f32 0.0, %v4810
  %v4812 = vpop.f32.mrf.mxu0
  %4813 = vdwg.mxu0
  %4814 = vmatpush.bf16.msra.mxu0 0
  %4815 = vmatpush.bf16.msra.mxu0 0
  %4816 = vmatpush.bf16.msra.mxu0 0
  %4817 = vmatpush.bf16.msra.mxu0 0
  %4818 = vmatpush.bf16.msra.mxu0 0
  %4819 = vmatpush.bf16.msra.mxu0 0
  %4820 = vmatpush.bf16.msra.mxu0 0
  %4821 = vmatpush.bf16.msra.mxu0 %v3018
  %4822 = vmatmul.bf16.gmra.mxu0 %v4734
  %v4823 = vpop.f32.mrf.mxu0
  %v4824 = vadd.f32 0.0, %v4823
  %v4825 = vpop.f32.mrf.mxu0
  %4826 = vdwg.mxu0
  %4827 = vmatpush.bf16.msra.mxu0 0
  %4828 = vmatpush.bf16.msra.mxu0 0
  %4829 = vmatpush.bf16.msra.mxu0 0
  %4830 = vmatpush.bf16.msra.mxu0 0
  %4831 = vmatpush.bf16.msra.mxu0 0
  %4832 = vmatpush.bf16.msra.mxu0 0
  %4833 = vmatpush.bf16.msra.mxu0 0
  %4834 = vmatpush.bf16.msra.mxu0 %v3021
  %4835 = vmatmul.bf16.gmra.mxu0 %v4734
  %v4836 = vpop.f32.mrf.mxu0
  %v4837 = vadd.f32 0.0, %v4836
  %v4838 = vpop.f32.mrf.mxu0
  %4839 = vdwg.mxu0
  %4840 = vmatpush.bf16.msra.mxu0 0
  %4841 = vmatpush.bf16.msra.mxu0 0
  %4842 = vmatpush.bf16.msra.mxu0 0
  %4843 = vmatpush.bf16.msra.mxu0 0
  %4844 = vmatpush.bf16.msra.mxu0 0
  %4845 = vmatpush.bf16.msra.mxu0 0
  %4846 = vmatpush.bf16.msra.mxu0 0
  %4847 = vmatpush.bf16.msra.mxu0 %v3024
  %4848 = vmatmul.bf16.gmra.mxu0 %v4734
  %v4849 = vpop.f32.mrf.mxu0
  %v4850 = vadd.f32 0.0, %v4849
  %v4851 = vpop.f32.mrf.mxu0
  %4852 = vdwg.mxu0
  %4853 = vmatpush.bf16.msra.mxu0 0
  %4854 = vmatpush.bf16.msra.mxu0 0
  %4855 = vmatpush.bf16.msra.mxu0 0
  %4856 = vmatpush.bf16.msra.mxu0 0
  %4857 = vmatpush.bf16.msra.mxu0 0
  %4858 = vmatpush.bf16.msra.mxu0 0
  %4859 = vmatpush.bf16.msra.mxu0 0
  %4860 = vmatpush.bf16.msra.mxu0 %v3027
  %4861 = vmatmul.bf16.gmra.mxu0 %v4734
  %v4862 = vpop.f32.mrf.mxu0
  %v4863 = vadd.f32 0.0, %v4862
  %v4864 = vpop.f32.mrf.mxu0
  %4865 = vdwg.mxu0
  %4866 = vmatpush.bf16.msra.mxu0 0
  %4867 = vmatpush.bf16.msra.mxu0 0
  %4868 = vmatpush.bf16.msra.mxu0 0
  %4869 = vmatpush.bf16.msra.mxu0 0
  %4870 = vmatpush.bf16.msra.mxu0 0
  %4871 = vmatpush.bf16.msra.mxu0 0
  %4872 = vmatpush.bf16.msra.mxu0 0
  %4873 = vmatpush.bf16.msra.mxu0 %v3030
  %4874 = vmatmul.bf16.gmra.mxu0 %v4734
  %v4875 = vpop.f32.mrf.mxu0
  %v4876 = vadd.f32 0.0, %v4875
  %v4877 = vpop.f32.mrf.mxu0
  %4878 = vdwg.mxu0
  %4879 = vmatpush.bf16.msra.mxu0 0
  %4880 = vmatpush.bf16.msra.mxu0 0
  %4881 = vmatpush.bf16.msra.mxu0 0
  %4882 = vmatpush.bf16.msra.mxu0 0
  %4883 = vmatpush.bf16.msra.mxu0 0
  %4884 = vmatpush.bf16.msra.mxu0 0
  %4885 = vmatpush.bf16.msra.mxu0 0
  %4886 = vmatpush.bf16.msra.mxu0 %v3033
  %4887 = vmatmul.bf16.gmra.mxu0 %v4734
  %v4888 = vpop.f32.mrf.mxu0
  %v4889 = vadd.f32 0.0, %v4888
  %v4890 = vpop.f32.mrf.mxu0
  %4891 = vdwg.mxu0
  %4892 = vmatpush.bf16.msra.mxu0 0
  %4893 = vmatpush.bf16.msra.mxu0 0
  %4894 = vmatpush.bf16.msra.mxu0 0
  %4895 = vmatpush.bf16.msra.mxu0 0
  %4896 = vmatpush.bf16.msra.mxu0 0
  %4897 = vmatpush.bf16.msra.mxu0 0
  %4898 = vmatpush.bf16.msra.mxu0 0
  %4899 = vmatpush.bf16.msra.mxu0 %v3036
  %4900 = vmatmul.bf16.gmra.mxu0 %v4734
  %v4901 = vpop.f32.mrf.mxu0
  %v4902 = vadd.f32 0.0, %v4901
  %v4903 = vpop.f32.mrf.mxu0
  %4904 = vdwg.mxu0
  %4905 = vmatpush.bf16.msra.mxu0 0
  %4906 = vmatpush.bf16.msra.mxu0 0
  %4907 = vmatpush.bf16.msra.mxu0 0
  %4908 = vmatpush.bf16.msra.mxu0 0
  %4909 = vmatpush.bf16.msra.mxu0 0
  %4910 = vmatpush.bf16.msra.mxu0 0
  %4911 = vmatpush.bf16.msra.mxu0 0
  %4912 = vmatpush.bf16.msra.mxu0 %v3039
  %4913 = vmatmul.bf16.gmra.mxu0 %v4734
  %v4914 = vpop.f32.mrf.mxu0
  %v4915 = vadd.f32 0.0, %v4914
  %v4916 = vpop.f32.mrf.mxu0
  %4917 = vdwg.mxu0
  %4918 = vmatpush.bf16.msra.mxu0 0
  %4919 = vmatpush.bf16.msra.mxu0 0
  %4920 = vmatpush.bf16.msra.mxu0 0
  %4921 = vmatpush.bf16.msra.mxu0 0
  %4922 = vmatpush.bf16.msra.mxu0 0
  %4923 = vmatpush.bf16.msra.mxu0 0
  %4924 = vmatpush.bf16.msra.mxu0 0
  %4925 = vmatpush.bf16.msra.mxu0 %v3042
  %4926 = vmatmul.bf16.gmra.mxu0 %v4734
  %v4927 = vpop.f32.mrf.mxu0
  %v4928 = vadd.f32 0.0, %v4927
  %v4929 = vpop.f32.mrf.mxu0
  %4930 = vdwg.mxu0
  %4931 = vmatpush.bf16.msra.mxu0 0
  %4932 = vmatpush.bf16.msra.mxu0 0
  %4933 = vmatpush.bf16.msra.mxu0 0
  %4934 = vmatpush.bf16.msra.mxu0 0
  %4935 = vmatpush.bf16.msra.mxu0 0
  %4936 = vmatpush.bf16.msra.mxu0 0
  %4937 = vmatpush.bf16.msra.mxu0 0
  %4938 = vmatpush.bf16.msra.mxu0 %v3045
  %4939 = vmatmul.bf16.gmra.mxu0 %v4734
  %v4940 = vpop.f32.mrf.mxu0
  %v4941 = vadd.f32 0.0, %v4940
  %v4942 = vpop.f32.mrf.mxu0
  %4943 = vdwg.mxu0
  %v4945 = vsel %vm711, %v4730, 0
  %4947 = vmatpush.bf16.msra.mxu0 0
  %4948 = vmatpush.bf16.msra.mxu0 0
  %4949 = vmatpush.bf16.msra.mxu0 0
  %4950 = vmatpush.bf16.msra.mxu0 0
  %4951 = vmatpush.bf16.msra.mxu0 0
  %4952 = vmatpush.bf16.msra.mxu0 0
  %4953 = vmatpush.bf16.msra.mxu0 0
  %4954 = vmatpush.bf16.msra.mxu0 %v1630
  %4955 = vmatmul.bf16.gmra.mxu0 %v4945
  %v4956 = vpop.f32.mrf.mxu0
  %v4957 = vadd.f32 %v4746, %v4956
  %v4958 = vpop.f32.mrf.mxu0
  %4959 = vdwg.mxu0
  %4960 = vmatpush.bf16.msra.mxu0 0
  %4961 = vmatpush.bf16.msra.mxu0 0
  %4962 = vmatpush.bf16.msra.mxu0 0
  %4963 = vmatpush.bf16.msra.mxu0 0
  %4964 = vmatpush.bf16.msra.mxu0 0
  %4965 = vmatpush.bf16.msra.mxu0 0
  %4966 = vmatpush.bf16.msra.mxu0 0
  %4967 = vmatpush.bf16.msra.mxu0 %v1633
  %4968 = vmatmul.bf16.gmra.mxu0 %v4945
  %v4969 = vpop.f32.mrf.mxu0
  %v4970 = vadd.f32 %v4759, %v4969
  %v4971 = vpop.f32.mrf.mxu0
  %4972 = vdwg.mxu0
  %4973 = vmatpush.bf16.msra.mxu0 0
  %4974 = vmatpush.bf16.msra.mxu0 0
  %4975 = vmatpush.bf16.msra.mxu0 0
  %4976 = vmatpush.bf16.msra.mxu0 0
  %4977 = vmatpush.bf16.msra.mxu0 0
  %4978 = vmatpush.bf16.msra.mxu0 0
  %4979 = vmatpush.bf16.msra.mxu0 0
  %4980 = vmatpush.bf16.msra.mxu0 %v1636
  %4981 = vmatmul.bf16.gmra.mxu0 %v4945
  %v4982 = vpop.f32.mrf.mxu0
  %v4983 = vadd.f32 %v4772, %v4982
  %v4984 = vpop.f32.mrf.mxu0
  %4985 = vdwg.mxu0
  %4986 = vmatpush.bf16.msra.mxu0 0
  %4987 = vmatpush.bf16.msra.mxu0 0
  %4988 = vmatpush.bf16.msra.mxu0 0
  %4989 = vmatpush.bf16.msra.mxu0 0
  %4990 = vmatpush.bf16.msra.mxu0 0
  %4991 = vmatpush.bf16.msra.mxu0 0
  %4992 = vmatpush.bf16.msra.mxu0 0
  %4993 = vmatpush.bf16.msra.mxu0 %v1639
  %4994 = vmatmul.bf16.gmra.mxu0 %v4945
  %v4995 = vpop.f32.mrf.mxu0
  %v4996 = vadd.f32 %v4785, %v4995
  %v4997 = vpop.f32.mrf.mxu0
  %4998 = vdwg.mxu0
  %4999 = vmatpush.bf16.msra.mxu0 0
  %5000 = vmatpush.bf16.msra.mxu0 0
  %5001 = vmatpush.bf16.msra.mxu0 0
  %5002 = vmatpush.bf16.msra.mxu0 0
  %5003 = vmatpush.bf16.msra.mxu0 0
  %5004 = vmatpush.bf16.msra.mxu0 0
  %5005 = vmatpush.bf16.msra.mxu0 0
  %5006 = vmatpush.bf16.msra.mxu0 %v1642
  %5007 = vmatmul.bf16.gmra.mxu0 %v4945
  %v5008 = vpop.f32.mrf.mxu0
  %v5009 = vadd.f32 %v4798, %v5008
  %v5010 = vpop.f32.mrf.mxu0
  %5011 = vdwg.mxu0
  %5012 = vmatpush.bf16.msra.mxu0 0
  %5013 = vmatpush.bf16.msra.mxu0 0
  %5014 = vmatpush.bf16.msra.mxu0 0
  %5015 = vmatpush.bf16.msra.mxu0 0
  %5016 = vmatpush.bf16.msra.mxu0 0
  %5017 = vmatpush.bf16.msra.mxu0 0
  %5018 = vmatpush.bf16.msra.mxu0 0
  %5019 = vmatpush.bf16.msra.mxu0 %v1645
  %5020 = vmatmul.bf16.gmra.mxu0 %v4945
  %v5021 = vpop.f32.mrf.mxu0
  %v5022 = vadd.f32 %v4811, %v5021
  %v5023 = vpop.f32.mrf.mxu0
  %5024 = vdwg.mxu0
  %5025 = vmatpush.bf16.msra.mxu0 0
  %5026 = vmatpush.bf16.msra.mxu0 0
  %5027 = vmatpush.bf16.msra.mxu0 0
  %5028 = vmatpush.bf16.msra.mxu0 0
  %5029 = vmatpush.bf16.msra.mxu0 0
  %5030 = vmatpush.bf16.msra.mxu0 0
  %5031 = vmatpush.bf16.msra.mxu0 0
  %5032 = vmatpush.bf16.msra.mxu0 %v1648
  %5033 = vmatmul.bf16.gmra.mxu0 %v4945
  %v5034 = vpop.f32.mrf.mxu0
  %v5035 = vadd.f32 %v4824, %v5034
  %v5036 = vpop.f32.mrf.mxu0
  %5037 = vdwg.mxu0
  %5038 = vmatpush.bf16.msra.mxu0 0
  %5039 = vmatpush.bf16.msra.mxu0 0
  %5040 = vmatpush.bf16.msra.mxu0 0
  %5041 = vmatpush.bf16.msra.mxu0 0
  %5042 = vmatpush.bf16.msra.mxu0 0
  %5043 = vmatpush.bf16.msra.mxu0 0
  %5044 = vmatpush.bf16.msra.mxu0 0
  %5045 = vmatpush.bf16.msra.mxu0 %v1651
  %5046 = vmatmul.bf16.gmra.mxu0 %v4945
  %v5047 = vpop.f32.mrf.mxu0
  %v5048 = vadd.f32 %v4837, %v5047
  %v5049 = vpop.f32.mrf.mxu0
  %5050 = vdwg.mxu0
  %5051 = vmatpush.bf16.msra.mxu0 0
  %5052 = vmatpush.bf16.msra.mxu0 0
  %5053 = vmatpush.bf16.msra.mxu0 0
  %5054 = vmatpush.bf16.msra.mxu0 0
  %5055 = vmatpush.bf16.msra.mxu0 0
  %5056 = vmatpush.bf16.msra.mxu0 0
  %5057 = vmatpush.bf16.msra.mxu0 0
  %5058 = vmatpush.bf16.msra.mxu0 %v1654
  %5059 = vmatmul.bf16.gmra.mxu0 %v4945
  %v5060 = vpop.f32.mrf.mxu0
  %v5061 = vadd.f32 %v4850, %v5060
  %v5062 = vpop.f32.mrf.mxu0
  %5063 = vdwg.mxu0
  %5064 = vmatpush.bf16.msra.mxu0 0
  %5065 = vmatpush.bf16.msra.mxu0 0
  %5066 = vmatpush.bf16.msra.mxu0 0
  %5067 = vmatpush.bf16.msra.mxu0 0
  %5068 = vmatpush.bf16.msra.mxu0 0
  %5069 = vmatpush.bf16.msra.mxu0 0
  %5070 = vmatpush.bf16.msra.mxu0 0
  %5071 = vmatpush.bf16.msra.mxu0 %v1657
  %5072 = vmatmul.bf16.gmra.mxu0 %v4945
  %v5073 = vpop.f32.mrf.mxu0
  %v5074 = vadd.f32 %v4863, %v5073
  %v5075 = vpop.f32.mrf.mxu0
  %5076 = vdwg.mxu0
  %5077 = vmatpush.bf16.msra.mxu0 0
  %5078 = vmatpush.bf16.msra.mxu0 0
  %5079 = vmatpush.bf16.msra.mxu0 0
  %5080 = vmatpush.bf16.msra.mxu0 0
  %5081 = vmatpush.bf16.msra.mxu0 0
  %5082 = vmatpush.bf16.msra.mxu0 0
  %5083 = vmatpush.bf16.msra.mxu0 0
  %5084 = vmatpush.bf16.msra.mxu0 %v1660
  %5085 = vmatmul.bf16.gmra.mxu0 %v4945
  %v5086 = vpop.f32.mrf.mxu0
  %v5087 = vadd.f32 %v4876, %v5086
  %v5088 = vpop.f32.mrf.mxu0
  %5089 = vdwg.mxu0
  %5090 = vmatpush.bf16.msra.mxu0 0
  %5091 = vmatpush.bf16.msra.mxu0 0
  %5092 = vmatpush.bf16.msra.mxu0 0
  %5093 = vmatpush.bf16.msra.mxu0 0
  %5094 = vmatpush.bf16.msra.mxu0 0
  %5095 = vmatpush.bf16.msra.mxu0 0
  %5096 = vmatpush.bf16.msra.mxu0 0
  %5097 = vmatpush.bf16.msra.mxu0 %v1663
  %5098 = vmatmul.bf16.gmra.mxu0 %v4945
  %v5099 = vpop.f32.mrf.mxu0
  %v5100 = vadd.f32 %v4889, %v5099
  %v5101 = vpop.f32.mrf.mxu0
  %5102 = vdwg.mxu0
  %5103 = vmatpush.bf16.msra.mxu0 0
  %5104 = vmatpush.bf16.msra.mxu0 0
  %5105 = vmatpush.bf16.msra.mxu0 0
  %5106 = vmatpush.bf16.msra.mxu0 0
  %5107 = vmatpush.bf16.msra.mxu0 0
  %5108 = vmatpush.bf16.msra.mxu0 0
  %5109 = vmatpush.bf16.msra.mxu0 0
  %5110 = vmatpush.bf16.msra.mxu0 %v1666
  %5111 = vmatmul.bf16.gmra.mxu0 %v4945
  %v5112 = vpop.f32.mrf.mxu0
  %v5113 = vadd.f32 %v4902, %v5112
  %v5114 = vpop.f32.mrf.mxu0
  %5115 = vdwg.mxu0
  %5116 = vmatpush.bf16.msra.mxu0 0
  %5117 = vmatpush.bf16.msra.mxu0 0
  %5118 = vmatpush.bf16.msra.mxu0 0
  %5119 = vmatpush.bf16.msra.mxu0 0
  %5120 = vmatpush.bf16.msra.mxu0 0
  %5121 = vmatpush.bf16.msra.mxu0 0
  %5122 = vmatpush.bf16.msra.mxu0 0
  %5123 = vmatpush.bf16.msra.mxu0 %v1669
  %5124 = vmatmul.bf16.gmra.mxu0 %v4945
  %v5125 = vpop.f32.mrf.mxu0
  %v5126 = vadd.f32 %v4915, %v5125
  %v5127 = vpop.f32.mrf.mxu0
  %5128 = vdwg.mxu0
  %5129 = vmatpush.bf16.msra.mxu0 0
  %5130 = vmatpush.bf16.msra.mxu0 0
  %5131 = vmatpush.bf16.msra.mxu0 0
  %5132 = vmatpush.bf16.msra.mxu0 0
  %5133 = vmatpush.bf16.msra.mxu0 0
  %5134 = vmatpush.bf16.msra.mxu0 0
  %5135 = vmatpush.bf16.msra.mxu0 0
  %5136 = vmatpush.bf16.msra.mxu0 %v1672
  %5137 = vmatmul.bf16.gmra.mxu0 %v4945
  %v5138 = vpop.f32.mrf.mxu0
  %v5139 = vadd.f32 %v4928, %v5138
  %v5140 = vpop.f32.mrf.mxu0
  %5141 = vdwg.mxu0
  %5142 = vmatpush.bf16.msra.mxu0 0
  %5143 = vmatpush.bf16.msra.mxu0 0
  %5144 = vmatpush.bf16.msra.mxu0 0
  %5145 = vmatpush.bf16.msra.mxu0 0
  %5146 = vmatpush.bf16.msra.mxu0 0
  %5147 = vmatpush.bf16.msra.mxu0 0
  %5148 = vmatpush.bf16.msra.mxu0 0
  %5149 = vmatpush.bf16.msra.mxu0 %v1675
  %5150 = vmatmul.bf16.gmra.mxu0 %v4945
  %v5151 = vpop.f32.mrf.mxu0
  %v5152 = vadd.f32 %v4941, %v5151
  %v5153 = vpop.f32.mrf.mxu0
  %5154 = vdwg.mxu0
  %s5155 = scalar_lea.vmem %s2, 28
  %v5156 = vld [vmem:[%s5155] sm:$0x3]
  %v5158 = vsel %vm711, %v5156, 0
  %5160 = vmatpush.bf16.msra.mxu0 0
  %5161 = vmatpush.bf16.msra.mxu0 0
  %5162 = vmatpush.bf16.msra.mxu0 0
  %5163 = vmatpush.bf16.msra.mxu0 0
  %5164 = vmatpush.bf16.msra.mxu0 0
  %5165 = vmatpush.bf16.msra.mxu0 0
  %5166 = vmatpush.bf16.msra.mxu0 0
  %5167 = vmatpush.bf16.msra.mxu0 %v4371
  %5168 = vmatmul.bf16.gmra.mxu0 %v5158
  %v5169 = vpop.f32.mrf.mxu0
  %v5170 = vadd.f32 0.0, %v5169
  %v5171 = vpop.f32.mrf.mxu0
  %5172 = vdwg.mxu0
  %5173 = vmatpush.bf16.msra.mxu0 0
  %5174 = vmatpush.bf16.msra.mxu0 0
  %5175 = vmatpush.bf16.msra.mxu0 0
  %5176 = vmatpush.bf16.msra.mxu0 0
  %5177 = vmatpush.bf16.msra.mxu0 0
  %5178 = vmatpush.bf16.msra.mxu0 0
  %5179 = vmatpush.bf16.msra.mxu0 0
  %5180 = vmatpush.bf16.msra.mxu0 %v4374
  %5181 = vmatmul.bf16.gmra.mxu0 %v5158
  %v5182 = vpop.f32.mrf.mxu0
  %v5183 = vadd.f32 0.0, %v5182
  %v5184 = vpop.f32.mrf.mxu0
  %5185 = vdwg.mxu0
  %5186 = vmatpush.bf16.msra.mxu0 0
  %5187 = vmatpush.bf16.msra.mxu0 0
  %5188 = vmatpush.bf16.msra.mxu0 0
  %5189 = vmatpush.bf16.msra.mxu0 0
  %5190 = vmatpush.bf16.msra.mxu0 0
  %5191 = vmatpush.bf16.msra.mxu0 0
  %5192 = vmatpush.bf16.msra.mxu0 0
  %5193 = vmatpush.bf16.msra.mxu0 %v4377
  %5194 = vmatmul.bf16.gmra.mxu0 %v5158
  %v5195 = vpop.f32.mrf.mxu0
  %v5196 = vadd.f32 0.0, %v5195
  %v5197 = vpop.f32.mrf.mxu0
  %5198 = vdwg.mxu0
  %5199 = vmatpush.bf16.msra.mxu0 0
  %5200 = vmatpush.bf16.msra.mxu0 0
  %5201 = vmatpush.bf16.msra.mxu0 0
  %5202 = vmatpush.bf16.msra.mxu0 0
  %5203 = vmatpush.bf16.msra.mxu0 0
  %5204 = vmatpush.bf16.msra.mxu0 0
  %5205 = vmatpush.bf16.msra.mxu0 0
  %5206 = vmatpush.bf16.msra.mxu0 %v4380
  %5207 = vmatmul.bf16.gmra.mxu0 %v5158
  %v5208 = vpop.f32.mrf.mxu0
  %v5209 = vadd.f32 0.0, %v5208
  %v5210 = vpop.f32.mrf.mxu0
  %5211 = vdwg.mxu0
  %5212 = vmatpush.bf16.msra.mxu0 0
  %5213 = vmatpush.bf16.msra.mxu0 0
  %5214 = vmatpush.bf16.msra.mxu0 0
  %5215 = vmatpush.bf16.msra.mxu0 0
  %5216 = vmatpush.bf16.msra.mxu0 0
  %5217 = vmatpush.bf16.msra.mxu0 0
  %5218 = vmatpush.bf16.msra.mxu0 0
  %5219 = vmatpush.bf16.msra.mxu0 %v4383
  %5220 = vmatmul.bf16.gmra.mxu0 %v5158
  %v5221 = vpop.f32.mrf.mxu0
  %v5222 = vadd.f32 0.0, %v5221
  %v5223 = vpop.f32.mrf.mxu0
  %5224 = vdwg.mxu0
  %5225 = vmatpush.bf16.msra.mxu0 0
  %5226 = vmatpush.bf16.msra.mxu0 0
  %5227 = vmatpush.bf16.msra.mxu0 0
  %5228 = vmatpush.bf16.msra.mxu0 0
  %5229 = vmatpush.bf16.msra.mxu0 0
  %5230 = vmatpush.bf16.msra.mxu0 0
  %5231 = vmatpush.bf16.msra.mxu0 0
  %5232 = vmatpush.bf16.msra.mxu0 %v4386
  %5233 = vmatmul.bf16.gmra.mxu0 %v5158
  %v5234 = vpop.f32.mrf.mxu0
  %v5235 = vadd.f32 0.0, %v5234
  %v5236 = vpop.f32.mrf.mxu0
  %5237 = vdwg.mxu0
  %5238 = vmatpush.bf16.msra.mxu0 0
  %5239 = vmatpush.bf16.msra.mxu0 0
  %5240 = vmatpush.bf16.msra.mxu0 0
  %5241 = vmatpush.bf16.msra.mxu0 0
  %5242 = vmatpush.bf16.msra.mxu0 0
  %5243 = vmatpush.bf16.msra.mxu0 0
  %5244 = vmatpush.bf16.msra.mxu0 0
  %5245 = vmatpush.bf16.msra.mxu0 %v4389
  %5246 = vmatmul.bf16.gmra.mxu0 %v5158
  %v5247 = vpop.f32.mrf.mxu0
  %v5248 = vadd.f32 0.0, %v5247
  %v5249 = vpop.f32.mrf.mxu0
  %5250 = vdwg.mxu0
  %5251 = vmatpush.bf16.msra.mxu0 0
  %5252 = vmatpush.bf16.msra.mxu0 0
  %5253 = vmatpush.bf16.msra.mxu0 0
  %5254 = vmatpush.bf16.msra.mxu0 0
  %5255 = vmatpush.bf16.msra.mxu0 0
  %5256 = vmatpush.bf16.msra.mxu0 0
  %5257 = vmatpush.bf16.msra.mxu0 0
  %5258 = vmatpush.bf16.msra.mxu0 %v4392
  %5259 = vmatmul.bf16.gmra.mxu0 %v5158
  %v5260 = vpop.f32.mrf.mxu0
  %v5261 = vadd.f32 0.0, %v5260
  %v5262 = vpop.f32.mrf.mxu0
  %5263 = vdwg.mxu0
  %5264 = vmatpush.bf16.msra.mxu0 0
  %5265 = vmatpush.bf16.msra.mxu0 0
  %5266 = vmatpush.bf16.msra.mxu0 0
  %5267 = vmatpush.bf16.msra.mxu0 0
  %5268 = vmatpush.bf16.msra.mxu0 0
  %5269 = vmatpush.bf16.msra.mxu0 0
  %5270 = vmatpush.bf16.msra.mxu0 0
  %5271 = vmatpush.bf16.msra.mxu0 %v4395
  %5272 = vmatmul.bf16.gmra.mxu0 %v5158
  %v5273 = vpop.f32.mrf.mxu0
  %v5274 = vadd.f32 0.0, %v5273
  %v5275 = vpop.f32.mrf.mxu0
  %5276 = vdwg.mxu0
  %5277 = vmatpush.bf16.msra.mxu0 0
  %5278 = vmatpush.bf16.msra.mxu0 0
  %5279 = vmatpush.bf16.msra.mxu0 0
  %5280 = vmatpush.bf16.msra.mxu0 0
  %5281 = vmatpush.bf16.msra.mxu0 0
  %5282 = vmatpush.bf16.msra.mxu0 0
  %5283 = vmatpush.bf16.msra.mxu0 0
  %5284 = vmatpush.bf16.msra.mxu0 %v4398
  %5285 = vmatmul.bf16.gmra.mxu0 %v5158
  %v5286 = vpop.f32.mrf.mxu0
  %v5287 = vadd.f32 0.0, %v5286
  %v5288 = vpop.f32.mrf.mxu0
  %5289 = vdwg.mxu0
  %5290 = vmatpush.bf16.msra.mxu0 0
  %5291 = vmatpush.bf16.msra.mxu0 0
  %5292 = vmatpush.bf16.msra.mxu0 0
  %5293 = vmatpush.bf16.msra.mxu0 0
  %5294 = vmatpush.bf16.msra.mxu0 0
  %5295 = vmatpush.bf16.msra.mxu0 0
  %5296 = vmatpush.bf16.msra.mxu0 0
  %5297 = vmatpush.bf16.msra.mxu0 %v4401
  %5298 = vmatmul.bf16.gmra.mxu0 %v5158
  %v5299 = vpop.f32.mrf.mxu0
  %v5300 = vadd.f32 0.0, %v5299
  %v5301 = vpop.f32.mrf.mxu0
  %5302 = vdwg.mxu0
  %5303 = vmatpush.bf16.msra.mxu0 0
  %5304 = vmatpush.bf16.msra.mxu0 0
  %5305 = vmatpush.bf16.msra.mxu0 0
  %5306 = vmatpush.bf16.msra.mxu0 0
  %5307 = vmatpush.bf16.msra.mxu0 0
  %5308 = vmatpush.bf16.msra.mxu0 0
  %5309 = vmatpush.bf16.msra.mxu0 0
  %5310 = vmatpush.bf16.msra.mxu0 %v4404
  %5311 = vmatmul.bf16.gmra.mxu0 %v5158
  %v5312 = vpop.f32.mrf.mxu0
  %v5313 = vadd.f32 0.0, %v5312
  %v5314 = vpop.f32.mrf.mxu0
  %5315 = vdwg.mxu0
  %5316 = vmatpush.bf16.msra.mxu0 0
  %5317 = vmatpush.bf16.msra.mxu0 0
  %5318 = vmatpush.bf16.msra.mxu0 0
  %5319 = vmatpush.bf16.msra.mxu0 0
  %5320 = vmatpush.bf16.msra.mxu0 0
  %5321 = vmatpush.bf16.msra.mxu0 0
  %5322 = vmatpush.bf16.msra.mxu0 0
  %5323 = vmatpush.bf16.msra.mxu0 %v4407
  %5324 = vmatmul.bf16.gmra.mxu0 %v5158
  %v5325 = vpop.f32.mrf.mxu0
  %v5326 = vadd.f32 0.0, %v5325
  %v5327 = vpop.f32.mrf.mxu0
  %5328 = vdwg.mxu0
  %5329 = vmatpush.bf16.msra.mxu0 0
  %5330 = vmatpush.bf16.msra.mxu0 0
  %5331 = vmatpush.bf16.msra.mxu0 0
  %5332 = vmatpush.bf16.msra.mxu0 0
  %5333 = vmatpush.bf16.msra.mxu0 0
  %5334 = vmatpush.bf16.msra.mxu0 0
  %5335 = vmatpush.bf16.msra.mxu0 0
  %5336 = vmatpush.bf16.msra.mxu0 %v4410
  %5337 = vmatmul.bf16.gmra.mxu0 %v5158
  %v5338 = vpop.f32.mrf.mxu0
  %v5339 = vadd.f32 0.0, %v5338
  %v5340 = vpop.f32.mrf.mxu0
  %5341 = vdwg.mxu0
  %5342 = vmatpush.bf16.msra.mxu0 0
  %5343 = vmatpush.bf16.msra.mxu0 0
  %5344 = vmatpush.bf16.msra.mxu0 0
  %5345 = vmatpush.bf16.msra.mxu0 0
  %5346 = vmatpush.bf16.msra.mxu0 0
  %5347 = vmatpush.bf16.msra.mxu0 0
  %5348 = vmatpush.bf16.msra.mxu0 0
  %5349 = vmatpush.bf16.msra.mxu0 %v4413
  %5350 = vmatmul.bf16.gmra.mxu0 %v5158
  %v5351 = vpop.f32.mrf.mxu0
  %v5352 = vadd.f32 0.0, %v5351
  %v5353 = vpop.f32.mrf.mxu0
  %5354 = vdwg.mxu0
  %5355 = vmatpush.bf16.msra.mxu0 0
  %5356 = vmatpush.bf16.msra.mxu0 0
  %5357 = vmatpush.bf16.msra.mxu0 0
  %5358 = vmatpush.bf16.msra.mxu0 0
  %5359 = vmatpush.bf16.msra.mxu0 0
  %5360 = vmatpush.bf16.msra.mxu0 0
  %5361 = vmatpush.bf16.msra.mxu0 0
  %5362 = vmatpush.bf16.msra.mxu0 %v4416
  %5363 = vmatmul.bf16.gmra.mxu0 %v5158
  %v5364 = vpop.f32.mrf.mxu0
  %v5365 = vadd.f32 0.0, %v5364
  %v5366 = vpop.f32.mrf.mxu0
  %5367 = vdwg.mxu0
  %v5368 = vadd.f32 %v4957, %v5170
  %v5369 = vadd.f32 %v4970, %v5183
  %v5370 = vadd.f32 %v4983, %v5196
  %v5371 = vadd.f32 %v4996, %v5209
  %v5372 = vadd.f32 %v5009, %v5222
  %v5373 = vadd.f32 %v5022, %v5235
  %v5374 = vadd.f32 %v5035, %v5248
  %v5375 = vadd.f32 %v5048, %v5261
  %v5376 = vadd.f32 %v5061, %v5274
  %v5377 = vadd.f32 %v5074, %v5287
  %v5378 = vadd.f32 %v5087, %v5300
  %v5379 = vadd.f32 %v5100, %v5313
  %v5380 = vadd.f32 %v5113, %v5326
  %v5381 = vadd.f32 %v5126, %v5339
  %v5382 = vadd.f32 %v5139, %v5352
  %v5383 = vadd.f32 %v5152, %v5365
  %5384 = vrot.lane.b32.xlu0 %v311, 95
  %v5385 = vpop.permute.xlu0 %5384
  %5386 = vrot.lane.b32.xlu0 %v312, 95
  %v5387 = vpop.permute.xlu0 %5386
  %5388 = vrot.lane.b32.xlu0 %v313, 95
  %v5389 = vpop.permute.xlu0 %5388
  %5390 = vrot.lane.b32.xlu0 %v314, 95
  %v5391 = vpop.permute.xlu0 %5390
  %5392 = vrot.lane.b32.xlu0 %v315, 95
  %v5393 = vpop.permute.xlu0 %5392
  %5394 = vrot.lane.b32.xlu0 %v316, 95
  %v5395 = vpop.permute.xlu0 %5394
  %5396 = vrot.lane.b32.xlu0 %v317, 95
  %v5397 = vpop.permute.xlu0 %5396
  %5398 = vrot.lane.b32.xlu0 %v318, 95
  %v5399 = vpop.permute.xlu0 %5398
  %5400 = vrot.lane.b32.xlu0 %v319, 95
  %v5401 = vpop.permute.xlu0 %5400
  %5402 = vrot.lane.b32.xlu0 %v320, 95
  %v5403 = vpop.permute.xlu0 %5402
  %5404 = vrot.lane.b32.xlu0 %v321, 95
  %v5405 = vpop.permute.xlu0 %5404
  %5406 = vrot.lane.b32.xlu0 %v322, 95
  %v5407 = vpop.permute.xlu0 %5406
  %5408 = vrot.lane.b32.xlu0 %v323, 95
  %v5409 = vpop.permute.xlu0 %5408
  %5410 = vrot.lane.b32.xlu0 %v324, 95
  %v5411 = vpop.permute.xlu0 %5410
  %5412 = vrot.lane.b32.xlu0 %v325, 95
  %v5413 = vpop.permute.xlu0 %5412
  %5414 = vrot.lane.b32.xlu0 %v286, 95
  %v5415 = vpop.permute.xlu0 %5414
  %vm5416 = vcmask 777216
  %v5417 = vsel %vm5416, %v5385, %v5387
  %v5418 = vsel %vm5416, %v5387, %v5389
  %v5419 = vsel %vm5416, %v5389, %v5391
  %v5420 = vsel %vm5416, %v5391, %v5393
  %v5421 = vsel %vm5416, %v5393, %v5395
  %v5422 = vsel %vm5416, %v5395, %v5397
  %v5423 = vsel %vm5416, %v5397, %v5399
  %v5424 = vsel %vm5416, %v5399, %v5401
  %v5425 = vsel %vm5416, %v5401, %v5403
  %v5426 = vsel %vm5416, %v5403, %v5405
  %v5427 = vsel %vm5416, %v5405, %v5407
  %v5428 = vsel %vm5416, %v5407, %v5409
  %v5429 = vsel %vm5416, %v5409, %v5411
  %v5430 = vsel %vm5416, %v5411, %v5413
  %v5431 = vsel %vm5416, %v5413, %v5415
  %vm5447 = vcmask 777216
  %v5450 = vsel %vm5447, %v5415, %v5385
  %v5452 = vunpack.c.l.bf16 %v5417
  %v5453 = vunpack.c.l.bf16 %v5418
  %v5454 = vunpack.c.l.bf16 %v5419
  %v5455 = vunpack.c.l.bf16 %v5420
  %v5456 = vunpack.c.l.bf16 %v5421
  %v5457 = vunpack.c.l.bf16 %v5422
  %v5458 = vunpack.c.l.bf16 %v5423
  %v5459 = vunpack.c.l.bf16 %v5424
  %v5460 = vunpack.c.l.bf16 %v5425
  %v5461 = vunpack.c.l.bf16 %v5426
  %v5462 = vunpack.c.l.bf16 %v5427
  %v5463 = vunpack.c.l.bf16 %v5428
  %v5464 = vunpack.c.l.bf16 %v5429
  %v5465 = vunpack.c.l.bf16 %v5430
  %v5466 = vunpack.c.l.bf16 %v5431
  %v5467 = vunpack.c.l.bf16 %v5450
  %v5468 = vmul.f32 %v5452, %v3884
  %v5469 = vmul.f32 %v5453, %v3885
  %v5470 = vmul.f32 %v5454, %v3886
  %v5471 = vmul.f32 %v5455, %v3887
  %v5472 = vmul.f32 %v5456, %v3888
  %v5473 = vmul.f32 %v5457, %v3889
  %v5474 = vmul.f32 %v5458, %v3890
  %v5475 = vmul.f32 %v5459, %v3891
  %v5476 = vmul.f32 %v5460, %v3892
  %v5477 = vmul.f32 %v5461, %v3893
  %v5478 = vmul.f32 %v5462, %v3894
  %v5479 = vmul.f32 %v5463, %v3895
  %v5480 = vmul.f32 %v5464, %v3896
  %v5481 = vmul.f32 %v5465, %v3897
  %v5482 = vmul.f32 %v5466, %v3898
  %v5483 = vmul.f32 %v5467, %v3899
  %v5484 = vpack.c.bf16 %v5469, %v5468
  %v5485 = vpack.c.bf16 %v5471, %v5470
  %v5486 = vpack.c.bf16 %v5473, %v5472
  %v5487 = vpack.c.bf16 %v5475, %v5474
  %v5488 = vpack.c.bf16 %v5477, %v5476
  %v5489 = vpack.c.bf16 %v5479, %v5478
  %v5490 = vpack.c.bf16 %v5481, %v5480
  %v5491 = vpack.c.bf16 %v5483, %v5482
  %v5492 = vunpack.c.l.bf16 %v5484
  %v5493 = vunpack.c.h.bf16 %v5484
  %v5494 = vunpack.c.l.bf16 %v5485
  %v5495 = vunpack.c.h.bf16 %v5485
  %v5496 = vunpack.c.l.bf16 %v5486
  %v5497 = vunpack.c.h.bf16 %v5486
  %v5498 = vunpack.c.l.bf16 %v5487
  %v5499 = vunpack.c.h.bf16 %v5487
  %v5500 = vunpack.c.l.bf16 %v5488
  %v5501 = vunpack.c.h.bf16 %v5488
  %v5502 = vunpack.c.l.bf16 %v5489
  %v5503 = vunpack.c.h.bf16 %v5489
  %v5504 = vunpack.c.l.bf16 %v5490
  %v5505 = vunpack.c.h.bf16 %v5490
  %v5506 = vunpack.c.l.bf16 %v5491
  %v5507 = vunpack.c.h.bf16 %v5491
  %v5508 = vmul.f32 %v5492, %v2129
  %v5509 = vmul.f32 %v5493, %v2130
  %v5510 = vmul.f32 %v5494, %v2131
  %v5511 = vmul.f32 %v5495, %v2132
  %v5512 = vmul.f32 %v5496, %v2133
  %v5513 = vmul.f32 %v5497, %v2134
  %v5514 = vmul.f32 %v5498, %v2135
  %v5515 = vmul.f32 %v5499, %v2136
  %v5516 = vmul.f32 %v5500, %v2137
  %v5517 = vmul.f32 %v5501, %v2138
  %v5518 = vmul.f32 %v5502, %v2139
  %v5519 = vmul.f32 %v5503, %v2140
  %v5520 = vmul.f32 %v5504, %v2141
  %v5521 = vmul.f32 %v5505, %v2142
  %v5522 = vmul.f32 %v5506, %v2143
  %v5523 = vmul.f32 %v5507, %v2144
  %v5524 = vpack.c.bf16 %v5508, %v5508
  %v5525 = vpack.c.bf16 %v5509, %v5509
  %v5526 = vpack.c.bf16 %v5510, %v5510
  %v5527 = vpack.c.bf16 %v5511, %v5511
  %v5528 = vpack.c.bf16 %v5512, %v5512
  %v5529 = vpack.c.bf16 %v5513, %v5513
  %v5530 = vpack.c.bf16 %v5514, %v5514
  %v5531 = vpack.c.bf16 %v5515, %v5515
  %v5532 = vpack.c.bf16 %v5516, %v5516
  %v5533 = vpack.c.bf16 %v5517, %v5517
  %v5534 = vpack.c.bf16 %v5518, %v5518
  %v5535 = vpack.c.bf16 %v5519, %v5519
  %v5536 = vpack.c.bf16 %v5520, %v5520
  %v5537 = vpack.c.bf16 %v5521, %v5521
  %v5538 = vpack.c.bf16 %v5522, %v5522
  %v5539 = vpack.c.bf16 %v5523, %v5523
  %s5540 = scalar_lea.vmem %s2, 30
  %v5541 = vld [vmem:[%s5540] sm:$0x3]
  %v5543 = vsel %vm711, %v5541, 0
  %v5546 = vsel %vm715, %v5524, 0
  %v5549 = vsel %vm715, %v5525, 0
  %v5552 = vsel %vm715, %v5526, 0
  %v5555 = vsel %vm715, %v5527, 0
  %v5558 = vsel %vm715, %v5528, 0
  %v5561 = vsel %vm715, %v5529, 0
  %v5564 = vsel %vm715, %v5530, 0
  %v5567 = vsel %vm715, %v5531, 0
  %v5570 = vsel %vm715, %v5532, 0
  %v5573 = vsel %vm715, %v5533, 0
  %v5576 = vsel %vm715, %v5534, 0
  %v5579 = vsel %vm715, %v5535, 0
  %v5582 = vsel %vm715, %v5536, 0
  %v5585 = vsel %vm715, %v5537, 0
  %v5588 = vsel %vm715, %v5538, 0
  %v5591 = vsel %vm715, %v5539, 0
  %5593 = vmatpush.bf16.msra.mxu0 0
  %5594 = vmatpush.bf16.msra.mxu0 0
  %5595 = vmatpush.bf16.msra.mxu0 0
  %5596 = vmatpush.bf16.msra.mxu0 0
  %5597 = vmatpush.bf16.msra.mxu0 0
  %5598 = vmatpush.bf16.msra.mxu0 0
  %5599 = vmatpush.bf16.msra.mxu0 0
  %5600 = vmatpush.bf16.msra.mxu0 %v5546
  %5601 = vmatmul.bf16.gmra.mxu0 %v5543
  %v5602 = vpop.f32.mrf.mxu0
  %v5603 = vadd.f32 0.0, %v5602
  %v5604 = vpop.f32.mrf.mxu0
  %5605 = vdwg.mxu0
  %5606 = vmatpush.bf16.msra.mxu0 0
  %5607 = vmatpush.bf16.msra.mxu0 0
  %5608 = vmatpush.bf16.msra.mxu0 0
  %5609 = vmatpush.bf16.msra.mxu0 0
  %5610 = vmatpush.bf16.msra.mxu0 0
  %5611 = vmatpush.bf16.msra.mxu0 0
  %5612 = vmatpush.bf16.msra.mxu0 0
  %5613 = vmatpush.bf16.msra.mxu0 %v5549
  %5614 = vmatmul.bf16.gmra.mxu0 %v5543
  %v5615 = vpop.f32.mrf.mxu0
  %v5616 = vadd.f32 0.0, %v5615
  %v5617 = vpop.f32.mrf.mxu0
  %5618 = vdwg.mxu0
  %5619 = vmatpush.bf16.msra.mxu0 0
  %5620 = vmatpush.bf16.msra.mxu0 0
  %5621 = vmatpush.bf16.msra.mxu0 0
  %5622 = vmatpush.bf16.msra.mxu0 0
  %5623 = vmatpush.bf16.msra.mxu0 0
  %5624 = vmatpush.bf16.msra.mxu0 0
  %5625 = vmatpush.bf16.msra.mxu0 0
  %5626 = vmatpush.bf16.msra.mxu0 %v5552
  %5627 = vmatmul.bf16.gmra.mxu0 %v5543
  %v5628 = vpop.f32.mrf.mxu0
  %v5629 = vadd.f32 0.0, %v5628
  %v5630 = vpop.f32.mrf.mxu0
  %5631 = vdwg.mxu0
  %5632 = vmatpush.bf16.msra.mxu0 0
  %5633 = vmatpush.bf16.msra.mxu0 0
  %5634 = vmatpush.bf16.msra.mxu0 0
  %5635 = vmatpush.bf16.msra.mxu0 0
  %5636 = vmatpush.bf16.msra.mxu0 0
  %5637 = vmatpush.bf16.msra.mxu0 0
  %5638 = vmatpush.bf16.msra.mxu0 0
  %5639 = vmatpush.bf16.msra.mxu0 %v5555
  %5640 = vmatmul.bf16.gmra.mxu0 %v5543
  %v5641 = vpop.f32.mrf.mxu0
  %v5642 = vadd.f32 0.0, %v5641
  %v5643 = vpop.f32.mrf.mxu0
  %5644 = vdwg.mxu0
  %5645 = vmatpush.bf16.msra.mxu0 0
  %5646 = vmatpush.bf16.msra.mxu0 0
  %5647 = vmatpush.bf16.msra.mxu0 0
  %5648 = vmatpush.bf16.msra.mxu0 0
  %5649 = vmatpush.bf16.msra.mxu0 0
  %5650 = vmatpush.bf16.msra.mxu0 0
  %5651 = vmatpush.bf16.msra.mxu0 0
  %5652 = vmatpush.bf16.msra.mxu0 %v5558
  %5653 = vmatmul.bf16.gmra.mxu0 %v5543
  %v5654 = vpop.f32.mrf.mxu0
  %v5655 = vadd.f32 0.0, %v5654
  %v5656 = vpop.f32.mrf.mxu0
  %5657 = vdwg.mxu0
  %5658 = vmatpush.bf16.msra.mxu0 0
  %5659 = vmatpush.bf16.msra.mxu0 0
  %5660 = vmatpush.bf16.msra.mxu0 0
  %5661 = vmatpush.bf16.msra.mxu0 0
  %5662 = vmatpush.bf16.msra.mxu0 0
  %5663 = vmatpush.bf16.msra.mxu0 0
  %5664 = vmatpush.bf16.msra.mxu0 0
  %5665 = vmatpush.bf16.msra.mxu0 %v5561
  %5666 = vmatmul.bf16.gmra.mxu0 %v5543
  %v5667 = vpop.f32.mrf.mxu0
  %v5668 = vadd.f32 0.0, %v5667
  %v5669 = vpop.f32.mrf.mxu0
  %5670 = vdwg.mxu0
  %5671 = vmatpush.bf16.msra.mxu0 0
  %5672 = vmatpush.bf16.msra.mxu0 0
  %5673 = vmatpush.bf16.msra.mxu0 0
  %5674 = vmatpush.bf16.msra.mxu0 0
  %5675 = vmatpush.bf16.msra.mxu0 0
  %5676 = vmatpush.bf16.msra.mxu0 0
  %5677 = vmatpush.bf16.msra.mxu0 0
  %5678 = vmatpush.bf16.msra.mxu0 %v5564
  %5679 = vmatmul.bf16.gmra.mxu0 %v5543
  %v5680 = vpop.f32.mrf.mxu0
  %v5681 = vadd.f32 0.0, %v5680
  %v5682 = vpop.f32.mrf.mxu0
  %5683 = vdwg.mxu0
  %5684 = vmatpush.bf16.msra.mxu0 0
  %5685 = vmatpush.bf16.msra.mxu0 0
  %5686 = vmatpush.bf16.msra.mxu0 0
  %5687 = vmatpush.bf16.msra.mxu0 0
  %5688 = vmatpush.bf16.msra.mxu0 0
  %5689 = vmatpush.bf16.msra.mxu0 0
  %5690 = vmatpush.bf16.msra.mxu0 0
  %5691 = vmatpush.bf16.msra.mxu0 %v5567
  %5692 = vmatmul.bf16.gmra.mxu0 %v5543
  %v5693 = vpop.f32.mrf.mxu0
  %v5694 = vadd.f32 0.0, %v5693
  %v5695 = vpop.f32.mrf.mxu0
  %5696 = vdwg.mxu0
  %5697 = vmatpush.bf16.msra.mxu0 0
  %5698 = vmatpush.bf16.msra.mxu0 0
  %5699 = vmatpush.bf16.msra.mxu0 0
  %5700 = vmatpush.bf16.msra.mxu0 0
  %5701 = vmatpush.bf16.msra.mxu0 0
  %5702 = vmatpush.bf16.msra.mxu0 0
  %5703 = vmatpush.bf16.msra.mxu0 0
  %5704 = vmatpush.bf16.msra.mxu0 %v5570
  %5705 = vmatmul.bf16.gmra.mxu0 %v5543
  %v5706 = vpop.f32.mrf.mxu0
  %v5707 = vadd.f32 0.0, %v5706
  %v5708 = vpop.f32.mrf.mxu0
  %5709 = vdwg.mxu0
  %5710 = vmatpush.bf16.msra.mxu0 0
  %5711 = vmatpush.bf16.msra.mxu0 0
  %5712 = vmatpush.bf16.msra.mxu0 0
  %5713 = vmatpush.bf16.msra.mxu0 0
  %5714 = vmatpush.bf16.msra.mxu0 0
  %5715 = vmatpush.bf16.msra.mxu0 0
  %5716 = vmatpush.bf16.msra.mxu0 0
  %5717 = vmatpush.bf16.msra.mxu0 %v5573
  %5718 = vmatmul.bf16.gmra.mxu0 %v5543
  %v5719 = vpop.f32.mrf.mxu0
  %v5720 = vadd.f32 0.0, %v5719
  %v5721 = vpop.f32.mrf.mxu0
  %5722 = vdwg.mxu0
  %5723 = vmatpush.bf16.msra.mxu0 0
  %5724 = vmatpush.bf16.msra.mxu0 0
  %5725 = vmatpush.bf16.msra.mxu0 0
  %5726 = vmatpush.bf16.msra.mxu0 0
  %5727 = vmatpush.bf16.msra.mxu0 0
  %5728 = vmatpush.bf16.msra.mxu0 0
  %5729 = vmatpush.bf16.msra.mxu0 0
  %5730 = vmatpush.bf16.msra.mxu0 %v5576
  %5731 = vmatmul.bf16.gmra.mxu0 %v5543
  %v5732 = vpop.f32.mrf.mxu0
  %v5733 = vadd.f32 0.0, %v5732
  %v5734 = vpop.f32.mrf.mxu0
  %5735 = vdwg.mxu0
  %5736 = vmatpush.bf16.msra.mxu0 0
  %5737 = vmatpush.bf16.msra.mxu0 0
  %5738 = vmatpush.bf16.msra.mxu0 0
  %5739 = vmatpush.bf16.msra.mxu0 0
  %5740 = vmatpush.bf16.msra.mxu0 0
  %5741 = vmatpush.bf16.msra.mxu0 0
  %5742 = vmatpush.bf16.msra.mxu0 0
  %5743 = vmatpush.bf16.msra.mxu0 %v5579
  %5744 = vmatmul.bf16.gmra.mxu0 %v5543
  %v5745 = vpop.f32.mrf.mxu0
  %v5746 = vadd.f32 0.0, %v5745
  %v5747 = vpop.f32.mrf.mxu0
  %5748 = vdwg.mxu0
  %5749 = vmatpush.bf16.msra.mxu0 0
  %5750 = vmatpush.bf16.msra.mxu0 0
  %5751 = vmatpush.bf16.msra.mxu0 0
  %5752 = vmatpush.bf16.msra.mxu0 0
  %5753 = vmatpush.bf16.msra.mxu0 0
  %5754 = vmatpush.bf16.msra.mxu0 0
  %5755 = vmatpush.bf16.msra.mxu0 0
  %5756 = vmatpush.bf16.msra.mxu0 %v5582
  %5757 = vmatmul.bf16.gmra.mxu0 %v5543
  %v5758 = vpop.f32.mrf.mxu0
  %v5759 = vadd.f32 0.0, %v5758
  %v5760 = vpop.f32.mrf.mxu0
  %5761 = vdwg.mxu0
  %5762 = vmatpush.bf16.msra.mxu0 0
  %5763 = vmatpush.bf16.msra.mxu0 0
  %5764 = vmatpush.bf16.msra.mxu0 0
  %5765 = vmatpush.bf16.msra.mxu0 0
  %5766 = vmatpush.bf16.msra.mxu0 0
  %5767 = vmatpush.bf16.msra.mxu0 0
  %5768 = vmatpush.bf16.msra.mxu0 0
  %5769 = vmatpush.bf16.msra.mxu0 %v5585
  %5770 = vmatmul.bf16.gmra.mxu0 %v5543
  %v5771 = vpop.f32.mrf.mxu0
  %v5772 = vadd.f32 0.0, %v5771
  %v5773 = vpop.f32.mrf.mxu0
  %5774 = vdwg.mxu0
  %5775 = vmatpush.bf16.msra.mxu0 0
  %5776 = vmatpush.bf16.msra.mxu0 0
  %5777 = vmatpush.bf16.msra.mxu0 0
  %5778 = vmatpush.bf16.msra.mxu0 0
  %5779 = vmatpush.bf16.msra.mxu0 0
  %5780 = vmatpush.bf16.msra.mxu0 0
  %5781 = vmatpush.bf16.msra.mxu0 0
  %5782 = vmatpush.bf16.msra.mxu0 %v5588
  %5783 = vmatmul.bf16.gmra.mxu0 %v5543
  %v5784 = vpop.f32.mrf.mxu0
  %v5785 = vadd.f32 0.0, %v5784
  %v5786 = vpop.f32.mrf.mxu0
  %5787 = vdwg.mxu0
  %5788 = vmatpush.bf16.msra.mxu0 0
  %5789 = vmatpush.bf16.msra.mxu0 0
  %5790 = vmatpush.bf16.msra.mxu0 0
  %5791 = vmatpush.bf16.msra.mxu0 0
  %5792 = vmatpush.bf16.msra.mxu0 0
  %5793 = vmatpush.bf16.msra.mxu0 0
  %5794 = vmatpush.bf16.msra.mxu0 0
  %5795 = vmatpush.bf16.msra.mxu0 %v5591
  %5796 = vmatmul.bf16.gmra.mxu0 %v5543
  %v5797 = vpop.f32.mrf.mxu0
  %v5798 = vadd.f32 0.0, %v5797
  %v5799 = vpop.f32.mrf.mxu0
  %5800 = vdwg.mxu0
  %v5801 = vadd.f32 %v5368, %v5603
  %v5802 = vadd.f32 %v5369, %v5616
  %v5803 = vadd.f32 %v5370, %v5629
  %v5804 = vadd.f32 %v5371, %v5642
  %v5805 = vadd.f32 %v5372, %v5655
  %v5806 = vadd.f32 %v5373, %v5668
  %v5807 = vadd.f32 %v5374, %v5681
  %v5808 = vadd.f32 %v5375, %v5694
  %v5809 = vadd.f32 %v5376, %v5707
  %v5810 = vadd.f32 %v5377, %v5720
  %v5811 = vadd.f32 %v5378, %v5733
  %v5812 = vadd.f32 %v5379, %v5746
  %v5813 = vadd.f32 %v5380, %v5759
  %v5814 = vadd.f32 %v5381, %v5772
  %v5815 = vadd.f32 %v5382, %v5785
  %v5816 = vadd.f32 %v5383, %v5798
  %v5817 = vld [vmem:[%s5] sm:$0x7]
  %5819 = vset.pattern.permute.xlu0 0
  %5820 = vperm.xlu0 %5819, %v5817
  %v5821 = vpop.permute.xlu0 %5820
  %v5823 = vadd.f32 %v5801, %v5821
  %v5824 = vadd.f32 %v5802, %v5821
  %v5825 = vadd.f32 %v5803, %v5821
  %v5826 = vadd.f32 %v5804, %v5821
  %v5827 = vadd.f32 %v5805, %v5821
  %v5828 = vadd.f32 %v5806, %v5821
  %v5829 = vadd.f32 %v5807, %v5821
  %v5830 = vadd.f32 %v5808, %v5821
  %v5831 = vadd.f32 %v5809, %v5821
  %v5832 = vadd.f32 %v5810, %v5821
  %v5833 = vadd.f32 %v5811, %v5821
  %v5834 = vadd.f32 %v5812, %v5821
  %v5835 = vadd.f32 %v5813, %v5821
  %v5836 = vadd.f32 %v5814, %v5821
  %v5837 = vadd.f32 %v5815, %v5821
  %v5838 = vadd.f32 %v5816, %v5821
  %v5839 = vtanh.pop %v5823
  %v5840 = vtanh.pop %v5824
  %v5841 = vtanh.pop %v5825
  %v5842 = vtanh.pop %v5826
  %v5843 = vtanh.pop %v5827
  %v5844 = vtanh.pop %v5828
  %v5845 = vtanh.pop %v5829
  %v5846 = vtanh.pop %v5830
  %v5847 = vtanh.pop %v5831
  %v5848 = vtanh.pop %v5832
  %v5849 = vtanh.pop %v5833
  %v5850 = vtanh.pop %v5834
  %v5851 = vtanh.pop %v5835
  %v5852 = vtanh.pop %v5836
  %v5853 = vtanh.pop %v5837
  %v5854 = vtanh.pop %v5838
  %v5871 = vrot.slane %v5840, 4
  %v5872 = vrot.slane %v5842, 4
  %v5873 = vrot.slane %v5844, 4
  %v5874 = vrot.slane %v5846, 4
  %v5875 = vrot.slane %v5848, 4
  %v5876 = vrot.slane %v5850, 4
  %v5877 = vrot.slane %v5852, 4
  %v5878 = vrot.slane %v5854, 4
  %v5879 = vsel %vm715, %v5839, %v5871
  %v5880 = vsel %vm715, %v5841, %v5872
  %v5881 = vsel %vm715, %v5843, %v5873
  %v5882 = vsel %vm715, %v5845, %v5874
  %v5883 = vsel %vm715, %v5847, %v5875
  %v5884 = vsel %vm715, %v5849, %v5876
  %v5885 = vsel %vm715, %v5851, %v5877
  %v5886 = vsel %vm715, %v5853, %v5878
  %s5895 = scalar_lea.vmem %s6, 192
  %5896 = vst [vmem:[%s5895] sm:$0x77] %v5879
  %5897 = vst [vmem:[%s5895 + $0x8] sm:$0x77] %v5880
  %5898 = vst [vmem:[%s5895 + $0x10] sm:$0x77] %v5881
  %5899 = vst [vmem:[%s5895 + $0x18] sm:$0x77] %v5882
  %5900 = vst [vmem:[%s5895 + $0x20] sm:$0x77] %v5883
  %5901 = vst [vmem:[%s5895 + $0x28] sm:$0x77] %v5884
  %5902 = vst [vmem:[%s5895 + $0x30] sm:$0x77] %v5885
  %5903 = vst [vmem:[%s5895 + $0x38] sm:$0x77] %v5886
  // Predicated region
  $region26: #{generator_forward.9} parent=0 // pred_check
    _
  $region27: #{generator_forward.9} parent=0 // pred_check_branch
    %5905 = sbr.rel (0) target = $region29
  $region28: #{generator_forward.9} parent=0 // pred_region
    _
  $region29: #{generator_forward.9} parent=0 // pred_fallthru
    _
  // Predicated region
  $region30: #{generator_forward.9} parent=0 // pred_check
    _
  $region31: #{generator_forward.9} parent=0 // pred_check_branch
    %5907 = sbr.rel (0) target = $region33
  $region32: #{generator_forward.9} parent=0 // pred_region
    _
  $region33: #{generator_forward.9} parent=0 // pred_fallthru
    _

</llo_original>
